<compile_context>
chip_gen: v5e
topology: v5e:2x2
jax: 0.10.0
libtpu: 0.0.40
codegen_flags: <defaults>
</compile_context>

<pallas_src>
import functools

import jax
import jax.numpy as jnp
from jax import lax
from jax.experimental import pallas as pl
from jax.experimental.pallas import tpu as pltpu


def _conv_t_kernel(x_ref, w_ref, b_ref, o_ref, patch_ref, *,
                   kt, kh, kw, Th, W_out, Cin_p):
    """One (output frame t, H tile hi) per grid step.

    x_ref     (1, T_tot, H_pad, W_pad, Cin_p)  frame stack of batch n (resident)
    w_ref     (K, Cout_p)                      folded weight, K = kt*kh*kw*Cin_p
    b_ref     (1, Cout_p)                      bias (f32)
    o_ref     (1, 1, Th*W_out, Cout_p)         lane-dense output block
    patch_ref (Th*W_out, K)                    im2col VMEM scratch
    """
    t = pl.program_id(1)
    h0 = pl.program_id(2) * Th
    M = Th * W_out

    # im2col: every write is a 128-aligned, Cin_p-wide (multiple of 128),
    # unmasked slab store; loads are full-lane-width window reads from the
    # VMEM-resident frame stack.
    for dt in range(kt):
        for dh in range(kh):
            for dw in range(kw):
                col = ((dt * kh + dh) * kw + dw) * Cin_p
                win = x_ref[0, t + dt,
                            pl.ds(h0 + dh, Th), pl.ds(dw, W_out), :]
                patch_ref[:, col:col + Cin_p] = win.reshape(M, Cin_p)

    # Single folded-K MXU contraction, f32 accumulation, fused bias epilogue.
    acc = jnp.dot(patch_ref[...], w_ref[...],
                  preferred_element_type=jnp.float32)
    acc = acc + b_ref[...]
    o_ref[0, 0] = acc.astype(o_ref.dtype)      # lane-dense (M, Cout_p) store


def _round_up(v, m):
    return ((v + m - 1) // m) * m


def _pick_h_tile(h_out, w_out, target_rows=512):
    """Largest divisor Th of h_out with Th * w_out <= target_rows (>= 1)."""
    th = 1
    for cand in range(1, h_out + 1):
        if h_out % cand == 0 and cand * w_out <= target_rows:
            th = cand
    return th


def causal_conv_transpose3d(x, weight, bias, *, stride=(1, 1, 1),
                            causal_pad='constant', direction='forward',
                            m=None, compute_dtype=None,
                            channel_last_output=False):
    """Forward of CausalConvTranspose(nd=3).

    x: (N, Cin, T, H, W)   weight: (Cin, Cout, kt, kh, kw)   bias: (Cout,)
    Returns (y, m_out); y is NCTHW (or NTHWC if channel_last_output=True).
    """
    N, Cin, T, H, W = x.shape
    Cin_w, Cout, kt, kh, kw = weight.shape
    assert Cin == Cin_w
    st, sh, sw = stride
    assert kt >= st and kh >= sh and kw >= sw
    pt, ph, pw = (kt - 1) // st, (kh - sh) // 2, (kw - sw) // 2

    # ---------------- CausalPad (glue, plain JAX) ----------------
    # TODO(synk): CausalPad source was not provided; `m` is treated as an
    # optional cached temporal prefix and m_out is the `pt` frames at the
    # causal edge (the common streaming convention).
    x_cl = jnp.transpose(x, (0, 2, 3, 4, 1))                    # N,T,H,W,C
    if pt > 0:
        if m is not None:
            pad_block = jnp.transpose(m, (0, 2, 3, 4, 1)).astype(x_cl.dtype)
        elif causal_pad == 'constant':
            pad_block = jnp.zeros((N, pt, H, W, Cin), x_cl.dtype)
        elif causal_pad == 'replicate':
            edge = x_cl[:, :1] if direction == 'forward' else x_cl[:, -1:]
            pad_block = jnp.broadcast_to(edge, (N, pt, H, W, Cin))
        else:
            raise NotImplementedError(causal_pad)
        if direction == 'forward':
            x_cl = jnp.concatenate([pad_block, x_cl], axis=1)
        else:
            x_cl = jnp.concatenate([x_cl, pad_block], axis=1)
    if direction == 'forward':
        m_cl = x_cl[:, x_cl.shape[1] - pt:]
    else:
        m_cl = x_cl[:, :pt]
    m_out = jnp.transpose(m_cl, (0, 4, 1, 2, 3))

    # ------ transposed conv -> zero-dilated, stride-1 conv (glue) ------
    # TODO(synk): stride>1 is handled by zero-insertion; phase decomposition
    # (st*sh*sw sub-convolutions on the undilated input) would additionally
    # save the MACs / input bandwidth spent on the inserted zeros.
    T_cp = x_cl.shape[1]
    if st > 1 or sh > 1 or sw > 1:
        T_d, H_d, W_d = (T_cp - 1) * st + 1, (H - 1) * sh + 1, (W - 1) * sw + 1
        x_dil = jnp.zeros((N, T_d, H_d, W_d, Cin), x_cl.dtype)
        x_dil = x_dil.at[:, ::st, ::sh, ::sw, :].set(x_cl)
    else:
        x_dil, T_d, H_d, W_d = x_cl, T_cp, H, W
    et, eh, ew = kt - 1 - pt * st, kh - 1 - ph, kw - 1 - pw
    assert et >= 0 and eh >= 0 and ew >= 0
    x_pad = jnp.pad(x_dil, ((0, 0), (et, et), (eh, eh), (ew, ew), (0, 0)))
    T_tot, H_pad, W_pad = T_d + 2 * et, H_d + 2 * eh, W_d + 2 * ew
    T_out, H_out, W_out = T_tot - kt + 1, H_pad - kh + 1, W_pad - kw + 1
    HW = H_out * W_out

    # --- lane-dense layouts: pad Cin / Cout to full vreg-lane multiples ---
    # TODO(synk): for tiny Cin this inflates input HBM traffic by ~128/Cin; a
    # (W_pad*Cin)-merged lane layout would avoid it at the cost of strided
    # in-kernel window extraction.  For production Cin (>=128) the pad is a
    # no-op.
    Cin_p = _round_up(Cin, 128)
    Cout_p = _round_up(Cout, 256) if Cout > 128 else _round_up(Cout, 128)
    if Cin_p != Cin:
        x_pad = jnp.pad(x_pad, ((0, 0),) * 4 + ((0, Cin_p - Cin),))

    # folded (spatially flipped, channel-swapped) weight, rows = (dt,dh,dw,ci)
    w_conv = jnp.transpose(jnp.flip(weight, axis=(2, 3, 4)), (2, 3, 4, 0, 1))
    if Cin_p != Cin:
        w_conv = jnp.pad(w_conv, ((0, 0),) * 3 + ((0, Cin_p - Cin), (0, 0)))
    K = kt * kh * kw * Cin_p
    w_flat = w_conv.reshape(K, Cout)
    b_row = bias.reshape(1, Cout).astype(jnp.float32)
    if Cout_p != Cout:
        w_flat = jnp.pad(w_flat, ((0, 0), (0, Cout_p - Cout)))
        b_row = jnp.pad(b_row, ((0, 0), (0, Cout_p - Cout)))

    cdt = compute_dtype if compute_dtype is not None else x_pad.dtype
    x_pad = x_pad.astype(cdt)
    w_flat = w_flat.astype(cdt)
    out_dtype = x.dtype

    # H (== MXU M) tiling: bounds per-step patch / f32 acc.
    Th = _pick_h_tile(H_out, W_out)
    H_tiles = H_out // Th
    M = Th * W_out

    kernel = functools.partial(_conv_t_kernel, kt=kt, kh=kh, kw=kw,
                               Th=Th, W_out=W_out, Cin_p=Cin_p)

    # The whole temporal stack of one batch element stays VMEM-resident: its
    # index_map is constant along (t, hi), so Pallas DMAs it once per n and
    # reuses it for all output frames / H tiles (no kt-fold temporal re-fetch).
    # TODO(synk): for frame stacks too large for VMEM (very large T*H*W*Cin on
    # v7x's 64 MiB), switch to an HBM-resident input (memory_space=pl.ANY)
    # with a manual temporal ring buffer / H-halo DMA.
    in_specs = [
        pl.BlockSpec((1, T_tot, H_pad, W_pad, Cin_p),
                     lambda n, t, hi: (n, 0, 0, 0, 0)),
        pl.BlockSpec((K, Cout_p), lambda n, t, hi: (0, 0)),   # resident weight
        pl.BlockSpec((1, Cout_p), lambda n, t, hi: (0, 0)),   # resident bias
    ]

    itm = jnp.dtype(cdt).itemsize
    o_itm = jnp.dtype(out_dtype).itemsize
    vmem_need = (2 * T_tot * H_pad * W_pad * Cin_p * itm      # input (dbl-buf)
                 + 2 * K * Cout_p * itm                       # weight
                 + M * K * itm                                # patch scratch
                 + 2 * M * Cout_p * o_itm                     # output blocks
                 + M * Cout_p * 4)                            # f32 acc
    vmem_limit = int(min(max(vmem_need * 5 // 4 + (8 << 20), 32 << 20),
                         100 << 20))

    cost = pl.CostEstimate(
        flops=2 * N * T_out * HW * K * Cout_p,
        transcendentals=0,
        bytes_accessed=(int(x_pad.size) * itm + int(w_flat.size) * itm
                        + N * T_out * HW * Cout_p * o_itm))

    out = pl.pallas_call(
        kernel,
        out_shape=jax.ShapeDtypeStruct((N, T_out, HW, Cout_p), out_dtype),
        grid_spec=pltpu.PrefetchScalarGridSpec(
            num_scalar_prefetch=0,
            grid=(N, T_out, H_tiles),
            in_specs=in_specs,
            out_specs=pl.BlockSpec((1, 1, M, Cout_p),
                                   lambda n, t, hi: (n, t, hi, 0)),
            scratch_shapes=[pltpu.VMEM((M, K), cdt)],
        ),
        compiler_params=pltpu.CompilerParams(
            dimension_semantics=("parallel", "arbitrary", "arbitrary"),
            vmem_limit_bytes=vmem_limit),
        cost_estimate=cost,
    )(x_pad, w_flat, b_row)

    out = out[..., :Cout].reshape(N, T_out, H_out, W_out, Cout)
    if channel_last_output:
        # Avoids the extra full-HBM transpose pass when downstream is NTHWC.
        return out, m_out
    return jnp.transpose(out, (0, 4, 1, 2, 3)), m_out


if __name__ == "__main__":
    # Small deterministic example: CausalConvTranspose(nd=3, k=3, stride=1).
    N, Cin, Cout, T, H, W = 2, 4, 8, 8, 16, 16
    kt = kh = kw = 3
    st = sh = sw = 1

    key = jax.random.PRNGKey(0)
    kx, kw_, kb = jax.random.split(key, 3)
    x = jax.random.normal(kx, (N, Cin, T, H, W), dtype=jnp.float32)

    # deterministic parameter init (kaiming-uniform-like bound, as in _ConvNd)
    fan_in = Cout * kt * kh * kw          # transposed conv: fan-in from dim 1
    bound = 1.0 / (fan_in ** 0.5)
    weight = jax.random.uniform(kw_, (Cin, Cout, kt, kh, kw),
                                minval=-bound, maxval=bound, dtype=jnp.float32)
    bias = jax.random.uniform(kb, (Cout,), minval=-bound, maxval=bound,
                              dtype=jnp.float32)

    y, m_out = causal_conv_transpose3d(x, weight, bias, stride=(st, sh, sw),
                                       causal_pad='constant',
                                       direction='forward', m=None)
    y = jax.block_until_ready(y)

    # Reference: causal front pad of pt frames, then conv_transpose3d
    # (== flipped-kernel conv with lhs_dilation=stride and padding k-1-p).
    pt_, ph_, pw_ = (kt - 1) // st, (kh - sh) // 2, (kw - sw) // 2
    x_cp = jnp.pad(x, ((0, 0), (0, 0), (pt_, 0), (0, 0), (0, 0)))
    w_oihw = jnp.transpose(jnp.flip(weight, axis=(2, 3, 4)), (1, 0, 2, 3, 4))
    ref = lax.conv_general_dilated(
        x_cp, w_oihw, window_strides=(1, 1, 1),
        padding=[(kt - 1 - pt_ * st,) * 2, (kh - 1 - ph_,) * 2,
                 (kw - 1 - pw_,) * 2],
        lhs_dilation=(st, sh, sw),
        dimension_numbers=('NCDHW', 'OIDHW', 'NCDHW'),
        precision=lax.Precision.HIGHEST)
    ref = ref + bias[None, :, None, None, None]

    assert y.shape == ref.shape, (y.shape, ref.shape)
    err = float(jnp.max(jnp.abs(y - ref)))
    assert err < 2e-4, f"f32 max abs err {err}"

    # bf16 operands / f32 accumulation (halved HBM/DMA traffic, full-rate MXU
    # on v6e/v7x).
    y16, _ = causal_conv_transpose3d(x, weight, bias, stride=(st, sh, sw),
                                     causal_pad='constant',
                                     direction='forward', m=None,
                                     compute_dtype=jnp.bfloat16)
    y16 = jax.block_until_ready(y16)
    err16 = float(jnp.max(jnp.abs(y16.astype(jnp.float32) - ref)))
    assert err16 < 6e-2, f"bf16 max abs err {err16}"

    print("KERNEL_OK")
</pallas_src>

<mosaic_0001>
module attributes {stable_mosaic.version = 11 : i64} {
  func.func @_conv_t_kernel(%arg0: i32, %arg1: i32, %arg2: i32, %arg3: memref<1x10x18x18x128xf32, #tpu.memory_space<vmem>>, %arg4: memref<3456x128xf32, #tpu.memory_space<vmem>>, %arg5: memref<1x128xf32, #tpu.memory_space<vmem>>, %arg6: memref<1x1x256x128xf32, #tpu.memory_space<vmem>>, %arg7: memref<256x3456xf32, #tpu.memory_space<vmem>>) attributes {dimension_semantics = [#tpu.dimension_semantics<parallel>, #tpu.dimension_semantics<arbitrary>, #tpu.dimension_semantics<arbitrary>], iteration_bounds = array<i64: 2, 8, 1>, scalar_prefetch = 0 : i64, scratch_operands = 1 : i64, tpu.core_type = #tpu.core_type<tc>, window_params = [{transform_indices = @transform_0, window_bounds = array<i64: 1, 10, 18, 18, 128>}, {pipeline_mode = #tpu.pipeline_mode<synchronous>, transform_indices = @transform_1, window_bounds = array<i64: 3456, 128>}, {pipeline_mode = #tpu.pipeline_mode<synchronous>, transform_indices = @transform_2, window_bounds = array<i64: 1, 128>}, {transform_indices = @transform_3, window_bounds = array<i64: 1, 1, 256, 128>}]} {
    %c16_i32 = arith.constant 16 : i32
    %0 = arith.muli %arg2, %c16_i32 : i32
    %c0_i32 = arith.constant 0 : i32
    %1 = arith.addi %arg1, %c0_i32 : i32
    %c0_i32_0 = arith.constant 0 : i32
    %2 = arith.addi %0, %c0_i32_0 : i32
    %c0 = arith.constant 0 : index
    %3 = arith.index_cast %1 : i32 to index
    %4 = arith.index_cast %2 : i32 to index
    %c0_1 = arith.constant 0 : index
    %c0_2 = arith.constant 0 : index
    %5 = vector.load %arg3[%c0, %3, %4, %c0_1, %c0_2] : memref<1x10x18x18x128xf32, #tpu.memory_space<vmem>>, vector<1x1x16x16x128xf32>
    %6 = vector.shape_cast %5 : vector<1x1x16x16x128xf32> to vector<16x16x128xf32>
    %7 = vector.shape_cast %6 : vector<16x16x128xf32> to vector<256x128xf32>
    %c0_3 = arith.constant 0 : index
    %c0_4 = arith.constant 0 : index
    %8 = vector.load %arg7[%c0_3, %c0_4] : memref<256x3456xf32, #tpu.memory_space<vmem>>, vector<256x128xf32>
    tpu.vector_store %arg7[%c0_3, %c0_4], %7 {strides = array<i32>} : memref<256x3456xf32, #tpu.memory_space<vmem>>, vector<256x128xf32>,
    %c0_i32_5 = arith.constant 0 : i32
    %9 = arith.addi %arg1, %c0_i32_5 : i32
    %c0_i32_6 = arith.constant 0 : i32
    %10 = arith.addi %0, %c0_i32_6 : i32
    %c0_7 = arith.constant 0 : index
    %11 = arith.index_cast %9 : i32 to index
    %12 = arith.index_cast %10 : i32 to index
    %c1 = arith.constant 1 : index
    %c0_8 = arith.constant 0 : index
    %13 = vector.load %arg3[%c0_7, %11, %12, %c1, %c0_8] : memref<1x10x18x18x128xf32, #tpu.memory_space<vmem>>, vector<1x1x16x16x128xf32>
    %14 = vector.shape_cast %13 : vector<1x1x16x16x128xf32> to vector<16x16x128xf32>
    %15 = vector.shape_cast %14 : vector<16x16x128xf32> to vector<256x128xf32>
    %c0_9 = arith.constant 0 : index
    %c128 = arith.constant 128 : index
    %16 = vector.load %arg7[%c0_9, %c128] : memref<256x3456xf32, #tpu.memory_space<vmem>>, vector<256x128xf32>
    tpu.vector_store %arg7[%c0_9, %c128], %15 {strides = array<i32>} : memref<256x3456xf32, #tpu.memory_space<vmem>>, vector<256x128xf32>,
    %c0_i32_10 = arith.constant 0 : i32
    %17 = arith.addi %arg1, %c0_i32_10 : i32
    %c0_i32_11 = arith.constant 0 : i32
    %18 = arith.addi %0, %c0_i32_11 : i32
    %c0_12 = arith.constant 0 : index
    %19 = arith.index_cast %17 : i32 to index
    %20 = arith.index_cast %18 : i32 to index
    %c2 = arith.constant 2 : index
    %c0_13 = arith.constant 0 : index
    %21 = vector.load %arg3[%c0_12, %19, %20, %c2, %c0_13] : memref<1x10x18x18x128xf32, #tpu.memory_space<vmem>>, vector<1x1x16x16x128xf32>
    %22 = vector.shape_cast %21 : vector<1x1x16x16x128xf32> to vector<16x16x128xf32>
    %23 = vector.shape_cast %22 : vector<16x16x128xf32> to vector<256x128xf32>
    %c0_14 = arith.constant 0 : index
    %c256 = arith.constant 256 : index
    %24 = vector.load %arg7[%c0_14, %c256] : memref<256x3456xf32, #tpu.memory_space<vmem>>, vector<256x128xf32>
    tpu.vector_store %arg7[%c0_14, %c256], %23 {strides = array<i32>} : memref<256x3456xf32, #tpu.memory_space<vmem>>, vector<256x128xf32>,
    %c0_i32_15 = arith.constant 0 : i32
    %25 = arith.addi %arg1, %c0_i32_15 : i32
    %c1_i32 = arith.constant 1 : i32
    %26 = arith.addi %0, %c1_i32 : i32
    %c0_16 = arith.constant 0 : index
    %27 = arith.index_cast %25 : i32 to index
    %28 = arith.index_cast %26 : i32 to index
    %c0_17 = arith.constant 0 : index
    %c0_18 = arith.constant 0 : index
    %29 = vector.load %arg3[%c0_16, %27, %28, %c0_17, %c0_18] : memref<1x10x18x18x128xf32, #tpu.memory_space<vmem>>, vector<1x1x16x16x128xf32>
    %30 = vector.shape_cast %29 : vector<1x1x16x16x128xf32> to vector<16x16x128xf32>
    %31 = vector.shape_cast %30 : vector<16x16x128xf32> to vector<256x128xf32>
    %c0_19 = arith.constant 0 : index
    %c384 = arith.constant 384 : index
    %32 = vector.load %arg7[%c0_19, %c384] : memref<256x3456xf32, #tpu.memory_space<vmem>>, vector<256x128xf32>
    tpu.vector_store %arg7[%c0_19, %c384], %31 {strides = array<i32>} : memref<256x3456xf32, #tpu.memory_space<vmem>>, vector<256x128xf32>,
    %c0_i32_20 = arith.constant 0 : i32
    %33 = arith.addi %arg1, %c0_i32_20 : i32
    %c1_i32_21 = arith.constant 1 : i32
    %34 = arith.addi %0, %c1_i32_21 : i32
    %c0_22 = arith.constant 0 : index
    %35 = arith.index_cast %33 : i32 to index
    %36 = arith.index_cast %34 : i32 to index
    %c1_23 = arith.constant 1 : index
    %c0_24 = arith.constant 0 : index
    %37 = vector.load %arg3[%c0_22, %35, %36, %c1_23, %c0_24] : memref<1x10x18x18x128xf32, #tpu.memory_space<vmem>>, vector<1x1x16x16x128xf32>
    %38 = vector.shape_cast %37 : vector<1x1x16x16x128xf32> to vector<16x16x128xf32>
    %39 = vector.shape_cast %38 : vector<16x16x128xf32> to vector<256x128xf32>
    %c0_25 = arith.constant 0 : index
    %c512 = arith.constant 512 : index
    %40 = vector.load %arg7[%c0_25, %c512] : memref<256x3456xf32, #tpu.memory_space<vmem>>, vector<256x128xf32>
    tpu.vector_store %arg7[%c0_25, %c512], %39 {strides = array<i32>} : memref<256x3456xf32, #tpu.memory_space<vmem>>, vector<256x128xf32>,
    %c0_i32_26 = arith.constant 0 : i32
    %41 = arith.addi %arg1, %c0_i32_26 : i32
    %c1_i32_27 = arith.constant 1 : i32
    %42 = arith.addi %0, %c1_i32_27 : i32
    %c0_28 = arith.constant 0 : index
    %43 = arith.index_cast %41 : i32 to index
    %44 = arith.index_cast %42 : i32 to index
    %c2_29 = arith.constant 2 : index
    %c0_30 = arith.constant 0 : index
    %45 = vector.load %arg3[%c0_28, %43, %44, %c2_29, %c0_30] : memref<1x10x18x18x128xf32, #tpu.memory_space<vmem>>, vector<1x1x16x16x128xf32>
    %46 = vector.shape_cast %45 : vector<1x1x16x16x128xf32> to vector<16x16x128xf32>
    %47 = vector.shape_cast %46 : vector<16x16x128xf32> to vector<256x128xf32>
    %c0_31 = arith.constant 0 : index
    %c640 = arith.constant 640 : index
    %48 = vector.load %arg7[%c0_31, %c640] : memref<256x3456xf32, #tpu.memory_space<vmem>>, vector<256x128xf32>
    tpu.vector_store %arg7[%c0_31, %c640], %47 {strides = array<i32>} : memref<256x3456xf32, #tpu.memory_space<vmem>>, vector<256x128xf32>,
    %c0_i32_32 = arith.constant 0 : i32
    %49 = arith.addi %arg1, %c0_i32_32 : i32
    %c2_i32 = arith.constant 2 : i32
    %50 = arith.addi %0, %c2_i32 : i32
    %c0_33 = arith.constant 0 : index
    %51 = arith.index_cast %49 : i32 to index
    %52 = arith.index_cast %50 : i32 to index
    %c0_34 = arith.constant 0 : index
    %c0_35 = arith.constant 0 : index
    %53 = vector.load %arg3[%c0_33, %51, %52, %c0_34, %c0_35] : memref<1x10x18x18x128xf32, #tpu.memory_space<vmem>>, vector<1x1x16x16x128xf32>
    %54 = vector.shape_cast %53 : vector<1x1x16x16x128xf32> to vector<16x16x128xf32>
    %55 = vector.shape_cast %54 : vector<16x16x128xf32> to vector<256x128xf32>
    %c0_36 = arith.constant 0 : index
    %c768 = arith.constant 768 : index
    %56 = vector.load %arg7[%c0_36, %c768] : memref<256x3456xf32, #tpu.memory_space<vmem>>, vector<256x128xf32>
    tpu.vector_store %arg7[%c0_36, %c768], %55 {strides = array<i32>} : memref<256x3456xf32, #tpu.memory_space<vmem>>, vector<256x128xf32>,
    %c0_i32_37 = arith.constant 0 : i32
    %57 = arith.addi %arg1, %c0_i32_37 : i32
    %c2_i32_38 = arith.constant 2 : i32
    %58 = arith.addi %0, %c2_i32_38 : i32
    %c0_39 = arith.constant 0 : index
    %59 = arith.index_cast %57 : i32 to index
    %60 = arith.index_cast %58 : i32 to index
    %c1_40 = arith.constant 1 : index
    %c0_41 = arith.constant 0 : index
    %61 = vector.load %arg3[%c0_39, %59, %60, %c1_40, %c0_41] : memref<1x10x18x18x128xf32, #tpu.memory_space<vmem>>, vector<1x1x16x16x128xf32>
    %62 = vector.shape_cast %61 : vector<1x1x16x16x128xf32> to vector<16x16x128xf32>
    %63 = vector.shape_cast %62 : vector<16x16x128xf32> to vector<256x128xf32>
    %c0_42 = arith.constant 0 : index
    %c896 = arith.constant 896 : index
    %64 = vector.load %arg7[%c0_42, %c896] : memref<256x3456xf32, #tpu.memory_space<vmem>>, vector<256x128xf32>
    tpu.vector_store %arg7[%c0_42, %c896], %63 {strides = array<i32>} : memref<256x3456xf32, #tpu.memory_space<vmem>>, vector<256x128xf32>,
    %c0_i32_43 = arith.constant 0 : i32
    %65 = arith.addi %arg1, %c0_i32_43 : i32
    %c2_i32_44 = arith.constant 2 : i32
    %66 = arith.addi %0, %c2_i32_44 : i32
    %c0_45 = arith.constant 0 : index
    %67 = arith.index_cast %65 : i32 to index
    %68 = arith.index_cast %66 : i32 to index
    %c2_46 = arith.constant 2 : index
    %c0_47 = arith.constant 0 : index
    %69 = vector.load %arg3[%c0_45, %67, %68, %c2_46, %c0_47] : memref<1x10x18x18x128xf32, #tpu.memory_space<vmem>>, vector<1x1x16x16x128xf32>
    %70 = vector.shape_cast %69 : vector<1x1x16x16x128xf32> to vector<16x16x128xf32>
    %71 = vector.shape_cast %70 : vector<16x16x128xf32> to vector<256x128xf32>
    %c0_48 = arith.constant 0 : index
    %c1024 = arith.constant 1024 : index
    %72 = vector.load %arg7[%c0_48, %c1024] : memref<256x3456xf32, #tpu.memory_space<vmem>>, vector<256x128xf32>
    tpu.vector_store %arg7[%c0_48, %c1024], %71 {strides = array<i32>} : memref<256x3456xf32, #tpu.memory_space<vmem>>, vector<256x128xf32>,
    %c1_i32_49 = arith.constant 1 : i32
    %73 = arith.addi %arg1, %c1_i32_49 : i32
    %c0_i32_50 = arith.constant 0 : i32
    %74 = arith.addi %0, %c0_i32_50 : i32
    %c0_51 = arith.constant 0 : index
    %75 = arith.index_cast %73 : i32 to index
    %76 = arith.index_cast %74 : i32 to index
    %c0_52 = arith.constant 0 : index
    %c0_53 = arith.constant 0 : index
    %77 = vector.load %arg3[%c0_51, %75, %76, %c0_52, %c0_53] : memref<1x10x18x18x128xf32, #tpu.memory_space<vmem>>, vector<1x1x16x16x128xf32>
    %78 = vector.shape_cast %77 : vector<1x1x16x16x128xf32> to vector<16x16x128xf32>
    %79 = vector.shape_cast %78 : vector<16x16x128xf32> to vector<256x128xf32>
    %c0_54 = arith.constant 0 : index
    %c1152 = arith.constant 1152 : index
    %80 = vector.load %arg7[%c0_54, %c1152] : memref<256x3456xf32, #tpu.memory_space<vmem>>, vector<256x128xf32>
    tpu.vector_store %arg7[%c0_54, %c1152], %79 {strides = array<i32>} : memref<256x3456xf32, #tpu.memory_space<vmem>>, vector<256x128xf32>,
    %c1_i32_55 = arith.constant 1 : i32
    %81 = arith.addi %arg1, %c1_i32_55 : i32
    %c0_i32_56 = arith.constant 0 : i32
    %82 = arith.addi %0, %c0_i32_56 : i32
    %c0_57 = arith.constant 0 : index
    %83 = arith.index_cast %81 : i32 to index
    %84 = arith.index_cast %82 : i32 to index
    %c1_58 = arith.constant 1 : index
    %c0_59 = arith.constant 0 : index
    %85 = vector.load %arg3[%c0_57, %83, %84, %c1_58, %c0_59] : memref<1x10x18x18x128xf32, #tpu.memory_space<vmem>>, vector<1x1x16x16x128xf32>
    %86 = vector.shape_cast %85 : vector<1x1x16x16x128xf32> to vector<16x16x128xf32>
    %87 = vector.shape_cast %86 : vector<16x16x128xf32> to vector<256x128xf32>
    %c0_60 = arith.constant 0 : index
    %c1280 = arith.constant 1280 : index
    %88 = vector.load %arg7[%c0_60, %c1280] : memref<256x3456xf32, #tpu.memory_space<vmem>>, vector<256x128xf32>
    tpu.vector_store %arg7[%c0_60, %c1280], %87 {strides = array<i32>} : memref<256x3456xf32, #tpu.memory_space<vmem>>, vector<256x128xf32>,
    %c1_i32_61 = arith.constant 1 : i32
    %89 = arith.addi %arg1, %c1_i32_61 : i32
    %c0_i32_62 = arith.constant 0 : i32
    %90 = arith.addi %0, %c0_i32_62 : i32
    %c0_63 = arith.constant 0 : index
    %91 = arith.index_cast %89 : i32 to index
    %92 = arith.index_cast %90 : i32 to index
    %c2_64 = arith.constant 2 : index
    %c0_65 = arith.constant 0 : index
    %93 = vector.load %arg3[%c0_63, %91, %92, %c2_64, %c0_65] : memref<1x10x18x18x128xf32, #tpu.memory_space<vmem>>, vector<1x1x16x16x128xf32>
    %94 = vector.shape_cast %93 : vector<1x1x16x16x128xf32> to vector<16x16x128xf32>
    %95 = vector.shape_cast %94 : vector<16x16x128xf32> to vector<256x128xf32>
    %c0_66 = arith.constant 0 : index
    %c1408 = arith.constant 1408 : index
    %96 = vector.load %arg7[%c0_66, %c1408] : memref<256x3456xf32, #tpu.memory_space<vmem>>, vector<256x128xf32>
    tpu.vector_store %arg7[%c0_66, %c1408], %95 {strides = array<i32>} : memref<256x3456xf32, #tpu.memory_space<vmem>>, vector<256x128xf32>,
    %c1_i32_67 = arith.constant 1 : i32
    %97 = arith.addi %arg1, %c1_i32_67 : i32
    %c1_i32_68 = arith.constant 1 : i32
    %98 = arith.addi %0, %c1_i32_68 : i32
    %c0_69 = arith.constant 0 : index
    %99 = arith.index_cast %97 : i32 to index
    %100 = arith.index_cast %98 : i32 to index
    %c0_70 = arith.constant 0 : index
    %c0_71 = arith.constant 0 : index
    %101 = vector.load %arg3[%c0_69, %99, %100, %c0_70, %c0_71] : memref<1x10x18x18x128xf32, #tpu.memory_space<vmem>>, vector<1x1x16x16x128xf32>
    %102 = vector.shape_cast %101 : vector<1x1x16x16x128xf32> to vector<16x16x128xf32>
    %103 = vector.shape_cast %102 : vector<16x16x128xf32> to vector<256x128xf32>
    %c0_72 = arith.constant 0 : index
    %c1536 = arith.constant 1536 : index
    %104 = vector.load %arg7[%c0_72, %c1536] : memref<256x3456xf32, #tpu.memory_space<vmem>>, vector<256x128xf32>
    tpu.vector_store %arg7[%c0_72, %c1536], %103 {strides = array<i32>} : memref<256x3456xf32, #tpu.memory_space<vmem>>, vector<256x128xf32>,
    %c1_i32_73 = arith.constant 1 : i32
    %105 = arith.addi %arg1, %c1_i32_73 : i32
    %c1_i32_74 = arith.constant 1 : i32
    %106 = arith.addi %0, %c1_i32_74 : i32
    %c0_75 = arith.constant 0 : index
    %107 = arith.index_cast %105 : i32 to index
    %108 = arith.index_cast %106 : i32 to index
    %c1_76 = arith.constant 1 : index
    %c0_77 = arith.constant 0 : index
    %109 = vector.load %arg3[%c0_75, %107, %108, %c1_76, %c0_77] : memref<1x10x18x18x128xf32, #tpu.memory_space<vmem>>, vector<1x1x16x16x128xf32>
    %110 = vector.shape_cast %109 : vector<1x1x16x16x128xf32> to vector<16x16x128xf32>
    %111 = vector.shape_cast %110 : vector<16x16x128xf32> to vector<256x128xf32>
    %c0_78 = arith.constant 0 : index
    %c1664 = arith.constant 1664 : index
    %112 = vector.load %arg7[%c0_78, %c1664] : memref<256x3456xf32, #tpu.memory_space<vmem>>, vector<256x128xf32>
    tpu.vector_store %arg7[%c0_78, %c1664], %111 {strides = array<i32>} : memref<256x3456xf32, #tpu.memory_space<vmem>>, vector<256x128xf32>,
    %c1_i32_79 = arith.constant 1 : i32
    %113 = arith.addi %arg1, %c1_i32_79 : i32
    %c1_i32_80 = arith.constant 1 : i32
    %114 = arith.addi %0, %c1_i32_80 : i32
    %c0_81 = arith.constant 0 : index
    %115 = arith.index_cast %113 : i32 to index
    %116 = arith.index_cast %114 : i32 to index
    %c2_82 = arith.constant 2 : index
    %c0_83 = arith.constant 0 : index
    %117 = vector.load %arg3[%c0_81, %115, %116, %c2_82, %c0_83] : memref<1x10x18x18x128xf32, #tpu.memory_space<vmem>>, vector<1x1x16x16x128xf32>
    %118 = vector.shape_cast %117 : vector<1x1x16x16x128xf32> to vector<16x16x128xf32>
    %119 = vector.shape_cast %118 : vector<16x16x128xf32> to vector<256x128xf32>
    %c0_84 = arith.constant 0 : index
    %c1792 = arith.constant 1792 : index
    %120 = vector.load %arg7[%c0_84, %c1792] : memref<256x3456xf32, #tpu.memory_space<vmem>>, vector<256x128xf32>
    tpu.vector_store %arg7[%c0_84, %c1792], %119 {strides = array<i32>} : memref<256x3456xf32, #tpu.memory_space<vmem>>, vector<256x128xf32>,
    %c1_i32_85 = arith.constant 1 : i32
    %121 = arith.addi %arg1, %c1_i32_85 : i32
    %c2_i32_86 = arith.constant 2 : i32
    %122 = arith.addi %0, %c2_i32_86 : i32
    %c0_87 = arith.constant 0 : index
    %123 = arith.index_cast %121 : i32 to index
    %124 = arith.index_cast %122 : i32 to index
    %c0_88 = arith.constant 0 : index
    %c0_89 = arith.constant 0 : index
    %125 = vector.load %arg3[%c0_87, %123, %124, %c0_88, %c0_89] : memref<1x10x18x18x128xf32, #tpu.memory_space<vmem>>, vector<1x1x16x16x128xf32>
    %126 = vector.shape_cast %125 : vector<1x1x16x16x128xf32> to vector<16x16x128xf32>
    %127 = vector.shape_cast %126 : vector<16x16x128xf32> to vector<256x128xf32>
    %c0_90 = arith.constant 0 : index
    %c1920 = arith.constant 1920 : index
    %128 = vector.load %arg7[%c0_90, %c1920] : memref<256x3456xf32, #tpu.memory_space<vmem>>, vector<256x128xf32>
    tpu.vector_store %arg7[%c0_90, %c1920], %127 {strides = array<i32>} : memref<256x3456xf32, #tpu.memory_space<vmem>>, vector<256x128xf32>,
    %c1_i32_91 = arith.constant 1 : i32
    %129 = arith.addi %arg1, %c1_i32_91 : i32
    %c2_i32_92 = arith.constant 2 : i32
    %130 = arith.addi %0, %c2_i32_92 : i32
    %c0_93 = arith.constant 0 : index
    %131 = arith.index_cast %129 : i32 to index
    %132 = arith.index_cast %130 : i32 to index
    %c1_94 = arith.constant 1 : index
    %c0_95 = arith.constant 0 : index
    %133 = vector.load %arg3[%c0_93, %131, %132, %c1_94, %c0_95] : memref<1x10x18x18x128xf32, #tpu.memory_space<vmem>>, vector<1x1x16x16x128xf32>
    %134 = vector.shape_cast %133 : vector<1x1x16x16x128xf32> to vector<16x16x128xf32>
    %135 = vector.shape_cast %134 : vector<16x16x128xf32> to vector<256x128xf32>
    %c0_96 = arith.constant 0 : index
    %c2048 = arith.constant 2048 : index
    %136 = vector.load %arg7[%c0_96, %c2048] : memref<256x3456xf32, #tpu.memory_space<vmem>>, vector<256x128xf32>
    tpu.vector_store %arg7[%c0_96, %c2048], %135 {strides = array<i32>} : memref<256x3456xf32, #tpu.memory_space<vmem>>, vector<256x128xf32>,
    %c1_i32_97 = arith.constant 1 : i32
    %137 = arith.addi %arg1, %c1_i32_97 : i32
    %c2_i32_98 = arith.constant 2 : i32
    %138 = arith.addi %0, %c2_i32_98 : i32
    %c0_99 = arith.constant 0 : index
    %139 = arith.index_cast %137 : i32 to index
    %140 = arith.index_cast %138 : i32 to index
    %c2_100 = arith.constant 2 : index
    %c0_101 = arith.constant 0 : index
    %141 = vector.load %arg3[%c0_99, %139, %140, %c2_100, %c0_101] : memref<1x10x18x18x128xf32, #tpu.memory_space<vmem>>, vector<1x1x16x16x128xf32>
    %142 = vector.shape_cast %141 : vector<1x1x16x16x128xf32> to vector<16x16x128xf32>
    %143 = vector.shape_cast %142 : vector<16x16x128xf32> to vector<256x128xf32>
    %c0_102 = arith.constant 0 : index
    %c2176 = arith.constant 2176 : index
    %144 = vector.load %arg7[%c0_102, %c2176] : memref<256x3456xf32, #tpu.memory_space<vmem>>, vector<256x128xf32>
    tpu.vector_store %arg7[%c0_102, %c2176], %143 {strides = array<i32>} : memref<256x3456xf32, #tpu.memory_space<vmem>>, vector<256x128xf32>,
    %c2_i32_103 = arith.constant 2 : i32
    %145 = arith.addi %arg1, %c2_i32_103 : i32
    %c0_i32_104 = arith.constant 0 : i32
    %146 = arith.addi %0, %c0_i32_104 : i32
    %c0_105 = arith.constant 0 : index
    %147 = arith.index_cast %145 : i32 to index
    %148 = arith.index_cast %146 : i32 to index
    %c0_106 = arith.constant 0 : index
    %c0_107 = arith.constant 0 : index
    %149 = vector.load %arg3[%c0_105, %147, %148, %c0_106, %c0_107] : memref<1x10x18x18x128xf32, #tpu.memory_space<vmem>>, vector<1x1x16x16x128xf32>
    %150 = vector.shape_cast %149 : vector<1x1x16x16x128xf32> to vector<16x16x128xf32>
    %151 = vector.shape_cast %150 : vector<16x16x128xf32> to vector<256x128xf32>
    %c0_108 = arith.constant 0 : index
    %c2304 = arith.constant 2304 : index
    %152 = vector.load %arg7[%c0_108, %c2304] : memref<256x3456xf32, #tpu.memory_space<vmem>>, vector<256x128xf32>
    tpu.vector_store %arg7[%c0_108, %c2304], %151 {strides = array<i32>} : memref<256x3456xf32, #tpu.memory_space<vmem>>, vector<256x128xf32>,
    %c2_i32_109 = arith.constant 2 : i32
    %153 = arith.addi %arg1, %c2_i32_109 : i32
    %c0_i32_110 = arith.constant 0 : i32
    %154 = arith.addi %0, %c0_i32_110 : i32
    %c0_111 = arith.constant 0 : index
    %155 = arith.index_cast %153 : i32 to index
    %156 = arith.index_cast %154 : i32 to index
    %c1_112 = arith.constant 1 : index
    %c0_113 = arith.constant 0 : index
    %157 = vector.load %arg3[%c0_111, %155, %156, %c1_112, %c0_113] : memref<1x10x18x18x128xf32, #tpu.memory_space<vmem>>, vector<1x1x16x16x128xf32>
    %158 = vector.shape_cast %157 : vector<1x1x16x16x128xf32> to vector<16x16x128xf32>
    %159 = vector.shape_cast %158 : vector<16x16x128xf32> to vector<256x128xf32>
    %c0_114 = arith.constant 0 : index
    %c2432 = arith.constant 2432 : index
    %160 = vector.load %arg7[%c0_114, %c2432] : memref<256x3456xf32, #tpu.memory_space<vmem>>, vector<256x128xf32>
    tpu.vector_store %arg7[%c0_114, %c2432], %159 {strides = array<i32>} : memref<256x3456xf32, #tpu.memory_space<vmem>>, vector<256x128xf32>,
    %c2_i32_115 = arith.constant 2 : i32
    %161 = arith.addi %arg1, %c2_i32_115 : i32
    %c0_i32_116 = arith.constant 0 : i32
    %162 = arith.addi %0, %c0_i32_116 : i32
    %c0_117 = arith.constant 0 : index
    %163 = arith.index_cast %161 : i32 to index
    %164 = arith.index_cast %162 : i32 to index
    %c2_118 = arith.constant 2 : index
    %c0_119 = arith.constant 0 : index
    %165 = vector.load %arg3[%c0_117, %163, %164, %c2_118, %c0_119] : memref<1x10x18x18x128xf32, #tpu.memory_space<vmem>>, vector<1x1x16x16x128xf32>
    %166 = vector.shape_cast %165 : vector<1x1x16x16x128xf32> to vector<16x16x128xf32>
    %167 = vector.shape_cast %166 : vector<16x16x128xf32> to vector<256x128xf32>
    %c0_120 = arith.constant 0 : index
    %c2560 = arith.constant 2560 : index
    %168 = vector.load %arg7[%c0_120, %c2560] : memref<256x3456xf32, #tpu.memory_space<vmem>>, vector<256x128xf32>
    tpu.vector_store %arg7[%c0_120, %c2560], %167 {strides = array<i32>} : memref<256x3456xf32, #tpu.memory_space<vmem>>, vector<256x128xf32>,
    %c2_i32_121 = arith.constant 2 : i32
    %169 = arith.addi %arg1, %c2_i32_121 : i32
    %c1_i32_122 = arith.constant 1 : i32
    %170 = arith.addi %0, %c1_i32_122 : i32
    %c0_123 = arith.constant 0 : index
    %171 = arith.index_cast %169 : i32 to index
    %172 = arith.index_cast %170 : i32 to index
    %c0_124 = arith.constant 0 : index
    %c0_125 = arith.constant 0 : index
    %173 = vector.load %arg3[%c0_123, %171, %172, %c0_124, %c0_125] : memref<1x10x18x18x128xf32, #tpu.memory_space<vmem>>, vector<1x1x16x16x128xf32>
    %174 = vector.shape_cast %173 : vector<1x1x16x16x128xf32> to vector<16x16x128xf32>
    %175 = vector.shape_cast %174 : vector<16x16x128xf32> to vector<256x128xf32>
    %c0_126 = arith.constant 0 : index
    %c2688 = arith.constant 2688 : index
    %176 = vector.load %arg7[%c0_126, %c2688] : memref<256x3456xf32, #tpu.memory_space<vmem>>, vector<256x128xf32>
    tpu.vector_store %arg7[%c0_126, %c2688], %175 {strides = array<i32>} : memref<256x3456xf32, #tpu.memory_space<vmem>>, vector<256x128xf32>,
    %c2_i32_127 = arith.constant 2 : i32
    %177 = arith.addi %arg1, %c2_i32_127 : i32
    %c1_i32_128 = arith.constant 1 : i32
    %178 = arith.addi %0, %c1_i32_128 : i32
    %c0_129 = arith.constant 0 : index
    %179 = arith.index_cast %177 : i32 to index
    %180 = arith.index_cast %178 : i32 to index
    %c1_130 = arith.constant 1 : index
    %c0_131 = arith.constant 0 : index
    %181 = vector.load %arg3[%c0_129, %179, %180, %c1_130, %c0_131] : memref<1x10x18x18x128xf32, #tpu.memory_space<vmem>>, vector<1x1x16x16x128xf32>
    %182 = vector.shape_cast %181 : vector<1x1x16x16x128xf32> to vector<16x16x128xf32>
    %183 = vector.shape_cast %182 : vector<16x16x128xf32> to vector<256x128xf32>
    %c0_132 = arith.constant 0 : index
    %c2816 = arith.constant 2816 : index
    %184 = vector.load %arg7[%c0_132, %c2816] : memref<256x3456xf32, #tpu.memory_space<vmem>>, vector<256x128xf32>
    tpu.vector_store %arg7[%c0_132, %c2816], %183 {strides = array<i32>} : memref<256x3456xf32, #tpu.memory_space<vmem>>, vector<256x128xf32>,
    %c2_i32_133 = arith.constant 2 : i32
    %185 = arith.addi %arg1, %c2_i32_133 : i32
    %c1_i32_134 = arith.constant 1 : i32
    %186 = arith.addi %0, %c1_i32_134 : i32
    %c0_135 = arith.constant 0 : index
    %187 = arith.index_cast %185 : i32 to index
    %188 = arith.index_cast %186 : i32 to index
    %c2_136 = arith.constant 2 : index
    %c0_137 = arith.constant 0 : index
    %189 = vector.load %arg3[%c0_135, %187, %188, %c2_136, %c0_137] : memref<1x10x18x18x128xf32, #tpu.memory_space<vmem>>, vector<1x1x16x16x128xf32>
    %190 = vector.shape_cast %189 : vector<1x1x16x16x128xf32> to vector<16x16x128xf32>
    %191 = vector.shape_cast %190 : vector<16x16x128xf32> to vector<256x128xf32>
    %c0_138 = arith.constant 0 : index
    %c2944 = arith.constant 2944 : index
    %192 = vector.load %arg7[%c0_138, %c2944] : memref<256x3456xf32, #tpu.memory_space<vmem>>, vector<256x128xf32>
    tpu.vector_store %arg7[%c0_138, %c2944], %191 {strides = array<i32>} : memref<256x3456xf32, #tpu.memory_space<vmem>>, vector<256x128xf32>,
    %c2_i32_139 = arith.constant 2 : i32
    %193 = arith.addi %arg1, %c2_i32_139 : i32
    %c2_i32_140 = arith.constant 2 : i32
    %194 = arith.addi %0, %c2_i32_140 : i32
    %c0_141 = arith.constant 0 : index
    %195 = arith.index_cast %193 : i32 to index
    %196 = arith.index_cast %194 : i32 to index
    %c0_142 = arith.constant 0 : index
    %c0_143 = arith.constant 0 : index
    %197 = vector.load %arg3[%c0_141, %195, %196, %c0_142, %c0_143] : memref<1x10x18x18x128xf32, #tpu.memory_space<vmem>>, vector<1x1x16x16x128xf32>
    %198 = vector.shape_cast %197 : vector<1x1x16x16x128xf32> to vector<16x16x128xf32>
    %199 = vector.shape_cast %198 : vector<16x16x128xf32> to vector<256x128xf32>
    %c0_144 = arith.constant 0 : index
    %c3072 = arith.constant 3072 : index
    %200 = vector.load %arg7[%c0_144, %c3072] : memref<256x3456xf32, #tpu.memory_space<vmem>>, vector<256x128xf32>
    tpu.vector_store %arg7[%c0_144, %c3072], %199 {strides = array<i32>} : memref<256x3456xf32, #tpu.memory_space<vmem>>, vector<256x128xf32>,
    %c2_i32_145 = arith.constant 2 : i32
    %201 = arith.addi %arg1, %c2_i32_145 : i32
    %c2_i32_146 = arith.constant 2 : i32
    %202 = arith.addi %0, %c2_i32_146 : i32
    %c0_147 = arith.constant 0 : index
    %203 = arith.index_cast %201 : i32 to index
    %204 = arith.index_cast %202 : i32 to index
    %c1_148 = arith.constant 1 : index
    %c0_149 = arith.constant 0 : index
    %205 = vector.load %arg3[%c0_147, %203, %204, %c1_148, %c0_149] : memref<1x10x18x18x128xf32, #tpu.memory_space<vmem>>, vector<1x1x16x16x128xf32>
    %206 = vector.shape_cast %205 : vector<1x1x16x16x128xf32> to vector<16x16x128xf32>
    %207 = vector.shape_cast %206 : vector<16x16x128xf32> to vector<256x128xf32>
    %c0_150 = arith.constant 0 : index
    %c3200 = arith.constant 3200 : index
    %208 = vector.load %arg7[%c0_150, %c3200] : memref<256x3456xf32, #tpu.memory_space<vmem>>, vector<256x128xf32>
    tpu.vector_store %arg7[%c0_150, %c3200], %207 {strides = array<i32>} : memref<256x3456xf32, #tpu.memory_space<vmem>>, vector<256x128xf32>,
    %c2_i32_151 = arith.constant 2 : i32
    %209 = arith.addi %arg1, %c2_i32_151 : i32
    %c2_i32_152 = arith.constant 2 : i32
    %210 = arith.addi %0, %c2_i32_152 : i32
    %c0_153 = arith.constant 0 : index
    %211 = arith.index_cast %209 : i32 to index
    %212 = arith.index_cast %210 : i32 to index
    %c2_154 = arith.constant 2 : index
    %c0_155 = arith.constant 0 : index
    %213 = vector.load %arg3[%c0_153, %211, %212, %c2_154, %c0_155] : memref<1x10x18x18x128xf32, #tpu.memory_space<vmem>>, vector<1x1x16x16x128xf32>
    %214 = vector.shape_cast %213 : vector<1x1x16x16x128xf32> to vector<16x16x128xf32>
    %215 = vector.shape_cast %214 : vector<16x16x128xf32> to vector<256x128xf32>
    %c0_156 = arith.constant 0 : index
    %c3328 = arith.constant 3328 : index
    %216 = vector.load %arg7[%c0_156, %c3328] : memref<256x3456xf32, #tpu.memory_space<vmem>>, vector<256x128xf32>
    tpu.vector_store %arg7[%c0_156, %c3328], %215 {strides = array<i32>} : memref<256x3456xf32, #tpu.memory_space<vmem>>, vector<256x128xf32>,
    %c0_157 = arith.constant 0 : index
    %c0_158 = arith.constant 0 : index
    %217 = vector.load %arg7[%c0_157, %c0_158] : memref<256x3456xf32, #tpu.memory_space<vmem>>, vector<256x3456xf32>
    %c0_159 = arith.constant 0 : index
    %c0_160 = arith.constant 0 : index
    %218 = vector.load %arg4[%c0_159, %c0_160] : memref<3456x128xf32, #tpu.memory_space<vmem>>, vector<3456x128xf32>
    %cst = arith.constant dense<0.000000e+00> : vector<256x128xf32>
    %219 = tpu.matmul %217, %218, %cst {dimension_numbers = #tpu.dot_dimension_numbers<[1], [0], [0], [1], [0, 0, 1, 1], [], []>} : vector<256x3456xf32>, vector<3456x128xf32>, vector<256x128xf32> -> vector<256x128xf32>
    %c0_161 = arith.constant 0 : index
    %c0_162 = arith.constant 0 : index
    %220 = vector.load %arg5[%c0_161, %c0_162] : memref<1x128xf32, #tpu.memory_space<vmem>>, vector<1x128xf32>
    %221 = vector.broadcast %220 : vector<1x128xf32> to vector<256x128xf32>
    %222 = arith.addf %219, %221 : vector<256x128xf32>
    %c0_163 = arith.constant 0 : index
    %c0_164 = arith.constant 0 : index
    %c0_165 = arith.constant 0 : index
    %c0_166 = arith.constant 0 : index
    %223 = vector.load %arg6[%c0_163, %c0_164, %c0_165, %c0_166] : memref<1x1x256x128xf32, #tpu.memory_space<vmem>>, vector<1x1x256x128xf32>
    %224 = vector.shape_cast %223 : vector<1x1x256x128xf32> to vector<256x128xf32>
    %225 = vector.shape_cast %222 : vector<256x128xf32> to vector<1x1x256x128xf32>
    tpu.vector_store %arg6[%c0_163, %c0_164, %c0_165, %c0_166], %225 {strides = array<i32>} : memref<1x1x256x128xf32, #tpu.memory_space<vmem>>, vector<1x1x256x128xf32>,
    return
  }
  func.func @transform_0(%arg0: i32, %arg1: i32, %arg2: i32) -> (i32, i32, i32, i32, i32) {
    %c0_i32 = arith.constant 0 : i32
    %c0_i32_0 = arith.constant 0 : i32
    %c0_i32_1 = arith.constant 0 : i32
    %c0_i32_2 = arith.constant 0 : i32
    %c0_i32_3 = arith.constant 0 : i32
    return %arg0, %c0_i32, %c0_i32_0, %c0_i32_1, %c0_i32_2 : i32, i32, i32, i32, i32
  }
  func.func @transform_1(%arg0: i32, %arg1: i32, %arg2: i32) -> (i32, i32) {
    %c0_i32 = arith.constant 0 : i32
    %c0_i32_0 = arith.constant 0 : i32
    %c0_i32_1 = arith.constant 0 : i32
    return %c0_i32, %c0_i32_0 : i32, i32
  }
  func.func @transform_2(%arg0: i32, %arg1: i32, %arg2: i32) -> (i32, i32) {
    %c0_i32 = arith.constant 0 : i32
    %c0_i32_0 = arith.constant 0 : i32
    %c0_i32_1 = arith.constant 0 : i32
    return %c0_i32, %c0_i32_0 : i32, i32
  }
  func.func @transform_3(%arg0: i32, %arg1: i32, %arg2: i32) -> (i32, i32, i32, i32) {
    %c0_i32 = arith.constant 0 : i32
    %c0_i32_0 = arith.constant 0 : i32
    return %arg0, %arg1, %arg2, %c0_i32 : i32, i32, i32, i32
  }
}

</mosaic_0001>

<llo_original>
// kernel: tpu_custom_call.1
$region0: #{tpu_custom_call.1}
  #allocation0 [shape = 'u32[]', space=smem, size = 0x4, offset = 0x4, fixed_abs, tag = 'smem constant byte address 0x4 - core index']
  #allocation1 [shape = 'u32[72,128]{1,0:T(1,128)}', space=vmem, size = 0x9000, scoped, tag = 'internal scratch']
  #allocation2 [shape = 'f32[256,3456]{1,0:T(8,128)}', space=vmem, size = 0x360000, scoped, tag = 'scratch operand']
  %s0 = inlined_call_operand.vmem [shape: f32[2,10,18,18,128], index: 0, kind: input, shape index: {}]
  %s1 = inlined_call_operand.vmem [shape: f32[3456,128], index: 1, kind: input, shape index: {}]
  %s2 = inlined_call_operand.vmem [shape: f32[1,128], index: 2, kind: input, shape index: {}]
  %s3 = inlined_call_operand.hbm [shape: f32[2,8,256,128], index: 3, kind: output, shape index: {}]
  %s4 = sld [smem:[#allocation0]]
  $region45: #{tpu_custom_call.1} parent=0
    _
  %s6 = ssub.s32 1, %s4
  %s7 = scalar_select 0, %s6, %s4
  $region1: #{tpu_custom_call.1} parent=0
    #allocation3 [shape = 'u8[262144]{0}', space=vmem, size = 0x40000, scoped, tag = 'output window, operand 0']
    #allocation4 [shape = 's32[2]{0}', space=sflag, size = 0x8, scoped, tag = 'scoped memory for tpu_custom_call.1']
    %8 = vsyncpa [#allocation4], 0
    %s9 = scalar_lea.sflag [#allocation4], 1
    %10 = vsyncpa %s9, 0
    loop: start=0, step=1, limit=18
    $region2: #{tpu_custom_call.1} parent=1 // loop_pre_header
      _
    $region3: #{tpu_custom_call.1} parent=1 // loop_header
      %s12 = sphi 0, %s16
      %p13 = scmp.ge.s32.totalorder %s12, 18
      %s19 = sphi 0, %s38
      %s20 = sphi 0, %s34
      %s21 = sphi 0, %s30
      %s22 = sphi 0, %s19
      %s23 = sphi 0, %s20
      %s24 = sphi 0, %s21
      %s25 = sphi 0, %s22
      %s26 = sphi 0, %s23
      %s27 = sphi 0, %s24
      %s41 = sphi 0, %s43
      %s44 = sphi 0, %s41
      %s45 = sphi 0, %s44
      %s61 = sphi 0, %s45
      %s65 = sphi 0, %s65
      %s67 = sphi 0, %s65
      %s68 = sphi 0, %s67
      %s82 = sphi 0, %s68
      %s86 = sphi 0, %s86
      %s88 = sphi 0, %s86
      %s89 = sphi 0, %s88
      %s103 = sphi 0, %s89
      %s113 = sphi 0, %s115
      %s116 = sphi 0, %s113
      %s117 = sphi 0, %s116
      %s133 = sphi 0, %s117
    $region4: #{tpu_custom_call.1} parent=1 // loop_header_branch
      %15 = sbr.rel (%p13) target = $region8
    $region5: #{tpu_custom_call.1} parent=1 // loop_body
      %s17 = ssub.s32 %s12, 1
      %s18 = ssub.s32 %s12, 2
      %s28 = sadd.s32 1, %s21
      %p29 = scmp.ge.s32.totalorder %s28, 1
      %s30 = scalar_select %p29, 0, %s28
      %s31 = sadd.s32 1, %s20
      %s32 = scalar_select %p29, %s31, %s20
      %p33 = scmp.ge.s32.totalorder %s32, 8
      %s34 = scalar_select %p33, 0, %s32
      %s35 = sadd.s32 1, %s19
      %s36 = scalar_select %p33, %s35, %s19
      %p37 = scmp.ge.s32.totalorder %s36, 2
      %s38 = scalar_select %p37, 0, %s36
      %s39 = ssub.s32 %s19, %s38
      %p40 = scmp.eq.s32.totalorder %s39, 0
      %s42 = sadd.s32 %s41, 1
      %s43 = scalar_select %p40, %s41, %s42
      %p46 = pneg %p40
      %p47 = scmp.eq.s32.totalorder %s12, 15
      %p48 = por %p46, %p47
      %p49 = scmp.ne.s32.totalorder %s41, %s44
      %p50 = scmp.eq.s32.totalorder %s12, 0
      %p51 = por %p49, %p50
      %p52 = scmp.ne.s32.totalorder %s41, %s44
      %p53 = scmp.eq.s32.totalorder %s17, 15
      %p54 = por %p52, %p53
      %p55 = scmp.ne.s32.totalorder %s44, %s45
      %p56 = scmp.eq.s32.totalorder %s17, 0
      %p57 = por %p55, %p56
      %p58 = scmp.ne.s32.totalorder %s44, %s45
      %p59 = scmp.eq.s32.totalorder %s18, 15
      %p60 = por %p58, %p59
      %p62 = scmp.ne.s32.totalorder %s45, %s61
      %p63 = scmp.eq.s32.totalorder %s18, 0
      %p64 = por %p62, %p63
      %s66 = sadd.s32 %s65, 1
      %p69 = scmp.eq.s32.totalorder %s12, 15
      %p70 = scmp.ne.s32.totalorder %s65, %s67
      %p71 = scmp.eq.s32.totalorder %s12, 0
      %p72 = por %p70, %p71
      %p73 = scmp.ne.s32.totalorder %s65, %s67
      %p74 = scmp.eq.s32.totalorder %s17, 15
      %p75 = por %p73, %p74
      %p76 = scmp.ne.s32.totalorder %s67, %s68
      %p77 = scmp.eq.s32.totalorder %s17, 0
      %p78 = por %p76, %p77
      %p79 = scmp.ne.s32.totalorder %s67, %s68
      %p80 = scmp.eq.s32.totalorder %s18, 15
      %p81 = por %p79, %p80
      %p83 = scmp.ne.s32.totalorder %s68, %s82
      %p84 = scmp.eq.s32.totalorder %s18, 0
      %p85 = por %p83, %p84
      %s87 = sadd.s32 %s86, 1
      %p90 = scmp.eq.s32.totalorder %s12, 15
      %p91 = scmp.ne.s32.totalorder %s86, %s88
      %p92 = scmp.eq.s32.totalorder %s12, 0
      %p93 = por %p91, %p92
      %p94 = scmp.ne.s32.totalorder %s86, %s88
      %p95 = scmp.eq.s32.totalorder %s17, 15
      %p96 = por %p94, %p95
      %p97 = scmp.ne.s32.totalorder %s88, %s89
      %p98 = scmp.eq.s32.totalorder %s17, 0
      %p99 = por %p97, %p98
      %p100 = scmp.ne.s32.totalorder %s88, %s89
      %p101 = scmp.eq.s32.totalorder %s18, 15
      %p102 = por %p100, %p101
      %p104 = scmp.ne.s32.totalorder %s89, %s103
      %p105 = scmp.eq.s32.totalorder %s18, 0
      %p106 = por %p104, %p105
      %s107 = ssub.s32 %s19, %s38
      %s108 = ssub.s32 %s20, %s34
      %s109 = sor.u32 %s107, %s108
      %s110 = ssub.s32 %s21, %s30
      %s111 = sor.u32 %s109, %s110
      %p112 = scmp.eq.s32.totalorder %s111, 0
      %s114 = sadd.s32 %s113, 1
      %s115 = scalar_select %p112, %s113, %s114
      %p118 = pneg %p112
      %p119 = scmp.eq.s32.totalorder %s12, 15
      %p120 = por %p118, %p119
      %p121 = scmp.ne.s32.totalorder %s113, %s116
      %p122 = scmp.eq.s32.totalorder %s12, 0
      %p123 = por %p121, %p122
      %p124 = scmp.ne.s32.totalorder %s113, %s116
      %p125 = scmp.eq.s32.totalorder %s17, 15
      %p126 = por %p124, %p125
      %p127 = scmp.ne.s32.totalorder %s116, %s117
      %p128 = scmp.eq.s32.totalorder %s17, 0
      %p129 = por %p127, %p128
      %p130 = scmp.ne.s32.totalorder %s116, %s117
      %p131 = scmp.eq.s32.totalorder %s18, 15
      %p132 = por %p130, %p131
      %p134 = scmp.ne.s32.totalorder %s117, %s133
      %p135 = scmp.eq.s32.totalorder %s18, 0
      %p136 = por %p134, %p135
      %p137 = scmp.le.s32.totalorder 1, %s12
      %p138 = scmp.lt.s32.totalorder %s12, 17
      %p139 = pnand %p137, %p138
      %p140 = pneg %p139
      // Predicated region
      $region9: #{tpu_custom_call.1} parent=5 // pred_check
        _
      $region10: #{tpu_custom_call.1} parent=5 // pred_check_branch
        %142 = sbr.rel (%p139) target = $region12
      $region11: #{tpu_custom_call.1} parent=5 // pred_region
        %s143 = ssub.s32 %s12, 1
        // Predicated region
        $region13: #{tpu_custom_call.1} parent=11 // pred_check
          %p144 = pneg %p78
        $region14: #{tpu_custom_call.1} parent=11 // pred_check_branch
          %146 = sbr.rel (%p144) target = $region16
        $region15: #{tpu_custom_call.1} parent=11 // pred_region
          _
        $region16: #{tpu_custom_call.1} parent=11 // pred_fallthru
          _
        // Predicated region
        $region17: #{tpu_custom_call.1} parent=11 // pred_check
          %p147 = pneg %p99
        $region18: #{tpu_custom_call.1} parent=11 // pred_check_branch
          %149 = sbr.rel (%p147) target = $region20
        $region19: #{tpu_custom_call.1} parent=11 // pred_region
          _
        $region20: #{tpu_custom_call.1} parent=11 // pred_fallthru
          _
      $region12: #{tpu_custom_call.1} parent=5 // pred_fallthru
        _
      %p150 = scmp.lt.s32.totalorder %s12, 16
      // Predicated region
      $region21: #{tpu_custom_call.1} parent=5 // pred_check
        %p151 = pneg %p150
      $region22: #{tpu_custom_call.1} parent=5 // pred_check_branch
        %153 = sbr.rel (%p151) target = $region24
      $region23: #{tpu_custom_call.1} parent=5 // pred_region
        // Predicated region
        $region25: #{tpu_custom_call.1} parent=23 // pred_check
          %p154 = pneg %p51
        $region26: #{tpu_custom_call.1} parent=23 // pred_check_branch
          %156 = sbr.rel (%p154) target = $region28
        $region27: #{tpu_custom_call.1} parent=23 // pred_region
          %p157 = scmp.lt.s32.totalorder %s19, 1
          %s158 = scalar_select %p157, %s19, 1
          %s159 = smul.addr %s158, 540
          %s160 = smul.addr %s159, 8
          %s161 = scalar_lea.vmem %s0, %s160
        $region28: #{tpu_custom_call.1} parent=23 // pred_fallthru
          _
      $region24: #{tpu_custom_call.1} parent=5 // pred_fallthru
        _
      %p162 = scmp.le.s32.totalorder 1, %s12
      %p163 = scmp.lt.s32.totalorder %s12, 17
      %p164 = pnand %p162, %p163
      %p165 = pneg %p164
      // Predicated region
      $region29: #{tpu_custom_call.1} parent=5 // pred_check
        _
      $region30: #{tpu_custom_call.1} parent=5 // pred_check_branch
        %167 = sbr.rel (%p164) target = $region32
      $region31: #{tpu_custom_call.1} parent=5 // pred_region
        %s168 = ssub.s32 %s12, 1
        %p169 = scmp.lt.s32.totalorder %s22, 1
        %s170 = scalar_select %p169, %s22, 1
        %s171 = smul.addr %s170, 540
        %s172 = smul.addr %s171, 8
        %s173 = scalar_lea.vmem %s0, %s172
        %p174 = pneg %p57
        %p175 = pneg %p54
        %p176 = pneg %p78
        %p177 = pneg %p75
        %p178 = pneg %p99
        %p179 = pneg %p96
        %p180 = pneg %p129
        %p181 = pneg %p126
        %s182 = sand.u32 %s116, 1
        %s183 = scalar_lea.sflag [#allocation4], %s182
        %s184 = sand.u32 %s116, 1
        %s185 = smul.addr %s184, 256
        %s186 = scalar_lea.vmem [#allocation3], %s185
        %p187 = scmp.lt.s32.totalorder %s22, 1
        %s188 = scalar_select %p187, %s22, 1
        %s189 = smul.addr %s188, 540
        %s190 = smul.addr %s189, 8
        %s191 = scalar_lea.vmem %s0, %s190
        %s192 = smul.u32 32, %s24
        %s193 = smul.u32 %s24, 16
        %s194 = smul.u32 %s193, 24
        %s195 = smul.u32 %s23, 432
        %s196 = sadd.s32 %s194, %s195
        %s197 = scalar_lea.vmem %s191, %s196
        %v198 = vld [vmem:[%s197] sm:$0xff]
        %v199 = vld [vmem:[%s197 + $0x8] sm:$0xff]
        %v200 = vld [vmem:[%s197 + $0x18] sm:$0xff]
        %v201 = vld [vmem:[%s197 + $0x20] sm:$0xff]
        %v202 = vld [vmem:[%s197 + $0x30] sm:$0xff]
        %v203 = vld [vmem:[%s197 + $0x38] sm:$0xff]
        %v204 = vld [vmem:[%s197 + $0x48] sm:$0xff]
        %v205 = vld [vmem:[%s197 + $0x50] sm:$0xff]
        %v206 = vld [vmem:[%s197 + $0x60] sm:$0xff]
        %v207 = vld [vmem:[%s197 + $0x68] sm:$0xff]
        %v208 = vld [vmem:[%s197 + $0x78] sm:$0xff]
        %v209 = vld [vmem:[%s197 + $0x80] sm:$0xff]
        %v210 = vld [vmem:[%s197 + $0x90] sm:$0xff]
        %v211 = vld [vmem:[%s197 + $0x98] sm:$0xff]
        %v212 = vld [vmem:[%s197 + $0xa8] sm:$0xff]
        %v213 = vld [vmem:[%s197 + $0xb0] sm:$0xff]
        %v214 = vld [vmem:[%s197 + $0xc0] sm:$0xff]
        %v215 = vld [vmem:[%s197 + $0xc8] sm:$0xff]
        %v216 = vld [vmem:[%s197 + $0xd8] sm:$0xff]
        %v217 = vld [vmem:[%s197 + $0xe0] sm:$0xff]
        %v218 = vld [vmem:[%s197 + $0xf0] sm:$0xff]
        %v219 = vld [vmem:[%s197 + $0xf8] sm:$0xff]
        %v220 = vld [vmem:[%s197 + $0x108] sm:$0xff]
        %v221 = vld [vmem:[%s197 + $0x110] sm:$0xff]
        %v222 = vld [vmem:[%s197 + $0x120] sm:$0xff]
        %v223 = vld [vmem:[%s197 + $0x128] sm:$0xff]
        %v224 = vld [vmem:[%s197 + $0x138] sm:$0xff]
        %v225 = vld [vmem:[%s197 + $0x140] sm:$0xff]
        %v226 = vld [vmem:[%s197 + $0x150] sm:$0xff]
        %v227 = vld [vmem:[%s197 + $0x158] sm:$0xff]
        %v228 = vld [vmem:[%s197 + $0x168] sm:$0xff]
        %v229 = vld [vmem:[%s197 + $0x170] sm:$0xff]
        %230 = vst [vmem:[#allocation2] sm:$0xff] %v198
        %231 = vst [vmem:[#allocation2 + $0xd8] sm:$0xff] %v199
        %232 = vst [vmem:[#allocation2 + $0x1b0] sm:$0xff] %v200
        %233 = vst [vmem:[#allocation2 + $0x288] sm:$0xff] %v201
        %234 = vst [vmem:[#allocation2 + $0x360] sm:$0xff] %v202
        %235 = vst [vmem:[#allocation2 + $0x438] sm:$0xff] %v203
        %236 = vst [vmem:[#allocation2 + $0x510] sm:$0xff] %v204
        %237 = vst [vmem:[#allocation2 + $0x5e8] sm:$0xff] %v205
        %238 = vst [vmem:[#allocation2 + $0x6c0] sm:$0xff] %v206
        %239 = vst [vmem:[#allocation2 + $0x798] sm:$0xff] %v207
        %240 = vst [vmem:[#allocation2 + $0x870] sm:$0xff] %v208
        %241 = vst [vmem:[#allocation2 + $0x948] sm:$0xff] %v209
        %242 = vst [vmem:[#allocation2 + $0xa20] sm:$0xff] %v210
        %243 = vst [vmem:[#allocation2 + $0xaf8] sm:$0xff] %v211
        %244 = vst [vmem:[#allocation2 + $0xbd0] sm:$0xff] %v212
        %245 = vst [vmem:[#allocation2 + $0xca8] sm:$0xff] %v213
        %246 = vst [vmem:[#allocation2 + $0xd80] sm:$0xff] %v214
        %247 = vst [vmem:[#allocation2 + $0xe58] sm:$0xff] %v215
        %248 = vst [vmem:[#allocation2 + $0xf30] sm:$0xff] %v216
        %249 = vst [vmem:[#allocation2 + $0x1008] sm:$0xff] %v217
        %250 = vst [vmem:[#allocation2 + $0x10e0] sm:$0xff] %v218
        %251 = vst [vmem:[#allocation2 + $0x11b8] sm:$0xff] %v219
        %252 = vst [vmem:[#allocation2 + $0x1290] sm:$0xff] %v220
        %253 = vst [vmem:[#allocation2 + $0x1368] sm:$0xff] %v221
        %254 = vst [vmem:[#allocation2 + $0x1440] sm:$0xff] %v222
        %255 = vst [vmem:[#allocation2 + $0x1518] sm:$0xff] %v223
        %256 = vst [vmem:[#allocation2 + $0x15f0] sm:$0xff] %v224
        %257 = vst [vmem:[#allocation2 + $0x16c8] sm:$0xff] %v225
        %258 = vst [vmem:[#allocation2 + $0x17a0] sm:$0xff] %v226
        %259 = vst [vmem:[#allocation2 + $0x1878] sm:$0xff] %v227
        %260 = vst [vmem:[#allocation2 + $0x1950] sm:$0xff] %v228
        %261 = vst [vmem:[#allocation2 + $0x1a28] sm:$0xff] %v229
        %v262 = vld [vmem:[%s197 + $0x1] sm:$0xff]
        %v263 = vld [vmem:[%s197 + $0x9] sm:$0xff]
        %v264 = vld [vmem:[%s197 + $0x19] sm:$0xff]
        %v265 = vld [vmem:[%s197 + $0x21] sm:$0xff]
        %v266 = vld [vmem:[%s197 + $0x31] sm:$0xff]
        %v267 = vld [vmem:[%s197 + $0x39] sm:$0xff]
        %v268 = vld [vmem:[%s197 + $0x49] sm:$0xff]
        %v269 = vld [vmem:[%s197 + $0x51] sm:$0xff]
        %v270 = vld [vmem:[%s197 + $0x61] sm:$0xff]
        %v271 = vld [vmem:[%s197 + $0x69] sm:$0xff]
        %v272 = vld [vmem:[%s197 + $0x79] sm:$0xff]
        %v273 = vld [vmem:[%s197 + $0x81] sm:$0xff]
        %v274 = vld [vmem:[%s197 + $0x91] sm:$0xff]
        %v275 = vld [vmem:[%s197 + $0x99] sm:$0xff]
        %v276 = vld [vmem:[%s197 + $0xa9] sm:$0xff]
        %v277 = vld [vmem:[%s197 + $0xb1] sm:$0xff]
        %v278 = vld [vmem:[%s197 + $0xc1] sm:$0xff]
        %v279 = vld [vmem:[%s197 + $0xc9] sm:$0xff]
        %v280 = vld [vmem:[%s197 + $0xd9] sm:$0xff]
        %v281 = vld [vmem:[%s197 + $0xe1] sm:$0xff]
        %v282 = vld [vmem:[%s197 + $0xf1] sm:$0xff]
        %v283 = vld [vmem:[%s197 + $0xf9] sm:$0xff]
        %v284 = vld [vmem:[%s197 + $0x109] sm:$0xff]
        %v285 = vld [vmem:[%s197 + $0x111] sm:$0xff]
        %v286 = vld [vmem:[%s197 + $0x121] sm:$0xff]
        %v287 = vld [vmem:[%s197 + $0x129] sm:$0xff]
        %v288 = vld [vmem:[%s197 + $0x139] sm:$0xff]
        %v289 = vld [vmem:[%s197 + $0x141] sm:$0xff]
        %v290 = vld [vmem:[%s197 + $0x151] sm:$0xff]
        %v291 = vld [vmem:[%s197 + $0x159] sm:$0xff]
        %v292 = vld [vmem:[%s197 + $0x169] sm:$0xff]
        %v293 = vld [vmem:[%s197 + $0x171] sm:$0xff]
        %294 = vst [vmem:[#allocation2 + $0x8] sm:$0xff] %v262
        %295 = vst [vmem:[#allocation2 + $0xe0] sm:$0xff] %v263
        %296 = vst [vmem:[#allocation2 + $0x1b8] sm:$0xff] %v264
        %297 = vst [vmem:[#allocation2 + $0x290] sm:$0xff] %v265
        %298 = vst [vmem:[#allocation2 + $0x368] sm:$0xff] %v266
        %299 = vst [vmem:[#allocation2 + $0x440] sm:$0xff] %v267
        %300 = vst [vmem:[#allocation2 + $0x518] sm:$0xff] %v268
        %301 = vst [vmem:[#allocation2 + $0x5f0] sm:$0xff] %v269
        %302 = vst [vmem:[#allocation2 + $0x6c8] sm:$0xff] %v270
        %303 = vst [vmem:[#allocation2 + $0x7a0] sm:$0xff] %v271
        %304 = vst [vmem:[#allocation2 + $0x878] sm:$0xff] %v272
        %305 = vst [vmem:[#allocation2 + $0x950] sm:$0xff] %v273
        %306 = vst [vmem:[#allocation2 + $0xa28] sm:$0xff] %v274
        %307 = vst [vmem:[#allocation2 + $0xb00] sm:$0xff] %v275
        %308 = vst [vmem:[#allocation2 + $0xbd8] sm:$0xff] %v276
        %309 = vst [vmem:[#allocation2 + $0xcb0] sm:$0xff] %v277
        %310 = vst [vmem:[#allocation2 + $0xd88] sm:$0xff] %v278
        %311 = vst [vmem:[#allocation2 + $0xe60] sm:$0xff] %v279
        %312 = vst [vmem:[#allocation2 + $0xf38] sm:$0xff] %v280
        %313 = vst [vmem:[#allocation2 + $0x1010] sm:$0xff] %v281
        %314 = vst [vmem:[#allocation2 + $0x10e8] sm:$0xff] %v282
        %315 = vst [vmem:[#allocation2 + $0x11c0] sm:$0xff] %v283
        %316 = vst [vmem:[#allocation2 + $0x1298] sm:$0xff] %v284
        %317 = vst [vmem:[#allocation2 + $0x1370] sm:$0xff] %v285
        %318 = vst [vmem:[#allocation2 + $0x1448] sm:$0xff] %v286
        %319 = vst [vmem:[#allocation2 + $0x1520] sm:$0xff] %v287
        %320 = vst [vmem:[#allocation2 + $0x15f8] sm:$0xff] %v288
        %321 = vst [vmem:[#allocation2 + $0x16d0] sm:$0xff] %v289
        %322 = vst [vmem:[#allocation2 + $0x17a8] sm:$0xff] %v290
        %323 = vst [vmem:[#allocation2 + $0x1880] sm:$0xff] %v291
        %324 = vst [vmem:[#allocation2 + $0x1958] sm:$0xff] %v292
        %325 = vst [vmem:[#allocation2 + $0x1a30] sm:$0xff] %v293
        %v326 = vld [vmem:[%s197 + $0x2] sm:$0xff]
        %v327 = vld [vmem:[%s197 + $0xa] sm:$0xff]
        %v328 = vld [vmem:[%s197 + $0x1a] sm:$0xff]
        %v329 = vld [vmem:[%s197 + $0x22] sm:$0xff]
        %v330 = vld [vmem:[%s197 + $0x32] sm:$0xff]
        %v331 = vld [vmem:[%s197 + $0x3a] sm:$0xff]
        %v332 = vld [vmem:[%s197 + $0x4a] sm:$0xff]
        %v333 = vld [vmem:[%s197 + $0x52] sm:$0xff]
        %v334 = vld [vmem:[%s197 + $0x62] sm:$0xff]
        %v335 = vld [vmem:[%s197 + $0x6a] sm:$0xff]
        %v336 = vld [vmem:[%s197 + $0x7a] sm:$0xff]
        %v337 = vld [vmem:[%s197 + $0x82] sm:$0xff]
        %v338 = vld [vmem:[%s197 + $0x92] sm:$0xff]
        %v339 = vld [vmem:[%s197 + $0x9a] sm:$0xff]
        %v340 = vld [vmem:[%s197 + $0xaa] sm:$0xff]
        %v341 = vld [vmem:[%s197 + $0xb2] sm:$0xff]
        %v342 = vld [vmem:[%s197 + $0xc2] sm:$0xff]
        %v343 = vld [vmem:[%s197 + $0xca] sm:$0xff]
        %v344 = vld [vmem:[%s197 + $0xda] sm:$0xff]
        %v345 = vld [vmem:[%s197 + $0xe2] sm:$0xff]
        %v346 = vld [vmem:[%s197 + $0xf2] sm:$0xff]
        %v347 = vld [vmem:[%s197 + $0xfa] sm:$0xff]
        %v348 = vld [vmem:[%s197 + $0x10a] sm:$0xff]
        %v349 = vld [vmem:[%s197 + $0x112] sm:$0xff]
        %v350 = vld [vmem:[%s197 + $0x122] sm:$0xff]
        %v351 = vld [vmem:[%s197 + $0x12a] sm:$0xff]
        %v352 = vld [vmem:[%s197 + $0x13a] sm:$0xff]
        %v353 = vld [vmem:[%s197 + $0x142] sm:$0xff]
        %v354 = vld [vmem:[%s197 + $0x152] sm:$0xff]
        %v355 = vld [vmem:[%s197 + $0x15a] sm:$0xff]
        %v356 = vld [vmem:[%s197 + $0x16a] sm:$0xff]
        %v357 = vld [vmem:[%s197 + $0x172] sm:$0xff]
        %358 = vst [vmem:[#allocation2 + $0x10] sm:$0xff] %v326
        %359 = vst [vmem:[#allocation2 + $0xe8] sm:$0xff] %v327
        %360 = vst [vmem:[#allocation2 + $0x1c0] sm:$0xff] %v328
        %361 = vst [vmem:[#allocation2 + $0x298] sm:$0xff] %v329
        %362 = vst [vmem:[#allocation2 + $0x370] sm:$0xff] %v330
        %363 = vst [vmem:[#allocation2 + $0x448] sm:$0xff] %v331
        %364 = vst [vmem:[#allocation2 + $0x520] sm:$0xff] %v332
        %365 = vst [vmem:[#allocation2 + $0x5f8] sm:$0xff] %v333
        %366 = vst [vmem:[#allocation2 + $0x6d0] sm:$0xff] %v334
        %367 = vst [vmem:[#allocation2 + $0x7a8] sm:$0xff] %v335
        %368 = vst [vmem:[#allocation2 + $0x880] sm:$0xff] %v336
        %369 = vst [vmem:[#allocation2 + $0x958] sm:$0xff] %v337
        %370 = vst [vmem:[#allocation2 + $0xa30] sm:$0xff] %v338
        %371 = vst [vmem:[#allocation2 + $0xb08] sm:$0xff] %v339
        %372 = vst [vmem:[#allocation2 + $0xbe0] sm:$0xff] %v340
        %373 = vst [vmem:[#allocation2 + $0xcb8] sm:$0xff] %v341
        %374 = vst [vmem:[#allocation2 + $0xd90] sm:$0xff] %v342
        %375 = vst [vmem:[#allocation2 + $0xe68] sm:$0xff] %v343
        %376 = vst [vmem:[#allocation2 + $0xf40] sm:$0xff] %v344
        %377 = vst [vmem:[#allocation2 + $0x1018] sm:$0xff] %v345
        %378 = vst [vmem:[#allocation2 + $0x10f0] sm:$0xff] %v346
        %379 = vst [vmem:[#allocation2 + $0x11c8] sm:$0xff] %v347
        %380 = vst [vmem:[#allocation2 + $0x12a0] sm:$0xff] %v348
        %381 = vst [vmem:[#allocation2 + $0x1378] sm:$0xff] %v349
        %382 = vst [vmem:[#allocation2 + $0x1450] sm:$0xff] %v350
        %383 = vst [vmem:[#allocation2 + $0x1528] sm:$0xff] %v351
        %384 = vst [vmem:[#allocation2 + $0x1600] sm:$0xff] %v352
        %385 = vst [vmem:[#allocation2 + $0x16d8] sm:$0xff] %v353
        %386 = vst [vmem:[#allocation2 + $0x17b0] sm:$0xff] %v354
        %387 = vst [vmem:[#allocation2 + $0x1888] sm:$0xff] %v355
        %388 = vst [vmem:[#allocation2 + $0x1960] sm:$0xff] %v356
        %389 = vst [vmem:[#allocation2 + $0x1a38] sm:$0xff] %v357
        %s390 = sadd.s32 %s193, 1
        %s391 = smul.u32 %s390, 24
        %s392 = sadd.s32 %s391, %s195
        %s393 = scalar_lea.vmem %s191, %s392
        %v394 = vld [vmem:[%s393] sm:$0xff]
        %v395 = vld [vmem:[%s393 + $0x8] sm:$0xff]
        %v396 = vld [vmem:[%s393 + $0x18] sm:$0xff]
        %v397 = vld [vmem:[%s393 + $0x20] sm:$0xff]
        %v398 = vld [vmem:[%s393 + $0x30] sm:$0xff]
        %v399 = vld [vmem:[%s393 + $0x38] sm:$0xff]
        %v400 = vld [vmem:[%s393 + $0x48] sm:$0xff]
        %v401 = vld [vmem:[%s393 + $0x50] sm:$0xff]
        %v402 = vld [vmem:[%s393 + $0x60] sm:$0xff]
        %v403 = vld [vmem:[%s393 + $0x68] sm:$0xff]
        %v404 = vld [vmem:[%s393 + $0x78] sm:$0xff]
        %v405 = vld [vmem:[%s393 + $0x80] sm:$0xff]
        %v406 = vld [vmem:[%s393 + $0x90] sm:$0xff]
        %v407 = vld [vmem:[%s393 + $0x98] sm:$0xff]
        %v408 = vld [vmem:[%s393 + $0xa8] sm:$0xff]
        %v409 = vld [vmem:[%s393 + $0xb0] sm:$0xff]
        %v410 = vld [vmem:[%s393 + $0xc0] sm:$0xff]
        %v411 = vld [vmem:[%s393 + $0xc8] sm:$0xff]
        %v412 = vld [vmem:[%s393 + $0xd8] sm:$0xff]
        %v413 = vld [vmem:[%s393 + $0xe0] sm:$0xff]
        %v414 = vld [vmem:[%s393 + $0xf0] sm:$0xff]
        %v415 = vld [vmem:[%s393 + $0xf8] sm:$0xff]
        %v416 = vld [vmem:[%s393 + $0x108] sm:$0xff]
        %v417 = vld [vmem:[%s393 + $0x110] sm:$0xff]
        %v418 = vld [vmem:[%s393 + $0x120] sm:$0xff]
        %v419 = vld [vmem:[%s393 + $0x128] sm:$0xff]
        %v420 = vld [vmem:[%s393 + $0x138] sm:$0xff]
        %v421 = vld [vmem:[%s393 + $0x140] sm:$0xff]
        %v422 = vld [vmem:[%s393 + $0x150] sm:$0xff]
        %v423 = vld [vmem:[%s393 + $0x158] sm:$0xff]
        %v424 = vld [vmem:[%s393 + $0x168] sm:$0xff]
        %v425 = vld [vmem:[%s393 + $0x170] sm:$0xff]
        %426 = vst [vmem:[#allocation2 + $0x18] sm:$0xff] %v394
        %427 = vst [vmem:[#allocation2 + $0xf0] sm:$0xff] %v395
        %428 = vst [vmem:[#allocation2 + $0x1c8] sm:$0xff] %v396
        %429 = vst [vmem:[#allocation2 + $0x2a0] sm:$0xff] %v397
        %430 = vst [vmem:[#allocation2 + $0x378] sm:$0xff] %v398
        %431 = vst [vmem:[#allocation2 + $0x450] sm:$0xff] %v399
        %432 = vst [vmem:[#allocation2 + $0x528] sm:$0xff] %v400
        %433 = vst [vmem:[#allocation2 + $0x600] sm:$0xff] %v401
        %434 = vst [vmem:[#allocation2 + $0x6d8] sm:$0xff] %v402
        %435 = vst [vmem:[#allocation2 + $0x7b0] sm:$0xff] %v403
        %436 = vst [vmem:[#allocation2 + $0x888] sm:$0xff] %v404
        %437 = vst [vmem:[#allocation2 + $0x960] sm:$0xff] %v405
        %438 = vst [vmem:[#allocation2 + $0xa38] sm:$0xff] %v406
        %439 = vst [vmem:[#allocation2 + $0xb10] sm:$0xff] %v407
        %440 = vst [vmem:[#allocation2 + $0xbe8] sm:$0xff] %v408
        %441 = vst [vmem:[#allocation2 + $0xcc0] sm:$0xff] %v409
        %442 = vst [vmem:[#allocation2 + $0xd98] sm:$0xff] %v410
        %443 = vst [vmem:[#allocation2 + $0xe70] sm:$0xff] %v411
        %444 = vst [vmem:[#allocation2 + $0xf48] sm:$0xff] %v412
        %445 = vst [vmem:[#allocation2 + $0x1020] sm:$0xff] %v413
        %446 = vst [vmem:[#allocation2 + $0x10f8] sm:$0xff] %v414
        %447 = vst [vmem:[#allocation2 + $0x11d0] sm:$0xff] %v415
        %448 = vst [vmem:[#allocation2 + $0x12a8] sm:$0xff] %v416
        %449 = vst [vmem:[#allocation2 + $0x1380] sm:$0xff] %v417
        %450 = vst [vmem:[#allocation2 + $0x1458] sm:$0xff] %v418
        %451 = vst [vmem:[#allocation2 + $0x1530] sm:$0xff] %v419
        %452 = vst [vmem:[#allocation2 + $0x1608] sm:$0xff] %v420
        %453 = vst [vmem:[#allocation2 + $0x16e0] sm:$0xff] %v421
        %454 = vst [vmem:[#allocation2 + $0x17b8] sm:$0xff] %v422
        %455 = vst [vmem:[#allocation2 + $0x1890] sm:$0xff] %v423
        %456 = vst [vmem:[#allocation2 + $0x1968] sm:$0xff] %v424
        %457 = vst [vmem:[#allocation2 + $0x1a40] sm:$0xff] %v425
        %v458 = vld [vmem:[%s393 + $0x1] sm:$0xff]
        %v459 = vld [vmem:[%s393 + $0x9] sm:$0xff]
        %v460 = vld [vmem:[%s393 + $0x19] sm:$0xff]
        %v461 = vld [vmem:[%s393 + $0x21] sm:$0xff]
        %v462 = vld [vmem:[%s393 + $0x31] sm:$0xff]
        %v463 = vld [vmem:[%s393 + $0x39] sm:$0xff]
        %v464 = vld [vmem:[%s393 + $0x49] sm:$0xff]
        %v465 = vld [vmem:[%s393 + $0x51] sm:$0xff]
        %v466 = vld [vmem:[%s393 + $0x61] sm:$0xff]
        %v467 = vld [vmem:[%s393 + $0x69] sm:$0xff]
        %v468 = vld [vmem:[%s393 + $0x79] sm:$0xff]
        %v469 = vld [vmem:[%s393 + $0x81] sm:$0xff]
        %v470 = vld [vmem:[%s393 + $0x91] sm:$0xff]
        %v471 = vld [vmem:[%s393 + $0x99] sm:$0xff]
        %v472 = vld [vmem:[%s393 + $0xa9] sm:$0xff]
        %v473 = vld [vmem:[%s393 + $0xb1] sm:$0xff]
        %v474 = vld [vmem:[%s393 + $0xc1] sm:$0xff]
        %v475 = vld [vmem:[%s393 + $0xc9] sm:$0xff]
        %v476 = vld [vmem:[%s393 + $0xd9] sm:$0xff]
        %v477 = vld [vmem:[%s393 + $0xe1] sm:$0xff]
        %v478 = vld [vmem:[%s393 + $0xf1] sm:$0xff]
        %v479 = vld [vmem:[%s393 + $0xf9] sm:$0xff]
        %v480 = vld [vmem:[%s393 + $0x109] sm:$0xff]
        %v481 = vld [vmem:[%s393 + $0x111] sm:$0xff]
        %v482 = vld [vmem:[%s393 + $0x121] sm:$0xff]
        %v483 = vld [vmem:[%s393 + $0x129] sm:$0xff]
        %v484 = vld [vmem:[%s393 + $0x139] sm:$0xff]
        %v485 = vld [vmem:[%s393 + $0x141] sm:$0xff]
        %v486 = vld [vmem:[%s393 + $0x151] sm:$0xff]
        %v487 = vld [vmem:[%s393 + $0x159] sm:$0xff]
        %v488 = vld [vmem:[%s393 + $0x169] sm:$0xff]
        %v489 = vld [vmem:[%s393 + $0x171] sm:$0xff]
        %490 = vst [vmem:[#allocation2 + $0x20] sm:$0xff] %v458
        %491 = vst [vmem:[#allocation2 + $0xf8] sm:$0xff] %v459
        %492 = vst [vmem:[#allocation2 + $0x1d0] sm:$0xff] %v460
        %493 = vst [vmem:[#allocation2 + $0x2a8] sm:$0xff] %v461
        %494 = vst [vmem:[#allocation2 + $0x380] sm:$0xff] %v462
        %495 = vst [vmem:[#allocation2 + $0x458] sm:$0xff] %v463
        %496 = vst [vmem:[#allocation2 + $0x530] sm:$0xff] %v464
        %497 = vst [vmem:[#allocation2 + $0x608] sm:$0xff] %v465
        %498 = vst [vmem:[#allocation2 + $0x6e0] sm:$0xff] %v466
        %499 = vst [vmem:[#allocation2 + $0x7b8] sm:$0xff] %v467
        %500 = vst [vmem:[#allocation2 + $0x890] sm:$0xff] %v468
        %501 = vst [vmem:[#allocation2 + $0x968] sm:$0xff] %v469
        %502 = vst [vmem:[#allocation2 + $0xa40] sm:$0xff] %v470
        %503 = vst [vmem:[#allocation2 + $0xb18] sm:$0xff] %v471
        %504 = vst [vmem:[#allocation2 + $0xbf0] sm:$0xff] %v472
        %505 = vst [vmem:[#allocation2 + $0xcc8] sm:$0xff] %v473
        %506 = vst [vmem:[#allocation2 + $0xda0] sm:$0xff] %v474
        %507 = vst [vmem:[#allocation2 + $0xe78] sm:$0xff] %v475
        %508 = vst [vmem:[#allocation2 + $0xf50] sm:$0xff] %v476
        %509 = vst [vmem:[#allocation2 + $0x1028] sm:$0xff] %v477
        %510 = vst [vmem:[#allocation2 + $0x1100] sm:$0xff] %v478
        %511 = vst [vmem:[#allocation2 + $0x11d8] sm:$0xff] %v479
        %512 = vst [vmem:[#allocation2 + $0x12b0] sm:$0xff] %v480
        %513 = vst [vmem:[#allocation2 + $0x1388] sm:$0xff] %v481
        %514 = vst [vmem:[#allocation2 + $0x1460] sm:$0xff] %v482
        %515 = vst [vmem:[#allocation2 + $0x1538] sm:$0xff] %v483
        %516 = vst [vmem:[#allocation2 + $0x1610] sm:$0xff] %v484
        %517 = vst [vmem:[#allocation2 + $0x16e8] sm:$0xff] %v485
        %518 = vst [vmem:[#allocation2 + $0x17c0] sm:$0xff] %v486
        %519 = vst [vmem:[#allocation2 + $0x1898] sm:$0xff] %v487
        %520 = vst [vmem:[#allocation2 + $0x1970] sm:$0xff] %v488
        %521 = vst [vmem:[#allocation2 + $0x1a48] sm:$0xff] %v489
        %v522 = vld [vmem:[%s393 + $0x2] sm:$0xff]
        %v523 = vld [vmem:[%s393 + $0xa] sm:$0xff]
        %v524 = vld [vmem:[%s393 + $0x1a] sm:$0xff]
        %v525 = vld [vmem:[%s393 + $0x22] sm:$0xff]
        %v526 = vld [vmem:[%s393 + $0x32] sm:$0xff]
        %v527 = vld [vmem:[%s393 + $0x3a] sm:$0xff]
        %v528 = vld [vmem:[%s393 + $0x4a] sm:$0xff]
        %v529 = vld [vmem:[%s393 + $0x52] sm:$0xff]
        %v530 = vld [vmem:[%s393 + $0x62] sm:$0xff]
        %v531 = vld [vmem:[%s393 + $0x6a] sm:$0xff]
        %v532 = vld [vmem:[%s393 + $0x7a] sm:$0xff]
        %v533 = vld [vmem:[%s393 + $0x82] sm:$0xff]
        %v534 = vld [vmem:[%s393 + $0x92] sm:$0xff]
        %v535 = vld [vmem:[%s393 + $0x9a] sm:$0xff]
        %v536 = vld [vmem:[%s393 + $0xaa] sm:$0xff]
        %v537 = vld [vmem:[%s393 + $0xb2] sm:$0xff]
        %v538 = vld [vmem:[%s393 + $0xc2] sm:$0xff]
        %v539 = vld [vmem:[%s393 + $0xca] sm:$0xff]
        %v540 = vld [vmem:[%s393 + $0xda] sm:$0xff]
        %v541 = vld [vmem:[%s393 + $0xe2] sm:$0xff]
        %v542 = vld [vmem:[%s393 + $0xf2] sm:$0xff]
        %v543 = vld [vmem:[%s393 + $0xfa] sm:$0xff]
        %v544 = vld [vmem:[%s393 + $0x10a] sm:$0xff]
        %v545 = vld [vmem:[%s393 + $0x112] sm:$0xff]
        %v546 = vld [vmem:[%s393 + $0x122] sm:$0xff]
        %v547 = vld [vmem:[%s393 + $0x12a] sm:$0xff]
        %v548 = vld [vmem:[%s393 + $0x13a] sm:$0xff]
        %v549 = vld [vmem:[%s393 + $0x142] sm:$0xff]
        %v550 = vld [vmem:[%s393 + $0x152] sm:$0xff]
        %v551 = vld [vmem:[%s393 + $0x15a] sm:$0xff]
        %v552 = vld [vmem:[%s393 + $0x16a] sm:$0xff]
        %v553 = vld [vmem:[%s393 + $0x172] sm:$0xff]
        %554 = vst [vmem:[#allocation2 + $0x28] sm:$0xff] %v522
        %555 = vst [vmem:[#allocation2 + $0x100] sm:$0xff] %v523
        %556 = vst [vmem:[#allocation2 + $0x1d8] sm:$0xff] %v524
        %557 = vst [vmem:[#allocation2 + $0x2b0] sm:$0xff] %v525
        %558 = vst [vmem:[#allocation2 + $0x388] sm:$0xff] %v526
        %559 = vst [vmem:[#allocation2 + $0x460] sm:$0xff] %v527
        %560 = vst [vmem:[#allocation2 + $0x538] sm:$0xff] %v528
        %561 = vst [vmem:[#allocation2 + $0x610] sm:$0xff] %v529
        %562 = vst [vmem:[#allocation2 + $0x6e8] sm:$0xff] %v530
        %563 = vst [vmem:[#allocation2 + $0x7c0] sm:$0xff] %v531
        %564 = vst [vmem:[#allocation2 + $0x898] sm:$0xff] %v532
        %565 = vst [vmem:[#allocation2 + $0x970] sm:$0xff] %v533
        %566 = vst [vmem:[#allocation2 + $0xa48] sm:$0xff] %v534
        %567 = vst [vmem:[#allocation2 + $0xb20] sm:$0xff] %v535
        %568 = vst [vmem:[#allocation2 + $0xbf8] sm:$0xff] %v536
        %569 = vst [vmem:[#allocation2 + $0xcd0] sm:$0xff] %v537
        %570 = vst [vmem:[#allocation2 + $0xda8] sm:$0xff] %v538
        %571 = vst [vmem:[#allocation2 + $0xe80] sm:$0xff] %v539
        %572 = vst [vmem:[#allocation2 + $0xf58] sm:$0xff] %v540
        %573 = vst [vmem:[#allocation2 + $0x1030] sm:$0xff] %v541
        %574 = vst [vmem:[#allocation2 + $0x1108] sm:$0xff] %v542
        %575 = vst [vmem:[#allocation2 + $0x11e0] sm:$0xff] %v543
        %576 = vst [vmem:[#allocation2 + $0x12b8] sm:$0xff] %v544
        %577 = vst [vmem:[#allocation2 + $0x1390] sm:$0xff] %v545
        %578 = vst [vmem:[#allocation2 + $0x1468] sm:$0xff] %v546
        %579 = vst [vmem:[#allocation2 + $0x1540] sm:$0xff] %v547
        %580 = vst [vmem:[#allocation2 + $0x1618] sm:$0xff] %v548
        %581 = vst [vmem:[#allocation2 + $0x16f0] sm:$0xff] %v549
        %582 = vst [vmem:[#allocation2 + $0x17c8] sm:$0xff] %v550
        %583 = vst [vmem:[#allocation2 + $0x18a0] sm:$0xff] %v551
        %584 = vst [vmem:[#allocation2 + $0x1978] sm:$0xff] %v552
        %585 = vst [vmem:[#allocation2 + $0x1a50] sm:$0xff] %v553
        %s586 = sadd.s32 %s193, 2
        %s587 = smul.u32 %s586, 24
        %s588 = sadd.s32 %s587, %s195
        %s589 = scalar_lea.vmem %s191, %s588
        %v590 = vld [vmem:[%s589] sm:$0xff]
        %v591 = vld [vmem:[%s589 + $0x8] sm:$0xff]
        %v592 = vld [vmem:[%s589 + $0x18] sm:$0xff]
        %v593 = vld [vmem:[%s589 + $0x20] sm:$0xff]
        %v594 = vld [vmem:[%s589 + $0x30] sm:$0xff]
        %v595 = vld [vmem:[%s589 + $0x38] sm:$0xff]
        %v596 = vld [vmem:[%s589 + $0x48] sm:$0xff]
        %v597 = vld [vmem:[%s589 + $0x50] sm:$0xff]
        %v598 = vld [vmem:[%s589 + $0x60] sm:$0xff]
        %v599 = vld [vmem:[%s589 + $0x68] sm:$0xff]
        %v600 = vld [vmem:[%s589 + $0x78] sm:$0xff]
        %v601 = vld [vmem:[%s589 + $0x80] sm:$0xff]
        %v602 = vld [vmem:[%s589 + $0x90] sm:$0xff]
        %v603 = vld [vmem:[%s589 + $0x98] sm:$0xff]
        %v604 = vld [vmem:[%s589 + $0xa8] sm:$0xff]
        %v605 = vld [vmem:[%s589 + $0xb0] sm:$0xff]
        %v606 = vld [vmem:[%s589 + $0xc0] sm:$0xff]
        %v607 = vld [vmem:[%s589 + $0xc8] sm:$0xff]
        %v608 = vld [vmem:[%s589 + $0xd8] sm:$0xff]
        %v609 = vld [vmem:[%s589 + $0xe0] sm:$0xff]
        %v610 = vld [vmem:[%s589 + $0xf0] sm:$0xff]
        %v611 = vld [vmem:[%s589 + $0xf8] sm:$0xff]
        %v612 = vld [vmem:[%s589 + $0x108] sm:$0xff]
        %v613 = vld [vmem:[%s589 + $0x110] sm:$0xff]
        %v614 = vld [vmem:[%s589 + $0x120] sm:$0xff]
        %v615 = vld [vmem:[%s589 + $0x128] sm:$0xff]
        %v616 = vld [vmem:[%s589 + $0x138] sm:$0xff]
        %v617 = vld [vmem:[%s589 + $0x140] sm:$0xff]
        %v618 = vld [vmem:[%s589 + $0x150] sm:$0xff]
        %v619 = vld [vmem:[%s589 + $0x158] sm:$0xff]
        %v620 = vld [vmem:[%s589 + $0x168] sm:$0xff]
        %v621 = vld [vmem:[%s589 + $0x170] sm:$0xff]
        %622 = vst [vmem:[#allocation2 + $0x30] sm:$0xff] %v590
        %623 = vst [vmem:[#allocation2 + $0x108] sm:$0xff] %v591
        %624 = vst [vmem:[#allocation2 + $0x1e0] sm:$0xff] %v592
        %625 = vst [vmem:[#allocation2 + $0x2b8] sm:$0xff] %v593
        %626 = vst [vmem:[#allocation2 + $0x390] sm:$0xff] %v594
        %627 = vst [vmem:[#allocation2 + $0x468] sm:$0xff] %v595
        %628 = vst [vmem:[#allocation2 + $0x540] sm:$0xff] %v596
        %629 = vst [vmem:[#allocation2 + $0x618] sm:$0xff] %v597
        %630 = vst [vmem:[#allocation2 + $0x6f0] sm:$0xff] %v598
        %631 = vst [vmem:[#allocation2 + $0x7c8] sm:$0xff] %v599
        %632 = vst [vmem:[#allocation2 + $0x8a0] sm:$0xff] %v600
        %633 = vst [vmem:[#allocation2 + $0x978] sm:$0xff] %v601
        %634 = vst [vmem:[#allocation2 + $0xa50] sm:$0xff] %v602
        %635 = vst [vmem:[#allocation2 + $0xb28] sm:$0xff] %v603
        %636 = vst [vmem:[#allocation2 + $0xc00] sm:$0xff] %v604
        %637 = vst [vmem:[#allocation2 + $0xcd8] sm:$0xff] %v605
        %638 = vst [vmem:[#allocation2 + $0xdb0] sm:$0xff] %v606
        %639 = vst [vmem:[#allocation2 + $0xe88] sm:$0xff] %v607
        %640 = vst [vmem:[#allocation2 + $0xf60] sm:$0xff] %v608
        %641 = vst [vmem:[#allocation2 + $0x1038] sm:$0xff] %v609
        %642 = vst [vmem:[#allocation2 + $0x1110] sm:$0xff] %v610
        %643 = vst [vmem:[#allocation2 + $0x11e8] sm:$0xff] %v611
        %644 = vst [vmem:[#allocation2 + $0x12c0] sm:$0xff] %v612
        %645 = vst [vmem:[#allocation2 + $0x1398] sm:$0xff] %v613
        %646 = vst [vmem:[#allocation2 + $0x1470] sm:$0xff] %v614
        %647 = vst [vmem:[#allocation2 + $0x1548] sm:$0xff] %v615
        %648 = vst [vmem:[#allocation2 + $0x1620] sm:$0xff] %v616
        %649 = vst [vmem:[#allocation2 + $0x16f8] sm:$0xff] %v617
        %650 = vst [vmem:[#allocation2 + $0x17d0] sm:$0xff] %v618
        %651 = vst [vmem:[#allocation2 + $0x18a8] sm:$0xff] %v619
        %652 = vst [vmem:[#allocation2 + $0x1980] sm:$0xff] %v620
        %653 = vst [vmem:[#allocation2 + $0x1a58] sm:$0xff] %v621
        %v654 = vld [vmem:[%s589 + $0x1] sm:$0xff]
        %v655 = vld [vmem:[%s589 + $0x9] sm:$0xff]
        %v656 = vld [vmem:[%s589 + $0x19] sm:$0xff]
        %v657 = vld [vmem:[%s589 + $0x21] sm:$0xff]
        %v658 = vld [vmem:[%s589 + $0x31] sm:$0xff]
        %v659 = vld [vmem:[%s589 + $0x39] sm:$0xff]
        %v660 = vld [vmem:[%s589 + $0x49] sm:$0xff]
        %v661 = vld [vmem:[%s589 + $0x51] sm:$0xff]
        %v662 = vld [vmem:[%s589 + $0x61] sm:$0xff]
        %v663 = vld [vmem:[%s589 + $0x69] sm:$0xff]
        %v664 = vld [vmem:[%s589 + $0x79] sm:$0xff]
        %v665 = vld [vmem:[%s589 + $0x81] sm:$0xff]
        %v666 = vld [vmem:[%s589 + $0x91] sm:$0xff]
        %v667 = vld [vmem:[%s589 + $0x99] sm:$0xff]
        %v668 = vld [vmem:[%s589 + $0xa9] sm:$0xff]
        %v669 = vld [vmem:[%s589 + $0xb1] sm:$0xff]
        %v670 = vld [vmem:[%s589 + $0xc1] sm:$0xff]
        %v671 = vld [vmem:[%s589 + $0xc9] sm:$0xff]
        %v672 = vld [vmem:[%s589 + $0xd9] sm:$0xff]
        %v673 = vld [vmem:[%s589 + $0xe1] sm:$0xff]
        %v674 = vld [vmem:[%s589 + $0xf1] sm:$0xff]
        %v675 = vld [vmem:[%s589 + $0xf9] sm:$0xff]
        %v676 = vld [vmem:[%s589 + $0x109] sm:$0xff]
        %v677 = vld [vmem:[%s589 + $0x111] sm:$0xff]
        %v678 = vld [vmem:[%s589 + $0x121] sm:$0xff]
        %v679 = vld [vmem:[%s589 + $0x129] sm:$0xff]
        %v680 = vld [vmem:[%s589 + $0x139] sm:$0xff]
        %v681 = vld [vmem:[%s589 + $0x141] sm:$0xff]
        %v682 = vld [vmem:[%s589 + $0x151] sm:$0xff]
        %v683 = vld [vmem:[%s589 + $0x159] sm:$0xff]
        %v684 = vld [vmem:[%s589 + $0x169] sm:$0xff]
        %v685 = vld [vmem:[%s589 + $0x171] sm:$0xff]
        %686 = vst [vmem:[#allocation2 + $0x38] sm:$0xff] %v654
        %687 = vst [vmem:[#allocation2 + $0x110] sm:$0xff] %v655
        %688 = vst [vmem:[#allocation2 + $0x1e8] sm:$0xff] %v656
        %689 = vst [vmem:[#allocation2 + $0x2c0] sm:$0xff] %v657
        %690 = vst [vmem:[#allocation2 + $0x398] sm:$0xff] %v658
        %691 = vst [vmem:[#allocation2 + $0x470] sm:$0xff] %v659
        %692 = vst [vmem:[#allocation2 + $0x548] sm:$0xff] %v660
        %693 = vst [vmem:[#allocation2 + $0x620] sm:$0xff] %v661
        %694 = vst [vmem:[#allocation2 + $0x6f8] sm:$0xff] %v662
        %695 = vst [vmem:[#allocation2 + $0x7d0] sm:$0xff] %v663
        %696 = vst [vmem:[#allocation2 + $0x8a8] sm:$0xff] %v664
        %697 = vst [vmem:[#allocation2 + $0x980] sm:$0xff] %v665
        %698 = vst [vmem:[#allocation2 + $0xa58] sm:$0xff] %v666
        %699 = vst [vmem:[#allocation2 + $0xb30] sm:$0xff] %v667
        %700 = vst [vmem:[#allocation2 + $0xc08] sm:$0xff] %v668
        %701 = vst [vmem:[#allocation2 + $0xce0] sm:$0xff] %v669
        %702 = vst [vmem:[#allocation2 + $0xdb8] sm:$0xff] %v670
        %703 = vst [vmem:[#allocation2 + $0xe90] sm:$0xff] %v671
        %704 = vst [vmem:[#allocation2 + $0xf68] sm:$0xff] %v672
        %705 = vst [vmem:[#allocation2 + $0x1040] sm:$0xff] %v673
        %706 = vst [vmem:[#allocation2 + $0x1118] sm:$0xff] %v674
        %707 = vst [vmem:[#allocation2 + $0x11f0] sm:$0xff] %v675
        %708 = vst [vmem:[#allocation2 + $0x12c8] sm:$0xff] %v676
        %709 = vst [vmem:[#allocation2 + $0x13a0] sm:$0xff] %v677
        %710 = vst [vmem:[#allocation2 + $0x1478] sm:$0xff] %v678
        %711 = vst [vmem:[#allocation2 + $0x1550] sm:$0xff] %v679
        %712 = vst [vmem:[#allocation2 + $0x1628] sm:$0xff] %v680
        %713 = vst [vmem:[#allocation2 + $0x1700] sm:$0xff] %v681
        %714 = vst [vmem:[#allocation2 + $0x17d8] sm:$0xff] %v682
        %715 = vst [vmem:[#allocation2 + $0x18b0] sm:$0xff] %v683
        %716 = vst [vmem:[#allocation2 + $0x1988] sm:$0xff] %v684
        %717 = vst [vmem:[#allocation2 + $0x1a60] sm:$0xff] %v685
        %v718 = vld [vmem:[%s589 + $0x2] sm:$0xff]
        %v719 = vld [vmem:[%s589 + $0xa] sm:$0xff]
        %v720 = vld [vmem:[%s589 + $0x1a] sm:$0xff]
        %v721 = vld [vmem:[%s589 + $0x22] sm:$0xff]
        %v722 = vld [vmem:[%s589 + $0x32] sm:$0xff]
        %v723 = vld [vmem:[%s589 + $0x3a] sm:$0xff]
        %v724 = vld [vmem:[%s589 + $0x4a] sm:$0xff]
        %v725 = vld [vmem:[%s589 + $0x52] sm:$0xff]
        %v726 = vld [vmem:[%s589 + $0x62] sm:$0xff]
        %v727 = vld [vmem:[%s589 + $0x6a] sm:$0xff]
        %v728 = vld [vmem:[%s589 + $0x7a] sm:$0xff]
        %v729 = vld [vmem:[%s589 + $0x82] sm:$0xff]
        %v730 = vld [vmem:[%s589 + $0x92] sm:$0xff]
        %v731 = vld [vmem:[%s589 + $0x9a] sm:$0xff]
        %v732 = vld [vmem:[%s589 + $0xaa] sm:$0xff]
        %v733 = vld [vmem:[%s589 + $0xb2] sm:$0xff]
        %v734 = vld [vmem:[%s589 + $0xc2] sm:$0xff]
        %v735 = vld [vmem:[%s589 + $0xca] sm:$0xff]
        %v736 = vld [vmem:[%s589 + $0xda] sm:$0xff]
        %v737 = vld [vmem:[%s589 + $0xe2] sm:$0xff]
        %v738 = vld [vmem:[%s589 + $0xf2] sm:$0xff]
        %v739 = vld [vmem:[%s589 + $0xfa] sm:$0xff]
        %v740 = vld [vmem:[%s589 + $0x10a] sm:$0xff]
        %v741 = vld [vmem:[%s589 + $0x112] sm:$0xff]
        %v742 = vld [vmem:[%s589 + $0x122] sm:$0xff]
        %v743 = vld [vmem:[%s589 + $0x12a] sm:$0xff]
        %v744 = vld [vmem:[%s589 + $0x13a] sm:$0xff]
        %v745 = vld [vmem:[%s589 + $0x142] sm:$0xff]
        %v746 = vld [vmem:[%s589 + $0x152] sm:$0xff]
        %v747 = vld [vmem:[%s589 + $0x15a] sm:$0xff]
        %v748 = vld [vmem:[%s589 + $0x16a] sm:$0xff]
        %v749 = vld [vmem:[%s589 + $0x172] sm:$0xff]
        %750 = vst [vmem:[#allocation2 + $0x40] sm:$0xff] %v718
        %751 = vst [vmem:[#allocation2 + $0x118] sm:$0xff] %v719
        %752 = vst [vmem:[#allocation2 + $0x1f0] sm:$0xff] %v720
        %753 = vst [vmem:[#allocation2 + $0x2c8] sm:$0xff] %v721
        %754 = vst [vmem:[#allocation2 + $0x3a0] sm:$0xff] %v722
        %755 = vst [vmem:[#allocation2 + $0x478] sm:$0xff] %v723
        %756 = vst [vmem:[#allocation2 + $0x550] sm:$0xff] %v724
        %757 = vst [vmem:[#allocation2 + $0x628] sm:$0xff] %v725
        %758 = vst [vmem:[#allocation2 + $0x700] sm:$0xff] %v726
        %759 = vst [vmem:[#allocation2 + $0x7d8] sm:$0xff] %v727
        %760 = vst [vmem:[#allocation2 + $0x8b0] sm:$0xff] %v728
        %761 = vst [vmem:[#allocation2 + $0x988] sm:$0xff] %v729
        %762 = vst [vmem:[#allocation2 + $0xa60] sm:$0xff] %v730
        %763 = vst [vmem:[#allocation2 + $0xb38] sm:$0xff] %v731
        %764 = vst [vmem:[#allocation2 + $0xc10] sm:$0xff] %v732
        %765 = vst [vmem:[#allocation2 + $0xce8] sm:$0xff] %v733
        %766 = vst [vmem:[#allocation2 + $0xdc0] sm:$0xff] %v734
        %767 = vst [vmem:[#allocation2 + $0xe98] sm:$0xff] %v735
        %768 = vst [vmem:[#allocation2 + $0xf70] sm:$0xff] %v736
        %769 = vst [vmem:[#allocation2 + $0x1048] sm:$0xff] %v737
        %770 = vst [vmem:[#allocation2 + $0x1120] sm:$0xff] %v738
        %771 = vst [vmem:[#allocation2 + $0x11f8] sm:$0xff] %v739
        %772 = vst [vmem:[#allocation2 + $0x12d0] sm:$0xff] %v740
        %773 = vst [vmem:[#allocation2 + $0x13a8] sm:$0xff] %v741
        %774 = vst [vmem:[#allocation2 + $0x1480] sm:$0xff] %v742
        %775 = vst [vmem:[#allocation2 + $0x1558] sm:$0xff] %v743
        %776 = vst [vmem:[#allocation2 + $0x1630] sm:$0xff] %v744
        %777 = vst [vmem:[#allocation2 + $0x1708] sm:$0xff] %v745
        %778 = vst [vmem:[#allocation2 + $0x17e0] sm:$0xff] %v746
        %779 = vst [vmem:[#allocation2 + $0x18b8] sm:$0xff] %v747
        %780 = vst [vmem:[#allocation2 + $0x1990] sm:$0xff] %v748
        %781 = vst [vmem:[#allocation2 + $0x1a68] sm:$0xff] %v749
        %s782 = sadd.s32 %s23, 1
        %s783 = smul.u32 %s782, 432
        %s784 = sadd.s32 %s194, %s783
        %s785 = scalar_lea.vmem %s191, %s784
        %v786 = vld [vmem:[%s785] sm:$0xff]
        %v787 = vld [vmem:[%s785 + $0x8] sm:$0xff]
        %v788 = vld [vmem:[%s785 + $0x18] sm:$0xff]
        %v789 = vld [vmem:[%s785 + $0x20] sm:$0xff]
        %v790 = vld [vmem:[%s785 + $0x30] sm:$0xff]
        %v791 = vld [vmem:[%s785 + $0x38] sm:$0xff]
        %v792 = vld [vmem:[%s785 + $0x48] sm:$0xff]
        %v793 = vld [vmem:[%s785 + $0x50] sm:$0xff]
        %v794 = vld [vmem:[%s785 + $0x60] sm:$0xff]
        %v795 = vld [vmem:[%s785 + $0x68] sm:$0xff]
        %v796 = vld [vmem:[%s785 + $0x78] sm:$0xff]
        %v797 = vld [vmem:[%s785 + $0x80] sm:$0xff]
        %v798 = vld [vmem:[%s785 + $0x90] sm:$0xff]
        %v799 = vld [vmem:[%s785 + $0x98] sm:$0xff]
        %v800 = vld [vmem:[%s785 + $0xa8] sm:$0xff]
        %v801 = vld [vmem:[%s785 + $0xb0] sm:$0xff]
        %v802 = vld [vmem:[%s785 + $0xc0] sm:$0xff]
        %v803 = vld [vmem:[%s785 + $0xc8] sm:$0xff]
        %v804 = vld [vmem:[%s785 + $0xd8] sm:$0xff]
        %v805 = vld [vmem:[%s785 + $0xe0] sm:$0xff]
        %v806 = vld [vmem:[%s785 + $0xf0] sm:$0xff]
        %v807 = vld [vmem:[%s785 + $0xf8] sm:$0xff]
        %v808 = vld [vmem:[%s785 + $0x108] sm:$0xff]
        %v809 = vld [vmem:[%s785 + $0x110] sm:$0xff]
        %v810 = vld [vmem:[%s785 + $0x120] sm:$0xff]
        %v811 = vld [vmem:[%s785 + $0x128] sm:$0xff]
        %v812 = vld [vmem:[%s785 + $0x138] sm:$0xff]
        %v813 = vld [vmem:[%s785 + $0x140] sm:$0xff]
        %v814 = vld [vmem:[%s785 + $0x150] sm:$0xff]
        %v815 = vld [vmem:[%s785 + $0x158] sm:$0xff]
        %v816 = vld [vmem:[%s785 + $0x168] sm:$0xff]
        %v817 = vld [vmem:[%s785 + $0x170] sm:$0xff]
        %818 = vst [vmem:[#allocation2 + $0x48] sm:$0xff] %v786
        %819 = vst [vmem:[#allocation2 + $0x120] sm:$0xff] %v787
        %820 = vst [vmem:[#allocation2 + $0x1f8] sm:$0xff] %v788
        %821 = vst [vmem:[#allocation2 + $0x2d0] sm:$0xff] %v789
        %822 = vst [vmem:[#allocation2 + $0x3a8] sm:$0xff] %v790
        %823 = vst [vmem:[#allocation2 + $0x480] sm:$0xff] %v791
        %824 = vst [vmem:[#allocation2 + $0x558] sm:$0xff] %v792
        %825 = vst [vmem:[#allocation2 + $0x630] sm:$0xff] %v793
        %826 = vst [vmem:[#allocation2 + $0x708] sm:$0xff] %v794
        %827 = vst [vmem:[#allocation2 + $0x7e0] sm:$0xff] %v795
        %828 = vst [vmem:[#allocation2 + $0x8b8] sm:$0xff] %v796
        %829 = vst [vmem:[#allocation2 + $0x990] sm:$0xff] %v797
        %830 = vst [vmem:[#allocation2 + $0xa68] sm:$0xff] %v798
        %831 = vst [vmem:[#allocation2 + $0xb40] sm:$0xff] %v799
        %832 = vst [vmem:[#allocation2 + $0xc18] sm:$0xff] %v800
        %833 = vst [vmem:[#allocation2 + $0xcf0] sm:$0xff] %v801
        %834 = vst [vmem:[#allocation2 + $0xdc8] sm:$0xff] %v802
        %835 = vst [vmem:[#allocation2 + $0xea0] sm:$0xff] %v803
        %836 = vst [vmem:[#allocation2 + $0xf78] sm:$0xff] %v804
        %837 = vst [vmem:[#allocation2 + $0x1050] sm:$0xff] %v805
        %838 = vst [vmem:[#allocation2 + $0x1128] sm:$0xff] %v806
        %839 = vst [vmem:[#allocation2 + $0x1200] sm:$0xff] %v807
        %840 = vst [vmem:[#allocation2 + $0x12d8] sm:$0xff] %v808
        %841 = vst [vmem:[#allocation2 + $0x13b0] sm:$0xff] %v809
        %842 = vst [vmem:[#allocation2 + $0x1488] sm:$0xff] %v810
        %843 = vst [vmem:[#allocation2 + $0x1560] sm:$0xff] %v811
        %844 = vst [vmem:[#allocation2 + $0x1638] sm:$0xff] %v812
        %845 = vst [vmem:[#allocation2 + $0x1710] sm:$0xff] %v813
        %846 = vst [vmem:[#allocation2 + $0x17e8] sm:$0xff] %v814
        %847 = vst [vmem:[#allocation2 + $0x18c0] sm:$0xff] %v815
        %848 = vst [vmem:[#allocation2 + $0x1998] sm:$0xff] %v816
        %849 = vst [vmem:[#allocation2 + $0x1a70] sm:$0xff] %v817
        %v850 = vld [vmem:[%s785 + $0x1] sm:$0xff]
        %v851 = vld [vmem:[%s785 + $0x9] sm:$0xff]
        %v852 = vld [vmem:[%s785 + $0x19] sm:$0xff]
        %v853 = vld [vmem:[%s785 + $0x21] sm:$0xff]
        %v854 = vld [vmem:[%s785 + $0x31] sm:$0xff]
        %v855 = vld [vmem:[%s785 + $0x39] sm:$0xff]
        %v856 = vld [vmem:[%s785 + $0x49] sm:$0xff]
        %v857 = vld [vmem:[%s785 + $0x51] sm:$0xff]
        %v858 = vld [vmem:[%s785 + $0x61] sm:$0xff]
        %v859 = vld [vmem:[%s785 + $0x69] sm:$0xff]
        %v860 = vld [vmem:[%s785 + $0x79] sm:$0xff]
        %v861 = vld [vmem:[%s785 + $0x81] sm:$0xff]
        %v862 = vld [vmem:[%s785 + $0x91] sm:$0xff]
        %v863 = vld [vmem:[%s785 + $0x99] sm:$0xff]
        %v864 = vld [vmem:[%s785 + $0xa9] sm:$0xff]
        %v865 = vld [vmem:[%s785 + $0xb1] sm:$0xff]
        %v866 = vld [vmem:[%s785 + $0xc1] sm:$0xff]
        %v867 = vld [vmem:[%s785 + $0xc9] sm:$0xff]
        %v868 = vld [vmem:[%s785 + $0xd9] sm:$0xff]
        %v869 = vld [vmem:[%s785 + $0xe1] sm:$0xff]
        %v870 = vld [vmem:[%s785 + $0xf1] sm:$0xff]
        %v871 = vld [vmem:[%s785 + $0xf9] sm:$0xff]
        %v872 = vld [vmem:[%s785 + $0x109] sm:$0xff]
        %v873 = vld [vmem:[%s785 + $0x111] sm:$0xff]
        %v874 = vld [vmem:[%s785 + $0x121] sm:$0xff]
        %v875 = vld [vmem:[%s785 + $0x129] sm:$0xff]
        %v876 = vld [vmem:[%s785 + $0x139] sm:$0xff]
        %v877 = vld [vmem:[%s785 + $0x141] sm:$0xff]
        %v878 = vld [vmem:[%s785 + $0x151] sm:$0xff]
        %v879 = vld [vmem:[%s785 + $0x159] sm:$0xff]
        %v880 = vld [vmem:[%s785 + $0x169] sm:$0xff]
        %v881 = vld [vmem:[%s785 + $0x171] sm:$0xff]
        %882 = vst [vmem:[#allocation2 + $0x50] sm:$0xff] %v850
        %883 = vst [vmem:[#allocation2 + $0x128] sm:$0xff] %v851
        %884 = vst [vmem:[#allocation2 + $0x200] sm:$0xff] %v852
        %885 = vst [vmem:[#allocation2 + $0x2d8] sm:$0xff] %v853
        %886 = vst [vmem:[#allocation2 + $0x3b0] sm:$0xff] %v854
        %887 = vst [vmem:[#allocation2 + $0x488] sm:$0xff] %v855
        %888 = vst [vmem:[#allocation2 + $0x560] sm:$0xff] %v856
        %889 = vst [vmem:[#allocation2 + $0x638] sm:$0xff] %v857
        %890 = vst [vmem:[#allocation2 + $0x710] sm:$0xff] %v858
        %891 = vst [vmem:[#allocation2 + $0x7e8] sm:$0xff] %v859
        %892 = vst [vmem:[#allocation2 + $0x8c0] sm:$0xff] %v860
        %893 = vst [vmem:[#allocation2 + $0x998] sm:$0xff] %v861
        %894 = vst [vmem:[#allocation2 + $0xa70] sm:$0xff] %v862
        %895 = vst [vmem:[#allocation2 + $0xb48] sm:$0xff] %v863
        %896 = vst [vmem:[#allocation2 + $0xc20] sm:$0xff] %v864
        %897 = vst [vmem:[#allocation2 + $0xcf8] sm:$0xff] %v865
        %898 = vst [vmem:[#allocation2 + $0xdd0] sm:$0xff] %v866
        %899 = vst [vmem:[#allocation2 + $0xea8] sm:$0xff] %v867
        %900 = vst [vmem:[#allocation2 + $0xf80] sm:$0xff] %v868
        %901 = vst [vmem:[#allocation2 + $0x1058] sm:$0xff] %v869
        %902 = vst [vmem:[#allocation2 + $0x1130] sm:$0xff] %v870
        %903 = vst [vmem:[#allocation2 + $0x1208] sm:$0xff] %v871
        %904 = vst [vmem:[#allocation2 + $0x12e0] sm:$0xff] %v872
        %905 = vst [vmem:[#allocation2 + $0x13b8] sm:$0xff] %v873
        %906 = vst [vmem:[#allocation2 + $0x1490] sm:$0xff] %v874
        %907 = vst [vmem:[#allocation2 + $0x1568] sm:$0xff] %v875
        %908 = vst [vmem:[#allocation2 + $0x1640] sm:$0xff] %v876
        %909 = vst [vmem:[#allocation2 + $0x1718] sm:$0xff] %v877
        %910 = vst [vmem:[#allocation2 + $0x17f0] sm:$0xff] %v878
        %911 = vst [vmem:[#allocation2 + $0x18c8] sm:$0xff] %v879
        %912 = vst [vmem:[#allocation2 + $0x19a0] sm:$0xff] %v880
        %913 = vst [vmem:[#allocation2 + $0x1a78] sm:$0xff] %v881
        %v914 = vld [vmem:[%s785 + $0x2] sm:$0xff]
        %v915 = vld [vmem:[%s785 + $0xa] sm:$0xff]
        %v916 = vld [vmem:[%s785 + $0x1a] sm:$0xff]
        %v917 = vld [vmem:[%s785 + $0x22] sm:$0xff]
        %v918 = vld [vmem:[%s785 + $0x32] sm:$0xff]
        %v919 = vld [vmem:[%s785 + $0x3a] sm:$0xff]
        %v920 = vld [vmem:[%s785 + $0x4a] sm:$0xff]
        %v921 = vld [vmem:[%s785 + $0x52] sm:$0xff]
        %v922 = vld [vmem:[%s785 + $0x62] sm:$0xff]
        %v923 = vld [vmem:[%s785 + $0x6a] sm:$0xff]
        %v924 = vld [vmem:[%s785 + $0x7a] sm:$0xff]
        %v925 = vld [vmem:[%s785 + $0x82] sm:$0xff]
        %v926 = vld [vmem:[%s785 + $0x92] sm:$0xff]
        %v927 = vld [vmem:[%s785 + $0x9a] sm:$0xff]
        %v928 = vld [vmem:[%s785 + $0xaa] sm:$0xff]
        %v929 = vld [vmem:[%s785 + $0xb2] sm:$0xff]
        %v930 = vld [vmem:[%s785 + $0xc2] sm:$0xff]
        %v931 = vld [vmem:[%s785 + $0xca] sm:$0xff]
        %v932 = vld [vmem:[%s785 + $0xda] sm:$0xff]
        %v933 = vld [vmem:[%s785 + $0xe2] sm:$0xff]
        %v934 = vld [vmem:[%s785 + $0xf2] sm:$0xff]
        %v935 = vld [vmem:[%s785 + $0xfa] sm:$0xff]
        %v936 = vld [vmem:[%s785 + $0x10a] sm:$0xff]
        %v937 = vld [vmem:[%s785 + $0x112] sm:$0xff]
        %v938 = vld [vmem:[%s785 + $0x122] sm:$0xff]
        %v939 = vld [vmem:[%s785 + $0x12a] sm:$0xff]
        %v940 = vld [vmem:[%s785 + $0x13a] sm:$0xff]
        %v941 = vld [vmem:[%s785 + $0x142] sm:$0xff]
        %v942 = vld [vmem:[%s785 + $0x152] sm:$0xff]
        %v943 = vld [vmem:[%s785 + $0x15a] sm:$0xff]
        %v944 = vld [vmem:[%s785 + $0x16a] sm:$0xff]
        %v945 = vld [vmem:[%s785 + $0x172] sm:$0xff]
        %946 = vst [vmem:[#allocation2 + $0x58] sm:$0xff] %v914
        %947 = vst [vmem:[#allocation2 + $0x130] sm:$0xff] %v915
        %948 = vst [vmem:[#allocation2 + $0x208] sm:$0xff] %v916
        %949 = vst [vmem:[#allocation2 + $0x2e0] sm:$0xff] %v917
        %950 = vst [vmem:[#allocation2 + $0x3b8] sm:$0xff] %v918
        %951 = vst [vmem:[#allocation2 + $0x490] sm:$0xff] %v919
        %952 = vst [vmem:[#allocation2 + $0x568] sm:$0xff] %v920
        %953 = vst [vmem:[#allocation2 + $0x640] sm:$0xff] %v921
        %954 = vst [vmem:[#allocation2 + $0x718] sm:$0xff] %v922
        %955 = vst [vmem:[#allocation2 + $0x7f0] sm:$0xff] %v923
        %956 = vst [vmem:[#allocation2 + $0x8c8] sm:$0xff] %v924
        %957 = vst [vmem:[#allocation2 + $0x9a0] sm:$0xff] %v925
        %958 = vst [vmem:[#allocation2 + $0xa78] sm:$0xff] %v926
        %959 = vst [vmem:[#allocation2 + $0xb50] sm:$0xff] %v927
        %960 = vst [vmem:[#allocation2 + $0xc28] sm:$0xff] %v928
        %961 = vst [vmem:[#allocation2 + $0xd00] sm:$0xff] %v929
        %962 = vst [vmem:[#allocation2 + $0xdd8] sm:$0xff] %v930
        %963 = vst [vmem:[#allocation2 + $0xeb0] sm:$0xff] %v931
        %964 = vst [vmem:[#allocation2 + $0xf88] sm:$0xff] %v932
        %965 = vst [vmem:[#allocation2 + $0x1060] sm:$0xff] %v933
        %966 = vst [vmem:[#allocation2 + $0x1138] sm:$0xff] %v934
        %967 = vst [vmem:[#allocation2 + $0x1210] sm:$0xff] %v935
        %968 = vst [vmem:[#allocation2 + $0x12e8] sm:$0xff] %v936
        %969 = vst [vmem:[#allocation2 + $0x13c0] sm:$0xff] %v937
        %970 = vst [vmem:[#allocation2 + $0x1498] sm:$0xff] %v938
        %971 = vst [vmem:[#allocation2 + $0x1570] sm:$0xff] %v939
        %972 = vst [vmem:[#allocation2 + $0x1648] sm:$0xff] %v940
        %973 = vst [vmem:[#allocation2 + $0x1720] sm:$0xff] %v941
        %974 = vst [vmem:[#allocation2 + $0x17f8] sm:$0xff] %v942
        %975 = vst [vmem:[#allocation2 + $0x18d0] sm:$0xff] %v943
        %976 = vst [vmem:[#allocation2 + $0x19a8] sm:$0xff] %v944
        %977 = vst [vmem:[#allocation2 + $0x1a80] sm:$0xff] %v945
        %s978 = sadd.s32 %s391, %s783
        %s979 = scalar_lea.vmem %s191, %s978
        %v980 = vld [vmem:[%s979] sm:$0xff]
        %v981 = vld [vmem:[%s979 + $0x8] sm:$0xff]
        %v982 = vld [vmem:[%s979 + $0x18] sm:$0xff]
        %v983 = vld [vmem:[%s979 + $0x20] sm:$0xff]
        %v984 = vld [vmem:[%s979 + $0x30] sm:$0xff]
        %v985 = vld [vmem:[%s979 + $0x38] sm:$0xff]
        %v986 = vld [vmem:[%s979 + $0x48] sm:$0xff]
        %v987 = vld [vmem:[%s979 + $0x50] sm:$0xff]
        %v988 = vld [vmem:[%s979 + $0x60] sm:$0xff]
        %v989 = vld [vmem:[%s979 + $0x68] sm:$0xff]
        %v990 = vld [vmem:[%s979 + $0x78] sm:$0xff]
        %v991 = vld [vmem:[%s979 + $0x80] sm:$0xff]
        %v992 = vld [vmem:[%s979 + $0x90] sm:$0xff]
        %v993 = vld [vmem:[%s979 + $0x98] sm:$0xff]
        %v994 = vld [vmem:[%s979 + $0xa8] sm:$0xff]
        %v995 = vld [vmem:[%s979 + $0xb0] sm:$0xff]
        %v996 = vld [vmem:[%s979 + $0xc0] sm:$0xff]
        %v997 = vld [vmem:[%s979 + $0xc8] sm:$0xff]
        %v998 = vld [vmem:[%s979 + $0xd8] sm:$0xff]
        %v999 = vld [vmem:[%s979 + $0xe0] sm:$0xff]
        %v1000 = vld [vmem:[%s979 + $0xf0] sm:$0xff]
        %v1001 = vld [vmem:[%s979 + $0xf8] sm:$0xff]
        %v1002 = vld [vmem:[%s979 + $0x108] sm:$0xff]
        %v1003 = vld [vmem:[%s979 + $0x110] sm:$0xff]
        %v1004 = vld [vmem:[%s979 + $0x120] sm:$0xff]
        %v1005 = vld [vmem:[%s979 + $0x128] sm:$0xff]
        %v1006 = vld [vmem:[%s979 + $0x138] sm:$0xff]
        %v1007 = vld [vmem:[%s979 + $0x140] sm:$0xff]
        %v1008 = vld [vmem:[%s979 + $0x150] sm:$0xff]
        %v1009 = vld [vmem:[%s979 + $0x158] sm:$0xff]
        %v1010 = vld [vmem:[%s979 + $0x168] sm:$0xff]
        %v1011 = vld [vmem:[%s979 + $0x170] sm:$0xff]
        %1012 = vst [vmem:[#allocation2 + $0x60] sm:$0xff] %v980
        %1013 = vst [vmem:[#allocation2 + $0x138] sm:$0xff] %v981
        %1014 = vst [vmem:[#allocation2 + $0x210] sm:$0xff] %v982
        %1015 = vst [vmem:[#allocation2 + $0x2e8] sm:$0xff] %v983
        %1016 = vst [vmem:[#allocation2 + $0x3c0] sm:$0xff] %v984
        %1017 = vst [vmem:[#allocation2 + $0x498] sm:$0xff] %v985
        %1018 = vst [vmem:[#allocation2 + $0x570] sm:$0xff] %v986
        %1019 = vst [vmem:[#allocation2 + $0x648] sm:$0xff] %v987
        %1020 = vst [vmem:[#allocation2 + $0x720] sm:$0xff] %v988
        %1021 = vst [vmem:[#allocation2 + $0x7f8] sm:$0xff] %v989
        %1022 = vst [vmem:[#allocation2 + $0x8d0] sm:$0xff] %v990
        %1023 = vst [vmem:[#allocation2 + $0x9a8] sm:$0xff] %v991
        %1024 = vst [vmem:[#allocation2 + $0xa80] sm:$0xff] %v992
        %1025 = vst [vmem:[#allocation2 + $0xb58] sm:$0xff] %v993
        %1026 = vst [vmem:[#allocation2 + $0xc30] sm:$0xff] %v994
        %1027 = vst [vmem:[#allocation2 + $0xd08] sm:$0xff] %v995
        %1028 = vst [vmem:[#allocation2 + $0xde0] sm:$0xff] %v996
        %1029 = vst [vmem:[#allocation2 + $0xeb8] sm:$0xff] %v997
        %1030 = vst [vmem:[#allocation2 + $0xf90] sm:$0xff] %v998
        %1031 = vst [vmem:[#allocation2 + $0x1068] sm:$0xff] %v999
        %1032 = vst [vmem:[#allocation2 + $0x1140] sm:$0xff] %v1000
        %1033 = vst [vmem:[#allocation2 + $0x1218] sm:$0xff] %v1001
        %1034 = vst [vmem:[#allocation2 + $0x12f0] sm:$0xff] %v1002
        %1035 = vst [vmem:[#allocation2 + $0x13c8] sm:$0xff] %v1003
        %1036 = vst [vmem:[#allocation2 + $0x14a0] sm:$0xff] %v1004
        %1037 = vst [vmem:[#allocation2 + $0x1578] sm:$0xff] %v1005
        %1038 = vst [vmem:[#allocation2 + $0x1650] sm:$0xff] %v1006
        %1039 = vst [vmem:[#allocation2 + $0x1728] sm:$0xff] %v1007
        %1040 = vst [vmem:[#allocation2 + $0x1800] sm:$0xff] %v1008
        %1041 = vst [vmem:[#allocation2 + $0x18d8] sm:$0xff] %v1009
        %1042 = vst [vmem:[#allocation2 + $0x19b0] sm:$0xff] %v1010
        %1043 = vst [vmem:[#allocation2 + $0x1a88] sm:$0xff] %v1011
        %v1044 = vld [vmem:[%s979 + $0x1] sm:$0xff]
        %v1045 = vld [vmem:[%s979 + $0x9] sm:$0xff]
        %v1046 = vld [vmem:[%s979 + $0x19] sm:$0xff]
        %v1047 = vld [vmem:[%s979 + $0x21] sm:$0xff]
        %v1048 = vld [vmem:[%s979 + $0x31] sm:$0xff]
        %v1049 = vld [vmem:[%s979 + $0x39] sm:$0xff]
        %v1050 = vld [vmem:[%s979 + $0x49] sm:$0xff]
        %v1051 = vld [vmem:[%s979 + $0x51] sm:$0xff]
        %v1052 = vld [vmem:[%s979 + $0x61] sm:$0xff]
        %v1053 = vld [vmem:[%s979 + $0x69] sm:$0xff]
        %v1054 = vld [vmem:[%s979 + $0x79] sm:$0xff]
        %v1055 = vld [vmem:[%s979 + $0x81] sm:$0xff]
        %v1056 = vld [vmem:[%s979 + $0x91] sm:$0xff]
        %v1057 = vld [vmem:[%s979 + $0x99] sm:$0xff]
        %v1058 = vld [vmem:[%s979 + $0xa9] sm:$0xff]
        %v1059 = vld [vmem:[%s979 + $0xb1] sm:$0xff]
        %v1060 = vld [vmem:[%s979 + $0xc1] sm:$0xff]
        %v1061 = vld [vmem:[%s979 + $0xc9] sm:$0xff]
        %v1062 = vld [vmem:[%s979 + $0xd9] sm:$0xff]
        %v1063 = vld [vmem:[%s979 + $0xe1] sm:$0xff]
        %v1064 = vld [vmem:[%s979 + $0xf1] sm:$0xff]
        %v1065 = vld [vmem:[%s979 + $0xf9] sm:$0xff]
        %v1066 = vld [vmem:[%s979 + $0x109] sm:$0xff]
        %v1067 = vld [vmem:[%s979 + $0x111] sm:$0xff]
        %v1068 = vld [vmem:[%s979 + $0x121] sm:$0xff]
        %v1069 = vld [vmem:[%s979 + $0x129] sm:$0xff]
        %v1070 = vld [vmem:[%s979 + $0x139] sm:$0xff]
        %v1071 = vld [vmem:[%s979 + $0x141] sm:$0xff]
        %v1072 = vld [vmem:[%s979 + $0x151] sm:$0xff]
        %v1073 = vld [vmem:[%s979 + $0x159] sm:$0xff]
        %v1074 = vld [vmem:[%s979 + $0x169] sm:$0xff]
        %v1075 = vld [vmem:[%s979 + $0x171] sm:$0xff]
        %1076 = vst [vmem:[#allocation2 + $0x68] sm:$0xff] %v1044
        %1077 = vst [vmem:[#allocation2 + $0x140] sm:$0xff] %v1045
        %1078 = vst [vmem:[#allocation2 + $0x218] sm:$0xff] %v1046
        %1079 = vst [vmem:[#allocation2 + $0x2f0] sm:$0xff] %v1047
        %1080 = vst [vmem:[#allocation2 + $0x3c8] sm:$0xff] %v1048
        %1081 = vst [vmem:[#allocation2 + $0x4a0] sm:$0xff] %v1049
        %1082 = vst [vmem:[#allocation2 + $0x578] sm:$0xff] %v1050
        %1083 = vst [vmem:[#allocation2 + $0x650] sm:$0xff] %v1051
        %1084 = vst [vmem:[#allocation2 + $0x728] sm:$0xff] %v1052
        %1085 = vst [vmem:[#allocation2 + $0x800] sm:$0xff] %v1053
        %1086 = vst [vmem:[#allocation2 + $0x8d8] sm:$0xff] %v1054
        %1087 = vst [vmem:[#allocation2 + $0x9b0] sm:$0xff] %v1055
        %1088 = vst [vmem:[#allocation2 + $0xa88] sm:$0xff] %v1056
        %1089 = vst [vmem:[#allocation2 + $0xb60] sm:$0xff] %v1057
        %1090 = vst [vmem:[#allocation2 + $0xc38] sm:$0xff] %v1058
        %1091 = vst [vmem:[#allocation2 + $0xd10] sm:$0xff] %v1059
        %1092 = vst [vmem:[#allocation2 + $0xde8] sm:$0xff] %v1060
        %1093 = vst [vmem:[#allocation2 + $0xec0] sm:$0xff] %v1061
        %1094 = vst [vmem:[#allocation2 + $0xf98] sm:$0xff] %v1062
        %1095 = vst [vmem:[#allocation2 + $0x1070] sm:$0xff] %v1063
        %1096 = vst [vmem:[#allocation2 + $0x1148] sm:$0xff] %v1064
        %1097 = vst [vmem:[#allocation2 + $0x1220] sm:$0xff] %v1065
        %1098 = vst [vmem:[#allocation2 + $0x12f8] sm:$0xff] %v1066
        %1099 = vst [vmem:[#allocation2 + $0x13d0] sm:$0xff] %v1067
        %1100 = vst [vmem:[#allocation2 + $0x14a8] sm:$0xff] %v1068
        %1101 = vst [vmem:[#allocation2 + $0x1580] sm:$0xff] %v1069
        %1102 = vst [vmem:[#allocation2 + $0x1658] sm:$0xff] %v1070
        %1103 = vst [vmem:[#allocation2 + $0x1730] sm:$0xff] %v1071
        %1104 = vst [vmem:[#allocation2 + $0x1808] sm:$0xff] %v1072
        %1105 = vst [vmem:[#allocation2 + $0x18e0] sm:$0xff] %v1073
        %1106 = vst [vmem:[#allocation2 + $0x19b8] sm:$0xff] %v1074
        %1107 = vst [vmem:[#allocation2 + $0x1a90] sm:$0xff] %v1075
        %v1108 = vld [vmem:[%s979 + $0x2] sm:$0xff]
        %v1109 = vld [vmem:[%s979 + $0xa] sm:$0xff]
        %v1110 = vld [vmem:[%s979 + $0x1a] sm:$0xff]
        %v1111 = vld [vmem:[%s979 + $0x22] sm:$0xff]
        %v1112 = vld [vmem:[%s979 + $0x32] sm:$0xff]
        %v1113 = vld [vmem:[%s979 + $0x3a] sm:$0xff]
        %v1114 = vld [vmem:[%s979 + $0x4a] sm:$0xff]
        %v1115 = vld [vmem:[%s979 + $0x52] sm:$0xff]
        %v1116 = vld [vmem:[%s979 + $0x62] sm:$0xff]
        %v1117 = vld [vmem:[%s979 + $0x6a] sm:$0xff]
        %v1118 = vld [vmem:[%s979 + $0x7a] sm:$0xff]
        %v1119 = vld [vmem:[%s979 + $0x82] sm:$0xff]
        %v1120 = vld [vmem:[%s979 + $0x92] sm:$0xff]
        %v1121 = vld [vmem:[%s979 + $0x9a] sm:$0xff]
        %v1122 = vld [vmem:[%s979 + $0xaa] sm:$0xff]
        %v1123 = vld [vmem:[%s979 + $0xb2] sm:$0xff]
        %v1124 = vld [vmem:[%s979 + $0xc2] sm:$0xff]
        %v1125 = vld [vmem:[%s979 + $0xca] sm:$0xff]
        %v1126 = vld [vmem:[%s979 + $0xda] sm:$0xff]
        %v1127 = vld [vmem:[%s979 + $0xe2] sm:$0xff]
        %v1128 = vld [vmem:[%s979 + $0xf2] sm:$0xff]
        %v1129 = vld [vmem:[%s979 + $0xfa] sm:$0xff]
        %v1130 = vld [vmem:[%s979 + $0x10a] sm:$0xff]
        %v1131 = vld [vmem:[%s979 + $0x112] sm:$0xff]
        %v1132 = vld [vmem:[%s979 + $0x122] sm:$0xff]
        %v1133 = vld [vmem:[%s979 + $0x12a] sm:$0xff]
        %v1134 = vld [vmem:[%s979 + $0x13a] sm:$0xff]
        %v1135 = vld [vmem:[%s979 + $0x142] sm:$0xff]
        %v1136 = vld [vmem:[%s979 + $0x152] sm:$0xff]
        %v1137 = vld [vmem:[%s979 + $0x15a] sm:$0xff]
        %v1138 = vld [vmem:[%s979 + $0x16a] sm:$0xff]
        %v1139 = vld [vmem:[%s979 + $0x172] sm:$0xff]
        %1140 = vst [vmem:[#allocation2 + $0x70] sm:$0xff] %v1108
        %1141 = vst [vmem:[#allocation2 + $0x148] sm:$0xff] %v1109
        %1142 = vst [vmem:[#allocation2 + $0x220] sm:$0xff] %v1110
        %1143 = vst [vmem:[#allocation2 + $0x2f8] sm:$0xff] %v1111
        %1144 = vst [vmem:[#allocation2 + $0x3d0] sm:$0xff] %v1112
        %1145 = vst [vmem:[#allocation2 + $0x4a8] sm:$0xff] %v1113
        %1146 = vst [vmem:[#allocation2 + $0x580] sm:$0xff] %v1114
        %1147 = vst [vmem:[#allocation2 + $0x658] sm:$0xff] %v1115
        %1148 = vst [vmem:[#allocation2 + $0x730] sm:$0xff] %v1116
        %1149 = vst [vmem:[#allocation2 + $0x808] sm:$0xff] %v1117
        %1150 = vst [vmem:[#allocation2 + $0x8e0] sm:$0xff] %v1118
        %1151 = vst [vmem:[#allocation2 + $0x9b8] sm:$0xff] %v1119
        %1152 = vst [vmem:[#allocation2 + $0xa90] sm:$0xff] %v1120
        %1153 = vst [vmem:[#allocation2 + $0xb68] sm:$0xff] %v1121
        %1154 = vst [vmem:[#allocation2 + $0xc40] sm:$0xff] %v1122
        %1155 = vst [vmem:[#allocation2 + $0xd18] sm:$0xff] %v1123
        %1156 = vst [vmem:[#allocation2 + $0xdf0] sm:$0xff] %v1124
        %1157 = vst [vmem:[#allocation2 + $0xec8] sm:$0xff] %v1125
        %1158 = vst [vmem:[#allocation2 + $0xfa0] sm:$0xff] %v1126
        %1159 = vst [vmem:[#allocation2 + $0x1078] sm:$0xff] %v1127
        %1160 = vst [vmem:[#allocation2 + $0x1150] sm:$0xff] %v1128
        %1161 = vst [vmem:[#allocation2 + $0x1228] sm:$0xff] %v1129
        %1162 = vst [vmem:[#allocation2 + $0x1300] sm:$0xff] %v1130
        %1163 = vst [vmem:[#allocation2 + $0x13d8] sm:$0xff] %v1131
        %1164 = vst [vmem:[#allocation2 + $0x14b0] sm:$0xff] %v1132
        %1165 = vst [vmem:[#allocation2 + $0x1588] sm:$0xff] %v1133
        %1166 = vst [vmem:[#allocation2 + $0x1660] sm:$0xff] %v1134
        %1167 = vst [vmem:[#allocation2 + $0x1738] sm:$0xff] %v1135
        %1168 = vst [vmem:[#allocation2 + $0x1810] sm:$0xff] %v1136
        %1169 = vst [vmem:[#allocation2 + $0x18e8] sm:$0xff] %v1137
        %1170 = vst [vmem:[#allocation2 + $0x19c0] sm:$0xff] %v1138
        %1171 = vst [vmem:[#allocation2 + $0x1a98] sm:$0xff] %v1139
        %s1172 = sadd.s32 %s587, %s783
        %s1173 = scalar_lea.vmem %s191, %s1172
        %v1174 = vld [vmem:[%s1173] sm:$0xff]
        %v1175 = vld [vmem:[%s1173 + $0x8] sm:$0xff]
        %v1176 = vld [vmem:[%s1173 + $0x18] sm:$0xff]
        %v1177 = vld [vmem:[%s1173 + $0x20] sm:$0xff]
        %v1178 = vld [vmem:[%s1173 + $0x30] sm:$0xff]
        %v1179 = vld [vmem:[%s1173 + $0x38] sm:$0xff]
        %v1180 = vld [vmem:[%s1173 + $0x48] sm:$0xff]
        %v1181 = vld [vmem:[%s1173 + $0x50] sm:$0xff]
        %v1182 = vld [vmem:[%s1173 + $0x60] sm:$0xff]
        %v1183 = vld [vmem:[%s1173 + $0x68] sm:$0xff]
        %v1184 = vld [vmem:[%s1173 + $0x78] sm:$0xff]
        %v1185 = vld [vmem:[%s1173 + $0x80] sm:$0xff]
        %v1186 = vld [vmem:[%s1173 + $0x90] sm:$0xff]
        %v1187 = vld [vmem:[%s1173 + $0x98] sm:$0xff]
        %v1188 = vld [vmem:[%s1173 + $0xa8] sm:$0xff]
        %v1189 = vld [vmem:[%s1173 + $0xb0] sm:$0xff]
        %v1190 = vld [vmem:[%s1173 + $0xc0] sm:$0xff]
        %v1191 = vld [vmem:[%s1173 + $0xc8] sm:$0xff]
        %v1192 = vld [vmem:[%s1173 + $0xd8] sm:$0xff]
        %v1193 = vld [vmem:[%s1173 + $0xe0] sm:$0xff]
        %v1194 = vld [vmem:[%s1173 + $0xf0] sm:$0xff]
        %v1195 = vld [vmem:[%s1173 + $0xf8] sm:$0xff]
        %v1196 = vld [vmem:[%s1173 + $0x108] sm:$0xff]
        %v1197 = vld [vmem:[%s1173 + $0x110] sm:$0xff]
        %v1198 = vld [vmem:[%s1173 + $0x120] sm:$0xff]
        %v1199 = vld [vmem:[%s1173 + $0x128] sm:$0xff]
        %v1200 = vld [vmem:[%s1173 + $0x138] sm:$0xff]
        %v1201 = vld [vmem:[%s1173 + $0x140] sm:$0xff]
        %v1202 = vld [vmem:[%s1173 + $0x150] sm:$0xff]
        %v1203 = vld [vmem:[%s1173 + $0x158] sm:$0xff]
        %v1204 = vld [vmem:[%s1173 + $0x168] sm:$0xff]
        %v1205 = vld [vmem:[%s1173 + $0x170] sm:$0xff]
        %1206 = vst [vmem:[#allocation2 + $0x78] sm:$0xff] %v1174
        %1207 = vst [vmem:[#allocation2 + $0x150] sm:$0xff] %v1175
        %1208 = vst [vmem:[#allocation2 + $0x228] sm:$0xff] %v1176
        %1209 = vst [vmem:[#allocation2 + $0x300] sm:$0xff] %v1177
        %1210 = vst [vmem:[#allocation2 + $0x3d8] sm:$0xff] %v1178
        %1211 = vst [vmem:[#allocation2 + $0x4b0] sm:$0xff] %v1179
        %1212 = vst [vmem:[#allocation2 + $0x588] sm:$0xff] %v1180
        %1213 = vst [vmem:[#allocation2 + $0x660] sm:$0xff] %v1181
        %1214 = vst [vmem:[#allocation2 + $0x738] sm:$0xff] %v1182
        %1215 = vst [vmem:[#allocation2 + $0x810] sm:$0xff] %v1183
        %1216 = vst [vmem:[#allocation2 + $0x8e8] sm:$0xff] %v1184
        %1217 = vst [vmem:[#allocation2 + $0x9c0] sm:$0xff] %v1185
        %1218 = vst [vmem:[#allocation2 + $0xa98] sm:$0xff] %v1186
        %1219 = vst [vmem:[#allocation2 + $0xb70] sm:$0xff] %v1187
        %1220 = vst [vmem:[#allocation2 + $0xc48] sm:$0xff] %v1188
        %1221 = vst [vmem:[#allocation2 + $0xd20] sm:$0xff] %v1189
        %1222 = vst [vmem:[#allocation2 + $0xdf8] sm:$0xff] %v1190
        %1223 = vst [vmem:[#allocation2 + $0xed0] sm:$0xff] %v1191
        %1224 = vst [vmem:[#allocation2 + $0xfa8] sm:$0xff] %v1192
        %1225 = vst [vmem:[#allocation2 + $0x1080] sm:$0xff] %v1193
        %1226 = vst [vmem:[#allocation2 + $0x1158] sm:$0xff] %v1194
        %1227 = vst [vmem:[#allocation2 + $0x1230] sm:$0xff] %v1195
        %1228 = vst [vmem:[#allocation2 + $0x1308] sm:$0xff] %v1196
        %1229 = vst [vmem:[#allocation2 + $0x13e0] sm:$0xff] %v1197
        %1230 = vst [vmem:[#allocation2 + $0x14b8] sm:$0xff] %v1198
        %1231 = vst [vmem:[#allocation2 + $0x1590] sm:$0xff] %v1199
        %1232 = vst [vmem:[#allocation2 + $0x1668] sm:$0xff] %v1200
        %1233 = vst [vmem:[#allocation2 + $0x1740] sm:$0xff] %v1201
        %1234 = vst [vmem:[#allocation2 + $0x1818] sm:$0xff] %v1202
        %1235 = vst [vmem:[#allocation2 + $0x18f0] sm:$0xff] %v1203
        %1236 = vst [vmem:[#allocation2 + $0x19c8] sm:$0xff] %v1204
        %1237 = vst [vmem:[#allocation2 + $0x1aa0] sm:$0xff] %v1205
        %v1238 = vld [vmem:[%s1173 + $0x1] sm:$0xff]
        %v1239 = vld [vmem:[%s1173 + $0x9] sm:$0xff]
        %v1240 = vld [vmem:[%s1173 + $0x19] sm:$0xff]
        %v1241 = vld [vmem:[%s1173 + $0x21] sm:$0xff]
        %v1242 = vld [vmem:[%s1173 + $0x31] sm:$0xff]
        %v1243 = vld [vmem:[%s1173 + $0x39] sm:$0xff]
        %v1244 = vld [vmem:[%s1173 + $0x49] sm:$0xff]
        %v1245 = vld [vmem:[%s1173 + $0x51] sm:$0xff]
        %v1246 = vld [vmem:[%s1173 + $0x61] sm:$0xff]
        %v1247 = vld [vmem:[%s1173 + $0x69] sm:$0xff]
        %v1248 = vld [vmem:[%s1173 + $0x79] sm:$0xff]
        %v1249 = vld [vmem:[%s1173 + $0x81] sm:$0xff]
        %v1250 = vld [vmem:[%s1173 + $0x91] sm:$0xff]
        %v1251 = vld [vmem:[%s1173 + $0x99] sm:$0xff]
        %v1252 = vld [vmem:[%s1173 + $0xa9] sm:$0xff]
        %v1253 = vld [vmem:[%s1173 + $0xb1] sm:$0xff]
        %v1254 = vld [vmem:[%s1173 + $0xc1] sm:$0xff]
        %v1255 = vld [vmem:[%s1173 + $0xc9] sm:$0xff]
        %v1256 = vld [vmem:[%s1173 + $0xd9] sm:$0xff]
        %v1257 = vld [vmem:[%s1173 + $0xe1] sm:$0xff]
        %v1258 = vld [vmem:[%s1173 + $0xf1] sm:$0xff]
        %v1259 = vld [vmem:[%s1173 + $0xf9] sm:$0xff]
        %v1260 = vld [vmem:[%s1173 + $0x109] sm:$0xff]
        %v1261 = vld [vmem:[%s1173 + $0x111] sm:$0xff]
        %v1262 = vld [vmem:[%s1173 + $0x121] sm:$0xff]
        %v1263 = vld [vmem:[%s1173 + $0x129] sm:$0xff]
        %v1264 = vld [vmem:[%s1173 + $0x139] sm:$0xff]
        %v1265 = vld [vmem:[%s1173 + $0x141] sm:$0xff]
        %v1266 = vld [vmem:[%s1173 + $0x151] sm:$0xff]
        %v1267 = vld [vmem:[%s1173 + $0x159] sm:$0xff]
        %v1268 = vld [vmem:[%s1173 + $0x169] sm:$0xff]
        %v1269 = vld [vmem:[%s1173 + $0x171] sm:$0xff]
        %1270 = vst [vmem:[#allocation2 + $0x80] sm:$0xff] %v1238
        %1271 = vst [vmem:[#allocation2 + $0x158] sm:$0xff] %v1239
        %1272 = vst [vmem:[#allocation2 + $0x230] sm:$0xff] %v1240
        %1273 = vst [vmem:[#allocation2 + $0x308] sm:$0xff] %v1241
        %1274 = vst [vmem:[#allocation2 + $0x3e0] sm:$0xff] %v1242
        %1275 = vst [vmem:[#allocation2 + $0x4b8] sm:$0xff] %v1243
        %1276 = vst [vmem:[#allocation2 + $0x590] sm:$0xff] %v1244
        %1277 = vst [vmem:[#allocation2 + $0x668] sm:$0xff] %v1245
        %1278 = vst [vmem:[#allocation2 + $0x740] sm:$0xff] %v1246
        %1279 = vst [vmem:[#allocation2 + $0x818] sm:$0xff] %v1247
        %1280 = vst [vmem:[#allocation2 + $0x8f0] sm:$0xff] %v1248
        %1281 = vst [vmem:[#allocation2 + $0x9c8] sm:$0xff] %v1249
        %1282 = vst [vmem:[#allocation2 + $0xaa0] sm:$0xff] %v1250
        %1283 = vst [vmem:[#allocation2 + $0xb78] sm:$0xff] %v1251
        %1284 = vst [vmem:[#allocation2 + $0xc50] sm:$0xff] %v1252
        %1285 = vst [vmem:[#allocation2 + $0xd28] sm:$0xff] %v1253
        %1286 = vst [vmem:[#allocation2 + $0xe00] sm:$0xff] %v1254
        %1287 = vst [vmem:[#allocation2 + $0xed8] sm:$0xff] %v1255
        %1288 = vst [vmem:[#allocation2 + $0xfb0] sm:$0xff] %v1256
        %1289 = vst [vmem:[#allocation2 + $0x1088] sm:$0xff] %v1257
        %1290 = vst [vmem:[#allocation2 + $0x1160] sm:$0xff] %v1258
        %1291 = vst [vmem:[#allocation2 + $0x1238] sm:$0xff] %v1259
        %1292 = vst [vmem:[#allocation2 + $0x1310] sm:$0xff] %v1260
        %1293 = vst [vmem:[#allocation2 + $0x13e8] sm:$0xff] %v1261
        %1294 = vst [vmem:[#allocation2 + $0x14c0] sm:$0xff] %v1262
        %1295 = vst [vmem:[#allocation2 + $0x1598] sm:$0xff] %v1263
        %1296 = vst [vmem:[#allocation2 + $0x1670] sm:$0xff] %v1264
        %1297 = vst [vmem:[#allocation2 + $0x1748] sm:$0xff] %v1265
        %1298 = vst [vmem:[#allocation2 + $0x1820] sm:$0xff] %v1266
        %1299 = vst [vmem:[#allocation2 + $0x18f8] sm:$0xff] %v1267
        %1300 = vst [vmem:[#allocation2 + $0x19d0] sm:$0xff] %v1268
        %1301 = vst [vmem:[#allocation2 + $0x1aa8] sm:$0xff] %v1269
        %v1302 = vld [vmem:[%s1173 + $0x2] sm:$0xff]
        %v1303 = vld [vmem:[%s1173 + $0xa] sm:$0xff]
        %v1304 = vld [vmem:[%s1173 + $0x1a] sm:$0xff]
        %v1305 = vld [vmem:[%s1173 + $0x22] sm:$0xff]
        %v1306 = vld [vmem:[%s1173 + $0x32] sm:$0xff]
        %v1307 = vld [vmem:[%s1173 + $0x3a] sm:$0xff]
        %v1308 = vld [vmem:[%s1173 + $0x4a] sm:$0xff]
        %v1309 = vld [vmem:[%s1173 + $0x52] sm:$0xff]
        %v1310 = vld [vmem:[%s1173 + $0x62] sm:$0xff]
        %v1311 = vld [vmem:[%s1173 + $0x6a] sm:$0xff]
        %v1312 = vld [vmem:[%s1173 + $0x7a] sm:$0xff]
        %v1313 = vld [vmem:[%s1173 + $0x82] sm:$0xff]
        %v1314 = vld [vmem:[%s1173 + $0x92] sm:$0xff]
        %v1315 = vld [vmem:[%s1173 + $0x9a] sm:$0xff]
        %v1316 = vld [vmem:[%s1173 + $0xaa] sm:$0xff]
        %v1317 = vld [vmem:[%s1173 + $0xb2] sm:$0xff]
        %v1318 = vld [vmem:[%s1173 + $0xc2] sm:$0xff]
        %v1319 = vld [vmem:[%s1173 + $0xca] sm:$0xff]
        %v1320 = vld [vmem:[%s1173 + $0xda] sm:$0xff]
        %v1321 = vld [vmem:[%s1173 + $0xe2] sm:$0xff]
        %v1322 = vld [vmem:[%s1173 + $0xf2] sm:$0xff]
        %v1323 = vld [vmem:[%s1173 + $0xfa] sm:$0xff]
        %v1324 = vld [vmem:[%s1173 + $0x10a] sm:$0xff]
        %v1325 = vld [vmem:[%s1173 + $0x112] sm:$0xff]
        %v1326 = vld [vmem:[%s1173 + $0x122] sm:$0xff]
        %v1327 = vld [vmem:[%s1173 + $0x12a] sm:$0xff]
        %v1328 = vld [vmem:[%s1173 + $0x13a] sm:$0xff]
        %v1329 = vld [vmem:[%s1173 + $0x142] sm:$0xff]
        %v1330 = vld [vmem:[%s1173 + $0x152] sm:$0xff]
        %v1331 = vld [vmem:[%s1173 + $0x15a] sm:$0xff]
        %v1332 = vld [vmem:[%s1173 + $0x16a] sm:$0xff]
        %v1333 = vld [vmem:[%s1173 + $0x172] sm:$0xff]
        %1334 = vst [vmem:[#allocation2 + $0x88] sm:$0xff] %v1302
        %1335 = vst [vmem:[#allocation2 + $0x160] sm:$0xff] %v1303
        %1336 = vst [vmem:[#allocation2 + $0x238] sm:$0xff] %v1304
        %1337 = vst [vmem:[#allocation2 + $0x310] sm:$0xff] %v1305
        %1338 = vst [vmem:[#allocation2 + $0x3e8] sm:$0xff] %v1306
        %1339 = vst [vmem:[#allocation2 + $0x4c0] sm:$0xff] %v1307
        %1340 = vst [vmem:[#allocation2 + $0x598] sm:$0xff] %v1308
        %1341 = vst [vmem:[#allocation2 + $0x670] sm:$0xff] %v1309
        %1342 = vst [vmem:[#allocation2 + $0x748] sm:$0xff] %v1310
        %1343 = vst [vmem:[#allocation2 + $0x820] sm:$0xff] %v1311
        %1344 = vst [vmem:[#allocation2 + $0x8f8] sm:$0xff] %v1312
        %1345 = vst [vmem:[#allocation2 + $0x9d0] sm:$0xff] %v1313
        %1346 = vst [vmem:[#allocation2 + $0xaa8] sm:$0xff] %v1314
        %1347 = vst [vmem:[#allocation2 + $0xb80] sm:$0xff] %v1315
        %1348 = vst [vmem:[#allocation2 + $0xc58] sm:$0xff] %v1316
        %1349 = vst [vmem:[#allocation2 + $0xd30] sm:$0xff] %v1317
        %1350 = vst [vmem:[#allocation2 + $0xe08] sm:$0xff] %v1318
        %1351 = vst [vmem:[#allocation2 + $0xee0] sm:$0xff] %v1319
        %1352 = vst [vmem:[#allocation2 + $0xfb8] sm:$0xff] %v1320
        %1353 = vst [vmem:[#allocation2 + $0x1090] sm:$0xff] %v1321
        %1354 = vst [vmem:[#allocation2 + $0x1168] sm:$0xff] %v1322
        %1355 = vst [vmem:[#allocation2 + $0x1240] sm:$0xff] %v1323
        %1356 = vst [vmem:[#allocation2 + $0x1318] sm:$0xff] %v1324
        %1357 = vst [vmem:[#allocation2 + $0x13f0] sm:$0xff] %v1325
        %1358 = vst [vmem:[#allocation2 + $0x14c8] sm:$0xff] %v1326
        %1359 = vst [vmem:[#allocation2 + $0x15a0] sm:$0xff] %v1327
        %1360 = vst [vmem:[#allocation2 + $0x1678] sm:$0xff] %v1328
        %1361 = vst [vmem:[#allocation2 + $0x1750] sm:$0xff] %v1329
        %1362 = vst [vmem:[#allocation2 + $0x1828] sm:$0xff] %v1330
        %1363 = vst [vmem:[#allocation2 + $0x1900] sm:$0xff] %v1331
        %1364 = vst [vmem:[#allocation2 + $0x19d8] sm:$0xff] %v1332
        %1365 = vst [vmem:[#allocation2 + $0x1ab0] sm:$0xff] %v1333
        %s1366 = sadd.s32 %s23, 2
        %s1367 = smul.u32 %s1366, 432
        %s1368 = sadd.s32 %s194, %s1367
        %s1369 = scalar_lea.vmem %s191, %s1368
        %v1370 = vld [vmem:[%s1369] sm:$0xff]
        %v1371 = vld [vmem:[%s1369 + $0x8] sm:$0xff]
        %v1372 = vld [vmem:[%s1369 + $0x18] sm:$0xff]
        %v1373 = vld [vmem:[%s1369 + $0x20] sm:$0xff]
        %v1374 = vld [vmem:[%s1369 + $0x30] sm:$0xff]
        %v1375 = vld [vmem:[%s1369 + $0x38] sm:$0xff]
        %v1376 = vld [vmem:[%s1369 + $0x48] sm:$0xff]
        %v1377 = vld [vmem:[%s1369 + $0x50] sm:$0xff]
        %v1378 = vld [vmem:[%s1369 + $0x60] sm:$0xff]
        %v1379 = vld [vmem:[%s1369 + $0x68] sm:$0xff]
        %v1380 = vld [vmem:[%s1369 + $0x78] sm:$0xff]
        %v1381 = vld [vmem:[%s1369 + $0x80] sm:$0xff]
        %v1382 = vld [vmem:[%s1369 + $0x90] sm:$0xff]
        %v1383 = vld [vmem:[%s1369 + $0x98] sm:$0xff]
        %v1384 = vld [vmem:[%s1369 + $0xa8] sm:$0xff]
        %v1385 = vld [vmem:[%s1369 + $0xb0] sm:$0xff]
        %v1386 = vld [vmem:[%s1369 + $0xc0] sm:$0xff]
        %v1387 = vld [vmem:[%s1369 + $0xc8] sm:$0xff]
        %v1388 = vld [vmem:[%s1369 + $0xd8] sm:$0xff]
        %v1389 = vld [vmem:[%s1369 + $0xe0] sm:$0xff]
        %v1390 = vld [vmem:[%s1369 + $0xf0] sm:$0xff]
        %v1391 = vld [vmem:[%s1369 + $0xf8] sm:$0xff]
        %v1392 = vld [vmem:[%s1369 + $0x108] sm:$0xff]
        %v1393 = vld [vmem:[%s1369 + $0x110] sm:$0xff]
        %v1394 = vld [vmem:[%s1369 + $0x120] sm:$0xff]
        %v1395 = vld [vmem:[%s1369 + $0x128] sm:$0xff]
        %v1396 = vld [vmem:[%s1369 + $0x138] sm:$0xff]
        %v1397 = vld [vmem:[%s1369 + $0x140] sm:$0xff]
        %v1398 = vld [vmem:[%s1369 + $0x150] sm:$0xff]
        %v1399 = vld [vmem:[%s1369 + $0x158] sm:$0xff]
        %v1400 = vld [vmem:[%s1369 + $0x168] sm:$0xff]
        %v1401 = vld [vmem:[%s1369 + $0x170] sm:$0xff]
        %1402 = vst [vmem:[#allocation2 + $0x90] sm:$0xff] %v1370
        %1403 = vst [vmem:[#allocation2 + $0x168] sm:$0xff] %v1371
        %1404 = vst [vmem:[#allocation2 + $0x240] sm:$0xff] %v1372
        %1405 = vst [vmem:[#allocation2 + $0x318] sm:$0xff] %v1373
        %1406 = vst [vmem:[#allocation2 + $0x3f0] sm:$0xff] %v1374
        %1407 = vst [vmem:[#allocation2 + $0x4c8] sm:$0xff] %v1375
        %1408 = vst [vmem:[#allocation2 + $0x5a0] sm:$0xff] %v1376
        %1409 = vst [vmem:[#allocation2 + $0x678] sm:$0xff] %v1377
        %1410 = vst [vmem:[#allocation2 + $0x750] sm:$0xff] %v1378
        %1411 = vst [vmem:[#allocation2 + $0x828] sm:$0xff] %v1379
        %1412 = vst [vmem:[#allocation2 + $0x900] sm:$0xff] %v1380
        %1413 = vst [vmem:[#allocation2 + $0x9d8] sm:$0xff] %v1381
        %1414 = vst [vmem:[#allocation2 + $0xab0] sm:$0xff] %v1382
        %1415 = vst [vmem:[#allocation2 + $0xb88] sm:$0xff] %v1383
        %1416 = vst [vmem:[#allocation2 + $0xc60] sm:$0xff] %v1384
        %1417 = vst [vmem:[#allocation2 + $0xd38] sm:$0xff] %v1385
        %1418 = vst [vmem:[#allocation2 + $0xe10] sm:$0xff] %v1386
        %1419 = vst [vmem:[#allocation2 + $0xee8] sm:$0xff] %v1387
        %1420 = vst [vmem:[#allocation2 + $0xfc0] sm:$0xff] %v1388
        %1421 = vst [vmem:[#allocation2 + $0x1098] sm:$0xff] %v1389
        %1422 = vst [vmem:[#allocation2 + $0x1170] sm:$0xff] %v1390
        %1423 = vst [vmem:[#allocation2 + $0x1248] sm:$0xff] %v1391
        %1424 = vst [vmem:[#allocation2 + $0x1320] sm:$0xff] %v1392
        %1425 = vst [vmem:[#allocation2 + $0x13f8] sm:$0xff] %v1393
        %1426 = vst [vmem:[#allocation2 + $0x14d0] sm:$0xff] %v1394
        %1427 = vst [vmem:[#allocation2 + $0x15a8] sm:$0xff] %v1395
        %1428 = vst [vmem:[#allocation2 + $0x1680] sm:$0xff] %v1396
        %1429 = vst [vmem:[#allocation2 + $0x1758] sm:$0xff] %v1397
        %1430 = vst [vmem:[#allocation2 + $0x1830] sm:$0xff] %v1398
        %1431 = vst [vmem:[#allocation2 + $0x1908] sm:$0xff] %v1399
        %1432 = vst [vmem:[#allocation2 + $0x19e0] sm:$0xff] %v1400
        %1433 = vst [vmem:[#allocation2 + $0x1ab8] sm:$0xff] %v1401
        %v1434 = vld [vmem:[%s1369 + $0x1] sm:$0xff]
        %v1435 = vld [vmem:[%s1369 + $0x9] sm:$0xff]
        %v1436 = vld [vmem:[%s1369 + $0x19] sm:$0xff]
        %v1437 = vld [vmem:[%s1369 + $0x21] sm:$0xff]
        %v1438 = vld [vmem:[%s1369 + $0x31] sm:$0xff]
        %v1439 = vld [vmem:[%s1369 + $0x39] sm:$0xff]
        %v1440 = vld [vmem:[%s1369 + $0x49] sm:$0xff]
        %v1441 = vld [vmem:[%s1369 + $0x51] sm:$0xff]
        %v1442 = vld [vmem:[%s1369 + $0x61] sm:$0xff]
        %v1443 = vld [vmem:[%s1369 + $0x69] sm:$0xff]
        %v1444 = vld [vmem:[%s1369 + $0x79] sm:$0xff]
        %v1445 = vld [vmem:[%s1369 + $0x81] sm:$0xff]
        %v1446 = vld [vmem:[%s1369 + $0x91] sm:$0xff]
        %v1447 = vld [vmem:[%s1369 + $0x99] sm:$0xff]
        %v1448 = vld [vmem:[%s1369 + $0xa9] sm:$0xff]
        %v1449 = vld [vmem:[%s1369 + $0xb1] sm:$0xff]
        %v1450 = vld [vmem:[%s1369 + $0xc1] sm:$0xff]
        %v1451 = vld [vmem:[%s1369 + $0xc9] sm:$0xff]
        %v1452 = vld [vmem:[%s1369 + $0xd9] sm:$0xff]
        %v1453 = vld [vmem:[%s1369 + $0xe1] sm:$0xff]
        %v1454 = vld [vmem:[%s1369 + $0xf1] sm:$0xff]
        %v1455 = vld [vmem:[%s1369 + $0xf9] sm:$0xff]
        %v1456 = vld [vmem:[%s1369 + $0x109] sm:$0xff]
        %v1457 = vld [vmem:[%s1369 + $0x111] sm:$0xff]
        %v1458 = vld [vmem:[%s1369 + $0x121] sm:$0xff]
        %v1459 = vld [vmem:[%s1369 + $0x129] sm:$0xff]
        %v1460 = vld [vmem:[%s1369 + $0x139] sm:$0xff]
        %v1461 = vld [vmem:[%s1369 + $0x141] sm:$0xff]
        %v1462 = vld [vmem:[%s1369 + $0x151] sm:$0xff]
        %v1463 = vld [vmem:[%s1369 + $0x159] sm:$0xff]
        %v1464 = vld [vmem:[%s1369 + $0x169] sm:$0xff]
        %v1465 = vld [vmem:[%s1369 + $0x171] sm:$0xff]
        %1466 = vst [vmem:[#allocation2 + $0x98] sm:$0xff] %v1434
        %1467 = vst [vmem:[#allocation2 + $0x170] sm:$0xff] %v1435
        %1468 = vst [vmem:[#allocation2 + $0x248] sm:$0xff] %v1436
        %1469 = vst [vmem:[#allocation2 + $0x320] sm:$0xff] %v1437
        %1470 = vst [vmem:[#allocation2 + $0x3f8] sm:$0xff] %v1438
        %1471 = vst [vmem:[#allocation2 + $0x4d0] sm:$0xff] %v1439
        %1472 = vst [vmem:[#allocation2 + $0x5a8] sm:$0xff] %v1440
        %1473 = vst [vmem:[#allocation2 + $0x680] sm:$0xff] %v1441
        %1474 = vst [vmem:[#allocation2 + $0x758] sm:$0xff] %v1442
        %1475 = vst [vmem:[#allocation2 + $0x830] sm:$0xff] %v1443
        %1476 = vst [vmem:[#allocation2 + $0x908] sm:$0xff] %v1444
        %1477 = vst [vmem:[#allocation2 + $0x9e0] sm:$0xff] %v1445
        %1478 = vst [vmem:[#allocation2 + $0xab8] sm:$0xff] %v1446
        %1479 = vst [vmem:[#allocation2 + $0xb90] sm:$0xff] %v1447
        %1480 = vst [vmem:[#allocation2 + $0xc68] sm:$0xff] %v1448
        %1481 = vst [vmem:[#allocation2 + $0xd40] sm:$0xff] %v1449
        %1482 = vst [vmem:[#allocation2 + $0xe18] sm:$0xff] %v1450
        %1483 = vst [vmem:[#allocation2 + $0xef0] sm:$0xff] %v1451
        %1484 = vst [vmem:[#allocation2 + $0xfc8] sm:$0xff] %v1452
        %1485 = vst [vmem:[#allocation2 + $0x10a0] sm:$0xff] %v1453
        %1486 = vst [vmem:[#allocation2 + $0x1178] sm:$0xff] %v1454
        %1487 = vst [vmem:[#allocation2 + $0x1250] sm:$0xff] %v1455
        %1488 = vst [vmem:[#allocation2 + $0x1328] sm:$0xff] %v1456
        %1489 = vst [vmem:[#allocation2 + $0x1400] sm:$0xff] %v1457
        %1490 = vst [vmem:[#allocation2 + $0x14d8] sm:$0xff] %v1458
        %1491 = vst [vmem:[#allocation2 + $0x15b0] sm:$0xff] %v1459
        %1492 = vst [vmem:[#allocation2 + $0x1688] sm:$0xff] %v1460
        %1493 = vst [vmem:[#allocation2 + $0x1760] sm:$0xff] %v1461
        %1494 = vst [vmem:[#allocation2 + $0x1838] sm:$0xff] %v1462
        %1495 = vst [vmem:[#allocation2 + $0x1910] sm:$0xff] %v1463
        %1496 = vst [vmem:[#allocation2 + $0x19e8] sm:$0xff] %v1464
        %1497 = vst [vmem:[#allocation2 + $0x1ac0] sm:$0xff] %v1465
        %v1498 = vld [vmem:[%s1369 + $0x2] sm:$0xff]
        %v1499 = vld [vmem:[%s1369 + $0xa] sm:$0xff]
        %v1500 = vld [vmem:[%s1369 + $0x1a] sm:$0xff]
        %v1501 = vld [vmem:[%s1369 + $0x22] sm:$0xff]
        %v1502 = vld [vmem:[%s1369 + $0x32] sm:$0xff]
        %v1503 = vld [vmem:[%s1369 + $0x3a] sm:$0xff]
        %v1504 = vld [vmem:[%s1369 + $0x4a] sm:$0xff]
        %v1505 = vld [vmem:[%s1369 + $0x52] sm:$0xff]
        %v1506 = vld [vmem:[%s1369 + $0x62] sm:$0xff]
        %v1507 = vld [vmem:[%s1369 + $0x6a] sm:$0xff]
        %v1508 = vld [vmem:[%s1369 + $0x7a] sm:$0xff]
        %v1509 = vld [vmem:[%s1369 + $0x82] sm:$0xff]
        %v1510 = vld [vmem:[%s1369 + $0x92] sm:$0xff]
        %v1511 = vld [vmem:[%s1369 + $0x9a] sm:$0xff]
        %v1512 = vld [vmem:[%s1369 + $0xaa] sm:$0xff]
        %v1513 = vld [vmem:[%s1369 + $0xb2] sm:$0xff]
        %v1514 = vld [vmem:[%s1369 + $0xc2] sm:$0xff]
        %v1515 = vld [vmem:[%s1369 + $0xca] sm:$0xff]
        %v1516 = vld [vmem:[%s1369 + $0xda] sm:$0xff]
        %v1517 = vld [vmem:[%s1369 + $0xe2] sm:$0xff]
        %v1518 = vld [vmem:[%s1369 + $0xf2] sm:$0xff]
        %v1519 = vld [vmem:[%s1369 + $0xfa] sm:$0xff]
        %v1520 = vld [vmem:[%s1369 + $0x10a] sm:$0xff]
        %v1521 = vld [vmem:[%s1369 + $0x112] sm:$0xff]
        %v1522 = vld [vmem:[%s1369 + $0x122] sm:$0xff]
        %v1523 = vld [vmem:[%s1369 + $0x12a] sm:$0xff]
        %v1524 = vld [vmem:[%s1369 + $0x13a] sm:$0xff]
        %v1525 = vld [vmem:[%s1369 + $0x142] sm:$0xff]
        %v1526 = vld [vmem:[%s1369 + $0x152] sm:$0xff]
        %v1527 = vld [vmem:[%s1369 + $0x15a] sm:$0xff]
        %v1528 = vld [vmem:[%s1369 + $0x16a] sm:$0xff]
        %v1529 = vld [vmem:[%s1369 + $0x172] sm:$0xff]
        %1530 = vst [vmem:[#allocation2 + $0xa0] sm:$0xff] %v1498
        %1531 = vst [vmem:[#allocation2 + $0x178] sm:$0xff] %v1499
        %1532 = vst [vmem:[#allocation2 + $0x250] sm:$0xff] %v1500
        %1533 = vst [vmem:[#allocation2 + $0x328] sm:$0xff] %v1501
        %1534 = vst [vmem:[#allocation2 + $0x400] sm:$0xff] %v1502
        %1535 = vst [vmem:[#allocation2 + $0x4d8] sm:$0xff] %v1503
        %1536 = vst [vmem:[#allocation2 + $0x5b0] sm:$0xff] %v1504
        %1537 = vst [vmem:[#allocation2 + $0x688] sm:$0xff] %v1505
        %1538 = vst [vmem:[#allocation2 + $0x760] sm:$0xff] %v1506
        %1539 = vst [vmem:[#allocation2 + $0x838] sm:$0xff] %v1507
        %1540 = vst [vmem:[#allocation2 + $0x910] sm:$0xff] %v1508
        %1541 = vst [vmem:[#allocation2 + $0x9e8] sm:$0xff] %v1509
        %1542 = vst [vmem:[#allocation2 + $0xac0] sm:$0xff] %v1510
        %1543 = vst [vmem:[#allocation2 + $0xb98] sm:$0xff] %v1511
        %1544 = vst [vmem:[#allocation2 + $0xc70] sm:$0xff] %v1512
        %1545 = vst [vmem:[#allocation2 + $0xd48] sm:$0xff] %v1513
        %1546 = vst [vmem:[#allocation2 + $0xe20] sm:$0xff] %v1514
        %1547 = vst [vmem:[#allocation2 + $0xef8] sm:$0xff] %v1515
        %1548 = vst [vmem:[#allocation2 + $0xfd0] sm:$0xff] %v1516
        %1549 = vst [vmem:[#allocation2 + $0x10a8] sm:$0xff] %v1517
        %1550 = vst [vmem:[#allocation2 + $0x1180] sm:$0xff] %v1518
        %1551 = vst [vmem:[#allocation2 + $0x1258] sm:$0xff] %v1519
        %1552 = vst [vmem:[#allocation2 + $0x1330] sm:$0xff] %v1520
        %1553 = vst [vmem:[#allocation2 + $0x1408] sm:$0xff] %v1521
        %1554 = vst [vmem:[#allocation2 + $0x14e0] sm:$0xff] %v1522
        %1555 = vst [vmem:[#allocation2 + $0x15b8] sm:$0xff] %v1523
        %1556 = vst [vmem:[#allocation2 + $0x1690] sm:$0xff] %v1524
        %1557 = vst [vmem:[#allocation2 + $0x1768] sm:$0xff] %v1525
        %1558 = vst [vmem:[#allocation2 + $0x1840] sm:$0xff] %v1526
        %1559 = vst [vmem:[#allocation2 + $0x1918] sm:$0xff] %v1527
        %1560 = vst [vmem:[#allocation2 + $0x19f0] sm:$0xff] %v1528
        %1561 = vst [vmem:[#allocation2 + $0x1ac8] sm:$0xff] %v1529
        %s1562 = sadd.s32 %s391, %s1367
        %s1563 = scalar_lea.vmem %s191, %s1562
        %v1564 = vld [vmem:[%s1563] sm:$0xff]
        %v1565 = vld [vmem:[%s1563 + $0x8] sm:$0xff]
        %v1566 = vld [vmem:[%s1563 + $0x18] sm:$0xff]
        %v1567 = vld [vmem:[%s1563 + $0x20] sm:$0xff]
        %v1568 = vld [vmem:[%s1563 + $0x30] sm:$0xff]
        %v1569 = vld [vmem:[%s1563 + $0x38] sm:$0xff]
        %v1570 = vld [vmem:[%s1563 + $0x48] sm:$0xff]
        %v1571 = vld [vmem:[%s1563 + $0x50] sm:$0xff]
        %v1572 = vld [vmem:[%s1563 + $0x60] sm:$0xff]
        %v1573 = vld [vmem:[%s1563 + $0x68] sm:$0xff]
        %v1574 = vld [vmem:[%s1563 + $0x78] sm:$0xff]
        %v1575 = vld [vmem:[%s1563 + $0x80] sm:$0xff]
        %v1576 = vld [vmem:[%s1563 + $0x90] sm:$0xff]
        %v1577 = vld [vmem:[%s1563 + $0x98] sm:$0xff]
        %v1578 = vld [vmem:[%s1563 + $0xa8] sm:$0xff]
        %v1579 = vld [vmem:[%s1563 + $0xb0] sm:$0xff]
        %v1580 = vld [vmem:[%s1563 + $0xc0] sm:$0xff]
        %v1581 = vld [vmem:[%s1563 + $0xc8] sm:$0xff]
        %v1582 = vld [vmem:[%s1563 + $0xd8] sm:$0xff]
        %v1583 = vld [vmem:[%s1563 + $0xe0] sm:$0xff]
        %v1584 = vld [vmem:[%s1563 + $0xf0] sm:$0xff]
        %v1585 = vld [vmem:[%s1563 + $0xf8] sm:$0xff]
        %v1586 = vld [vmem:[%s1563 + $0x108] sm:$0xff]
        %v1587 = vld [vmem:[%s1563 + $0x110] sm:$0xff]
        %v1588 = vld [vmem:[%s1563 + $0x120] sm:$0xff]
        %v1589 = vld [vmem:[%s1563 + $0x128] sm:$0xff]
        %v1590 = vld [vmem:[%s1563 + $0x138] sm:$0xff]
        %v1591 = vld [vmem:[%s1563 + $0x140] sm:$0xff]
        %v1592 = vld [vmem:[%s1563 + $0x150] sm:$0xff]
        %v1593 = vld [vmem:[%s1563 + $0x158] sm:$0xff]
        %v1594 = vld [vmem:[%s1563 + $0x168] sm:$0xff]
        %v1595 = vld [vmem:[%s1563 + $0x170] sm:$0xff]
        %1596 = vst [vmem:[#allocation2 + $0xa8] sm:$0xff] %v1564
        %1597 = vst [vmem:[#allocation2 + $0x180] sm:$0xff] %v1565
        %1598 = vst [vmem:[#allocation2 + $0x258] sm:$0xff] %v1566
        %1599 = vst [vmem:[#allocation2 + $0x330] sm:$0xff] %v1567
        %1600 = vst [vmem:[#allocation2 + $0x408] sm:$0xff] %v1568
        %1601 = vst [vmem:[#allocation2 + $0x4e0] sm:$0xff] %v1569
        %1602 = vst [vmem:[#allocation2 + $0x5b8] sm:$0xff] %v1570
        %1603 = vst [vmem:[#allocation2 + $0x690] sm:$0xff] %v1571
        %1604 = vst [vmem:[#allocation2 + $0x768] sm:$0xff] %v1572
        %1605 = vst [vmem:[#allocation2 + $0x840] sm:$0xff] %v1573
        %1606 = vst [vmem:[#allocation2 + $0x918] sm:$0xff] %v1574
        %1607 = vst [vmem:[#allocation2 + $0x9f0] sm:$0xff] %v1575
        %1608 = vst [vmem:[#allocation2 + $0xac8] sm:$0xff] %v1576
        %1609 = vst [vmem:[#allocation2 + $0xba0] sm:$0xff] %v1577
        %1610 = vst [vmem:[#allocation2 + $0xc78] sm:$0xff] %v1578
        %1611 = vst [vmem:[#allocation2 + $0xd50] sm:$0xff] %v1579
        %1612 = vst [vmem:[#allocation2 + $0xe28] sm:$0xff] %v1580
        %1613 = vst [vmem:[#allocation2 + $0xf00] sm:$0xff] %v1581
        %1614 = vst [vmem:[#allocation2 + $0xfd8] sm:$0xff] %v1582
        %1615 = vst [vmem:[#allocation2 + $0x10b0] sm:$0xff] %v1583
        %1616 = vst [vmem:[#allocation2 + $0x1188] sm:$0xff] %v1584
        %1617 = vst [vmem:[#allocation2 + $0x1260] sm:$0xff] %v1585
        %1618 = vst [vmem:[#allocation2 + $0x1338] sm:$0xff] %v1586
        %1619 = vst [vmem:[#allocation2 + $0x1410] sm:$0xff] %v1587
        %1620 = vst [vmem:[#allocation2 + $0x14e8] sm:$0xff] %v1588
        %1621 = vst [vmem:[#allocation2 + $0x15c0] sm:$0xff] %v1589
        %1622 = vst [vmem:[#allocation2 + $0x1698] sm:$0xff] %v1590
        %1623 = vst [vmem:[#allocation2 + $0x1770] sm:$0xff] %v1591
        %1624 = vst [vmem:[#allocation2 + $0x1848] sm:$0xff] %v1592
        %1625 = vst [vmem:[#allocation2 + $0x1920] sm:$0xff] %v1593
        %1626 = vst [vmem:[#allocation2 + $0x19f8] sm:$0xff] %v1594
        %1627 = vst [vmem:[#allocation2 + $0x1ad0] sm:$0xff] %v1595
        %v1628 = vld [vmem:[%s1563 + $0x1] sm:$0xff]
        %v1629 = vld [vmem:[%s1563 + $0x9] sm:$0xff]
        %v1630 = vld [vmem:[%s1563 + $0x19] sm:$0xff]
        %v1631 = vld [vmem:[%s1563 + $0x21] sm:$0xff]
        %v1632 = vld [vmem:[%s1563 + $0x31] sm:$0xff]
        %v1633 = vld [vmem:[%s1563 + $0x39] sm:$0xff]
        %v1634 = vld [vmem:[%s1563 + $0x49] sm:$0xff]
        %v1635 = vld [vmem:[%s1563 + $0x51] sm:$0xff]
        %v1636 = vld [vmem:[%s1563 + $0x61] sm:$0xff]
        %v1637 = vld [vmem:[%s1563 + $0x69] sm:$0xff]
        %v1638 = vld [vmem:[%s1563 + $0x79] sm:$0xff]
        %v1639 = vld [vmem:[%s1563 + $0x81] sm:$0xff]
        %v1640 = vld [vmem:[%s1563 + $0x91] sm:$0xff]
        %v1641 = vld [vmem:[%s1563 + $0x99] sm:$0xff]
        %v1642 = vld [vmem:[%s1563 + $0xa9] sm:$0xff]
        %v1643 = vld [vmem:[%s1563 + $0xb1] sm:$0xff]
        %v1644 = vld [vmem:[%s1563 + $0xc1] sm:$0xff]
        %v1645 = vld [vmem:[%s1563 + $0xc9] sm:$0xff]
        %v1646 = vld [vmem:[%s1563 + $0xd9] sm:$0xff]
        %v1647 = vld [vmem:[%s1563 + $0xe1] sm:$0xff]
        %v1648 = vld [vmem:[%s1563 + $0xf1] sm:$0xff]
        %v1649 = vld [vmem:[%s1563 + $0xf9] sm:$0xff]
        %v1650 = vld [vmem:[%s1563 + $0x109] sm:$0xff]
        %v1651 = vld [vmem:[%s1563 + $0x111] sm:$0xff]
        %v1652 = vld [vmem:[%s1563 + $0x121] sm:$0xff]
        %v1653 = vld [vmem:[%s1563 + $0x129] sm:$0xff]
        %v1654 = vld [vmem:[%s1563 + $0x139] sm:$0xff]
        %v1655 = vld [vmem:[%s1563 + $0x141] sm:$0xff]
        %v1656 = vld [vmem:[%s1563 + $0x151] sm:$0xff]
        %v1657 = vld [vmem:[%s1563 + $0x159] sm:$0xff]
        %v1658 = vld [vmem:[%s1563 + $0x169] sm:$0xff]
        %v1659 = vld [vmem:[%s1563 + $0x171] sm:$0xff]
        %1660 = vst [vmem:[#allocation2 + $0xb0] sm:$0xff] %v1628
        %1661 = vst [vmem:[#allocation2 + $0x188] sm:$0xff] %v1629
        %1662 = vst [vmem:[#allocation2 + $0x260] sm:$0xff] %v1630
        %1663 = vst [vmem:[#allocation2 + $0x338] sm:$0xff] %v1631
        %1664 = vst [vmem:[#allocation2 + $0x410] sm:$0xff] %v1632
        %1665 = vst [vmem:[#allocation2 + $0x4e8] sm:$0xff] %v1633
        %1666 = vst [vmem:[#allocation2 + $0x5c0] sm:$0xff] %v1634
        %1667 = vst [vmem:[#allocation2 + $0x698] sm:$0xff] %v1635
        %1668 = vst [vmem:[#allocation2 + $0x770] sm:$0xff] %v1636
        %1669 = vst [vmem:[#allocation2 + $0x848] sm:$0xff] %v1637
        %1670 = vst [vmem:[#allocation2 + $0x920] sm:$0xff] %v1638
        %1671 = vst [vmem:[#allocation2 + $0x9f8] sm:$0xff] %v1639
        %1672 = vst [vmem:[#allocation2 + $0xad0] sm:$0xff] %v1640
        %1673 = vst [vmem:[#allocation2 + $0xba8] sm:$0xff] %v1641
        %1674 = vst [vmem:[#allocation2 + $0xc80] sm:$0xff] %v1642
        %1675 = vst [vmem:[#allocation2 + $0xd58] sm:$0xff] %v1643
        %1676 = vst [vmem:[#allocation2 + $0xe30] sm:$0xff] %v1644
        %1677 = vst [vmem:[#allocation2 + $0xf08] sm:$0xff] %v1645
        %1678 = vst [vmem:[#allocation2 + $0xfe0] sm:$0xff] %v1646
        %1679 = vst [vmem:[#allocation2 + $0x10b8] sm:$0xff] %v1647
        %1680 = vst [vmem:[#allocation2 + $0x1190] sm:$0xff] %v1648
        %1681 = vst [vmem:[#allocation2 + $0x1268] sm:$0xff] %v1649
        %1682 = vst [vmem:[#allocation2 + $0x1340] sm:$0xff] %v1650
        %1683 = vst [vmem:[#allocation2 + $0x1418] sm:$0xff] %v1651
        %1684 = vst [vmem:[#allocation2 + $0x14f0] sm:$0xff] %v1652
        %1685 = vst [vmem:[#allocation2 + $0x15c8] sm:$0xff] %v1653
        %1686 = vst [vmem:[#allocation2 + $0x16a0] sm:$0xff] %v1654
        %1687 = vst [vmem:[#allocation2 + $0x1778] sm:$0xff] %v1655
        %1688 = vst [vmem:[#allocation2 + $0x1850] sm:$0xff] %v1656
        %1689 = vst [vmem:[#allocation2 + $0x1928] sm:$0xff] %v1657
        %1690 = vst [vmem:[#allocation2 + $0x1a00] sm:$0xff] %v1658
        %1691 = vst [vmem:[#allocation2 + $0x1ad8] sm:$0xff] %v1659
        %v1692 = vld [vmem:[%s1563 + $0x2] sm:$0xff]
        %v1693 = vld [vmem:[%s1563 + $0xa] sm:$0xff]
        %v1694 = vld [vmem:[%s1563 + $0x1a] sm:$0xff]
        %v1695 = vld [vmem:[%s1563 + $0x22] sm:$0xff]
        %v1696 = vld [vmem:[%s1563 + $0x32] sm:$0xff]
        %v1697 = vld [vmem:[%s1563 + $0x3a] sm:$0xff]
        %v1698 = vld [vmem:[%s1563 + $0x4a] sm:$0xff]
        %v1699 = vld [vmem:[%s1563 + $0x52] sm:$0xff]
        %v1700 = vld [vmem:[%s1563 + $0x62] sm:$0xff]
        %v1701 = vld [vmem:[%s1563 + $0x6a] sm:$0xff]
        %v1702 = vld [vmem:[%s1563 + $0x7a] sm:$0xff]
        %v1703 = vld [vmem:[%s1563 + $0x82] sm:$0xff]
        %v1704 = vld [vmem:[%s1563 + $0x92] sm:$0xff]
        %v1705 = vld [vmem:[%s1563 + $0x9a] sm:$0xff]
        %v1706 = vld [vmem:[%s1563 + $0xaa] sm:$0xff]
        %v1707 = vld [vmem:[%s1563 + $0xb2] sm:$0xff]
        %v1708 = vld [vmem:[%s1563 + $0xc2] sm:$0xff]
        %v1709 = vld [vmem:[%s1563 + $0xca] sm:$0xff]
        %v1710 = vld [vmem:[%s1563 + $0xda] sm:$0xff]
        %v1711 = vld [vmem:[%s1563 + $0xe2] sm:$0xff]
        %v1712 = vld [vmem:[%s1563 + $0xf2] sm:$0xff]
        %v1713 = vld [vmem:[%s1563 + $0xfa] sm:$0xff]
        %v1714 = vld [vmem:[%s1563 + $0x10a] sm:$0xff]
        %v1715 = vld [vmem:[%s1563 + $0x112] sm:$0xff]
        %v1716 = vld [vmem:[%s1563 + $0x122] sm:$0xff]
        %v1717 = vld [vmem:[%s1563 + $0x12a] sm:$0xff]
        %v1718 = vld [vmem:[%s1563 + $0x13a] sm:$0xff]
        %v1719 = vld [vmem:[%s1563 + $0x142] sm:$0xff]
        %v1720 = vld [vmem:[%s1563 + $0x152] sm:$0xff]
        %v1721 = vld [vmem:[%s1563 + $0x15a] sm:$0xff]
        %v1722 = vld [vmem:[%s1563 + $0x16a] sm:$0xff]
        %v1723 = vld [vmem:[%s1563 + $0x172] sm:$0xff]
        %1724 = vst [vmem:[#allocation2 + $0xb8] sm:$0xff] %v1692
        %1725 = vst [vmem:[#allocation2 + $0x190] sm:$0xff] %v1693
        %1726 = vst [vmem:[#allocation2 + $0x268] sm:$0xff] %v1694
        %1727 = vst [vmem:[#allocation2 + $0x340] sm:$0xff] %v1695
        %1728 = vst [vmem:[#allocation2 + $0x418] sm:$0xff] %v1696
        %1729 = vst [vmem:[#allocation2 + $0x4f0] sm:$0xff] %v1697
        %1730 = vst [vmem:[#allocation2 + $0x5c8] sm:$0xff] %v1698
        %1731 = vst [vmem:[#allocation2 + $0x6a0] sm:$0xff] %v1699
        %1732 = vst [vmem:[#allocation2 + $0x778] sm:$0xff] %v1700
        %1733 = vst [vmem:[#allocation2 + $0x850] sm:$0xff] %v1701
        %1734 = vst [vmem:[#allocation2 + $0x928] sm:$0xff] %v1702
        %1735 = vst [vmem:[#allocation2 + $0xa00] sm:$0xff] %v1703
        %1736 = vst [vmem:[#allocation2 + $0xad8] sm:$0xff] %v1704
        %1737 = vst [vmem:[#allocation2 + $0xbb0] sm:$0xff] %v1705
        %1738 = vst [vmem:[#allocation2 + $0xc88] sm:$0xff] %v1706
        %1739 = vst [vmem:[#allocation2 + $0xd60] sm:$0xff] %v1707
        %1740 = vst [vmem:[#allocation2 + $0xe38] sm:$0xff] %v1708
        %1741 = vst [vmem:[#allocation2 + $0xf10] sm:$0xff] %v1709
        %1742 = vst [vmem:[#allocation2 + $0xfe8] sm:$0xff] %v1710
        %1743 = vst [vmem:[#allocation2 + $0x10c0] sm:$0xff] %v1711
        %1744 = vst [vmem:[#allocation2 + $0x1198] sm:$0xff] %v1712
        %1745 = vst [vmem:[#allocation2 + $0x1270] sm:$0xff] %v1713
        %1746 = vst [vmem:[#allocation2 + $0x1348] sm:$0xff] %v1714
        %1747 = vst [vmem:[#allocation2 + $0x1420] sm:$0xff] %v1715
        %1748 = vst [vmem:[#allocation2 + $0x14f8] sm:$0xff] %v1716
        %1749 = vst [vmem:[#allocation2 + $0x15d0] sm:$0xff] %v1717
        %1750 = vst [vmem:[#allocation2 + $0x16a8] sm:$0xff] %v1718
        %1751 = vst [vmem:[#allocation2 + $0x1780] sm:$0xff] %v1719
        %1752 = vst [vmem:[#allocation2 + $0x1858] sm:$0xff] %v1720
        %1753 = vst [vmem:[#allocation2 + $0x1930] sm:$0xff] %v1721
        %1754 = vst [vmem:[#allocation2 + $0x1a08] sm:$0xff] %v1722
        %1755 = vst [vmem:[#allocation2 + $0x1ae0] sm:$0xff] %v1723
        %s1756 = sadd.s32 %s587, %s1367
        %s1757 = scalar_lea.vmem %s191, %s1756
        %v1758 = vld [vmem:[%s1757] sm:$0xff]
        %v1759 = vld [vmem:[%s1757 + $0x8] sm:$0xff]
        %v1760 = vld [vmem:[%s1757 + $0x18] sm:$0xff]
        %v1761 = vld [vmem:[%s1757 + $0x20] sm:$0xff]
        %v1762 = vld [vmem:[%s1757 + $0x30] sm:$0xff]
        %v1763 = vld [vmem:[%s1757 + $0x38] sm:$0xff]
        %v1764 = vld [vmem:[%s1757 + $0x48] sm:$0xff]
        %v1765 = vld [vmem:[%s1757 + $0x50] sm:$0xff]
        %v1766 = vld [vmem:[%s1757 + $0x60] sm:$0xff]
        %v1767 = vld [vmem:[%s1757 + $0x68] sm:$0xff]
        %v1768 = vld [vmem:[%s1757 + $0x78] sm:$0xff]
        %v1769 = vld [vmem:[%s1757 + $0x80] sm:$0xff]
        %v1770 = vld [vmem:[%s1757 + $0x90] sm:$0xff]
        %v1771 = vld [vmem:[%s1757 + $0x98] sm:$0xff]
        %v1772 = vld [vmem:[%s1757 + $0xa8] sm:$0xff]
        %v1773 = vld [vmem:[%s1757 + $0xb0] sm:$0xff]
        %v1774 = vld [vmem:[%s1757 + $0xc0] sm:$0xff]
        %v1775 = vld [vmem:[%s1757 + $0xc8] sm:$0xff]
        %v1776 = vld [vmem:[%s1757 + $0xd8] sm:$0xff]
        %v1777 = vld [vmem:[%s1757 + $0xe0] sm:$0xff]
        %v1778 = vld [vmem:[%s1757 + $0xf0] sm:$0xff]
        %v1779 = vld [vmem:[%s1757 + $0xf8] sm:$0xff]
        %v1780 = vld [vmem:[%s1757 + $0x108] sm:$0xff]
        %v1781 = vld [vmem:[%s1757 + $0x110] sm:$0xff]
        %v1782 = vld [vmem:[%s1757 + $0x120] sm:$0xff]
        %v1783 = vld [vmem:[%s1757 + $0x128] sm:$0xff]
        %v1784 = vld [vmem:[%s1757 + $0x138] sm:$0xff]
        %v1785 = vld [vmem:[%s1757 + $0x140] sm:$0xff]
        %v1786 = vld [vmem:[%s1757 + $0x150] sm:$0xff]
        %v1787 = vld [vmem:[%s1757 + $0x158] sm:$0xff]
        %v1788 = vld [vmem:[%s1757 + $0x168] sm:$0xff]
        %v1789 = vld [vmem:[%s1757 + $0x170] sm:$0xff]
        %1790 = vst [vmem:[#allocation2 + $0xc0] sm:$0xff] %v1758
        %1791 = vst [vmem:[#allocation2 + $0x198] sm:$0xff] %v1759
        %1792 = vst [vmem:[#allocation2 + $0x270] sm:$0xff] %v1760
        %1793 = vst [vmem:[#allocation2 + $0x348] sm:$0xff] %v1761
        %1794 = vst [vmem:[#allocation2 + $0x420] sm:$0xff] %v1762
        %1795 = vst [vmem:[#allocation2 + $0x4f8] sm:$0xff] %v1763
        %1796 = vst [vmem:[#allocation2 + $0x5d0] sm:$0xff] %v1764
        %1797 = vst [vmem:[#allocation2 + $0x6a8] sm:$0xff] %v1765
        %1798 = vst [vmem:[#allocation2 + $0x780] sm:$0xff] %v1766
        %1799 = vst [vmem:[#allocation2 + $0x858] sm:$0xff] %v1767
        %1800 = vst [vmem:[#allocation2 + $0x930] sm:$0xff] %v1768
        %1801 = vst [vmem:[#allocation2 + $0xa08] sm:$0xff] %v1769
        %1802 = vst [vmem:[#allocation2 + $0xae0] sm:$0xff] %v1770
        %1803 = vst [vmem:[#allocation2 + $0xbb8] sm:$0xff] %v1771
        %1804 = vst [vmem:[#allocation2 + $0xc90] sm:$0xff] %v1772
        %1805 = vst [vmem:[#allocation2 + $0xd68] sm:$0xff] %v1773
        %1806 = vst [vmem:[#allocation2 + $0xe40] sm:$0xff] %v1774
        %1807 = vst [vmem:[#allocation2 + $0xf18] sm:$0xff] %v1775
        %1808 = vst [vmem:[#allocation2 + $0xff0] sm:$0xff] %v1776
        %1809 = vst [vmem:[#allocation2 + $0x10c8] sm:$0xff] %v1777
        %1810 = vst [vmem:[#allocation2 + $0x11a0] sm:$0xff] %v1778
        %1811 = vst [vmem:[#allocation2 + $0x1278] sm:$0xff] %v1779
        %1812 = vst [vmem:[#allocation2 + $0x1350] sm:$0xff] %v1780
        %1813 = vst [vmem:[#allocation2 + $0x1428] sm:$0xff] %v1781
        %1814 = vst [vmem:[#allocation2 + $0x1500] sm:$0xff] %v1782
        %1815 = vst [vmem:[#allocation2 + $0x15d8] sm:$0xff] %v1783
        %1816 = vst [vmem:[#allocation2 + $0x16b0] sm:$0xff] %v1784
        %1817 = vst [vmem:[#allocation2 + $0x1788] sm:$0xff] %v1785
        %1818 = vst [vmem:[#allocation2 + $0x1860] sm:$0xff] %v1786
        %1819 = vst [vmem:[#allocation2 + $0x1938] sm:$0xff] %v1787
        %1820 = vst [vmem:[#allocation2 + $0x1a10] sm:$0xff] %v1788
        %1821 = vst [vmem:[#allocation2 + $0x1ae8] sm:$0xff] %v1789
        %v1822 = vld [vmem:[%s1757 + $0x1] sm:$0xff]
        %v1823 = vld [vmem:[%s1757 + $0x9] sm:$0xff]
        %v1824 = vld [vmem:[%s1757 + $0x19] sm:$0xff]
        %v1825 = vld [vmem:[%s1757 + $0x21] sm:$0xff]
        %v1826 = vld [vmem:[%s1757 + $0x31] sm:$0xff]
        %v1827 = vld [vmem:[%s1757 + $0x39] sm:$0xff]
        %v1828 = vld [vmem:[%s1757 + $0x49] sm:$0xff]
        %v1829 = vld [vmem:[%s1757 + $0x51] sm:$0xff]
        %v1830 = vld [vmem:[%s1757 + $0x61] sm:$0xff]
        %v1831 = vld [vmem:[%s1757 + $0x69] sm:$0xff]
        %v1832 = vld [vmem:[%s1757 + $0x79] sm:$0xff]
        %v1833 = vld [vmem:[%s1757 + $0x81] sm:$0xff]
        %v1834 = vld [vmem:[%s1757 + $0x91] sm:$0xff]
        %v1835 = vld [vmem:[%s1757 + $0x99] sm:$0xff]
        %v1836 = vld [vmem:[%s1757 + $0xa9] sm:$0xff]
        %v1837 = vld [vmem:[%s1757 + $0xb1] sm:$0xff]
        %v1838 = vld [vmem:[%s1757 + $0xc1] sm:$0xff]
        %v1839 = vld [vmem:[%s1757 + $0xc9] sm:$0xff]
        %v1840 = vld [vmem:[%s1757 + $0xd9] sm:$0xff]
        %v1841 = vld [vmem:[%s1757 + $0xe1] sm:$0xff]
        %v1842 = vld [vmem:[%s1757 + $0xf1] sm:$0xff]
        %v1843 = vld [vmem:[%s1757 + $0xf9] sm:$0xff]
        %v1844 = vld [vmem:[%s1757 + $0x109] sm:$0xff]
        %v1845 = vld [vmem:[%s1757 + $0x111] sm:$0xff]
        %v1846 = vld [vmem:[%s1757 + $0x121] sm:$0xff]
        %v1847 = vld [vmem:[%s1757 + $0x129] sm:$0xff]
        %v1848 = vld [vmem:[%s1757 + $0x139] sm:$0xff]
        %v1849 = vld [vmem:[%s1757 + $0x141] sm:$0xff]
        %v1850 = vld [vmem:[%s1757 + $0x151] sm:$0xff]
        %v1851 = vld [vmem:[%s1757 + $0x159] sm:$0xff]
        %v1852 = vld [vmem:[%s1757 + $0x169] sm:$0xff]
        %v1853 = vld [vmem:[%s1757 + $0x171] sm:$0xff]
        %1854 = vst [vmem:[#allocation2 + $0xc8] sm:$0xff] %v1822
        %1855 = vst [vmem:[#allocation2 + $0x1a0] sm:$0xff] %v1823
        %1856 = vst [vmem:[#allocation2 + $0x278] sm:$0xff] %v1824
        %1857 = vst [vmem:[#allocation2 + $0x350] sm:$0xff] %v1825
        %1858 = vst [vmem:[#allocation2 + $0x428] sm:$0xff] %v1826
        %1859 = vst [vmem:[#allocation2 + $0x500] sm:$0xff] %v1827
        %1860 = vst [vmem:[#allocation2 + $0x5d8] sm:$0xff] %v1828
        %1861 = vst [vmem:[#allocation2 + $0x6b0] sm:$0xff] %v1829
        %1862 = vst [vmem:[#allocation2 + $0x788] sm:$0xff] %v1830
        %1863 = vst [vmem:[#allocation2 + $0x860] sm:$0xff] %v1831
        %1864 = vst [vmem:[#allocation2 + $0x938] sm:$0xff] %v1832
        %1865 = vst [vmem:[#allocation2 + $0xa10] sm:$0xff] %v1833
        %1866 = vst [vmem:[#allocation2 + $0xae8] sm:$0xff] %v1834
        %1867 = vst [vmem:[#allocation2 + $0xbc0] sm:$0xff] %v1835
        %1868 = vst [vmem:[#allocation2 + $0xc98] sm:$0xff] %v1836
        %1869 = vst [vmem:[#allocation2 + $0xd70] sm:$0xff] %v1837
        %1870 = vst [vmem:[#allocation2 + $0xe48] sm:$0xff] %v1838
        %1871 = vst [vmem:[#allocation2 + $0xf20] sm:$0xff] %v1839
        %1872 = vst [vmem:[#allocation2 + $0xff8] sm:$0xff] %v1840
        %1873 = vst [vmem:[#allocation2 + $0x10d0] sm:$0xff] %v1841
        %1874 = vst [vmem:[#allocation2 + $0x11a8] sm:$0xff] %v1842
        %1875 = vst [vmem:[#allocation2 + $0x1280] sm:$0xff] %v1843
        %1876 = vst [vmem:[#allocation2 + $0x1358] sm:$0xff] %v1844
        %1877 = vst [vmem:[#allocation2 + $0x1430] sm:$0xff] %v1845
        %1878 = vst [vmem:[#allocation2 + $0x1508] sm:$0xff] %v1846
        %1879 = vst [vmem:[#allocation2 + $0x15e0] sm:$0xff] %v1847
        %1880 = vst [vmem:[#allocation2 + $0x16b8] sm:$0xff] %v1848
        %1881 = vst [vmem:[#allocation2 + $0x1790] sm:$0xff] %v1849
        %1882 = vst [vmem:[#allocation2 + $0x1868] sm:$0xff] %v1850
        %1883 = vst [vmem:[#allocation2 + $0x1940] sm:$0xff] %v1851
        %1884 = vst [vmem:[#allocation2 + $0x1a18] sm:$0xff] %v1852
        %1885 = vst [vmem:[#allocation2 + $0x1af0] sm:$0xff] %v1853
        %v1886 = vld [vmem:[%s1757 + $0x2] sm:$0xff]
        %v1887 = vld [vmem:[%s1757 + $0xa] sm:$0xff]
        %v1888 = vld [vmem:[%s1757 + $0x1a] sm:$0xff]
        %v1889 = vld [vmem:[%s1757 + $0x22] sm:$0xff]
        %v1890 = vld [vmem:[%s1757 + $0x32] sm:$0xff]
        %v1891 = vld [vmem:[%s1757 + $0x3a] sm:$0xff]
        %v1892 = vld [vmem:[%s1757 + $0x4a] sm:$0xff]
        %v1893 = vld [vmem:[%s1757 + $0x52] sm:$0xff]
        %v1894 = vld [vmem:[%s1757 + $0x62] sm:$0xff]
        %v1895 = vld [vmem:[%s1757 + $0x6a] sm:$0xff]
        %v1896 = vld [vmem:[%s1757 + $0x7a] sm:$0xff]
        %v1897 = vld [vmem:[%s1757 + $0x82] sm:$0xff]
        %v1898 = vld [vmem:[%s1757 + $0x92] sm:$0xff]
        %v1899 = vld [vmem:[%s1757 + $0x9a] sm:$0xff]
        %v1900 = vld [vmem:[%s1757 + $0xaa] sm:$0xff]
        %v1901 = vld [vmem:[%s1757 + $0xb2] sm:$0xff]
        %v1902 = vld [vmem:[%s1757 + $0xc2] sm:$0xff]
        %v1903 = vld [vmem:[%s1757 + $0xca] sm:$0xff]
        %v1904 = vld [vmem:[%s1757 + $0xda] sm:$0xff]
        %v1905 = vld [vmem:[%s1757 + $0xe2] sm:$0xff]
        %v1906 = vld [vmem:[%s1757 + $0xf2] sm:$0xff]
        %v1907 = vld [vmem:[%s1757 + $0xfa] sm:$0xff]
        %v1908 = vld [vmem:[%s1757 + $0x10a] sm:$0xff]
        %v1909 = vld [vmem:[%s1757 + $0x112] sm:$0xff]
        %v1910 = vld [vmem:[%s1757 + $0x122] sm:$0xff]
        %v1911 = vld [vmem:[%s1757 + $0x12a] sm:$0xff]
        %v1912 = vld [vmem:[%s1757 + $0x13a] sm:$0xff]
        %v1913 = vld [vmem:[%s1757 + $0x142] sm:$0xff]
        %v1914 = vld [vmem:[%s1757 + $0x152] sm:$0xff]
        %v1915 = vld [vmem:[%s1757 + $0x15a] sm:$0xff]
        %v1916 = vld [vmem:[%s1757 + $0x16a] sm:$0xff]
        %v1917 = vld [vmem:[%s1757 + $0x172] sm:$0xff]
        %1918 = vst [vmem:[#allocation2 + $0xd0] sm:$0xff] %v1886
        %1919 = vst [vmem:[#allocation2 + $0x1a8] sm:$0xff] %v1887
        %1920 = vst [vmem:[#allocation2 + $0x280] sm:$0xff] %v1888
        %1921 = vst [vmem:[#allocation2 + $0x358] sm:$0xff] %v1889
        %1922 = vst [vmem:[#allocation2 + $0x430] sm:$0xff] %v1890
        %1923 = vst [vmem:[#allocation2 + $0x508] sm:$0xff] %v1891
        %1924 = vst [vmem:[#allocation2 + $0x5e0] sm:$0xff] %v1892
        %1925 = vst [vmem:[#allocation2 + $0x6b8] sm:$0xff] %v1893
        %1926 = vst [vmem:[#allocation2 + $0x790] sm:$0xff] %v1894
        %1927 = vst [vmem:[#allocation2 + $0x868] sm:$0xff] %v1895
        %1928 = vst [vmem:[#allocation2 + $0x940] sm:$0xff] %v1896
        %1929 = vst [vmem:[#allocation2 + $0xa18] sm:$0xff] %v1897
        %1930 = vst [vmem:[#allocation2 + $0xaf0] sm:$0xff] %v1898
        %1931 = vst [vmem:[#allocation2 + $0xbc8] sm:$0xff] %v1899
        %1932 = vst [vmem:[#allocation2 + $0xca0] sm:$0xff] %v1900
        %1933 = vst [vmem:[#allocation2 + $0xd78] sm:$0xff] %v1901
        %1934 = vst [vmem:[#allocation2 + $0xe50] sm:$0xff] %v1902
        %1935 = vst [vmem:[#allocation2 + $0xf28] sm:$0xff] %v1903
        %1936 = vst [vmem:[#allocation2 + $0x1000] sm:$0xff] %v1904
        %1937 = vst [vmem:[#allocation2 + $0x10d8] sm:$0xff] %v1905
        %1938 = vst [vmem:[#allocation2 + $0x11b0] sm:$0xff] %v1906
        %1939 = vst [vmem:[#allocation2 + $0x1288] sm:$0xff] %v1907
        %1940 = vst [vmem:[#allocation2 + $0x1360] sm:$0xff] %v1908
        %1941 = vst [vmem:[#allocation2 + $0x1438] sm:$0xff] %v1909
        %1942 = vst [vmem:[#allocation2 + $0x1510] sm:$0xff] %v1910
        %1943 = vst [vmem:[#allocation2 + $0x15e8] sm:$0xff] %v1911
        %1944 = vst [vmem:[#allocation2 + $0x16c0] sm:$0xff] %v1912
        %1945 = vst [vmem:[#allocation2 + $0x1798] sm:$0xff] %v1913
        %1946 = vst [vmem:[#allocation2 + $0x1870] sm:$0xff] %v1914
        %1947 = vst [vmem:[#allocation2 + $0x1948] sm:$0xff] %v1915
        %1948 = vst [vmem:[#allocation2 + $0x1a20] sm:$0xff] %v1916
        %1949 = vst [vmem:[#allocation2 + $0x1af8] sm:$0xff] %v1917
        %v1950 = vld [vmem:[#allocation2] sm:$0xff]
        %v1951 = vld [vmem:[#allocation2 + $0x8] sm:$0xff]
        %v1952 = vld [vmem:[#allocation2 + $0x10] sm:$0xff]
        %v1953 = vld [vmem:[#allocation2 + $0x18] sm:$0xff]
        %v1954 = vld [vmem:[#allocation2 + $0x20] sm:$0xff]
        %v1955 = vld [vmem:[#allocation2 + $0x28] sm:$0xff]
        %v1956 = vld [vmem:[#allocation2 + $0x30] sm:$0xff]
        %v1957 = vld [vmem:[#allocation2 + $0x38] sm:$0xff]
        %v1958 = vld [vmem:[#allocation2 + $0x40] sm:$0xff]
        %v1959 = vld [vmem:[#allocation2 + $0x48] sm:$0xff]
        %v1960 = vld [vmem:[#allocation2 + $0x50] sm:$0xff]
        %v1961 = vld [vmem:[#allocation2 + $0x58] sm:$0xff]
        %v1962 = vld [vmem:[#allocation2 + $0x60] sm:$0xff]
        %v1963 = vld [vmem:[#allocation2 + $0x68] sm:$0xff]
        %v1964 = vld [vmem:[#allocation2 + $0x70] sm:$0xff]
        %v1965 = vld [vmem:[#allocation2 + $0x78] sm:$0xff]
        %v1966 = vld [vmem:[#allocation2 + $0x80] sm:$0xff]
        %v1967 = vld [vmem:[#allocation2 + $0x88] sm:$0xff]
        %v1968 = vld [vmem:[#allocation2 + $0x90] sm:$0xff]
        %v1969 = vld [vmem:[#allocation2 + $0x98] sm:$0xff]
        %v1970 = vld [vmem:[#allocation2 + $0xa0] sm:$0xff]
        %v1971 = vld [vmem:[#allocation2 + $0xa8] sm:$0xff]
        %v1972 = vld [vmem:[#allocation2 + $0xb0] sm:$0xff]
        %v1973 = vld [vmem:[#allocation2 + $0xb8] sm:$0xff]
        %v1974 = vld [vmem:[#allocation2 + $0xc0] sm:$0xff]
        %v1975 = vld [vmem:[#allocation2 + $0xc8] sm:$0xff]
        %v1976 = vld [vmem:[#allocation2 + $0xd0] sm:$0xff]
        %v1977 = vld [vmem:[#allocation2 + $0xd8] sm:$0xff]
        %v1978 = vld [vmem:[#allocation2 + $0xe0] sm:$0xff]
        %v1979 = vld [vmem:[#allocation2 + $0xe8] sm:$0xff]
        %v1980 = vld [vmem:[#allocation2 + $0xf0] sm:$0xff]
        %v1981 = vld [vmem:[#allocation2 + $0xf8] sm:$0xff]
        %v1982 = vld [vmem:[#allocation2 + $0x100] sm:$0xff]
        %v1983 = vld [vmem:[#allocation2 + $0x108] sm:$0xff]
        %v1984 = vld [vmem:[#allocation2 + $0x110] sm:$0xff]
        %v1985 = vld [vmem:[#allocation2 + $0x118] sm:$0xff]
        %v1986 = vld [vmem:[#allocation2 + $0x120] sm:$0xff]
        %v1987 = vld [vmem:[#allocation2 + $0x128] sm:$0xff]
        %v1988 = vld [vmem:[#allocation2 + $0x130] sm:$0xff]
        %v1989 = vld [vmem:[#allocation2 + $0x138] sm:$0xff]
        %v1990 = vld [vmem:[#allocation2 + $0x140] sm:$0xff]
        %v1991 = vld [vmem:[#allocation2 + $0x148] sm:$0xff]
        %v1992 = vld [vmem:[#allocation2 + $0x150] sm:$0xff]
        %v1993 = vld [vmem:[#allocation2 + $0x158] sm:$0xff]
        %v1994 = vld [vmem:[#allocation2 + $0x160] sm:$0xff]
        %v1995 = vld [vmem:[#allocation2 + $0x168] sm:$0xff]
        %v1996 = vld [vmem:[#allocation2 + $0x170] sm:$0xff]
        %v1997 = vld [vmem:[#allocation2 + $0x178] sm:$0xff]
        %v1998 = vld [vmem:[#allocation2 + $0x180] sm:$0xff]
        %v1999 = vld [vmem:[#allocation2 + $0x188] sm:$0xff]
        %v2000 = vld [vmem:[#allocation2 + $0x190] sm:$0xff]
        %v2001 = vld [vmem:[#allocation2 + $0x198] sm:$0xff]
        %v2002 = vld [vmem:[#allocation2 + $0x1a0] sm:$0xff]
        %v2003 = vld [vmem:[#allocation2 + $0x1a8] sm:$0xff]
        %v2004 = vld [vmem:[#allocation2 + $0x1b0] sm:$0xff]
        %v2005 = vld [vmem:[#allocation2 + $0x1b8] sm:$0xff]
        %v2006 = vld [vmem:[#allocation2 + $0x1c0] sm:$0xff]
        %v2007 = vld [vmem:[#allocation2 + $0x1c8] sm:$0xff]
        %v2008 = vld [vmem:[#allocation2 + $0x1d0] sm:$0xff]
        %v2009 = vld [vmem:[#allocation2 + $0x1d8] sm:$0xff]
        %v2010 = vld [vmem:[#allocation2 + $0x1e0] sm:$0xff]
        %v2011 = vld [vmem:[#allocation2 + $0x1e8] sm:$0xff]
        %v2012 = vld [vmem:[#allocation2 + $0x1f0] sm:$0xff]
        %v2013 = vld [vmem:[#allocation2 + $0x1f8] sm:$0xff]
        %v2014 = vld [vmem:[#allocation2 + $0x200] sm:$0xff]
        %v2015 = vld [vmem:[#allocation2 + $0x208] sm:$0xff]
        %v2016 = vld [vmem:[#allocation2 + $0x210] sm:$0xff]
        %v2017 = vld [vmem:[#allocation2 + $0x218] sm:$0xff]
        %v2018 = vld [vmem:[#allocation2 + $0x220] sm:$0xff]
        %v2019 = vld [vmem:[#allocation2 + $0x228] sm:$0xff]
        %v2020 = vld [vmem:[#allocation2 + $0x230] sm:$0xff]
        %v2021 = vld [vmem:[#allocation2 + $0x238] sm:$0xff]
        %v2022 = vld [vmem:[#allocation2 + $0x240] sm:$0xff]
        %v2023 = vld [vmem:[#allocation2 + $0x248] sm:$0xff]
        %v2024 = vld [vmem:[#allocation2 + $0x250] sm:$0xff]
        %v2025 = vld [vmem:[#allocation2 + $0x258] sm:$0xff]
        %v2026 = vld [vmem:[#allocation2 + $0x260] sm:$0xff]
        %v2027 = vld [vmem:[#allocation2 + $0x268] sm:$0xff]
        %v2028 = vld [vmem:[#allocation2 + $0x270] sm:$0xff]
        %v2029 = vld [vmem:[#allocation2 + $0x278] sm:$0xff]
        %v2030 = vld [vmem:[#allocation2 + $0x280] sm:$0xff]
        %v2031 = vld [vmem:[#allocation2 + $0x288] sm:$0xff]
        %v2032 = vld [vmem:[#allocation2 + $0x290] sm:$0xff]
        %v2033 = vld [vmem:[#allocation2 + $0x298] sm:$0xff]
        %v2034 = vld [vmem:[#allocation2 + $0x2a0] sm:$0xff]
        %v2035 = vld [vmem:[#allocation2 + $0x2a8] sm:$0xff]
        %v2036 = vld [vmem:[#allocation2 + $0x2b0] sm:$0xff]
        %v2037 = vld [vmem:[#allocation2 + $0x2b8] sm:$0xff]
        %v2038 = vld [vmem:[#allocation2 + $0x2c0] sm:$0xff]
        %v2039 = vld [vmem:[#allocation2 + $0x2c8] sm:$0xff]
        %v2040 = vld [vmem:[#allocation2 + $0x2d0] sm:$0xff]
        %v2041 = vld [vmem:[#allocation2 + $0x2d8] sm:$0xff]
        %v2042 = vld [vmem:[#allocation2 + $0x2e0] sm:$0xff]
        %v2043 = vld [vmem:[#allocation2 + $0x2e8] sm:$0xff]
        %v2044 = vld [vmem:[#allocation2 + $0x2f0] sm:$0xff]
        %v2045 = vld [vmem:[#allocation2 + $0x2f8] sm:$0xff]
        %v2046 = vld [vmem:[#allocation2 + $0x300] sm:$0xff]
        %v2047 = vld [vmem:[#allocation2 + $0x308] sm:$0xff]
        %v2048 = vld [vmem:[#allocation2 + $0x310] sm:$0xff]
        %v2049 = vld [vmem:[#allocation2 + $0x318] sm:$0xff]
        %v2050 = vld [vmem:[#allocation2 + $0x320] sm:$0xff]
        %v2051 = vld [vmem:[#allocation2 + $0x328] sm:$0xff]
        %v2052 = vld [vmem:[#allocation2 + $0x330] sm:$0xff]
        %v2053 = vld [vmem:[#allocation2 + $0x338] sm:$0xff]
        %v2054 = vld [vmem:[#allocation2 + $0x340] sm:$0xff]
        %v2055 = vld [vmem:[#allocation2 + $0x348] sm:$0xff]
        %v2056 = vld [vmem:[#allocation2 + $0x350] sm:$0xff]
        %v2057 = vld [vmem:[#allocation2 + $0x358] sm:$0xff]
        %v2058 = vld [vmem:[#allocation2 + $0x360] sm:$0xff]
        %v2059 = vld [vmem:[#allocation2 + $0x368] sm:$0xff]
        %v2060 = vld [vmem:[#allocation2 + $0x370] sm:$0xff]
        %v2061 = vld [vmem:[#allocation2 + $0x378] sm:$0xff]
        %v2062 = vld [vmem:[#allocation2 + $0x380] sm:$0xff]
        %v2063 = vld [vmem:[#allocation2 + $0x388] sm:$0xff]
        %v2064 = vld [vmem:[#allocation2 + $0x390] sm:$0xff]
        %v2065 = vld [vmem:[#allocation2 + $0x398] sm:$0xff]
        %v2066 = vld [vmem:[#allocation2 + $0x3a0] sm:$0xff]
        %v2067 = vld [vmem:[#allocation2 + $0x3a8] sm:$0xff]
        %v2068 = vld [vmem:[#allocation2 + $0x3b0] sm:$0xff]
        %v2069 = vld [vmem:[#allocation2 + $0x3b8] sm:$0xff]
        %v2070 = vld [vmem:[#allocation2 + $0x3c0] sm:$0xff]
        %v2071 = vld [vmem:[#allocation2 + $0x3c8] sm:$0xff]
        %v2072 = vld [vmem:[#allocation2 + $0x3d0] sm:$0xff]
        %v2073 = vld [vmem:[#allocation2 + $0x3d8] sm:$0xff]
        %v2074 = vld [vmem:[#allocation2 + $0x3e0] sm:$0xff]
        %v2075 = vld [vmem:[#allocation2 + $0x3e8] sm:$0xff]
        %v2076 = vld [vmem:[#allocation2 + $0x3f0] sm:$0xff]
        %v2077 = vld [vmem:[#allocation2 + $0x3f8] sm:$0xff]
        %v2078 = vld [vmem:[#allocation2 + $0x400] sm:$0xff]
        %v2079 = vld [vmem:[#allocation2 + $0x408] sm:$0xff]
        %v2080 = vld [vmem:[#allocation2 + $0x410] sm:$0xff]
        %v2081 = vld [vmem:[#allocation2 + $0x418] sm:$0xff]
        %v2082 = vld [vmem:[#allocation2 + $0x420] sm:$0xff]
        %v2083 = vld [vmem:[#allocation2 + $0x428] sm:$0xff]
        %v2084 = vld [vmem:[#allocation2 + $0x430] sm:$0xff]
        %v2085 = vld [vmem:[#allocation2 + $0x438] sm:$0xff]
        %v2086 = vld [vmem:[#allocation2 + $0x440] sm:$0xff]
        %v2087 = vld [vmem:[#allocation2 + $0x448] sm:$0xff]
        %v2088 = vld [vmem:[#allocation2 + $0x450] sm:$0xff]
        %v2089 = vld [vmem:[#allocation2 + $0x458] sm:$0xff]
        %v2090 = vld [vmem:[#allocation2 + $0x460] sm:$0xff]
        %v2091 = vld [vmem:[#allocation2 + $0x468] sm:$0xff]
        %v2092 = vld [vmem:[#allocation2 + $0x470] sm:$0xff]
        %v2093 = vld [vmem:[#allocation2 + $0x478] sm:$0xff]
        %v2094 = vld [vmem:[#allocation2 + $0x480] sm:$0xff]
        %v2095 = vld [vmem:[#allocation2 + $0x488] sm:$0xff]
        %v2096 = vld [vmem:[#allocation2 + $0x490] sm:$0xff]
        %v2097 = vld [vmem:[#allocation2 + $0x498] sm:$0xff]
        %v2098 = vld [vmem:[#allocation2 + $0x4a0] sm:$0xff]
        %v2099 = vld [vmem:[#allocation2 + $0x4a8] sm:$0xff]
        %v2100 = vld [vmem:[#allocation2 + $0x4b0] sm:$0xff]
        %v2101 = vld [vmem:[#allocation2 + $0x4b8] sm:$0xff]
        %v2102 = vld [vmem:[#allocation2 + $0x4c0] sm:$0xff]
        %v2103 = vld [vmem:[#allocation2 + $0x4c8] sm:$0xff]
        %v2104 = vld [vmem:[#allocation2 + $0x4d0] sm:$0xff]
        %v2105 = vld [vmem:[#allocation2 + $0x4d8] sm:$0xff]
        %v2106 = vld [vmem:[#allocation2 + $0x4e0] sm:$0xff]
        %v2107 = vld [vmem:[#allocation2 + $0x4e8] sm:$0xff]
        %v2108 = vld [vmem:[#allocation2 + $0x4f0] sm:$0xff]
        %v2109 = vld [vmem:[#allocation2 + $0x4f8] sm:$0xff]
        %v2110 = vld [vmem:[#allocation2 + $0x500] sm:$0xff]
        %v2111 = vld [vmem:[#allocation2 + $0x508] sm:$0xff]
        %v2112 = vld [vmem:[#allocation2 + $0x510] sm:$0xff]
        %v2113 = vld [vmem:[#allocation2 + $0x518] sm:$0xff]
        %v2114 = vld [vmem:[#allocation2 + $0x520] sm:$0xff]
        %v2115 = vld [vmem:[#allocation2 + $0x528] sm:$0xff]
        %v2116 = vld [vmem:[#allocation2 + $0x530] sm:$0xff]
        %v2117 = vld [vmem:[#allocation2 + $0x538] sm:$0xff]
        %v2118 = vld [vmem:[#allocation2 + $0x540] sm:$0xff]
        %v2119 = vld [vmem:[#allocation2 + $0x548] sm:$0xff]
        %v2120 = vld [vmem:[#allocation2 + $0x550] sm:$0xff]
        %v2121 = vld [vmem:[#allocation2 + $0x558] sm:$0xff]
        %v2122 = vld [vmem:[#allocation2 + $0x560] sm:$0xff]
        %v2123 = vld [vmem:[#allocation2 + $0x568] sm:$0xff]
        %v2124 = vld [vmem:[#allocation2 + $0x570] sm:$0xff]
        %v2125 = vld [vmem:[#allocation2 + $0x578] sm:$0xff]
        %v2126 = vld [vmem:[#allocation2 + $0x580] sm:$0xff]
        %v2127 = vld [vmem:[#allocation2 + $0x588] sm:$0xff]
        %v2128 = vld [vmem:[#allocation2 + $0x590] sm:$0xff]
        %v2129 = vld [vmem:[#allocation2 + $0x598] sm:$0xff]
        %v2130 = vld [vmem:[#allocation2 + $0x5a0] sm:$0xff]
        %v2131 = vld [vmem:[#allocation2 + $0x5a8] sm:$0xff]
        %v2132 = vld [vmem:[#allocation2 + $0x5b0] sm:$0xff]
        %v2133 = vld [vmem:[#allocation2 + $0x5b8] sm:$0xff]
        %v2134 = vld [vmem:[#allocation2 + $0x5c0] sm:$0xff]
        %v2135 = vld [vmem:[#allocation2 + $0x5c8] sm:$0xff]
        %v2136 = vld [vmem:[#allocation2 + $0x5d0] sm:$0xff]
        %v2137 = vld [vmem:[#allocation2 + $0x5d8] sm:$0xff]
        %v2138 = vld [vmem:[#allocation2 + $0x5e0] sm:$0xff]
        %v2139 = vld [vmem:[#allocation2 + $0x5e8] sm:$0xff]
        %v2140 = vld [vmem:[#allocation2 + $0x5f0] sm:$0xff]
        %v2141 = vld [vmem:[#allocation2 + $0x5f8] sm:$0xff]
        %v2142 = vld [vmem:[#allocation2 + $0x600] sm:$0xff]
        %v2143 = vld [vmem:[#allocation2 + $0x608] sm:$0xff]
        %v2144 = vld [vmem:[#allocation2 + $0x610] sm:$0xff]
        %v2145 = vld [vmem:[#allocation2 + $0x618] sm:$0xff]
        %v2146 = vld [vmem:[#allocation2 + $0x620] sm:$0xff]
        %v2147 = vld [vmem:[#allocation2 + $0x628] sm:$0xff]
        %v2148 = vld [vmem:[#allocation2 + $0x630] sm:$0xff]
        %v2149 = vld [vmem:[#allocation2 + $0x638] sm:$0xff]
        %v2150 = vld [vmem:[#allocation2 + $0x640] sm:$0xff]
        %v2151 = vld [vmem:[#allocation2 + $0x648] sm:$0xff]
        %v2152 = vld [vmem:[#allocation2 + $0x650] sm:$0xff]
        %v2153 = vld [vmem:[#allocation2 + $0x658] sm:$0xff]
        %v2154 = vld [vmem:[#allocation2 + $0x660] sm:$0xff]
        %v2155 = vld [vmem:[#allocation2 + $0x668] sm:$0xff]
        %v2156 = vld [vmem:[#allocation2 + $0x670] sm:$0xff]
        %v2157 = vld [vmem:[#allocation2 + $0x678] sm:$0xff]
        %v2158 = vld [vmem:[#allocation2 + $0x680] sm:$0xff]
        %v2159 = vld [vmem:[#allocation2 + $0x688] sm:$0xff]
        %v2160 = vld [vmem:[#allocation2 + $0x690] sm:$0xff]
        %v2161 = vld [vmem:[#allocation2 + $0x698] sm:$0xff]
        %v2162 = vld [vmem:[#allocation2 + $0x6a0] sm:$0xff]
        %v2163 = vld [vmem:[#allocation2 + $0x6a8] sm:$0xff]
        %v2164 = vld [vmem:[#allocation2 + $0x6b0] sm:$0xff]
        %v2165 = vld [vmem:[#allocation2 + $0x6b8] sm:$0xff]
        %v2166 = vld [vmem:[#allocation2 + $0x6c0] sm:$0xff]
        %v2167 = vld [vmem:[#allocation2 + $0x6c8] sm:$0xff]
        %v2168 = vld [vmem:[#allocation2 + $0x6d0] sm:$0xff]
        %v2169 = vld [vmem:[#allocation2 + $0x6d8] sm:$0xff]
        %v2170 = vld [vmem:[#allocation2 + $0x6e0] sm:$0xff]
        %v2171 = vld [vmem:[#allocation2 + $0x6e8] sm:$0xff]
        %v2172 = vld [vmem:[#allocation2 + $0x6f0] sm:$0xff]
        %v2173 = vld [vmem:[#allocation2 + $0x6f8] sm:$0xff]
        %v2174 = vld [vmem:[#allocation2 + $0x700] sm:$0xff]
        %v2175 = vld [vmem:[#allocation2 + $0x708] sm:$0xff]
        %v2176 = vld [vmem:[#allocation2 + $0x710] sm:$0xff]
        %v2177 = vld [vmem:[#allocation2 + $0x718] sm:$0xff]
        %v2178 = vld [vmem:[#allocation2 + $0x720] sm:$0xff]
        %v2179 = vld [vmem:[#allocation2 + $0x728] sm:$0xff]
        %v2180 = vld [vmem:[#allocation2 + $0x730] sm:$0xff]
        %v2181 = vld [vmem:[#allocation2 + $0x738] sm:$0xff]
        %v2182 = vld [vmem:[#allocation2 + $0x740] sm:$0xff]
        %v2183 = vld [vmem:[#allocation2 + $0x748] sm:$0xff]
        %v2184 = vld [vmem:[#allocation2 + $0x750] sm:$0xff]
        %v2185 = vld [vmem:[#allocation2 + $0x758] sm:$0xff]
        %v2186 = vld [vmem:[#allocation2 + $0x760] sm:$0xff]
        %v2187 = vld [vmem:[#allocation2 + $0x768] sm:$0xff]
        %v2188 = vld [vmem:[#allocation2 + $0x770] sm:$0xff]
        %v2189 = vld [vmem:[#allocation2 + $0x778] sm:$0xff]
        %v2190 = vld [vmem:[#allocation2 + $0x780] sm:$0xff]
        %v2191 = vld [vmem:[#allocation2 + $0x788] sm:$0xff]
        %v2192 = vld [vmem:[#allocation2 + $0x790] sm:$0xff]
        %v2193 = vld [vmem:[#allocation2 + $0x798] sm:$0xff]
        %v2194 = vld [vmem:[#allocation2 + $0x7a0] sm:$0xff]
        %v2195 = vld [vmem:[#allocation2 + $0x7a8] sm:$0xff]
        %v2196 = vld [vmem:[#allocation2 + $0x7b0] sm:$0xff]
        %v2197 = vld [vmem:[#allocation2 + $0x7b8] sm:$0xff]
        %v2198 = vld [vmem:[#allocation2 + $0x7c0] sm:$0xff]
        %v2199 = vld [vmem:[#allocation2 + $0x7c8] sm:$0xff]
        %v2200 = vld [vmem:[#allocation2 + $0x7d0] sm:$0xff]
        %v2201 = vld [vmem:[#allocation2 + $0x7d8] sm:$0xff]
        %v2202 = vld [vmem:[#allocation2 + $0x7e0] sm:$0xff]
        %v2203 = vld [vmem:[#allocation2 + $0x7e8] sm:$0xff]
        %v2204 = vld [vmem:[#allocation2 + $0x7f0] sm:$0xff]
        %v2205 = vld [vmem:[#allocation2 + $0x7f8] sm:$0xff]
        %v2206 = vld [vmem:[#allocation2 + $0x800] sm:$0xff]
        %v2207 = vld [vmem:[#allocation2 + $0x808] sm:$0xff]
        %v2208 = vld [vmem:[#allocation2 + $0x810] sm:$0xff]
        %v2209 = vld [vmem:[#allocation2 + $0x818] sm:$0xff]
        %v2210 = vld [vmem:[#allocation2 + $0x820] sm:$0xff]
        %v2211 = vld [vmem:[#allocation2 + $0x828] sm:$0xff]
        %v2212 = vld [vmem:[#allocation2 + $0x830] sm:$0xff]
        %v2213 = vld [vmem:[#allocation2 + $0x838] sm:$0xff]
        %v2214 = vld [vmem:[#allocation2 + $0x840] sm:$0xff]
        %v2215 = vld [vmem:[#allocation2 + $0x848] sm:$0xff]
        %v2216 = vld [vmem:[#allocation2 + $0x850] sm:$0xff]
        %v2217 = vld [vmem:[#allocation2 + $0x858] sm:$0xff]
        %v2218 = vld [vmem:[#allocation2 + $0x860] sm:$0xff]
        %v2219 = vld [vmem:[#allocation2 + $0x868] sm:$0xff]
        %v2220 = vld [vmem:[#allocation2 + $0x870] sm:$0xff]
        %v2221 = vld [vmem:[#allocation2 + $0x878] sm:$0xff]
        %v2222 = vld [vmem:[#allocation2 + $0x880] sm:$0xff]
        %v2223 = vld [vmem:[#allocation2 + $0x888] sm:$0xff]
        %v2224 = vld [vmem:[#allocation2 + $0x890] sm:$0xff]
        %v2225 = vld [vmem:[#allocation2 + $0x898] sm:$0xff]
        %v2226 = vld [vmem:[#allocation2 + $0x8a0] sm:$0xff]
        %v2227 = vld [vmem:[#allocation2 + $0x8a8] sm:$0xff]
        %v2228 = vld [vmem:[#allocation2 + $0x8b0] sm:$0xff]
        %v2229 = vld [vmem:[#allocation2 + $0x8b8] sm:$0xff]
        %v2230 = vld [vmem:[#allocation2 + $0x8c0] sm:$0xff]
        %v2231 = vld [vmem:[#allocation2 + $0x8c8] sm:$0xff]
        %v2232 = vld [vmem:[#allocation2 + $0x8d0] sm:$0xff]
        %v2233 = vld [vmem:[#allocation2 + $0x8d8] sm:$0xff]
        %v2234 = vld [vmem:[#allocation2 + $0x8e0] sm:$0xff]
        %v2235 = vld [vmem:[#allocation2 + $0x8e8] sm:$0xff]
        %v2236 = vld [vmem:[#allocation2 + $0x8f0] sm:$0xff]
        %v2237 = vld [vmem:[#allocation2 + $0x8f8] sm:$0xff]
        %v2238 = vld [vmem:[#allocation2 + $0x900] sm:$0xff]
        %v2239 = vld [vmem:[#allocation2 + $0x908] sm:$0xff]
        %v2240 = vld [vmem:[#allocation2 + $0x910] sm:$0xff]
        %v2241 = vld [vmem:[#allocation2 + $0x918] sm:$0xff]
        %v2242 = vld [vmem:[#allocation2 + $0x920] sm:$0xff]
        %v2243 = vld [vmem:[#allocation2 + $0x928] sm:$0xff]
        %v2244 = vld [vmem:[#allocation2 + $0x930] sm:$0xff]
        %v2245 = vld [vmem:[#allocation2 + $0x938] sm:$0xff]
        %v2246 = vld [vmem:[#allocation2 + $0x940] sm:$0xff]
        %v2247 = vld [vmem:[#allocation2 + $0x948] sm:$0xff]
        %v2248 = vld [vmem:[#allocation2 + $0x950] sm:$0xff]
        %v2249 = vld [vmem:[#allocation2 + $0x958] sm:$0xff]
        %v2250 = vld [vmem:[#allocation2 + $0x960] sm:$0xff]
        %v2251 = vld [vmem:[#allocation2 + $0x968] sm:$0xff]
        %v2252 = vld [vmem:[#allocation2 + $0x970] sm:$0xff]
        %v2253 = vld [vmem:[#allocation2 + $0x978] sm:$0xff]
        %v2254 = vld [vmem:[#allocation2 + $0x980] sm:$0xff]
        %v2255 = vld [vmem:[#allocation2 + $0x988] sm:$0xff]
        %v2256 = vld [vmem:[#allocation2 + $0x990] sm:$0xff]
        %v2257 = vld [vmem:[#allocation2 + $0x998] sm:$0xff]
        %v2258 = vld [vmem:[#allocation2 + $0x9a0] sm:$0xff]
        %v2259 = vld [vmem:[#allocation2 + $0x9a8] sm:$0xff]
        %v2260 = vld [vmem:[#allocation2 + $0x9b0] sm:$0xff]
        %v2261 = vld [vmem:[#allocation2 + $0x9b8] sm:$0xff]
        %v2262 = vld [vmem:[#allocation2 + $0x9c0] sm:$0xff]
        %v2263 = vld [vmem:[#allocation2 + $0x9c8] sm:$0xff]
        %v2264 = vld [vmem:[#allocation2 + $0x9d0] sm:$0xff]
        %v2265 = vld [vmem:[#allocation2 + $0x9d8] sm:$0xff]
        %v2266 = vld [vmem:[#allocation2 + $0x9e0] sm:$0xff]
        %v2267 = vld [vmem:[#allocation2 + $0x9e8] sm:$0xff]
        %v2268 = vld [vmem:[#allocation2 + $0x9f0] sm:$0xff]
        %v2269 = vld [vmem:[#allocation2 + $0x9f8] sm:$0xff]
        %v2270 = vld [vmem:[#allocation2 + $0xa00] sm:$0xff]
        %v2271 = vld [vmem:[#allocation2 + $0xa08] sm:$0xff]
        %v2272 = vld [vmem:[#allocation2 + $0xa10] sm:$0xff]
        %v2273 = vld [vmem:[#allocation2 + $0xa18] sm:$0xff]
        %v2274 = vld [vmem:[#allocation2 + $0xa20] sm:$0xff]
        %v2275 = vld [vmem:[#allocation2 + $0xa28] sm:$0xff]
        %v2276 = vld [vmem:[#allocation2 + $0xa30] sm:$0xff]
        %v2277 = vld [vmem:[#allocation2 + $0xa38] sm:$0xff]
        %v2278 = vld [vmem:[#allocation2 + $0xa40] sm:$0xff]
        %v2279 = vld [vmem:[#allocation2 + $0xa48] sm:$0xff]
        %v2280 = vld [vmem:[#allocation2 + $0xa50] sm:$0xff]
        %v2281 = vld [vmem:[#allocation2 + $0xa58] sm:$0xff]
        %v2282 = vld [vmem:[#allocation2 + $0xa60] sm:$0xff]
        %v2283 = vld [vmem:[#allocation2 + $0xa68] sm:$0xff]
        %v2284 = vld [vmem:[#allocation2 + $0xa70] sm:$0xff]
        %v2285 = vld [vmem:[#allocation2 + $0xa78] sm:$0xff]
        %v2286 = vld [vmem:[#allocation2 + $0xa80] sm:$0xff]
        %v2287 = vld [vmem:[#allocation2 + $0xa88] sm:$0xff]
        %v2288 = vld [vmem:[#allocation2 + $0xa90] sm:$0xff]
        %v2289 = vld [vmem:[#allocation2 + $0xa98] sm:$0xff]
        %v2290 = vld [vmem:[#allocation2 + $0xaa0] sm:$0xff]
        %v2291 = vld [vmem:[#allocation2 + $0xaa8] sm:$0xff]
        %v2292 = vld [vmem:[#allocation2 + $0xab0] sm:$0xff]
        %v2293 = vld [vmem:[#allocation2 + $0xab8] sm:$0xff]
        %v2294 = vld [vmem:[#allocation2 + $0xac0] sm:$0xff]
        %v2295 = vld [vmem:[#allocation2 + $0xac8] sm:$0xff]
        %v2296 = vld [vmem:[#allocation2 + $0xad0] sm:$0xff]
        %v2297 = vld [vmem:[#allocation2 + $0xad8] sm:$0xff]
        %v2298 = vld [vmem:[#allocation2 + $0xae0] sm:$0xff]
        %v2299 = vld [vmem:[#allocation2 + $0xae8] sm:$0xff]
        %v2300 = vld [vmem:[#allocation2 + $0xaf0] sm:$0xff]
        %v2301 = vld [vmem:[#allocation2 + $0xaf8] sm:$0xff]
        %v2302 = vld [vmem:[#allocation2 + $0xb00] sm:$0xff]
        %v2303 = vld [vmem:[#allocation2 + $0xb08] sm:$0xff]
        %v2304 = vld [vmem:[#allocation2 + $0xb10] sm:$0xff]
        %v2305 = vld [vmem:[#allocation2 + $0xb18] sm:$0xff]
        %v2306 = vld [vmem:[#allocation2 + $0xb20] sm:$0xff]
        %v2307 = vld [vmem:[#allocation2 + $0xb28] sm:$0xff]
        %v2308 = vld [vmem:[#allocation2 + $0xb30] sm:$0xff]
        %v2309 = vld [vmem:[#allocation2 + $0xb38] sm:$0xff]
        %v2310 = vld [vmem:[#allocation2 + $0xb40] sm:$0xff]
        %v2311 = vld [vmem:[#allocation2 + $0xb48] sm:$0xff]
        %v2312 = vld [vmem:[#allocation2 + $0xb50] sm:$0xff]
        %v2313 = vld [vmem:[#allocation2 + $0xb58] sm:$0xff]
        %v2314 = vld [vmem:[#allocation2 + $0xb60] sm:$0xff]
        %v2315 = vld [vmem:[#allocation2 + $0xb68] sm:$0xff]
        %v2316 = vld [vmem:[#allocation2 + $0xb70] sm:$0xff]
        %v2317 = vld [vmem:[#allocation2 + $0xb78] sm:$0xff]
        %v2318 = vld [vmem:[#allocation2 + $0xb80] sm:$0xff]
        %v2319 = vld [vmem:[#allocation2 + $0xb88] sm:$0xff]
        %v2320 = vld [vmem:[#allocation2 + $0xb90] sm:$0xff]
        %v2321 = vld [vmem:[#allocation2 + $0xb98] sm:$0xff]
        %v2322 = vld [vmem:[#allocation2 + $0xba0] sm:$0xff]
        %v2323 = vld [vmem:[#allocation2 + $0xba8] sm:$0xff]
        %v2324 = vld [vmem:[#allocation2 + $0xbb0] sm:$0xff]
        %v2325 = vld [vmem:[#allocation2 + $0xbb8] sm:$0xff]
        %v2326 = vld [vmem:[#allocation2 + $0xbc0] sm:$0xff]
        %v2327 = vld [vmem:[#allocation2 + $0xbc8] sm:$0xff]
        %v2328 = vld [vmem:[#allocation2 + $0xbd0] sm:$0xff]
        %v2329 = vld [vmem:[#allocation2 + $0xbd8] sm:$0xff]
        %v2330 = vld [vmem:[#allocation2 + $0xbe0] sm:$0xff]
        %v2331 = vld [vmem:[#allocation2 + $0xbe8] sm:$0xff]
        %v2332 = vld [vmem:[#allocation2 + $0xbf0] sm:$0xff]
        %v2333 = vld [vmem:[#allocation2 + $0xbf8] sm:$0xff]
        %v2334 = vld [vmem:[#allocation2 + $0xc00] sm:$0xff]
        %v2335 = vld [vmem:[#allocation2 + $0xc08] sm:$0xff]
        %v2336 = vld [vmem:[#allocation2 + $0xc10] sm:$0xff]
        %v2337 = vld [vmem:[#allocation2 + $0xc18] sm:$0xff]
        %v2338 = vld [vmem:[#allocation2 + $0xc20] sm:$0xff]
        %v2339 = vld [vmem:[#allocation2 + $0xc28] sm:$0xff]
        %v2340 = vld [vmem:[#allocation2 + $0xc30] sm:$0xff]
        %v2341 = vld [vmem:[#allocation2 + $0xc38] sm:$0xff]
        %v2342 = vld [vmem:[#allocation2 + $0xc40] sm:$0xff]
        %v2343 = vld [vmem:[#allocation2 + $0xc48] sm:$0xff]
        %v2344 = vld [vmem:[#allocation2 + $0xc50] sm:$0xff]
        %v2345 = vld [vmem:[#allocation2 + $0xc58] sm:$0xff]
        %v2346 = vld [vmem:[#allocation2 + $0xc60] sm:$0xff]
        %v2347 = vld [vmem:[#allocation2 + $0xc68] sm:$0xff]
        %v2348 = vld [vmem:[#allocation2 + $0xc70] sm:$0xff]
        %v2349 = vld [vmem:[#allocation2 + $0xc78] sm:$0xff]
        %v2350 = vld [vmem:[#allocation2 + $0xc80] sm:$0xff]
        %v2351 = vld [vmem:[#allocation2 + $0xc88] sm:$0xff]
        %v2352 = vld [vmem:[#allocation2 + $0xc90] sm:$0xff]
        %v2353 = vld [vmem:[#allocation2 + $0xc98] sm:$0xff]
        %v2354 = vld [vmem:[#allocation2 + $0xca0] sm:$0xff]
        %v2355 = vld [vmem:[#allocation2 + $0xca8] sm:$0xff]
        %v2356 = vld [vmem:[#allocation2 + $0xcb0] sm:$0xff]
        %v2357 = vld [vmem:[#allocation2 + $0xcb8] sm:$0xff]
        %v2358 = vld [vmem:[#allocation2 + $0xcc0] sm:$0xff]
        %v2359 = vld [vmem:[#allocation2 + $0xcc8] sm:$0xff]
        %v2360 = vld [vmem:[#allocation2 + $0xcd0] sm:$0xff]
        %v2361 = vld [vmem:[#allocation2 + $0xcd8] sm:$0xff]
        %v2362 = vld [vmem:[#allocation2 + $0xce0] sm:$0xff]
        %v2363 = vld [vmem:[#allocation2 + $0xce8] sm:$0xff]
        %v2364 = vld [vmem:[#allocation2 + $0xcf0] sm:$0xff]
        %v2365 = vld [vmem:[#allocation2 + $0xcf8] sm:$0xff]
        %v2366 = vld [vmem:[#allocation2 + $0xd00] sm:$0xff]
        %v2367 = vld [vmem:[#allocation2 + $0xd08] sm:$0xff]
        %v2368 = vld [vmem:[#allocation2 + $0xd10] sm:$0xff]
        %v2369 = vld [vmem:[#allocation2 + $0xd18] sm:$0xff]
        %v2370 = vld [vmem:[#allocation2 + $0xd20] sm:$0xff]
        %v2371 = vld [vmem:[#allocation2 + $0xd28] sm:$0xff]
        %v2372 = vld [vmem:[#allocation2 + $0xd30] sm:$0xff]
        %v2373 = vld [vmem:[#allocation2 + $0xd38] sm:$0xff]
        %v2374 = vld [vmem:[#allocation2 + $0xd40] sm:$0xff]
        %v2375 = vld [vmem:[#allocation2 + $0xd48] sm:$0xff]
        %v2376 = vld [vmem:[#allocation2 + $0xd50] sm:$0xff]
        %v2377 = vld [vmem:[#allocation2 + $0xd58] sm:$0xff]
        %v2378 = vld [vmem:[#allocation2 + $0xd60] sm:$0xff]
        %v2379 = vld [vmem:[#allocation2 + $0xd68] sm:$0xff]
        %v2380 = vld [vmem:[#allocation2 + $0xd70] sm:$0xff]
        %v2381 = vld [vmem:[#allocation2 + $0xd78] sm:$0xff]
        %v2382 = vld [vmem:[#allocation2 + $0xd80] sm:$0xff]
        %v2383 = vld [vmem:[#allocation2 + $0xd88] sm:$0xff]
        %v2384 = vld [vmem:[#allocation2 + $0xd90] sm:$0xff]
        %v2385 = vld [vmem:[#allocation2 + $0xd98] sm:$0xff]
        %v2386 = vld [vmem:[#allocation2 + $0xda0] sm:$0xff]
        %v2387 = vld [vmem:[#allocation2 + $0xda8] sm:$0xff]
        %v2388 = vld [vmem:[#allocation2 + $0xdb0] sm:$0xff]
        %v2389 = vld [vmem:[#allocation2 + $0xdb8] sm:$0xff]
        %v2390 = vld [vmem:[#allocation2 + $0xdc0] sm:$0xff]
        %v2391 = vld [vmem:[#allocation2 + $0xdc8] sm:$0xff]
        %v2392 = vld [vmem:[#allocation2 + $0xdd0] sm:$0xff]
        %v2393 = vld [vmem:[#allocation2 + $0xdd8] sm:$0xff]
        %v2394 = vld [vmem:[#allocation2 + $0xde0] sm:$0xff]
        %v2395 = vld [vmem:[#allocation2 + $0xde8] sm:$0xff]
        %v2396 = vld [vmem:[#allocation2 + $0xdf0] sm:$0xff]
        %v2397 = vld [vmem:[#allocation2 + $0xdf8] sm:$0xff]
        %v2398 = vld [vmem:[#allocation2 + $0xe00] sm:$0xff]
        %v2399 = vld [vmem:[#allocation2 + $0xe08] sm:$0xff]
        %v2400 = vld [vmem:[#allocation2 + $0xe10] sm:$0xff]
        %v2401 = vld [vmem:[#allocation2 + $0xe18] sm:$0xff]
        %v2402 = vld [vmem:[#allocation2 + $0xe20] sm:$0xff]
        %v2403 = vld [vmem:[#allocation2 + $0xe28] sm:$0xff]
        %v2404 = vld [vmem:[#allocation2 + $0xe30] sm:$0xff]
        %v2405 = vld [vmem:[#allocation2 + $0xe38] sm:$0xff]
        %v2406 = vld [vmem:[#allocation2 + $0xe40] sm:$0xff]
        %v2407 = vld [vmem:[#allocation2 + $0xe48] sm:$0xff]
        %v2408 = vld [vmem:[#allocation2 + $0xe50] sm:$0xff]
        %v2409 = vld [vmem:[#allocation2 + $0xe58] sm:$0xff]
        %v2410 = vld [vmem:[#allocation2 + $0xe60] sm:$0xff]
        %v2411 = vld [vmem:[#allocation2 + $0xe68] sm:$0xff]
        %v2412 = vld [vmem:[#allocation2 + $0xe70] sm:$0xff]
        %v2413 = vld [vmem:[#allocation2 + $0xe78] sm:$0xff]
        %v2414 = vld [vmem:[#allocation2 + $0xe80] sm:$0xff]
        %v2415 = vld [vmem:[#allocation2 + $0xe88] sm:$0xff]
        %v2416 = vld [vmem:[#allocation2 + $0xe90] sm:$0xff]
        %v2417 = vld [vmem:[#allocation2 + $0xe98] sm:$0xff]
        %v2418 = vld [vmem:[#allocation2 + $0xea0] sm:$0xff]
        %v2419 = vld [vmem:[#allocation2 + $0xea8] sm:$0xff]
        %v2420 = vld [vmem:[#allocation2 + $0xeb0] sm:$0xff]
        %v2421 = vld [vmem:[#allocation2 + $0xeb8] sm:$0xff]
        %v2422 = vld [vmem:[#allocation2 + $0xec0] sm:$0xff]
        %v2423 = vld [vmem:[#allocation2 + $0xec8] sm:$0xff]
        %v2424 = vld [vmem:[#allocation2 + $0xed0] sm:$0xff]
        %v2425 = vld [vmem:[#allocation2 + $0xed8] sm:$0xff]
        %v2426 = vld [vmem:[#allocation2 + $0xee0] sm:$0xff]
        %v2427 = vld [vmem:[#allocation2 + $0xee8] sm:$0xff]
        %v2428 = vld [vmem:[#allocation2 + $0xef0] sm:$0xff]
        %v2429 = vld [vmem:[#allocation2 + $0xef8] sm:$0xff]
        %v2430 = vld [vmem:[#allocation2 + $0xf00] sm:$0xff]
        %v2431 = vld [vmem:[#allocation2 + $0xf08] sm:$0xff]
        %v2432 = vld [vmem:[#allocation2 + $0xf10] sm:$0xff]
        %v2433 = vld [vmem:[#allocation2 + $0xf18] sm:$0xff]
        %v2434 = vld [vmem:[#allocation2 + $0xf20] sm:$0xff]
        %v2435 = vld [vmem:[#allocation2 + $0xf28] sm:$0xff]
        %v2436 = vld [vmem:[#allocation2 + $0xf30] sm:$0xff]
        %v2437 = vld [vmem:[#allocation2 + $0xf38] sm:$0xff]
        %v2438 = vld [vmem:[#allocation2 + $0xf40] sm:$0xff]
        %v2439 = vld [vmem:[#allocation2 + $0xf48] sm:$0xff]
        %v2440 = vld [vmem:[#allocation2 + $0xf50] sm:$0xff]
        %v2441 = vld [vmem:[#allocation2 + $0xf58] sm:$0xff]
        %v2442 = vld [vmem:[#allocation2 + $0xf60] sm:$0xff]
        %v2443 = vld [vmem:[#allocation2 + $0xf68] sm:$0xff]
        %v2444 = vld [vmem:[#allocation2 + $0xf70] sm:$0xff]
        %v2445 = vld [vmem:[#allocation2 + $0xf78] sm:$0xff]
        %v2446 = vld [vmem:[#allocation2 + $0xf80] sm:$0xff]
        %v2447 = vld [vmem:[#allocation2 + $0xf88] sm:$0xff]
        %v2448 = vld [vmem:[#allocation2 + $0xf90] sm:$0xff]
        %v2449 = vld [vmem:[#allocation2 + $0xf98] sm:$0xff]
        %v2450 = vld [vmem:[#allocation2 + $0xfa0] sm:$0xff]
        %v2451 = vld [vmem:[#allocation2 + $0xfa8] sm:$0xff]
        %v2452 = vld [vmem:[#allocation2 + $0xfb0] sm:$0xff]
        %v2453 = vld [vmem:[#allocation2 + $0xfb8] sm:$0xff]
        %v2454 = vld [vmem:[#allocation2 + $0xfc0] sm:$0xff]
        %v2455 = vld [vmem:[#allocation2 + $0xfc8] sm:$0xff]
        %v2456 = vld [vmem:[#allocation2 + $0xfd0] sm:$0xff]
        %v2457 = vld [vmem:[#allocation2 + $0xfd8] sm:$0xff]
        %v2458 = vld [vmem:[#allocation2 + $0xfe0] sm:$0xff]
        %v2459 = vld [vmem:[#allocation2 + $0xfe8] sm:$0xff]
        %v2460 = vld [vmem:[#allocation2 + $0xff0] sm:$0xff]
        %v2461 = vld [vmem:[#allocation2 + $0xff8] sm:$0xff]
        %v2462 = vld [vmem:[#allocation2 + $0x1000] sm:$0xff]
        %v2463 = vld [vmem:[#allocation2 + $0x1008] sm:$0xff]
        %v2464 = vld [vmem:[#allocation2 + $0x1010] sm:$0xff]
        %v2465 = vld [vmem:[#allocation2 + $0x1018] sm:$0xff]
        %v2466 = vld [vmem:[#allocation2 + $0x1020] sm:$0xff]
        %v2467 = vld [vmem:[#allocation2 + $0x1028] sm:$0xff]
        %v2468 = vld [vmem:[#allocation2 + $0x1030] sm:$0xff]
        %v2469 = vld [vmem:[#allocation2 + $0x1038] sm:$0xff]
        %v2470 = vld [vmem:[#allocation2 + $0x1040] sm:$0xff]
        %v2471 = vld [vmem:[#allocation2 + $0x1048] sm:$0xff]
        %v2472 = vld [vmem:[#allocation2 + $0x1050] sm:$0xff]
        %v2473 = vld [vmem:[#allocation2 + $0x1058] sm:$0xff]
        %v2474 = vld [vmem:[#allocation2 + $0x1060] sm:$0xff]
        %v2475 = vld [vmem:[#allocation2 + $0x1068] sm:$0xff]
        %v2476 = vld [vmem:[#allocation2 + $0x1070] sm:$0xff]
        %v2477 = vld [vmem:[#allocation2 + $0x1078] sm:$0xff]
        %v2478 = vld [vmem:[#allocation2 + $0x1080] sm:$0xff]
        %v2479 = vld [vmem:[#allocation2 + $0x1088] sm:$0xff]
        %v2480 = vld [vmem:[#allocation2 + $0x1090] sm:$0xff]
        %v2481 = vld [vmem:[#allocation2 + $0x1098] sm:$0xff]
        %v2482 = vld [vmem:[#allocation2 + $0x10a0] sm:$0xff]
        %v2483 = vld [vmem:[#allocation2 + $0x10a8] sm:$0xff]
        %v2484 = vld [vmem:[#allocation2 + $0x10b0] sm:$0xff]
        %v2485 = vld [vmem:[#allocation2 + $0x10b8] sm:$0xff]
        %v2486 = vld [vmem:[#allocation2 + $0x10c0] sm:$0xff]
        %v2487 = vld [vmem:[#allocation2 + $0x10c8] sm:$0xff]
        %v2488 = vld [vmem:[#allocation2 + $0x10d0] sm:$0xff]
        %v2489 = vld [vmem:[#allocation2 + $0x10d8] sm:$0xff]
        %v2490 = vld [vmem:[#allocation2 + $0x10e0] sm:$0xff]
        %v2491 = vld [vmem:[#allocation2 + $0x10e8] sm:$0xff]
        %v2492 = vld [vmem:[#allocation2 + $0x10f0] sm:$0xff]
        %v2493 = vld [vmem:[#allocation2 + $0x10f8] sm:$0xff]
        %v2494 = vld [vmem:[#allocation2 + $0x1100] sm:$0xff]
        %v2495 = vld [vmem:[#allocation2 + $0x1108] sm:$0xff]
        %v2496 = vld [vmem:[#allocation2 + $0x1110] sm:$0xff]
        %v2497 = vld [vmem:[#allocation2 + $0x1118] sm:$0xff]
        %v2498 = vld [vmem:[#allocation2 + $0x1120] sm:$0xff]
        %v2499 = vld [vmem:[#allocation2 + $0x1128] sm:$0xff]
        %v2500 = vld [vmem:[#allocation2 + $0x1130] sm:$0xff]
        %v2501 = vld [vmem:[#allocation2 + $0x1138] sm:$0xff]
        %v2502 = vld [vmem:[#allocation2 + $0x1140] sm:$0xff]
        %v2503 = vld [vmem:[#allocation2 + $0x1148] sm:$0xff]
        %v2504 = vld [vmem:[#allocation2 + $0x1150] sm:$0xff]
        %v2505 = vld [vmem:[#allocation2 + $0x1158] sm:$0xff]
        %v2506 = vld [vmem:[#allocation2 + $0x1160] sm:$0xff]
        %v2507 = vld [vmem:[#allocation2 + $0x1168] sm:$0xff]
        %v2508 = vld [vmem:[#allocation2 + $0x1170] sm:$0xff]
        %v2509 = vld [vmem:[#allocation2 + $0x1178] sm:$0xff]
        %v2510 = vld [vmem:[#allocation2 + $0x1180] sm:$0xff]
        %v2511 = vld [vmem:[#allocation2 + $0x1188] sm:$0xff]
        %v2512 = vld [vmem:[#allocation2 + $0x1190] sm:$0xff]
        %v2513 = vld [vmem:[#allocation2 + $0x1198] sm:$0xff]
        %v2514 = vld [vmem:[#allocation2 + $0x11a0] sm:$0xff]
        %v2515 = vld [vmem:[#allocation2 + $0x11a8] sm:$0xff]
        %v2516 = vld [vmem:[#allocation2 + $0x11b0] sm:$0xff]
        %v2517 = vld [vmem:[#allocation2 + $0x11b8] sm:$0xff]
        %v2518 = vld [vmem:[#allocation2 + $0x11c0] sm:$0xff]
        %v2519 = vld [vmem:[#allocation2 + $0x11c8] sm:$0xff]
        %v2520 = vld [vmem:[#allocation2 + $0x11d0] sm:$0xff]
        %v2521 = vld [vmem:[#allocation2 + $0x11d8] sm:$0xff]
        %v2522 = vld [vmem:[#allocation2 + $0x11e0] sm:$0xff]
        %v2523 = vld [vmem:[#allocation2 + $0x11e8] sm:$0xff]
        %v2524 = vld [vmem:[#allocation2 + $0x11f0] sm:$0xff]
        %v2525 = vld [vmem:[#allocation2 + $0x11f8] sm:$0xff]
        %v2526 = vld [vmem:[#allocation2 + $0x1200] sm:$0xff]
        %v2527 = vld [vmem:[#allocation2 + $0x1208] sm:$0xff]
        %v2528 = vld [vmem:[#allocation2 + $0x1210] sm:$0xff]
        %v2529 = vld [vmem:[#allocation2 + $0x1218] sm:$0xff]
        %v2530 = vld [vmem:[#allocation2 + $0x1220] sm:$0xff]
        %v2531 = vld [vmem:[#allocation2 + $0x1228] sm:$0xff]
        %v2532 = vld [vmem:[#allocation2 + $0x1230] sm:$0xff]
        %v2533 = vld [vmem:[#allocation2 + $0x1238] sm:$0xff]
        %v2534 = vld [vmem:[#allocation2 + $0x1240] sm:$0xff]
        %v2535 = vld [vmem:[#allocation2 + $0x1248] sm:$0xff]
        %v2536 = vld [vmem:[#allocation2 + $0x1250] sm:$0xff]
        %v2537 = vld [vmem:[#allocation2 + $0x1258] sm:$0xff]
        %v2538 = vld [vmem:[#allocation2 + $0x1260] sm:$0xff]
        %v2539 = vld [vmem:[#allocation2 + $0x1268] sm:$0xff]
        %v2540 = vld [vmem:[#allocation2 + $0x1270] sm:$0xff]
        %v2541 = vld [vmem:[#allocation2 + $0x1278] sm:$0xff]
        %v2542 = vld [vmem:[#allocation2 + $0x1280] sm:$0xff]
        %v2543 = vld [vmem:[#allocation2 + $0x1288] sm:$0xff]
        %v2544 = vld [vmem:[#allocation2 + $0x1290] sm:$0xff]
        %v2545 = vld [vmem:[#allocation2 + $0x1298] sm:$0xff]
        %v2546 = vld [vmem:[#allocation2 + $0x12a0] sm:$0xff]
        %v2547 = vld [vmem:[#allocation2 + $0x12a8] sm:$0xff]
        %v2548 = vld [vmem:[#allocation2 + $0x12b0] sm:$0xff]
        %v2549 = vld [vmem:[#allocation2 + $0x12b8] sm:$0xff]
        %v2550 = vld [vmem:[#allocation2 + $0x12c0] sm:$0xff]
        %v2551 = vld [vmem:[#allocation2 + $0x12c8] sm:$0xff]
        %v2552 = vld [vmem:[#allocation2 + $0x12d0] sm:$0xff]
        %v2553 = vld [vmem:[#allocation2 + $0x12d8] sm:$0xff]
        %v2554 = vld [vmem:[#allocation2 + $0x12e0] sm:$0xff]
        %v2555 = vld [vmem:[#allocation2 + $0x12e8] sm:$0xff]
        %v2556 = vld [vmem:[#allocation2 + $0x12f0] sm:$0xff]
        %v2557 = vld [vmem:[#allocation2 + $0x12f8] sm:$0xff]
        %v2558 = vld [vmem:[#allocation2 + $0x1300] sm:$0xff]
        %v2559 = vld [vmem:[#allocation2 + $0x1308] sm:$0xff]
        %v2560 = vld [vmem:[#allocation2 + $0x1310] sm:$0xff]
        %v2561 = vld [vmem:[#allocation2 + $0x1318] sm:$0xff]
        %v2562 = vld [vmem:[#allocation2 + $0x1320] sm:$0xff]
        %v2563 = vld [vmem:[#allocation2 + $0x1328] sm:$0xff]
        %v2564 = vld [vmem:[#allocation2 + $0x1330] sm:$0xff]
        %v2565 = vld [vmem:[#allocation2 + $0x1338] sm:$0xff]
        %v2566 = vld [vmem:[#allocation2 + $0x1340] sm:$0xff]
        %v2567 = vld [vmem:[#allocation2 + $0x1348] sm:$0xff]
        %v2568 = vld [vmem:[#allocation2 + $0x1350] sm:$0xff]
        %v2569 = vld [vmem:[#allocation2 + $0x1358] sm:$0xff]
        %v2570 = vld [vmem:[#allocation2 + $0x1360] sm:$0xff]
        %v2571 = vld [vmem:[#allocation2 + $0x1368] sm:$0xff]
        %v2572 = vld [vmem:[#allocation2 + $0x1370] sm:$0xff]
        %v2573 = vld [vmem:[#allocation2 + $0x1378] sm:$0xff]
        %v2574 = vld [vmem:[#allocation2 + $0x1380] sm:$0xff]
        %v2575 = vld [vmem:[#allocation2 + $0x1388] sm:$0xff]
        %v2576 = vld [vmem:[#allocation2 + $0x1390] sm:$0xff]
        %v2577 = vld [vmem:[#allocation2 + $0x1398] sm:$0xff]
        %v2578 = vld [vmem:[#allocation2 + $0x13a0] sm:$0xff]
        %v2579 = vld [vmem:[#allocation2 + $0x13a8] sm:$0xff]
        %v2580 = vld [vmem:[#allocation2 + $0x13b0] sm:$0xff]
        %v2581 = vld [vmem:[#allocation2 + $0x13b8] sm:$0xff]
        %v2582 = vld [vmem:[#allocation2 + $0x13c0] sm:$0xff]
        %v2583 = vld [vmem:[#allocation2 + $0x13c8] sm:$0xff]
        %v2584 = vld [vmem:[#allocation2 + $0x13d0] sm:$0xff]
        %v2585 = vld [vmem:[#allocation2 + $0x13d8] sm:$0xff]
        %v2586 = vld [vmem:[#allocation2 + $0x13e0] sm:$0xff]
        %v2587 = vld [vmem:[#allocation2 + $0x13e8] sm:$0xff]
        %v2588 = vld [vmem:[#allocation2 + $0x13f0] sm:$0xff]
        %v2589 = vld [vmem:[#allocation2 + $0x13f8] sm:$0xff]
        %v2590 = vld [vmem:[#allocation2 + $0x1400] sm:$0xff]
        %v2591 = vld [vmem:[#allocation2 + $0x1408] sm:$0xff]
        %v2592 = vld [vmem:[#allocation2 + $0x1410] sm:$0xff]
        %v2593 = vld [vmem:[#allocation2 + $0x1418] sm:$0xff]
        %v2594 = vld [vmem:[#allocation2 + $0x1420] sm:$0xff]
        %v2595 = vld [vmem:[#allocation2 + $0x1428] sm:$0xff]
        %v2596 = vld [vmem:[#allocation2 + $0x1430] sm:$0xff]
        %v2597 = vld [vmem:[#allocation2 + $0x1438] sm:$0xff]
        %v2598 = vld [vmem:[#allocation2 + $0x1440] sm:$0xff]
        %v2599 = vld [vmem:[#allocation2 + $0x1448] sm:$0xff]
        %v2600 = vld [vmem:[#allocation2 + $0x1450] sm:$0xff]
        %v2601 = vld [vmem:[#allocation2 + $0x1458] sm:$0xff]
        %v2602 = vld [vmem:[#allocation2 + $0x1460] sm:$0xff]
        %v2603 = vld [vmem:[#allocation2 + $0x1468] sm:$0xff]
        %v2604 = vld [vmem:[#allocation2 + $0x1470] sm:$0xff]
        %v2605 = vld [vmem:[#allocation2 + $0x1478] sm:$0xff]
        %v2606 = vld [vmem:[#allocation2 + $0x1480] sm:$0xff]
        %v2607 = vld [vmem:[#allocation2 + $0x1488] sm:$0xff]
        %v2608 = vld [vmem:[#allocation2 + $0x1490] sm:$0xff]
        %v2609 = vld [vmem:[#allocation2 + $0x1498] sm:$0xff]
        %v2610 = vld [vmem:[#allocation2 + $0x14a0] sm:$0xff]
        %v2611 = vld [vmem:[#allocation2 + $0x14a8] sm:$0xff]
        %v2612 = vld [vmem:[#allocation2 + $0x14b0] sm:$0xff]
        %v2613 = vld [vmem:[#allocation2 + $0x14b8] sm:$0xff]
        %v2614 = vld [vmem:[#allocation2 + $0x14c0] sm:$0xff]
        %v2615 = vld [vmem:[#allocation2 + $0x14c8] sm:$0xff]
        %v2616 = vld [vmem:[#allocation2 + $0x14d0] sm:$0xff]
        %v2617 = vld [vmem:[#allocation2 + $0x14d8] sm:$0xff]
        %v2618 = vld [vmem:[#allocation2 + $0x14e0] sm:$0xff]
        %v2619 = vld [vmem:[#allocation2 + $0x14e8] sm:$0xff]
        %v2620 = vld [vmem:[#allocation2 + $0x14f0] sm:$0xff]
        %v2621 = vld [vmem:[#allocation2 + $0x14f8] sm:$0xff]
        %v2622 = vld [vmem:[#allocation2 + $0x1500] sm:$0xff]
        %v2623 = vld [vmem:[#allocation2 + $0x1508] sm:$0xff]
        %v2624 = vld [vmem:[#allocation2 + $0x1510] sm:$0xff]
        %v2625 = vld [vmem:[#allocation2 + $0x1518] sm:$0xff]
        %v2626 = vld [vmem:[#allocation2 + $0x1520] sm:$0xff]
        %v2627 = vld [vmem:[#allocation2 + $0x1528] sm:$0xff]
        %v2628 = vld [vmem:[#allocation2 + $0x1530] sm:$0xff]
        %v2629 = vld [vmem:[#allocation2 + $0x1538] sm:$0xff]
        %v2630 = vld [vmem:[#allocation2 + $0x1540] sm:$0xff]
        %v2631 = vld [vmem:[#allocation2 + $0x1548] sm:$0xff]
        %v2632 = vld [vmem:[#allocation2 + $0x1550] sm:$0xff]
        %v2633 = vld [vmem:[#allocation2 + $0x1558] sm:$0xff]
        %v2634 = vld [vmem:[#allocation2 + $0x1560] sm:$0xff]
        %v2635 = vld [vmem:[#allocation2 + $0x1568] sm:$0xff]
        %v2636 = vld [vmem:[#allocation2 + $0x1570] sm:$0xff]
        %v2637 = vld [vmem:[#allocation2 + $0x1578] sm:$0xff]
        %v2638 = vld [vmem:[#allocation2 + $0x1580] sm:$0xff]
        %v2639 = vld [vmem:[#allocation2 + $0x1588] sm:$0xff]
        %v2640 = vld [vmem:[#allocation2 + $0x1590] sm:$0xff]
        %v2641 = vld [vmem:[#allocation2 + $0x1598] sm:$0xff]
        %v2642 = vld [vmem:[#allocation2 + $0x15a0] sm:$0xff]
        %v2643 = vld [vmem:[#allocation2 + $0x15a8] sm:$0xff]
        %v2644 = vld [vmem:[#allocation2 + $0x15b0] sm:$0xff]
        %v2645 = vld [vmem:[#allocation2 + $0x15b8] sm:$0xff]
        %v2646 = vld [vmem:[#allocation2 + $0x15c0] sm:$0xff]
        %v2647 = vld [vmem:[#allocation2 + $0x15c8] sm:$0xff]
        %v2648 = vld [vmem:[#allocation2 + $0x15d0] sm:$0xff]
        %v2649 = vld [vmem:[#allocation2 + $0x15d8] sm:$0xff]
        %v2650 = vld [vmem:[#allocation2 + $0x15e0] sm:$0xff]
        %v2651 = vld [vmem:[#allocation2 + $0x15e8] sm:$0xff]
        %v2652 = vld [vmem:[#allocation2 + $0x15f0] sm:$0xff]
        %v2653 = vld [vmem:[#allocation2 + $0x15f8] sm:$0xff]
        %v2654 = vld [vmem:[#allocation2 + $0x1600] sm:$0xff]
        %v2655 = vld [vmem:[#allocation2 + $0x1608] sm:$0xff]
        %v2656 = vld [vmem:[#allocation2 + $0x1610] sm:$0xff]
        %v2657 = vld [vmem:[#allocation2 + $0x1618] sm:$0xff]
        %v2658 = vld [vmem:[#allocation2 + $0x1620] sm:$0xff]
        %v2659 = vld [vmem:[#allocation2 + $0x1628] sm:$0xff]
        %v2660 = vld [vmem:[#allocation2 + $0x1630] sm:$0xff]
        %v2661 = vld [vmem:[#allocation2 + $0x1638] sm:$0xff]
        %v2662 = vld [vmem:[#allocation2 + $0x1640] sm:$0xff]
        %v2663 = vld [vmem:[#allocation2 + $0x1648] sm:$0xff]
        %v2664 = vld [vmem:[#allocation2 + $0x1650] sm:$0xff]
        %v2665 = vld [vmem:[#allocation2 + $0x1658] sm:$0xff]
        %v2666 = vld [vmem:[#allocation2 + $0x1660] sm:$0xff]
        %v2667 = vld [vmem:[#allocation2 + $0x1668] sm:$0xff]
        %v2668 = vld [vmem:[#allocation2 + $0x1670] sm:$0xff]
        %v2669 = vld [vmem:[#allocation2 + $0x1678] sm:$0xff]
        %v2670 = vld [vmem:[#allocation2 + $0x1680] sm:$0xff]
        %v2671 = vld [vmem:[#allocation2 + $0x1688] sm:$0xff]
        %v2672 = vld [vmem:[#allocation2 + $0x1690] sm:$0xff]
        %v2673 = vld [vmem:[#allocation2 + $0x1698] sm:$0xff]
        %v2674 = vld [vmem:[#allocation2 + $0x16a0] sm:$0xff]
        %v2675 = vld [vmem:[#allocation2 + $0x16a8] sm:$0xff]
        %v2676 = vld [vmem:[#allocation2 + $0x16b0] sm:$0xff]
        %v2677 = vld [vmem:[#allocation2 + $0x16b8] sm:$0xff]
        %v2678 = vld [vmem:[#allocation2 + $0x16c0] sm:$0xff]
        %v2679 = vld [vmem:[#allocation2 + $0x16c8] sm:$0xff]
        %v2680 = vld [vmem:[#allocation2 + $0x16d0] sm:$0xff]
        %v2681 = vld [vmem:[#allocation2 + $0x16d8] sm:$0xff]
        %v2682 = vld [vmem:[#allocation2 + $0x16e0] sm:$0xff]
        %v2683 = vld [vmem:[#allocation2 + $0x16e8] sm:$0xff]
        %v2684 = vld [vmem:[#allocation2 + $0x16f0] sm:$0xff]
        %v2685 = vld [vmem:[#allocation2 + $0x16f8] sm:$0xff]
        %v2686 = vld [vmem:[#allocation2 + $0x1700] sm:$0xff]
        %v2687 = vld [vmem:[#allocation2 + $0x1708] sm:$0xff]
        %v2688 = vld [vmem:[#allocation2 + $0x1710] sm:$0xff]
        %v2689 = vld [vmem:[#allocation2 + $0x1718] sm:$0xff]
        %v2690 = vld [vmem:[#allocation2 + $0x1720] sm:$0xff]
        %v2691 = vld [vmem:[#allocation2 + $0x1728] sm:$0xff]
        %v2692 = vld [vmem:[#allocation2 + $0x1730] sm:$0xff]
        %v2693 = vld [vmem:[#allocation2 + $0x1738] sm:$0xff]
        %v2694 = vld [vmem:[#allocation2 + $0x1740] sm:$0xff]
        %v2695 = vld [vmem:[#allocation2 + $0x1748] sm:$0xff]
        %v2696 = vld [vmem:[#allocation2 + $0x1750] sm:$0xff]
        %v2697 = vld [vmem:[#allocation2 + $0x1758] sm:$0xff]
        %v2698 = vld [vmem:[#allocation2 + $0x1760] sm:$0xff]
        %v2699 = vld [vmem:[#allocation2 + $0x1768] sm:$0xff]
        %v2700 = vld [vmem:[#allocation2 + $0x1770] sm:$0xff]
        %v2701 = vld [vmem:[#allocation2 + $0x1778] sm:$0xff]
        %v2702 = vld [vmem:[#allocation2 + $0x1780] sm:$0xff]
        %v2703 = vld [vmem:[#allocation2 + $0x1788] sm:$0xff]
        %v2704 = vld [vmem:[#allocation2 + $0x1790] sm:$0xff]
        %v2705 = vld [vmem:[#allocation2 + $0x1798] sm:$0xff]
        %v2706 = vld [vmem:[#allocation2 + $0x17a0] sm:$0xff]
        %v2707 = vld [vmem:[#allocation2 + $0x17a8] sm:$0xff]
        %v2708 = vld [vmem:[#allocation2 + $0x17b0] sm:$0xff]
        %v2709 = vld [vmem:[#allocation2 + $0x17b8] sm:$0xff]
        %v2710 = vld [vmem:[#allocation2 + $0x17c0] sm:$0xff]
        %v2711 = vld [vmem:[#allocation2 + $0x17c8] sm:$0xff]
        %v2712 = vld [vmem:[#allocation2 + $0x17d0] sm:$0xff]
        %v2713 = vld [vmem:[#allocation2 + $0x17d8] sm:$0xff]
        %v2714 = vld [vmem:[#allocation2 + $0x17e0] sm:$0xff]
        %v2715 = vld [vmem:[#allocation2 + $0x17e8] sm:$0xff]
        %v2716 = vld [vmem:[#allocation2 + $0x17f0] sm:$0xff]
        %v2717 = vld [vmem:[#allocation2 + $0x17f8] sm:$0xff]
        %v2718 = vld [vmem:[#allocation2 + $0x1800] sm:$0xff]
        %v2719 = vld [vmem:[#allocation2 + $0x1808] sm:$0xff]
        %v2720 = vld [vmem:[#allocation2 + $0x1810] sm:$0xff]
        %v2721 = vld [vmem:[#allocation2 + $0x1818] sm:$0xff]
        %v2722 = vld [vmem:[#allocation2 + $0x1820] sm:$0xff]
        %v2723 = vld [vmem:[#allocation2 + $0x1828] sm:$0xff]
        %v2724 = vld [vmem:[#allocation2 + $0x1830] sm:$0xff]
        %v2725 = vld [vmem:[#allocation2 + $0x1838] sm:$0xff]
        %v2726 = vld [vmem:[#allocation2 + $0x1840] sm:$0xff]
        %v2727 = vld [vmem:[#allocation2 + $0x1848] sm:$0xff]
        %v2728 = vld [vmem:[#allocation2 + $0x1850] sm:$0xff]
        %v2729 = vld [vmem:[#allocation2 + $0x1858] sm:$0xff]
        %v2730 = vld [vmem:[#allocation2 + $0x1860] sm:$0xff]
        %v2731 = vld [vmem:[#allocation2 + $0x1868] sm:$0xff]
        %v2732 = vld [vmem:[#allocation2 + $0x1870] sm:$0xff]
        %v2733 = vld [vmem:[#allocation2 + $0x1878] sm:$0xff]
        %v2734 = vld [vmem:[#allocation2 + $0x1880] sm:$0xff]
        %v2735 = vld [vmem:[#allocation2 + $0x1888] sm:$0xff]
        %v2736 = vld [vmem:[#allocation2 + $0x1890] sm:$0xff]
        %v2737 = vld [vmem:[#allocation2 + $0x1898] sm:$0xff]
        %v2738 = vld [vmem:[#allocation2 + $0x18a0] sm:$0xff]
        %v2739 = vld [vmem:[#allocation2 + $0x18a8] sm:$0xff]
        %v2740 = vld [vmem:[#allocation2 + $0x18b0] sm:$0xff]
        %v2741 = vld [vmem:[#allocation2 + $0x18b8] sm:$0xff]
        %v2742 = vld [vmem:[#allocation2 + $0x18c0] sm:$0xff]
        %v2743 = vld [vmem:[#allocation2 + $0x18c8] sm:$0xff]
        %v2744 = vld [vmem:[#allocation2 + $0x18d0] sm:$0xff]
        %v2745 = vld [vmem:[#allocation2 + $0x18d8] sm:$0xff]
        %v2746 = vld [vmem:[#allocation2 + $0x18e0] sm:$0xff]
        %v2747 = vld [vmem:[#allocation2 + $0x18e8] sm:$0xff]
        %v2748 = vld [vmem:[#allocation2 + $0x18f0] sm:$0xff]
        %v2749 = vld [vmem:[#allocation2 + $0x18f8] sm:$0xff]
        %v2750 = vld [vmem:[#allocation2 + $0x1900] sm:$0xff]
        %v2751 = vld [vmem:[#allocation2 + $0x1908] sm:$0xff]
        %v2752 = vld [vmem:[#allocation2 + $0x1910] sm:$0xff]
        %v2753 = vld [vmem:[#allocation2 + $0x1918] sm:$0xff]
        %v2754 = vld [vmem:[#allocation2 + $0x1920] sm:$0xff]
        %v2755 = vld [vmem:[#allocation2 + $0x1928] sm:$0xff]
        %v2756 = vld [vmem:[#allocation2 + $0x1930] sm:$0xff]
        %v2757 = vld [vmem:[#allocation2 + $0x1938] sm:$0xff]
        %v2758 = vld [vmem:[#allocation2 + $0x1940] sm:$0xff]
        %v2759 = vld [vmem:[#allocation2 + $0x1948] sm:$0xff]
        %v2760 = vld [vmem:[#allocation2 + $0x1950] sm:$0xff]
        %v2761 = vld [vmem:[#allocation2 + $0x1958] sm:$0xff]
        %v2762 = vld [vmem:[#allocation2 + $0x1960] sm:$0xff]
        %v2763 = vld [vmem:[#allocation2 + $0x1968] sm:$0xff]
        %v2764 = vld [vmem:[#allocation2 + $0x1970] sm:$0xff]
        %v2765 = vld [vmem:[#allocation2 + $0x1978] sm:$0xff]
        %v2766 = vld [vmem:[#allocation2 + $0x1980] sm:$0xff]
        %v2767 = vld [vmem:[#allocation2 + $0x1988] sm:$0xff]
        %v2768 = vld [vmem:[#allocation2 + $0x1990] sm:$0xff]
        %v2769 = vld [vmem:[#allocation2 + $0x1998] sm:$0xff]
        %v2770 = vld [vmem:[#allocation2 + $0x19a0] sm:$0xff]
        %v2771 = vld [vmem:[#allocation2 + $0x19a8] sm:$0xff]
        %v2772 = vld [vmem:[#allocation2 + $0x19b0] sm:$0xff]
        %v2773 = vld [vmem:[#allocation2 + $0x19b8] sm:$0xff]
        %v2774 = vld [vmem:[#allocation2 + $0x19c0] sm:$0xff]
        %v2775 = vld [vmem:[#allocation2 + $0x19c8] sm:$0xff]
        %v2776 = vld [vmem:[#allocation2 + $0x19d0] sm:$0xff]
        %v2777 = vld [vmem:[#allocation2 + $0x19d8] sm:$0xff]
        %v2778 = vld [vmem:[#allocation2 + $0x19e0] sm:$0xff]
        %v2779 = vld [vmem:[#allocation2 + $0x19e8] sm:$0xff]
        %v2780 = vld [vmem:[#allocation2 + $0x19f0] sm:$0xff]
        %v2781 = vld [vmem:[#allocation2 + $0x19f8] sm:$0xff]
        %v2782 = vld [vmem:[#allocation2 + $0x1a00] sm:$0xff]
        %v2783 = vld [vmem:[#allocation2 + $0x1a08] sm:$0xff]
        %v2784 = vld [vmem:[#allocation2 + $0x1a10] sm:$0xff]
        %v2785 = vld [vmem:[#allocation2 + $0x1a18] sm:$0xff]
        %v2786 = vld [vmem:[#allocation2 + $0x1a20] sm:$0xff]
        %v2787 = vld [vmem:[#allocation2 + $0x1a28] sm:$0xff]
        %v2788 = vld [vmem:[#allocation2 + $0x1a30] sm:$0xff]
        %v2789 = vld [vmem:[#allocation2 + $0x1a38] sm:$0xff]
        %v2790 = vld [vmem:[#allocation2 + $0x1a40] sm:$0xff]
        %v2791 = vld [vmem:[#allocation2 + $0x1a48] sm:$0xff]
        %v2792 = vld [vmem:[#allocation2 + $0x1a50] sm:$0xff]
        %v2793 = vld [vmem:[#allocation2 + $0x1a58] sm:$0xff]
        %v2794 = vld [vmem:[#allocation2 + $0x1a60] sm:$0xff]
        %v2795 = vld [vmem:[#allocation2 + $0x1a68] sm:$0xff]
        %v2796 = vld [vmem:[#allocation2 + $0x1a70] sm:$0xff]
        %v2797 = vld [vmem:[#allocation2 + $0x1a78] sm:$0xff]
        %v2798 = vld [vmem:[#allocation2 + $0x1a80] sm:$0xff]
        %v2799 = vld [vmem:[#allocation2 + $0x1a88] sm:$0xff]
        %v2800 = vld [vmem:[#allocation2 + $0x1a90] sm:$0xff]
        %v2801 = vld [vmem:[#allocation2 + $0x1a98] sm:$0xff]
        %v2802 = vld [vmem:[#allocation2 + $0x1aa0] sm:$0xff]
        %v2803 = vld [vmem:[#allocation2 + $0x1aa8] sm:$0xff]
        %v2804 = vld [vmem:[#allocation2 + $0x1ab0] sm:$0xff]
        %v2805 = vld [vmem:[#allocation2 + $0x1ab8] sm:$0xff]
        %v2806 = vld [vmem:[#allocation2 + $0x1ac0] sm:$0xff]
        %v2807 = vld [vmem:[#allocation2 + $0x1ac8] sm:$0xff]
        %v2808 = vld [vmem:[#allocation2 + $0x1ad0] sm:$0xff]
        %v2809 = vld [vmem:[#allocation2 + $0x1ad8] sm:$0xff]
        %v2810 = vld [vmem:[#allocation2 + $0x1ae0] sm:$0xff]
        %v2811 = vld [vmem:[#allocation2 + $0x1ae8] sm:$0xff]
        %v2812 = vld [vmem:[#allocation2 + $0x1af0] sm:$0xff]
        %v2813 = vld [vmem:[#allocation2 + $0x1af8] sm:$0xff]
        %v2814 = vld [vmem:[%s1] sm:$0xff]
        %v2815 = vld [vmem:[%s1 + $0x8] sm:$0xff]
        %v2816 = vld [vmem:[%s1 + $0x10] sm:$0xff]
        %v2817 = vld [vmem:[%s1 + $0x18] sm:$0xff]
        %v2818 = vld [vmem:[%s1 + $0x20] sm:$0xff]
        %v2819 = vld [vmem:[%s1 + $0x28] sm:$0xff]
        %v2820 = vld [vmem:[%s1 + $0x30] sm:$0xff]
        %v2821 = vld [vmem:[%s1 + $0x38] sm:$0xff]
        %v2822 = vld [vmem:[%s1 + $0x40] sm:$0xff]
        %v2823 = vld [vmem:[%s1 + $0x48] sm:$0xff]
        %v2824 = vld [vmem:[%s1 + $0x50] sm:$0xff]
        %v2825 = vld [vmem:[%s1 + $0x58] sm:$0xff]
        %v2826 = vld [vmem:[%s1 + $0x60] sm:$0xff]
        %v2827 = vld [vmem:[%s1 + $0x68] sm:$0xff]
        %v2828 = vld [vmem:[%s1 + $0x70] sm:$0xff]
        %v2829 = vld [vmem:[%s1 + $0x78] sm:$0xff]
        %v2830 = vld [vmem:[%s1 + $0x80] sm:$0xff]
        %v2831 = vld [vmem:[%s1 + $0x88] sm:$0xff]
        %v2832 = vld [vmem:[%s1 + $0x90] sm:$0xff]
        %v2833 = vld [vmem:[%s1 + $0x98] sm:$0xff]
        %v2834 = vld [vmem:[%s1 + $0xa0] sm:$0xff]
        %v2835 = vld [vmem:[%s1 + $0xa8] sm:$0xff]
        %v2836 = vld [vmem:[%s1 + $0xb0] sm:$0xff]
        %v2837 = vld [vmem:[%s1 + $0xb8] sm:$0xff]
        %v2838 = vld [vmem:[%s1 + $0xc0] sm:$0xff]
        %v2839 = vld [vmem:[%s1 + $0xc8] sm:$0xff]
        %v2840 = vld [vmem:[%s1 + $0xd0] sm:$0xff]
        %v2841 = vld [vmem:[%s1 + $0xd8] sm:$0xff]
        %v2842 = vld [vmem:[%s1 + $0xe0] sm:$0xff]
        %v2843 = vld [vmem:[%s1 + $0xe8] sm:$0xff]
        %v2844 = vld [vmem:[%s1 + $0xf0] sm:$0xff]
        %v2845 = vld [vmem:[%s1 + $0xf8] sm:$0xff]
        %v2846 = vld [vmem:[%s1 + $0x100] sm:$0xff]
        %v2847 = vld [vmem:[%s1 + $0x108] sm:$0xff]
        %v2848 = vld [vmem:[%s1 + $0x110] sm:$0xff]
        %v2849 = vld [vmem:[%s1 + $0x118] sm:$0xff]
        %v2850 = vld [vmem:[%s1 + $0x120] sm:$0xff]
        %v2851 = vld [vmem:[%s1 + $0x128] sm:$0xff]
        %v2852 = vld [vmem:[%s1 + $0x130] sm:$0xff]
        %v2853 = vld [vmem:[%s1 + $0x138] sm:$0xff]
        %v2854 = vld [vmem:[%s1 + $0x140] sm:$0xff]
        %v2855 = vld [vmem:[%s1 + $0x148] sm:$0xff]
        %v2856 = vld [vmem:[%s1 + $0x150] sm:$0xff]
        %v2857 = vld [vmem:[%s1 + $0x158] sm:$0xff]
        %v2858 = vld [vmem:[%s1 + $0x160] sm:$0xff]
        %v2859 = vld [vmem:[%s1 + $0x168] sm:$0xff]
        %v2860 = vld [vmem:[%s1 + $0x170] sm:$0xff]
        %v2861 = vld [vmem:[%s1 + $0x178] sm:$0xff]
        %v2862 = vld [vmem:[%s1 + $0x180] sm:$0xff]
        %v2863 = vld [vmem:[%s1 + $0x188] sm:$0xff]
        %v2864 = vld [vmem:[%s1 + $0x190] sm:$0xff]
        %v2865 = vld [vmem:[%s1 + $0x198] sm:$0xff]
        %v2866 = vld [vmem:[%s1 + $0x1a0] sm:$0xff]
        %v2867 = vld [vmem:[%s1 + $0x1a8] sm:$0xff]
        %v2868 = vld [vmem:[%s1 + $0x1b0] sm:$0xff]
        %v2869 = vld [vmem:[%s1 + $0x1b8] sm:$0xff]
        %v2870 = vld [vmem:[%s1 + $0x1c0] sm:$0xff]
        %v2871 = vld [vmem:[%s1 + $0x1c8] sm:$0xff]
        %v2872 = vld [vmem:[%s1 + $0x1d0] sm:$0xff]
        %v2873 = vld [vmem:[%s1 + $0x1d8] sm:$0xff]
        %v2874 = vld [vmem:[%s1 + $0x1e0] sm:$0xff]
        %v2875 = vld [vmem:[%s1 + $0x1e8] sm:$0xff]
        %v2876 = vld [vmem:[%s1 + $0x1f0] sm:$0xff]
        %v2877 = vld [vmem:[%s1 + $0x1f8] sm:$0xff]
        %v2878 = vld [vmem:[%s1 + $0x200] sm:$0xff]
        %v2879 = vld [vmem:[%s1 + $0x208] sm:$0xff]
        %v2880 = vld [vmem:[%s1 + $0x210] sm:$0xff]
        %v2881 = vld [vmem:[%s1 + $0x218] sm:$0xff]
        %v2882 = vld [vmem:[%s1 + $0x220] sm:$0xff]
        %v2883 = vld [vmem:[%s1 + $0x228] sm:$0xff]
        %v2884 = vld [vmem:[%s1 + $0x230] sm:$0xff]
        %v2885 = vld [vmem:[%s1 + $0x238] sm:$0xff]
        %v2886 = vld [vmem:[%s1 + $0x240] sm:$0xff]
        %v2887 = vld [vmem:[%s1 + $0x248] sm:$0xff]
        %v2888 = vld [vmem:[%s1 + $0x250] sm:$0xff]
        %v2889 = vld [vmem:[%s1 + $0x258] sm:$0xff]
        %v2890 = vld [vmem:[%s1 + $0x260] sm:$0xff]
        %v2891 = vld [vmem:[%s1 + $0x268] sm:$0xff]
        %v2892 = vld [vmem:[%s1 + $0x270] sm:$0xff]
        %v2893 = vld [vmem:[%s1 + $0x278] sm:$0xff]
        %v2894 = vld [vmem:[%s1 + $0x280] sm:$0xff]
        %v2895 = vld [vmem:[%s1 + $0x288] sm:$0xff]
        %v2896 = vld [vmem:[%s1 + $0x290] sm:$0xff]
        %v2897 = vld [vmem:[%s1 + $0x298] sm:$0xff]
        %v2898 = vld [vmem:[%s1 + $0x2a0] sm:$0xff]
        %v2899 = vld [vmem:[%s1 + $0x2a8] sm:$0xff]
        %v2900 = vld [vmem:[%s1 + $0x2b0] sm:$0xff]
        %v2901 = vld [vmem:[%s1 + $0x2b8] sm:$0xff]
        %v2902 = vld [vmem:[%s1 + $0x2c0] sm:$0xff]
        %v2903 = vld [vmem:[%s1 + $0x2c8] sm:$0xff]
        %v2904 = vld [vmem:[%s1 + $0x2d0] sm:$0xff]
        %v2905 = vld [vmem:[%s1 + $0x2d8] sm:$0xff]
        %v2906 = vld [vmem:[%s1 + $0x2e0] sm:$0xff]
        %v2907 = vld [vmem:[%s1 + $0x2e8] sm:$0xff]
        %v2908 = vld [vmem:[%s1 + $0x2f0] sm:$0xff]
        %v2909 = vld [vmem:[%s1 + $0x2f8] sm:$0xff]
        %v2910 = vld [vmem:[%s1 + $0x300] sm:$0xff]
        %v2911 = vld [vmem:[%s1 + $0x308] sm:$0xff]
        %v2912 = vld [vmem:[%s1 + $0x310] sm:$0xff]
        %v2913 = vld [vmem:[%s1 + $0x318] sm:$0xff]
        %v2914 = vld [vmem:[%s1 + $0x320] sm:$0xff]
        %v2915 = vld [vmem:[%s1 + $0x328] sm:$0xff]
        %v2916 = vld [vmem:[%s1 + $0x330] sm:$0xff]
        %v2917 = vld [vmem:[%s1 + $0x338] sm:$0xff]
        %v2918 = vld [vmem:[%s1 + $0x340] sm:$0xff]
        %v2919 = vld [vmem:[%s1 + $0x348] sm:$0xff]
        %v2920 = vld [vmem:[%s1 + $0x350] sm:$0xff]
        %v2921 = vld [vmem:[%s1 + $0x358] sm:$0xff]
        %v2922 = vld [vmem:[%s1 + $0x360] sm:$0xff]
        %v2923 = vld [vmem:[%s1 + $0x368] sm:$0xff]
        %v2924 = vld [vmem:[%s1 + $0x370] sm:$0xff]
        %v2925 = vld [vmem:[%s1 + $0x378] sm:$0xff]
        %v2926 = vld [vmem:[%s1 + $0x380] sm:$0xff]
        %v2927 = vld [vmem:[%s1 + $0x388] sm:$0xff]
        %v2928 = vld [vmem:[%s1 + $0x390] sm:$0xff]
        %v2929 = vld [vmem:[%s1 + $0x398] sm:$0xff]
        %v2930 = vld [vmem:[%s1 + $0x3a0] sm:$0xff]
        %v2931 = vld [vmem:[%s1 + $0x3a8] sm:$0xff]
        %v2932 = vld [vmem:[%s1 + $0x3b0] sm:$0xff]
        %v2933 = vld [vmem:[%s1 + $0x3b8] sm:$0xff]
        %v2934 = vld [vmem:[%s1 + $0x3c0] sm:$0xff]
        %v2935 = vld [vmem:[%s1 + $0x3c8] sm:$0xff]
        %v2936 = vld [vmem:[%s1 + $0x3d0] sm:$0xff]
        %v2937 = vld [vmem:[%s1 + $0x3d8] sm:$0xff]
        %v2938 = vld [vmem:[%s1 + $0x3e0] sm:$0xff]
        %v2939 = vld [vmem:[%s1 + $0x3e8] sm:$0xff]
        %v2940 = vld [vmem:[%s1 + $0x3f0] sm:$0xff]
        %v2941 = vld [vmem:[%s1 + $0x3f8] sm:$0xff]
        %v2942 = vld [vmem:[%s1 + $0x400] sm:$0xff]
        %v2943 = vld [vmem:[%s1 + $0x408] sm:$0xff]
        %v2944 = vld [vmem:[%s1 + $0x410] sm:$0xff]
        %v2945 = vld [vmem:[%s1 + $0x418] sm:$0xff]
        %v2946 = vld [vmem:[%s1 + $0x420] sm:$0xff]
        %v2947 = vld [vmem:[%s1 + $0x428] sm:$0xff]
        %v2948 = vld [vmem:[%s1 + $0x430] sm:$0xff]
        %v2949 = vld [vmem:[%s1 + $0x438] sm:$0xff]
        %v2950 = vld [vmem:[%s1 + $0x440] sm:$0xff]
        %v2951 = vld [vmem:[%s1 + $0x448] sm:$0xff]
        %v2952 = vld [vmem:[%s1 + $0x450] sm:$0xff]
        %v2953 = vld [vmem:[%s1 + $0x458] sm:$0xff]
        %v2954 = vld [vmem:[%s1 + $0x460] sm:$0xff]
        %v2955 = vld [vmem:[%s1 + $0x468] sm:$0xff]
        %v2956 = vld [vmem:[%s1 + $0x470] sm:$0xff]
        %v2957 = vld [vmem:[%s1 + $0x478] sm:$0xff]
        %v2958 = vld [vmem:[%s1 + $0x480] sm:$0xff]
        %v2959 = vld [vmem:[%s1 + $0x488] sm:$0xff]
        %v2960 = vld [vmem:[%s1 + $0x490] sm:$0xff]
        %v2961 = vld [vmem:[%s1 + $0x498] sm:$0xff]
        %v2962 = vld [vmem:[%s1 + $0x4a0] sm:$0xff]
        %v2963 = vld [vmem:[%s1 + $0x4a8] sm:$0xff]
        %v2964 = vld [vmem:[%s1 + $0x4b0] sm:$0xff]
        %v2965 = vld [vmem:[%s1 + $0x4b8] sm:$0xff]
        %v2966 = vld [vmem:[%s1 + $0x4c0] sm:$0xff]
        %v2967 = vld [vmem:[%s1 + $0x4c8] sm:$0xff]
        %v2968 = vld [vmem:[%s1 + $0x4d0] sm:$0xff]
        %v2969 = vld [vmem:[%s1 + $0x4d8] sm:$0xff]
        %v2970 = vld [vmem:[%s1 + $0x4e0] sm:$0xff]
        %v2971 = vld [vmem:[%s1 + $0x4e8] sm:$0xff]
        %v2972 = vld [vmem:[%s1 + $0x4f0] sm:$0xff]
        %v2973 = vld [vmem:[%s1 + $0x4f8] sm:$0xff]
        %v2974 = vld [vmem:[%s1 + $0x500] sm:$0xff]
        %v2975 = vld [vmem:[%s1 + $0x508] sm:$0xff]
        %v2976 = vld [vmem:[%s1 + $0x510] sm:$0xff]
        %v2977 = vld [vmem:[%s1 + $0x518] sm:$0xff]
        %v2978 = vld [vmem:[%s1 + $0x520] sm:$0xff]
        %v2979 = vld [vmem:[%s1 + $0x528] sm:$0xff]
        %v2980 = vld [vmem:[%s1 + $0x530] sm:$0xff]
        %v2981 = vld [vmem:[%s1 + $0x538] sm:$0xff]
        %v2982 = vld [vmem:[%s1 + $0x540] sm:$0xff]
        %v2983 = vld [vmem:[%s1 + $0x548] sm:$0xff]
        %v2984 = vld [vmem:[%s1 + $0x550] sm:$0xff]
        %v2985 = vld [vmem:[%s1 + $0x558] sm:$0xff]
        %v2986 = vld [vmem:[%s1 + $0x560] sm:$0xff]
        %v2987 = vld [vmem:[%s1 + $0x568] sm:$0xff]
        %v2988 = vld [vmem:[%s1 + $0x570] sm:$0xff]
        %v2989 = vld [vmem:[%s1 + $0x578] sm:$0xff]
        %v2990 = vld [vmem:[%s1 + $0x580] sm:$0xff]
        %v2991 = vld [vmem:[%s1 + $0x588] sm:$0xff]
        %v2992 = vld [vmem:[%s1 + $0x590] sm:$0xff]
        %v2993 = vld [vmem:[%s1 + $0x598] sm:$0xff]
        %v2994 = vld [vmem:[%s1 + $0x5a0] sm:$0xff]
        %v2995 = vld [vmem:[%s1 + $0x5a8] sm:$0xff]
        %v2996 = vld [vmem:[%s1 + $0x5b0] sm:$0xff]
        %v2997 = vld [vmem:[%s1 + $0x5b8] sm:$0xff]
        %v2998 = vld [vmem:[%s1 + $0x5c0] sm:$0xff]
        %v2999 = vld [vmem:[%s1 + $0x5c8] sm:$0xff]
        %v3000 = vld [vmem:[%s1 + $0x5d0] sm:$0xff]
        %v3001 = vld [vmem:[%s1 + $0x5d8] sm:$0xff]
        %v3002 = vld [vmem:[%s1 + $0x5e0] sm:$0xff]
        %v3003 = vld [vmem:[%s1 + $0x5e8] sm:$0xff]
        %v3004 = vld [vmem:[%s1 + $0x5f0] sm:$0xff]
        %v3005 = vld [vmem:[%s1 + $0x5f8] sm:$0xff]
        %v3006 = vld [vmem:[%s1 + $0x600] sm:$0xff]
        %v3007 = vld [vmem:[%s1 + $0x608] sm:$0xff]
        %v3008 = vld [vmem:[%s1 + $0x610] sm:$0xff]
        %v3009 = vld [vmem:[%s1 + $0x618] sm:$0xff]
        %v3010 = vld [vmem:[%s1 + $0x620] sm:$0xff]
        %v3011 = vld [vmem:[%s1 + $0x628] sm:$0xff]
        %v3012 = vld [vmem:[%s1 + $0x630] sm:$0xff]
        %v3013 = vld [vmem:[%s1 + $0x638] sm:$0xff]
        %v3014 = vld [vmem:[%s1 + $0x640] sm:$0xff]
        %v3015 = vld [vmem:[%s1 + $0x648] sm:$0xff]
        %v3016 = vld [vmem:[%s1 + $0x650] sm:$0xff]
        %v3017 = vld [vmem:[%s1 + $0x658] sm:$0xff]
        %v3018 = vld [vmem:[%s1 + $0x660] sm:$0xff]
        %v3019 = vld [vmem:[%s1 + $0x668] sm:$0xff]
        %v3020 = vld [vmem:[%s1 + $0x670] sm:$0xff]
        %v3021 = vld [vmem:[%s1 + $0x678] sm:$0xff]
        %v3022 = vld [vmem:[%s1 + $0x680] sm:$0xff]
        %v3023 = vld [vmem:[%s1 + $0x688] sm:$0xff]
        %v3024 = vld [vmem:[%s1 + $0x690] sm:$0xff]
        %v3025 = vld [vmem:[%s1 + $0x698] sm:$0xff]
        %v3026 = vld [vmem:[%s1 + $0x6a0] sm:$0xff]
        %v3027 = vld [vmem:[%s1 + $0x6a8] sm:$0xff]
        %v3028 = vld [vmem:[%s1 + $0x6b0] sm:$0xff]
        %v3029 = vld [vmem:[%s1 + $0x6b8] sm:$0xff]
        %v3030 = vld [vmem:[%s1 + $0x6c0] sm:$0xff]
        %v3031 = vld [vmem:[%s1 + $0x6c8] sm:$0xff]
        %v3032 = vld [vmem:[%s1 + $0x6d0] sm:$0xff]
        %v3033 = vld [vmem:[%s1 + $0x6d8] sm:$0xff]
        %v3034 = vld [vmem:[%s1 + $0x6e0] sm:$0xff]
        %v3035 = vld [vmem:[%s1 + $0x6e8] sm:$0xff]
        %v3036 = vld [vmem:[%s1 + $0x6f0] sm:$0xff]
        %v3037 = vld [vmem:[%s1 + $0x6f8] sm:$0xff]
        %v3038 = vld [vmem:[%s1 + $0x700] sm:$0xff]
        %v3039 = vld [vmem:[%s1 + $0x708] sm:$0xff]
        %v3040 = vld [vmem:[%s1 + $0x710] sm:$0xff]
        %v3041 = vld [vmem:[%s1 + $0x718] sm:$0xff]
        %v3042 = vld [vmem:[%s1 + $0x720] sm:$0xff]
        %v3043 = vld [vmem:[%s1 + $0x728] sm:$0xff]
        %v3044 = vld [vmem:[%s1 + $0x730] sm:$0xff]
        %v3045 = vld [vmem:[%s1 + $0x738] sm:$0xff]
        %v3046 = vld [vmem:[%s1 + $0x740] sm:$0xff]
        %v3047 = vld [vmem:[%s1 + $0x748] sm:$0xff]
        %v3048 = vld [vmem:[%s1 + $0x750] sm:$0xff]
        %v3049 = vld [vmem:[%s1 + $0x758] sm:$0xff]
        %v3050 = vld [vmem:[%s1 + $0x760] sm:$0xff]
        %v3051 = vld [vmem:[%s1 + $0x768] sm:$0xff]
        %v3052 = vld [vmem:[%s1 + $0x770] sm:$0xff]
        %v3053 = vld [vmem:[%s1 + $0x778] sm:$0xff]
        %v3054 = vld [vmem:[%s1 + $0x780] sm:$0xff]
        %v3055 = vld [vmem:[%s1 + $0x788] sm:$0xff]
        %v3056 = vld [vmem:[%s1 + $0x790] sm:$0xff]
        %v3057 = vld [vmem:[%s1 + $0x798] sm:$0xff]
        %v3058 = vld [vmem:[%s1 + $0x7a0] sm:$0xff]
        %v3059 = vld [vmem:[%s1 + $0x7a8] sm:$0xff]
        %v3060 = vld [vmem:[%s1 + $0x7b0] sm:$0xff]
        %v3061 = vld [vmem:[%s1 + $0x7b8] sm:$0xff]
        %v3062 = vld [vmem:[%s1 + $0x7c0] sm:$0xff]
        %v3063 = vld [vmem:[%s1 + $0x7c8] sm:$0xff]
        %v3064 = vld [vmem:[%s1 + $0x7d0] sm:$0xff]
        %v3065 = vld [vmem:[%s1 + $0x7d8] sm:$0xff]
        %v3066 = vld [vmem:[%s1 + $0x7e0] sm:$0xff]
        %v3067 = vld [vmem:[%s1 + $0x7e8] sm:$0xff]
        %v3068 = vld [vmem:[%s1 + $0x7f0] sm:$0xff]
        %v3069 = vld [vmem:[%s1 + $0x7f8] sm:$0xff]
        %v3070 = vld [vmem:[%s1 + $0x800] sm:$0xff]
        %v3071 = vld [vmem:[%s1 + $0x808] sm:$0xff]
        %v3072 = vld [vmem:[%s1 + $0x810] sm:$0xff]
        %v3073 = vld [vmem:[%s1 + $0x818] sm:$0xff]
        %v3074 = vld [vmem:[%s1 + $0x820] sm:$0xff]
        %v3075 = vld [vmem:[%s1 + $0x828] sm:$0xff]
        %v3076 = vld [vmem:[%s1 + $0x830] sm:$0xff]
        %v3077 = vld [vmem:[%s1 + $0x838] sm:$0xff]
        %v3078 = vld [vmem:[%s1 + $0x840] sm:$0xff]
        %v3079 = vld [vmem:[%s1 + $0x848] sm:$0xff]
        %v3080 = vld [vmem:[%s1 + $0x850] sm:$0xff]
        %v3081 = vld [vmem:[%s1 + $0x858] sm:$0xff]
        %v3082 = vld [vmem:[%s1 + $0x860] sm:$0xff]
        %v3083 = vld [vmem:[%s1 + $0x868] sm:$0xff]
        %v3084 = vld [vmem:[%s1 + $0x870] sm:$0xff]
        %v3085 = vld [vmem:[%s1 + $0x878] sm:$0xff]
        %v3086 = vld [vmem:[%s1 + $0x880] sm:$0xff]
        %v3087 = vld [vmem:[%s1 + $0x888] sm:$0xff]
        %v3088 = vld [vmem:[%s1 + $0x890] sm:$0xff]
        %v3089 = vld [vmem:[%s1 + $0x898] sm:$0xff]
        %v3090 = vld [vmem:[%s1 + $0x8a0] sm:$0xff]
        %v3091 = vld [vmem:[%s1 + $0x8a8] sm:$0xff]
        %v3092 = vld [vmem:[%s1 + $0x8b0] sm:$0xff]
        %v3093 = vld [vmem:[%s1 + $0x8b8] sm:$0xff]
        %v3094 = vld [vmem:[%s1 + $0x8c0] sm:$0xff]
        %v3095 = vld [vmem:[%s1 + $0x8c8] sm:$0xff]
        %v3096 = vld [vmem:[%s1 + $0x8d0] sm:$0xff]
        %v3097 = vld [vmem:[%s1 + $0x8d8] sm:$0xff]
        %v3098 = vld [vmem:[%s1 + $0x8e0] sm:$0xff]
        %v3099 = vld [vmem:[%s1 + $0x8e8] sm:$0xff]
        %v3100 = vld [vmem:[%s1 + $0x8f0] sm:$0xff]
        %v3101 = vld [vmem:[%s1 + $0x8f8] sm:$0xff]
        %v3102 = vld [vmem:[%s1 + $0x900] sm:$0xff]
        %v3103 = vld [vmem:[%s1 + $0x908] sm:$0xff]
        %v3104 = vld [vmem:[%s1 + $0x910] sm:$0xff]
        %v3105 = vld [vmem:[%s1 + $0x918] sm:$0xff]
        %v3106 = vld [vmem:[%s1 + $0x920] sm:$0xff]
        %v3107 = vld [vmem:[%s1 + $0x928] sm:$0xff]
        %v3108 = vld [vmem:[%s1 + $0x930] sm:$0xff]
        %v3109 = vld [vmem:[%s1 + $0x938] sm:$0xff]
        %v3110 = vld [vmem:[%s1 + $0x940] sm:$0xff]
        %v3111 = vld [vmem:[%s1 + $0x948] sm:$0xff]
        %v3112 = vld [vmem:[%s1 + $0x950] sm:$0xff]
        %v3113 = vld [vmem:[%s1 + $0x958] sm:$0xff]
        %v3114 = vld [vmem:[%s1 + $0x960] sm:$0xff]
        %v3115 = vld [vmem:[%s1 + $0x968] sm:$0xff]
        %v3116 = vld [vmem:[%s1 + $0x970] sm:$0xff]
        %v3117 = vld [vmem:[%s1 + $0x978] sm:$0xff]
        %v3118 = vld [vmem:[%s1 + $0x980] sm:$0xff]
        %v3119 = vld [vmem:[%s1 + $0x988] sm:$0xff]
        %v3120 = vld [vmem:[%s1 + $0x990] sm:$0xff]
        %v3121 = vld [vmem:[%s1 + $0x998] sm:$0xff]
        %v3122 = vld [vmem:[%s1 + $0x9a0] sm:$0xff]
        %v3123 = vld [vmem:[%s1 + $0x9a8] sm:$0xff]
        %v3124 = vld [vmem:[%s1 + $0x9b0] sm:$0xff]
        %v3125 = vld [vmem:[%s1 + $0x9b8] sm:$0xff]
        %v3126 = vld [vmem:[%s1 + $0x9c0] sm:$0xff]
        %v3127 = vld [vmem:[%s1 + $0x9c8] sm:$0xff]
        %v3128 = vld [vmem:[%s1 + $0x9d0] sm:$0xff]
        %v3129 = vld [vmem:[%s1 + $0x9d8] sm:$0xff]
        %v3130 = vld [vmem:[%s1 + $0x9e0] sm:$0xff]
        %v3131 = vld [vmem:[%s1 + $0x9e8] sm:$0xff]
        %v3132 = vld [vmem:[%s1 + $0x9f0] sm:$0xff]
        %v3133 = vld [vmem:[%s1 + $0x9f8] sm:$0xff]
        %v3134 = vld [vmem:[%s1 + $0xa00] sm:$0xff]
        %v3135 = vld [vmem:[%s1 + $0xa08] sm:$0xff]
        %v3136 = vld [vmem:[%s1 + $0xa10] sm:$0xff]
        %v3137 = vld [vmem:[%s1 + $0xa18] sm:$0xff]
        %v3138 = vld [vmem:[%s1 + $0xa20] sm:$0xff]
        %v3139 = vld [vmem:[%s1 + $0xa28] sm:$0xff]
        %v3140 = vld [vmem:[%s1 + $0xa30] sm:$0xff]
        %v3141 = vld [vmem:[%s1 + $0xa38] sm:$0xff]
        %v3142 = vld [vmem:[%s1 + $0xa40] sm:$0xff]
        %v3143 = vld [vmem:[%s1 + $0xa48] sm:$0xff]
        %v3144 = vld [vmem:[%s1 + $0xa50] sm:$0xff]
        %v3145 = vld [vmem:[%s1 + $0xa58] sm:$0xff]
        %v3146 = vld [vmem:[%s1 + $0xa60] sm:$0xff]
        %v3147 = vld [vmem:[%s1 + $0xa68] sm:$0xff]
        %v3148 = vld [vmem:[%s1 + $0xa70] sm:$0xff]
        %v3149 = vld [vmem:[%s1 + $0xa78] sm:$0xff]
        %v3150 = vld [vmem:[%s1 + $0xa80] sm:$0xff]
        %v3151 = vld [vmem:[%s1 + $0xa88] sm:$0xff]
        %v3152 = vld [vmem:[%s1 + $0xa90] sm:$0xff]
        %v3153 = vld [vmem:[%s1 + $0xa98] sm:$0xff]
        %v3154 = vld [vmem:[%s1 + $0xaa0] sm:$0xff]
        %v3155 = vld [vmem:[%s1 + $0xaa8] sm:$0xff]
        %v3156 = vld [vmem:[%s1 + $0xab0] sm:$0xff]
        %v3157 = vld [vmem:[%s1 + $0xab8] sm:$0xff]
        %v3158 = vld [vmem:[%s1 + $0xac0] sm:$0xff]
        %v3159 = vld [vmem:[%s1 + $0xac8] sm:$0xff]
        %v3160 = vld [vmem:[%s1 + $0xad0] sm:$0xff]
        %v3161 = vld [vmem:[%s1 + $0xad8] sm:$0xff]
        %v3162 = vld [vmem:[%s1 + $0xae0] sm:$0xff]
        %v3163 = vld [vmem:[%s1 + $0xae8] sm:$0xff]
        %v3164 = vld [vmem:[%s1 + $0xaf0] sm:$0xff]
        %v3165 = vld [vmem:[%s1 + $0xaf8] sm:$0xff]
        %v3166 = vld [vmem:[%s1 + $0xb00] sm:$0xff]
        %v3167 = vld [vmem:[%s1 + $0xb08] sm:$0xff]
        %v3168 = vld [vmem:[%s1 + $0xb10] sm:$0xff]
        %v3169 = vld [vmem:[%s1 + $0xb18] sm:$0xff]
        %v3170 = vld [vmem:[%s1 + $0xb20] sm:$0xff]
        %v3171 = vld [vmem:[%s1 + $0xb28] sm:$0xff]
        %v3172 = vld [vmem:[%s1 + $0xb30] sm:$0xff]
        %v3173 = vld [vmem:[%s1 + $0xb38] sm:$0xff]
        %v3174 = vld [vmem:[%s1 + $0xb40] sm:$0xff]
        %v3175 = vld [vmem:[%s1 + $0xb48] sm:$0xff]
        %v3176 = vld [vmem:[%s1 + $0xb50] sm:$0xff]
        %v3177 = vld [vmem:[%s1 + $0xb58] sm:$0xff]
        %v3178 = vld [vmem:[%s1 + $0xb60] sm:$0xff]
        %v3179 = vld [vmem:[%s1 + $0xb68] sm:$0xff]
        %v3180 = vld [vmem:[%s1 + $0xb70] sm:$0xff]
        %v3181 = vld [vmem:[%s1 + $0xb78] sm:$0xff]
        %v3182 = vld [vmem:[%s1 + $0xb80] sm:$0xff]
        %v3183 = vld [vmem:[%s1 + $0xb88] sm:$0xff]
        %v3184 = vld [vmem:[%s1 + $0xb90] sm:$0xff]
        %v3185 = vld [vmem:[%s1 + $0xb98] sm:$0xff]
        %v3186 = vld [vmem:[%s1 + $0xba0] sm:$0xff]
        %v3187 = vld [vmem:[%s1 + $0xba8] sm:$0xff]
        %v3188 = vld [vmem:[%s1 + $0xbb0] sm:$0xff]
        %v3189 = vld [vmem:[%s1 + $0xbb8] sm:$0xff]
        %v3190 = vld [vmem:[%s1 + $0xbc0] sm:$0xff]
        %v3191 = vld [vmem:[%s1 + $0xbc8] sm:$0xff]
        %v3192 = vld [vmem:[%s1 + $0xbd0] sm:$0xff]
        %v3193 = vld [vmem:[%s1 + $0xbd8] sm:$0xff]
        %v3194 = vld [vmem:[%s1 + $0xbe0] sm:$0xff]
        %v3195 = vld [vmem:[%s1 + $0xbe8] sm:$0xff]
        %v3196 = vld [vmem:[%s1 + $0xbf0] sm:$0xff]
        %v3197 = vld [vmem:[%s1 + $0xbf8] sm:$0xff]
        %v3198 = vld [vmem:[%s1 + $0xc00] sm:$0xff]
        %v3199 = vld [vmem:[%s1 + $0xc08] sm:$0xff]
        %v3200 = vld [vmem:[%s1 + $0xc10] sm:$0xff]
        %v3201 = vld [vmem:[%s1 + $0xc18] sm:$0xff]
        %v3202 = vld [vmem:[%s1 + $0xc20] sm:$0xff]
        %v3203 = vld [vmem:[%s1 + $0xc28] sm:$0xff]
        %v3204 = vld [vmem:[%s1 + $0xc30] sm:$0xff]
        %v3205 = vld [vmem:[%s1 + $0xc38] sm:$0xff]
        %v3206 = vld [vmem:[%s1 + $0xc40] sm:$0xff]
        %v3207 = vld [vmem:[%s1 + $0xc48] sm:$0xff]
        %v3208 = vld [vmem:[%s1 + $0xc50] sm:$0xff]
        %v3209 = vld [vmem:[%s1 + $0xc58] sm:$0xff]
        %v3210 = vld [vmem:[%s1 + $0xc60] sm:$0xff]
        %v3211 = vld [vmem:[%s1 + $0xc68] sm:$0xff]
        %v3212 = vld [vmem:[%s1 + $0xc70] sm:$0xff]
        %v3213 = vld [vmem:[%s1 + $0xc78] sm:$0xff]
        %v3214 = vld [vmem:[%s1 + $0xc80] sm:$0xff]
        %v3215 = vld [vmem:[%s1 + $0xc88] sm:$0xff]
        %v3216 = vld [vmem:[%s1 + $0xc90] sm:$0xff]
        %v3217 = vld [vmem:[%s1 + $0xc98] sm:$0xff]
        %v3218 = vld [vmem:[%s1 + $0xca0] sm:$0xff]
        %v3219 = vld [vmem:[%s1 + $0xca8] sm:$0xff]
        %v3220 = vld [vmem:[%s1 + $0xcb0] sm:$0xff]
        %v3221 = vld [vmem:[%s1 + $0xcb8] sm:$0xff]
        %v3222 = vld [vmem:[%s1 + $0xcc0] sm:$0xff]
        %v3223 = vld [vmem:[%s1 + $0xcc8] sm:$0xff]
        %v3224 = vld [vmem:[%s1 + $0xcd0] sm:$0xff]
        %v3225 = vld [vmem:[%s1 + $0xcd8] sm:$0xff]
        %v3226 = vld [vmem:[%s1 + $0xce0] sm:$0xff]
        %v3227 = vld [vmem:[%s1 + $0xce8] sm:$0xff]
        %v3228 = vld [vmem:[%s1 + $0xcf0] sm:$0xff]
        %v3229 = vld [vmem:[%s1 + $0xcf8] sm:$0xff]
        %v3230 = vld [vmem:[%s1 + $0xd00] sm:$0xff]
        %v3231 = vld [vmem:[%s1 + $0xd08] sm:$0xff]
        %v3232 = vld [vmem:[%s1 + $0xd10] sm:$0xff]
        %v3233 = vld [vmem:[%s1 + $0xd18] sm:$0xff]
        %v3234 = vld [vmem:[%s1 + $0xd20] sm:$0xff]
        %v3235 = vld [vmem:[%s1 + $0xd28] sm:$0xff]
        %v3236 = vld [vmem:[%s1 + $0xd30] sm:$0xff]
        %v3237 = vld [vmem:[%s1 + $0xd38] sm:$0xff]
        %v3238 = vld [vmem:[%s1 + $0xd40] sm:$0xff]
        %v3239 = vld [vmem:[%s1 + $0xd48] sm:$0xff]
        %v3240 = vld [vmem:[%s1 + $0xd50] sm:$0xff]
        %v3241 = vld [vmem:[%s1 + $0xd58] sm:$0xff]
        %v3242 = vld [vmem:[%s1 + $0xd60] sm:$0xff]
        %v3243 = vld [vmem:[%s1 + $0xd68] sm:$0xff]
        %v3244 = vld [vmem:[%s1 + $0xd70] sm:$0xff]
        %v3245 = vld [vmem:[%s1 + $0xd78] sm:$0xff]
        %v3246 = vld [vmem:[%s2] sm:$0x1]
        %v3248 = vperm.slane %v3246, 0
        %3250 = vmatpush.msra.mxu0 %v2829
        %3251 = vmatpush.msra.mxu0 %v2828
        %3252 = vmatpush.msra.mxu0 %v2827
        %3253 = vmatpush.msra.mxu0 %v2826
        %3254 = vmatpush.msra.mxu0 %v2825
        %3255 = vmatpush.msra.mxu0 %v2824
        %3256 = vmatpush.msra.mxu0 %v2823
        %3257 = vmatpush.msra.mxu0 %v2822
        %3258 = vmatpush.msra.mxu0 %v2821
        %3259 = vmatpush.msra.mxu0 %v2820
        %3260 = vmatpush.msra.mxu0 %v2819
        %3261 = vmatpush.msra.mxu0 %v2818
        %3262 = vmatpush.msra.mxu0 %v2817
        %3263 = vmatpush.msra.mxu0 %v2816
        %3264 = vmatpush.msra.mxu0 %v2815
        %3265 = vmatpush.msra.mxu0 %v2814
        %3266 = vmatmul.f32.gmra.mxu0 %v1950
        %v3267 = vpop.f32.mrf.mxu0
        %v3268 = vadd.f32 %v3248, %v3267
        %3269 = vmatmul.f32.gmra.mxu0 %v1977
        %v3270 = vpop.f32.mrf.mxu0
        %v3271 = vadd.f32 %v3248, %v3270
        %3272 = vmatmul.f32.gmra.mxu0 %v2004
        %v3273 = vpop.f32.mrf.mxu0
        %v3274 = vadd.f32 %v3248, %v3273
        %3275 = vmatmul.f32.gmra.mxu0 %v2031
        %v3276 = vpop.f32.mrf.mxu0
        %v3277 = vadd.f32 %v3248, %v3276
        %3278 = vmatmul.f32.gmra.mxu0 %v2058
        %v3279 = vpop.f32.mrf.mxu0
        %v3280 = vadd.f32 %v3248, %v3279
        %3281 = vmatmul.f32.gmra.mxu0 %v2085
        %v3282 = vpop.f32.mrf.mxu0
        %v3283 = vadd.f32 %v3248, %v3282
        %3284 = vmatmul.f32.gmra.mxu0 %v2112
        %v3285 = vpop.f32.mrf.mxu0
        %v3286 = vadd.f32 %v3248, %v3285
        %3287 = vmatmul.f32.gmra.mxu0 %v2139
        %v3288 = vpop.f32.mrf.mxu0
        %v3289 = vadd.f32 %v3248, %v3288
        %3290 = vmatmul.f32.gmra.mxu0 %v2166
        %v3291 = vpop.f32.mrf.mxu0
        %v3292 = vadd.f32 %v3248, %v3291
        %3293 = vmatmul.f32.gmra.mxu0 %v2193
        %v3294 = vpop.f32.mrf.mxu0
        %v3295 = vadd.f32 %v3248, %v3294
        %3296 = vmatmul.f32.gmra.mxu0 %v2220
        %v3297 = vpop.f32.mrf.mxu0
        %v3298 = vadd.f32 %v3248, %v3297
        %3299 = vmatmul.f32.gmra.mxu0 %v2247
        %v3300 = vpop.f32.mrf.mxu0
        %v3301 = vadd.f32 %v3248, %v3300
        %3302 = vmatmul.f32.gmra.mxu0 %v2274
        %v3303 = vpop.f32.mrf.mxu0
        %v3304 = vadd.f32 %v3248, %v3303
        %3305 = vmatmul.f32.gmra.mxu0 %v2301
        %v3306 = vpop.f32.mrf.mxu0
        %v3307 = vadd.f32 %v3248, %v3306
        %3308 = vmatmul.f32.gmra.mxu0 %v2328
        %v3309 = vpop.f32.mrf.mxu0
        %v3310 = vadd.f32 %v3248, %v3309
        %3311 = vmatmul.f32.gmra.mxu0 %v2355
        %v3312 = vpop.f32.mrf.mxu0
        %v3313 = vadd.f32 %v3248, %v3312
        %3314 = vmatmul.f32.gmra.mxu0 %v2382
        %v3315 = vpop.f32.mrf.mxu0
        %v3316 = vadd.f32 %v3248, %v3315
        %3317 = vmatmul.f32.gmra.mxu0 %v2409
        %v3318 = vpop.f32.mrf.mxu0
        %v3319 = vadd.f32 %v3248, %v3318
        %3320 = vmatmul.f32.gmra.mxu0 %v2436
        %v3321 = vpop.f32.mrf.mxu0
        %v3322 = vadd.f32 %v3248, %v3321
        %3323 = vmatmul.f32.gmra.mxu0 %v2463
        %v3324 = vpop.f32.mrf.mxu0
        %v3325 = vadd.f32 %v3248, %v3324
        %3326 = vmatmul.f32.gmra.mxu0 %v2490
        %v3327 = vpop.f32.mrf.mxu0
        %v3328 = vadd.f32 %v3248, %v3327
        %3329 = vmatmul.f32.gmra.mxu0 %v2517
        %v3330 = vpop.f32.mrf.mxu0
        %v3331 = vadd.f32 %v3248, %v3330
        %3332 = vmatmul.f32.gmra.mxu0 %v2544
        %v3333 = vpop.f32.mrf.mxu0
        %v3334 = vadd.f32 %v3248, %v3333
        %3335 = vmatmul.f32.gmra.mxu0 %v2571
        %v3336 = vpop.f32.mrf.mxu0
        %v3337 = vadd.f32 %v3248, %v3336
        %3338 = vmatmul.f32.gmra.mxu0 %v2598
        %v3339 = vpop.f32.mrf.mxu0
        %v3340 = vadd.f32 %v3248, %v3339
        %3341 = vmatmul.f32.gmra.mxu0 %v2625
        %v3342 = vpop.f32.mrf.mxu0
        %v3343 = vadd.f32 %v3248, %v3342
        %3344 = vmatmul.f32.gmra.mxu0 %v2652
        %v3345 = vpop.f32.mrf.mxu0
        %v3346 = vadd.f32 %v3248, %v3345
        %3347 = vmatmul.f32.gmra.mxu0 %v2679
        %v3348 = vpop.f32.mrf.mxu0
        %v3349 = vadd.f32 %v3248, %v3348
        %3350 = vmatmul.f32.gmra.mxu0 %v2706
        %v3351 = vpop.f32.mrf.mxu0
        %v3352 = vadd.f32 %v3248, %v3351
        %3353 = vmatmul.f32.gmra.mxu0 %v2733
        %v3354 = vpop.f32.mrf.mxu0
        %v3355 = vadd.f32 %v3248, %v3354
        %3356 = vmatmul.f32.gmra.mxu0 %v2760
        %v3357 = vpop.f32.mrf.mxu0
        %v3358 = vadd.f32 %v3248, %v3357
        %3359 = vmatmul.f32.gmra.mxu0 %v2787
        %v3360 = vpop.f32.mrf.mxu0
        %v3361 = vadd.f32 %v3248, %v3360
        %3362 = vdwg.mxu0
        %3363 = vmatpush.msra.mxu0 %v2845
        %3364 = vmatpush.msra.mxu0 %v2844
        %3365 = vmatpush.msra.mxu0 %v2843
        %3366 = vmatpush.msra.mxu0 %v2842
        %3367 = vmatpush.msra.mxu0 %v2841
        %3368 = vmatpush.msra.mxu0 %v2840
        %3369 = vmatpush.msra.mxu0 %v2839
        %3370 = vmatpush.msra.mxu0 %v2838
        %3371 = vmatpush.msra.mxu0 %v2837
        %3372 = vmatpush.msra.mxu0 %v2836
        %3373 = vmatpush.msra.mxu0 %v2835
        %3374 = vmatpush.msra.mxu0 %v2834
        %3375 = vmatpush.msra.mxu0 %v2833
        %3376 = vmatpush.msra.mxu0 %v2832
        %3377 = vmatpush.msra.mxu0 %v2831
        %3378 = vmatpush.msra.mxu0 %v2830
        %3379 = vmatmul.f32.gmra.mxu0 %v1951
        %v3380 = vpop.f32.mrf.mxu0
        %v3381 = vadd.f32 %v3268, %v3380
        %3382 = vmatmul.f32.gmra.mxu0 %v1978
        %v3383 = vpop.f32.mrf.mxu0
        %v3384 = vadd.f32 %v3271, %v3383
        %3385 = vmatmul.f32.gmra.mxu0 %v2005
        %v3386 = vpop.f32.mrf.mxu0
        %v3387 = vadd.f32 %v3274, %v3386
        %3388 = vmatmul.f32.gmra.mxu0 %v2032
        %v3389 = vpop.f32.mrf.mxu0
        %v3390 = vadd.f32 %v3277, %v3389
        %3391 = vmatmul.f32.gmra.mxu0 %v2059
        %v3392 = vpop.f32.mrf.mxu0
        %v3393 = vadd.f32 %v3280, %v3392
        %3394 = vmatmul.f32.gmra.mxu0 %v2086
        %v3395 = vpop.f32.mrf.mxu0
        %v3396 = vadd.f32 %v3283, %v3395
        %3397 = vmatmul.f32.gmra.mxu0 %v2113
        %v3398 = vpop.f32.mrf.mxu0
        %v3399 = vadd.f32 %v3286, %v3398
        %3400 = vmatmul.f32.gmra.mxu0 %v2140
        %v3401 = vpop.f32.mrf.mxu0
        %v3402 = vadd.f32 %v3289, %v3401
        %3403 = vmatmul.f32.gmra.mxu0 %v2167
        %v3404 = vpop.f32.mrf.mxu0
        %v3405 = vadd.f32 %v3292, %v3404
        %3406 = vmatmul.f32.gmra.mxu0 %v2194
        %v3407 = vpop.f32.mrf.mxu0
        %v3408 = vadd.f32 %v3295, %v3407
        %3409 = vmatmul.f32.gmra.mxu0 %v2221
        %v3410 = vpop.f32.mrf.mxu0
        %v3411 = vadd.f32 %v3298, %v3410
        %3412 = vmatmul.f32.gmra.mxu0 %v2248
        %v3413 = vpop.f32.mrf.mxu0
        %v3414 = vadd.f32 %v3301, %v3413
        %3415 = vmatmul.f32.gmra.mxu0 %v2275
        %v3416 = vpop.f32.mrf.mxu0
        %v3417 = vadd.f32 %v3304, %v3416
        %3418 = vmatmul.f32.gmra.mxu0 %v2302
        %v3419 = vpop.f32.mrf.mxu0
        %v3420 = vadd.f32 %v3307, %v3419
        %3421 = vmatmul.f32.gmra.mxu0 %v2329
        %v3422 = vpop.f32.mrf.mxu0
        %v3423 = vadd.f32 %v3310, %v3422
        %3424 = vmatmul.f32.gmra.mxu0 %v2356
        %v3425 = vpop.f32.mrf.mxu0
        %v3426 = vadd.f32 %v3313, %v3425
        %3427 = vmatmul.f32.gmra.mxu0 %v2383
        %v3428 = vpop.f32.mrf.mxu0
        %v3429 = vadd.f32 %v3316, %v3428
        %3430 = vmatmul.f32.gmra.mxu0 %v2410
        %v3431 = vpop.f32.mrf.mxu0
        %v3432 = vadd.f32 %v3319, %v3431
        %3433 = vmatmul.f32.gmra.mxu0 %v2437
        %v3434 = vpop.f32.mrf.mxu0
        %v3435 = vadd.f32 %v3322, %v3434
        %3436 = vmatmul.f32.gmra.mxu0 %v2464
        %v3437 = vpop.f32.mrf.mxu0
        %v3438 = vadd.f32 %v3325, %v3437
        %3439 = vmatmul.f32.gmra.mxu0 %v2491
        %v3440 = vpop.f32.mrf.mxu0
        %v3441 = vadd.f32 %v3328, %v3440
        %3442 = vmatmul.f32.gmra.mxu0 %v2518
        %v3443 = vpop.f32.mrf.mxu0
        %v3444 = vadd.f32 %v3331, %v3443
        %3445 = vmatmul.f32.gmra.mxu0 %v2545
        %v3446 = vpop.f32.mrf.mxu0
        %v3447 = vadd.f32 %v3334, %v3446
        %3448 = vmatmul.f32.gmra.mxu0 %v2572
        %v3449 = vpop.f32.mrf.mxu0
        %v3450 = vadd.f32 %v3337, %v3449
        %3451 = vmatmul.f32.gmra.mxu0 %v2599
        %v3452 = vpop.f32.mrf.mxu0
        %v3453 = vadd.f32 %v3340, %v3452
        %3454 = vmatmul.f32.gmra.mxu0 %v2626
        %v3455 = vpop.f32.mrf.mxu0
        %v3456 = vadd.f32 %v3343, %v3455
        %3457 = vmatmul.f32.gmra.mxu0 %v2653
        %v3458 = vpop.f32.mrf.mxu0
        %v3459 = vadd.f32 %v3346, %v3458
        %3460 = vmatmul.f32.gmra.mxu0 %v2680
        %v3461 = vpop.f32.mrf.mxu0
        %v3462 = vadd.f32 %v3349, %v3461
        %3463 = vmatmul.f32.gmra.mxu0 %v2707
        %v3464 = vpop.f32.mrf.mxu0
        %v3465 = vadd.f32 %v3352, %v3464
        %3466 = vmatmul.f32.gmra.mxu0 %v2734
        %v3467 = vpop.f32.mrf.mxu0
        %v3468 = vadd.f32 %v3355, %v3467
        %3469 = vmatmul.f32.gmra.mxu0 %v2761
        %v3470 = vpop.f32.mrf.mxu0
        %v3471 = vadd.f32 %v3358, %v3470
        %3472 = vmatmul.f32.gmra.mxu0 %v2788
        %v3473 = vpop.f32.mrf.mxu0
        %v3474 = vadd.f32 %v3361, %v3473
        %3475 = vdwg.mxu0
        %3476 = vmatpush.msra.mxu0 %v2861
        %3477 = vmatpush.msra.mxu0 %v2860
        %3478 = vmatpush.msra.mxu0 %v2859
        %3479 = vmatpush.msra.mxu0 %v2858
        %3480 = vmatpush.msra.mxu0 %v2857
        %3481 = vmatpush.msra.mxu0 %v2856
        %3482 = vmatpush.msra.mxu0 %v2855
        %3483 = vmatpush.msra.mxu0 %v2854
        %3484 = vmatpush.msra.mxu0 %v2853
        %3485 = vmatpush.msra.mxu0 %v2852
        %3486 = vmatpush.msra.mxu0 %v2851
        %3487 = vmatpush.msra.mxu0 %v2850
        %3488 = vmatpush.msra.mxu0 %v2849
        %3489 = vmatpush.msra.mxu0 %v2848
        %3490 = vmatpush.msra.mxu0 %v2847
        %3491 = vmatpush.msra.mxu0 %v2846
        %3492 = vmatmul.f32.gmra.mxu0 %v1952
        %v3493 = vpop.f32.mrf.mxu0
        %v3494 = vadd.f32 %v3381, %v3493
        %3495 = vmatmul.f32.gmra.mxu0 %v1979
        %v3496 = vpop.f32.mrf.mxu0
        %v3497 = vadd.f32 %v3384, %v3496
        %3498 = vmatmul.f32.gmra.mxu0 %v2006
        %v3499 = vpop.f32.mrf.mxu0
        %v3500 = vadd.f32 %v3387, %v3499
        %3501 = vmatmul.f32.gmra.mxu0 %v2033
        %v3502 = vpop.f32.mrf.mxu0
        %v3503 = vadd.f32 %v3390, %v3502
        %3504 = vmatmul.f32.gmra.mxu0 %v2060
        %v3505 = vpop.f32.mrf.mxu0
        %v3506 = vadd.f32 %v3393, %v3505
        %3507 = vmatmul.f32.gmra.mxu0 %v2087
        %v3508 = vpop.f32.mrf.mxu0
        %v3509 = vadd.f32 %v3396, %v3508
        %3510 = vmatmul.f32.gmra.mxu0 %v2114
        %v3511 = vpop.f32.mrf.mxu0
        %v3512 = vadd.f32 %v3399, %v3511
        %3513 = vmatmul.f32.gmra.mxu0 %v2141
        %v3514 = vpop.f32.mrf.mxu0
        %v3515 = vadd.f32 %v3402, %v3514
        %3516 = vmatmul.f32.gmra.mxu0 %v2168
        %v3517 = vpop.f32.mrf.mxu0
        %v3518 = vadd.f32 %v3405, %v3517
        %3519 = vmatmul.f32.gmra.mxu0 %v2195
        %v3520 = vpop.f32.mrf.mxu0
        %v3521 = vadd.f32 %v3408, %v3520
        %3522 = vmatmul.f32.gmra.mxu0 %v2222
        %v3523 = vpop.f32.mrf.mxu0
        %v3524 = vadd.f32 %v3411, %v3523
        %3525 = vmatmul.f32.gmra.mxu0 %v2249
        %v3526 = vpop.f32.mrf.mxu0
        %v3527 = vadd.f32 %v3414, %v3526
        %3528 = vmatmul.f32.gmra.mxu0 %v2276
        %v3529 = vpop.f32.mrf.mxu0
        %v3530 = vadd.f32 %v3417, %v3529
        %3531 = vmatmul.f32.gmra.mxu0 %v2303
        %v3532 = vpop.f32.mrf.mxu0
        %v3533 = vadd.f32 %v3420, %v3532
        %3534 = vmatmul.f32.gmra.mxu0 %v2330
        %v3535 = vpop.f32.mrf.mxu0
        %v3536 = vadd.f32 %v3423, %v3535
        %3537 = vmatmul.f32.gmra.mxu0 %v2357
        %v3538 = vpop.f32.mrf.mxu0
        %v3539 = vadd.f32 %v3426, %v3538
        %3540 = vmatmul.f32.gmra.mxu0 %v2384
        %v3541 = vpop.f32.mrf.mxu0
        %v3542 = vadd.f32 %v3429, %v3541
        %3543 = vmatmul.f32.gmra.mxu0 %v2411
        %v3544 = vpop.f32.mrf.mxu0
        %v3545 = vadd.f32 %v3432, %v3544
        %3546 = vmatmul.f32.gmra.mxu0 %v2438
        %v3547 = vpop.f32.mrf.mxu0
        %v3548 = vadd.f32 %v3435, %v3547
        %3549 = vmatmul.f32.gmra.mxu0 %v2465
        %v3550 = vpop.f32.mrf.mxu0
        %v3551 = vadd.f32 %v3438, %v3550
        %3552 = vmatmul.f32.gmra.mxu0 %v2492
        %v3553 = vpop.f32.mrf.mxu0
        %v3554 = vadd.f32 %v3441, %v3553
        %3555 = vmatmul.f32.gmra.mxu0 %v2519
        %v3556 = vpop.f32.mrf.mxu0
        %v3557 = vadd.f32 %v3444, %v3556
        %3558 = vmatmul.f32.gmra.mxu0 %v2546
        %v3559 = vpop.f32.mrf.mxu0
        %v3560 = vadd.f32 %v3447, %v3559
        %3561 = vmatmul.f32.gmra.mxu0 %v2573
        %v3562 = vpop.f32.mrf.mxu0
        %v3563 = vadd.f32 %v3450, %v3562
        %3564 = vmatmul.f32.gmra.mxu0 %v2600
        %v3565 = vpop.f32.mrf.mxu0
        %v3566 = vadd.f32 %v3453, %v3565
        %3567 = vmatmul.f32.gmra.mxu0 %v2627
        %v3568 = vpop.f32.mrf.mxu0
        %v3569 = vadd.f32 %v3456, %v3568
        %3570 = vmatmul.f32.gmra.mxu0 %v2654
        %v3571 = vpop.f32.mrf.mxu0
        %v3572 = vadd.f32 %v3459, %v3571
        %3573 = vmatmul.f32.gmra.mxu0 %v2681
        %v3574 = vpop.f32.mrf.mxu0
        %v3575 = vadd.f32 %v3462, %v3574
        %3576 = vmatmul.f32.gmra.mxu0 %v2708
        %v3577 = vpop.f32.mrf.mxu0
        %v3578 = vadd.f32 %v3465, %v3577
        %3579 = vmatmul.f32.gmra.mxu0 %v2735
        %v3580 = vpop.f32.mrf.mxu0
        %v3581 = vadd.f32 %v3468, %v3580
        %3582 = vmatmul.f32.gmra.mxu0 %v2762
        %v3583 = vpop.f32.mrf.mxu0
        %v3584 = vadd.f32 %v3471, %v3583
        %3585 = vmatmul.f32.gmra.mxu0 %v2789
        %v3586 = vpop.f32.mrf.mxu0
        %v3587 = vadd.f32 %v3474, %v3586
        %3588 = vdwg.mxu0
        %3589 = vmatpush.msra.mxu0 %v2877
        %3590 = vmatpush.msra.mxu0 %v2876
        %3591 = vmatpush.msra.mxu0 %v2875
        %3592 = vmatpush.msra.mxu0 %v2874
        %3593 = vmatpush.msra.mxu0 %v2873
        %3594 = vmatpush.msra.mxu0 %v2872
        %3595 = vmatpush.msra.mxu0 %v2871
        %3596 = vmatpush.msra.mxu0 %v2870
        %3597 = vmatpush.msra.mxu0 %v2869
        %3598 = vmatpush.msra.mxu0 %v2868
        %3599 = vmatpush.msra.mxu0 %v2867
        %3600 = vmatpush.msra.mxu0 %v2866
        %3601 = vmatpush.msra.mxu0 %v2865
        %3602 = vmatpush.msra.mxu0 %v2864
        %3603 = vmatpush.msra.mxu0 %v2863
        %3604 = vmatpush.msra.mxu0 %v2862
        %3605 = vmatmul.f32.gmra.mxu0 %v1953
        %v3606 = vpop.f32.mrf.mxu0
        %v3607 = vadd.f32 %v3494, %v3606
        %3608 = vmatmul.f32.gmra.mxu0 %v1980
        %v3609 = vpop.f32.mrf.mxu0
        %v3610 = vadd.f32 %v3497, %v3609
        %3611 = vmatmul.f32.gmra.mxu0 %v2007
        %v3612 = vpop.f32.mrf.mxu0
        %v3613 = vadd.f32 %v3500, %v3612
        %3614 = vmatmul.f32.gmra.mxu0 %v2034
        %v3615 = vpop.f32.mrf.mxu0
        %v3616 = vadd.f32 %v3503, %v3615
        %3617 = vmatmul.f32.gmra.mxu0 %v2061
        %v3618 = vpop.f32.mrf.mxu0
        %v3619 = vadd.f32 %v3506, %v3618
        %3620 = vmatmul.f32.gmra.mxu0 %v2088
        %v3621 = vpop.f32.mrf.mxu0
        %v3622 = vadd.f32 %v3509, %v3621
        %3623 = vmatmul.f32.gmra.mxu0 %v2115
        %v3624 = vpop.f32.mrf.mxu0
        %v3625 = vadd.f32 %v3512, %v3624
        %3626 = vmatmul.f32.gmra.mxu0 %v2142
        %v3627 = vpop.f32.mrf.mxu0
        %v3628 = vadd.f32 %v3515, %v3627
        %3629 = vmatmul.f32.gmra.mxu0 %v2169
        %v3630 = vpop.f32.mrf.mxu0
        %v3631 = vadd.f32 %v3518, %v3630
        %3632 = vmatmul.f32.gmra.mxu0 %v2196
        %v3633 = vpop.f32.mrf.mxu0
        %v3634 = vadd.f32 %v3521, %v3633
        %3635 = vmatmul.f32.gmra.mxu0 %v2223
        %v3636 = vpop.f32.mrf.mxu0
        %v3637 = vadd.f32 %v3524, %v3636
        %3638 = vmatmul.f32.gmra.mxu0 %v2250
        %v3639 = vpop.f32.mrf.mxu0
        %v3640 = vadd.f32 %v3527, %v3639
        %3641 = vmatmul.f32.gmra.mxu0 %v2277
        %v3642 = vpop.f32.mrf.mxu0
        %v3643 = vadd.f32 %v3530, %v3642
        %3644 = vmatmul.f32.gmra.mxu0 %v2304
        %v3645 = vpop.f32.mrf.mxu0
        %v3646 = vadd.f32 %v3533, %v3645
        %3647 = vmatmul.f32.gmra.mxu0 %v2331
        %v3648 = vpop.f32.mrf.mxu0
        %v3649 = vadd.f32 %v3536, %v3648
        %3650 = vmatmul.f32.gmra.mxu0 %v2358
        %v3651 = vpop.f32.mrf.mxu0
        %v3652 = vadd.f32 %v3539, %v3651
        %3653 = vmatmul.f32.gmra.mxu0 %v2385
        %v3654 = vpop.f32.mrf.mxu0
        %v3655 = vadd.f32 %v3542, %v3654
        %3656 = vmatmul.f32.gmra.mxu0 %v2412
        %v3657 = vpop.f32.mrf.mxu0
        %v3658 = vadd.f32 %v3545, %v3657
        %3659 = vmatmul.f32.gmra.mxu0 %v2439
        %v3660 = vpop.f32.mrf.mxu0
        %v3661 = vadd.f32 %v3548, %v3660
        %3662 = vmatmul.f32.gmra.mxu0 %v2466
        %v3663 = vpop.f32.mrf.mxu0
        %v3664 = vadd.f32 %v3551, %v3663
        %3665 = vmatmul.f32.gmra.mxu0 %v2493
        %v3666 = vpop.f32.mrf.mxu0
        %v3667 = vadd.f32 %v3554, %v3666
        %3668 = vmatmul.f32.gmra.mxu0 %v2520
        %v3669 = vpop.f32.mrf.mxu0
        %v3670 = vadd.f32 %v3557, %v3669
        %3671 = vmatmul.f32.gmra.mxu0 %v2547
        %v3672 = vpop.f32.mrf.mxu0
        %v3673 = vadd.f32 %v3560, %v3672
        %3674 = vmatmul.f32.gmra.mxu0 %v2574
        %v3675 = vpop.f32.mrf.mxu0
        %v3676 = vadd.f32 %v3563, %v3675
        %3677 = vmatmul.f32.gmra.mxu0 %v2601
        %v3678 = vpop.f32.mrf.mxu0
        %v3679 = vadd.f32 %v3566, %v3678
        %3680 = vmatmul.f32.gmra.mxu0 %v2628
        %v3681 = vpop.f32.mrf.mxu0
        %v3682 = vadd.f32 %v3569, %v3681
        %3683 = vmatmul.f32.gmra.mxu0 %v2655
        %v3684 = vpop.f32.mrf.mxu0
        %v3685 = vadd.f32 %v3572, %v3684
        %3686 = vmatmul.f32.gmra.mxu0 %v2682
        %v3687 = vpop.f32.mrf.mxu0
        %v3688 = vadd.f32 %v3575, %v3687
        %3689 = vmatmul.f32.gmra.mxu0 %v2709
        %v3690 = vpop.f32.mrf.mxu0
        %v3691 = vadd.f32 %v3578, %v3690
        %3692 = vmatmul.f32.gmra.mxu0 %v2736
        %v3693 = vpop.f32.mrf.mxu0
        %v3694 = vadd.f32 %v3581, %v3693
        %3695 = vmatmul.f32.gmra.mxu0 %v2763
        %v3696 = vpop.f32.mrf.mxu0
        %v3697 = vadd.f32 %v3584, %v3696
        %3698 = vmatmul.f32.gmra.mxu0 %v2790
        %v3699 = vpop.f32.mrf.mxu0
        %v3700 = vadd.f32 %v3587, %v3699
        %3701 = vdwg.mxu0
        %3702 = vmatpush.msra.mxu0 %v2893
        %3703 = vmatpush.msra.mxu0 %v2892
        %3704 = vmatpush.msra.mxu0 %v2891
        %3705 = vmatpush.msra.mxu0 %v2890
        %3706 = vmatpush.msra.mxu0 %v2889
        %3707 = vmatpush.msra.mxu0 %v2888
        %3708 = vmatpush.msra.mxu0 %v2887
        %3709 = vmatpush.msra.mxu0 %v2886
        %3710 = vmatpush.msra.mxu0 %v2885
        %3711 = vmatpush.msra.mxu0 %v2884
        %3712 = vmatpush.msra.mxu0 %v2883
        %3713 = vmatpush.msra.mxu0 %v2882
        %3714 = vmatpush.msra.mxu0 %v2881
        %3715 = vmatpush.msra.mxu0 %v2880
        %3716 = vmatpush.msra.mxu0 %v2879
        %3717 = vmatpush.msra.mxu0 %v2878
        %3718 = vmatmul.f32.gmra.mxu0 %v1954
        %v3719 = vpop.f32.mrf.mxu0
        %v3720 = vadd.f32 %v3607, %v3719
        %3721 = vmatmul.f32.gmra.mxu0 %v1981
        %v3722 = vpop.f32.mrf.mxu0
        %v3723 = vadd.f32 %v3610, %v3722
        %3724 = vmatmul.f32.gmra.mxu0 %v2008
        %v3725 = vpop.f32.mrf.mxu0
        %v3726 = vadd.f32 %v3613, %v3725
        %3727 = vmatmul.f32.gmra.mxu0 %v2035
        %v3728 = vpop.f32.mrf.mxu0
        %v3729 = vadd.f32 %v3616, %v3728
        %3730 = vmatmul.f32.gmra.mxu0 %v2062
        %v3731 = vpop.f32.mrf.mxu0
        %v3732 = vadd.f32 %v3619, %v3731
        %3733 = vmatmul.f32.gmra.mxu0 %v2089
        %v3734 = vpop.f32.mrf.mxu0
        %v3735 = vadd.f32 %v3622, %v3734
        %3736 = vmatmul.f32.gmra.mxu0 %v2116
        %v3737 = vpop.f32.mrf.mxu0
        %v3738 = vadd.f32 %v3625, %v3737
        %3739 = vmatmul.f32.gmra.mxu0 %v2143
        %v3740 = vpop.f32.mrf.mxu0
        %v3741 = vadd.f32 %v3628, %v3740
        %3742 = vmatmul.f32.gmra.mxu0 %v2170
        %v3743 = vpop.f32.mrf.mxu0
        %v3744 = vadd.f32 %v3631, %v3743
        %3745 = vmatmul.f32.gmra.mxu0 %v2197
        %v3746 = vpop.f32.mrf.mxu0
        %v3747 = vadd.f32 %v3634, %v3746
        %3748 = vmatmul.f32.gmra.mxu0 %v2224
        %v3749 = vpop.f32.mrf.mxu0
        %v3750 = vadd.f32 %v3637, %v3749
        %3751 = vmatmul.f32.gmra.mxu0 %v2251
        %v3752 = vpop.f32.mrf.mxu0
        %v3753 = vadd.f32 %v3640, %v3752
        %3754 = vmatmul.f32.gmra.mxu0 %v2278
        %v3755 = vpop.f32.mrf.mxu0
        %v3756 = vadd.f32 %v3643, %v3755
        %3757 = vmatmul.f32.gmra.mxu0 %v2305
        %v3758 = vpop.f32.mrf.mxu0
        %v3759 = vadd.f32 %v3646, %v3758
        %3760 = vmatmul.f32.gmra.mxu0 %v2332
        %v3761 = vpop.f32.mrf.mxu0
        %v3762 = vadd.f32 %v3649, %v3761
        %3763 = vmatmul.f32.gmra.mxu0 %v2359
        %v3764 = vpop.f32.mrf.mxu0
        %v3765 = vadd.f32 %v3652, %v3764
        %3766 = vmatmul.f32.gmra.mxu0 %v2386
        %v3767 = vpop.f32.mrf.mxu0
        %v3768 = vadd.f32 %v3655, %v3767
        %3769 = vmatmul.f32.gmra.mxu0 %v2413
        %v3770 = vpop.f32.mrf.mxu0
        %v3771 = vadd.f32 %v3658, %v3770
        %3772 = vmatmul.f32.gmra.mxu0 %v2440
        %v3773 = vpop.f32.mrf.mxu0
        %v3774 = vadd.f32 %v3661, %v3773
        %3775 = vmatmul.f32.gmra.mxu0 %v2467
        %v3776 = vpop.f32.mrf.mxu0
        %v3777 = vadd.f32 %v3664, %v3776
        %3778 = vmatmul.f32.gmra.mxu0 %v2494
        %v3779 = vpop.f32.mrf.mxu0
        %v3780 = vadd.f32 %v3667, %v3779
        %3781 = vmatmul.f32.gmra.mxu0 %v2521
        %v3782 = vpop.f32.mrf.mxu0
        %v3783 = vadd.f32 %v3670, %v3782
        %3784 = vmatmul.f32.gmra.mxu0 %v2548
        %v3785 = vpop.f32.mrf.mxu0
        %v3786 = vadd.f32 %v3673, %v3785
        %3787 = vmatmul.f32.gmra.mxu0 %v2575
        %v3788 = vpop.f32.mrf.mxu0
        %v3789 = vadd.f32 %v3676, %v3788
        %3790 = vmatmul.f32.gmra.mxu0 %v2602
        %v3791 = vpop.f32.mrf.mxu0
        %v3792 = vadd.f32 %v3679, %v3791
        %3793 = vmatmul.f32.gmra.mxu0 %v2629
        %v3794 = vpop.f32.mrf.mxu0
        %v3795 = vadd.f32 %v3682, %v3794
        %3796 = vmatmul.f32.gmra.mxu0 %v2656
        %v3797 = vpop.f32.mrf.mxu0
        %v3798 = vadd.f32 %v3685, %v3797
        %3799 = vmatmul.f32.gmra.mxu0 %v2683
        %v3800 = vpop.f32.mrf.mxu0
        %v3801 = vadd.f32 %v3688, %v3800
        %3802 = vmatmul.f32.gmra.mxu0 %v2710
        %v3803 = vpop.f32.mrf.mxu0
        %v3804 = vadd.f32 %v3691, %v3803
        %3805 = vmatmul.f32.gmra.mxu0 %v2737
        %v3806 = vpop.f32.mrf.mxu0
        %v3807 = vadd.f32 %v3694, %v3806
        %3808 = vmatmul.f32.gmra.mxu0 %v2764
        %v3809 = vpop.f32.mrf.mxu0
        %v3810 = vadd.f32 %v3697, %v3809
        %3811 = vmatmul.f32.gmra.mxu0 %v2791
        %v3812 = vpop.f32.mrf.mxu0
        %v3813 = vadd.f32 %v3700, %v3812
        %3814 = vdwg.mxu0
        %3815 = vmatpush.msra.mxu0 %v2909
        %3816 = vmatpush.msra.mxu0 %v2908
        %3817 = vmatpush.msra.mxu0 %v2907
        %3818 = vmatpush.msra.mxu0 %v2906
        %3819 = vmatpush.msra.mxu0 %v2905
        %3820 = vmatpush.msra.mxu0 %v2904
        %3821 = vmatpush.msra.mxu0 %v2903
        %3822 = vmatpush.msra.mxu0 %v2902
        %3823 = vmatpush.msra.mxu0 %v2901
        %3824 = vmatpush.msra.mxu0 %v2900
        %3825 = vmatpush.msra.mxu0 %v2899
        %3826 = vmatpush.msra.mxu0 %v2898
        %3827 = vmatpush.msra.mxu0 %v2897
        %3828 = vmatpush.msra.mxu0 %v2896
        %3829 = vmatpush.msra.mxu0 %v2895
        %3830 = vmatpush.msra.mxu0 %v2894
        %3831 = vmatmul.f32.gmra.mxu0 %v1955
        %v3832 = vpop.f32.mrf.mxu0
        %v3833 = vadd.f32 %v3720, %v3832
        %3834 = vmatmul.f32.gmra.mxu0 %v1982
        %v3835 = vpop.f32.mrf.mxu0
        %v3836 = vadd.f32 %v3723, %v3835
        %3837 = vmatmul.f32.gmra.mxu0 %v2009
        %v3838 = vpop.f32.mrf.mxu0
        %v3839 = vadd.f32 %v3726, %v3838
        %3840 = vmatmul.f32.gmra.mxu0 %v2036
        %v3841 = vpop.f32.mrf.mxu0
        %v3842 = vadd.f32 %v3729, %v3841
        %3843 = vmatmul.f32.gmra.mxu0 %v2063
        %v3844 = vpop.f32.mrf.mxu0
        %v3845 = vadd.f32 %v3732, %v3844
        %3846 = vmatmul.f32.gmra.mxu0 %v2090
        %v3847 = vpop.f32.mrf.mxu0
        %v3848 = vadd.f32 %v3735, %v3847
        %3849 = vmatmul.f32.gmra.mxu0 %v2117
        %v3850 = vpop.f32.mrf.mxu0
        %v3851 = vadd.f32 %v3738, %v3850
        %3852 = vmatmul.f32.gmra.mxu0 %v2144
        %v3853 = vpop.f32.mrf.mxu0
        %v3854 = vadd.f32 %v3741, %v3853
        %3855 = vmatmul.f32.gmra.mxu0 %v2171
        %v3856 = vpop.f32.mrf.mxu0
        %v3857 = vadd.f32 %v3744, %v3856
        %3858 = vmatmul.f32.gmra.mxu0 %v2198
        %v3859 = vpop.f32.mrf.mxu0
        %v3860 = vadd.f32 %v3747, %v3859
        %3861 = vmatmul.f32.gmra.mxu0 %v2225
        %v3862 = vpop.f32.mrf.mxu0
        %v3863 = vadd.f32 %v3750, %v3862
        %3864 = vmatmul.f32.gmra.mxu0 %v2252
        %v3865 = vpop.f32.mrf.mxu0
        %v3866 = vadd.f32 %v3753, %v3865
        %3867 = vmatmul.f32.gmra.mxu0 %v2279
        %v3868 = vpop.f32.mrf.mxu0
        %v3869 = vadd.f32 %v3756, %v3868
        %3870 = vmatmul.f32.gmra.mxu0 %v2306
        %v3871 = vpop.f32.mrf.mxu0
        %v3872 = vadd.f32 %v3759, %v3871
        %3873 = vmatmul.f32.gmra.mxu0 %v2333
        %v3874 = vpop.f32.mrf.mxu0
        %v3875 = vadd.f32 %v3762, %v3874
        %3876 = vmatmul.f32.gmra.mxu0 %v2360
        %v3877 = vpop.f32.mrf.mxu0
        %v3878 = vadd.f32 %v3765, %v3877
        %3879 = vmatmul.f32.gmra.mxu0 %v2387
        %v3880 = vpop.f32.mrf.mxu0
        %v3881 = vadd.f32 %v3768, %v3880
        %3882 = vmatmul.f32.gmra.mxu0 %v2414
        %v3883 = vpop.f32.mrf.mxu0
        %v3884 = vadd.f32 %v3771, %v3883
        %3885 = vmatmul.f32.gmra.mxu0 %v2441
        %v3886 = vpop.f32.mrf.mxu0
        %v3887 = vadd.f32 %v3774, %v3886
        %3888 = vmatmul.f32.gmra.mxu0 %v2468
        %v3889 = vpop.f32.mrf.mxu0
        %v3890 = vadd.f32 %v3777, %v3889
        %3891 = vmatmul.f32.gmra.mxu0 %v2495
        %v3892 = vpop.f32.mrf.mxu0
        %v3893 = vadd.f32 %v3780, %v3892
        %3894 = vmatmul.f32.gmra.mxu0 %v2522
        %v3895 = vpop.f32.mrf.mxu0
        %v3896 = vadd.f32 %v3783, %v3895
        %3897 = vmatmul.f32.gmra.mxu0 %v2549
        %v3898 = vpop.f32.mrf.mxu0
        %v3899 = vadd.f32 %v3786, %v3898
        %3900 = vmatmul.f32.gmra.mxu0 %v2576
        %v3901 = vpop.f32.mrf.mxu0
        %v3902 = vadd.f32 %v3789, %v3901
        %3903 = vmatmul.f32.gmra.mxu0 %v2603
        %v3904 = vpop.f32.mrf.mxu0
        %v3905 = vadd.f32 %v3792, %v3904
        %3906 = vmatmul.f32.gmra.mxu0 %v2630
        %v3907 = vpop.f32.mrf.mxu0
        %v3908 = vadd.f32 %v3795, %v3907
        %3909 = vmatmul.f32.gmra.mxu0 %v2657
        %v3910 = vpop.f32.mrf.mxu0
        %v3911 = vadd.f32 %v3798, %v3910
        %3912 = vmatmul.f32.gmra.mxu0 %v2684
        %v3913 = vpop.f32.mrf.mxu0
        %v3914 = vadd.f32 %v3801, %v3913
        %3915 = vmatmul.f32.gmra.mxu0 %v2711
        %v3916 = vpop.f32.mrf.mxu0
        %v3917 = vadd.f32 %v3804, %v3916
        %3918 = vmatmul.f32.gmra.mxu0 %v2738
        %v3919 = vpop.f32.mrf.mxu0
        %v3920 = vadd.f32 %v3807, %v3919
        %3921 = vmatmul.f32.gmra.mxu0 %v2765
        %v3922 = vpop.f32.mrf.mxu0
        %v3923 = vadd.f32 %v3810, %v3922
        %3924 = vmatmul.f32.gmra.mxu0 %v2792
        %v3925 = vpop.f32.mrf.mxu0
        %v3926 = vadd.f32 %v3813, %v3925
        %3927 = vdwg.mxu0
        %3928 = vmatpush.msra.mxu0 %v2925
        %3929 = vmatpush.msra.mxu0 %v2924
        %3930 = vmatpush.msra.mxu0 %v2923
        %3931 = vmatpush.msra.mxu0 %v2922
        %3932 = vmatpush.msra.mxu0 %v2921
        %3933 = vmatpush.msra.mxu0 %v2920
        %3934 = vmatpush.msra.mxu0 %v2919
        %3935 = vmatpush.msra.mxu0 %v2918
        %3936 = vmatpush.msra.mxu0 %v2917
        %3937 = vmatpush.msra.mxu0 %v2916
        %3938 = vmatpush.msra.mxu0 %v2915
        %3939 = vmatpush.msra.mxu0 %v2914
        %3940 = vmatpush.msra.mxu0 %v2913
        %3941 = vmatpush.msra.mxu0 %v2912
        %3942 = vmatpush.msra.mxu0 %v2911
        %3943 = vmatpush.msra.mxu0 %v2910
        %3944 = vmatmul.f32.gmra.mxu0 %v1956
        %v3945 = vpop.f32.mrf.mxu0
        %v3946 = vadd.f32 %v3833, %v3945
        %3947 = vmatmul.f32.gmra.mxu0 %v1983
        %v3948 = vpop.f32.mrf.mxu0
        %v3949 = vadd.f32 %v3836, %v3948
        %3950 = vmatmul.f32.gmra.mxu0 %v2010
        %v3951 = vpop.f32.mrf.mxu0
        %v3952 = vadd.f32 %v3839, %v3951
        %3953 = vmatmul.f32.gmra.mxu0 %v2037
        %v3954 = vpop.f32.mrf.mxu0
        %v3955 = vadd.f32 %v3842, %v3954
        %3956 = vmatmul.f32.gmra.mxu0 %v2064
        %v3957 = vpop.f32.mrf.mxu0
        %v3958 = vadd.f32 %v3845, %v3957
        %3959 = vmatmul.f32.gmra.mxu0 %v2091
        %v3960 = vpop.f32.mrf.mxu0
        %v3961 = vadd.f32 %v3848, %v3960
        %3962 = vmatmul.f32.gmra.mxu0 %v2118
        %v3963 = vpop.f32.mrf.mxu0
        %v3964 = vadd.f32 %v3851, %v3963
        %3965 = vmatmul.f32.gmra.mxu0 %v2145
        %v3966 = vpop.f32.mrf.mxu0
        %v3967 = vadd.f32 %v3854, %v3966
        %3968 = vmatmul.f32.gmra.mxu0 %v2172
        %v3969 = vpop.f32.mrf.mxu0
        %v3970 = vadd.f32 %v3857, %v3969
        %3971 = vmatmul.f32.gmra.mxu0 %v2199
        %v3972 = vpop.f32.mrf.mxu0
        %v3973 = vadd.f32 %v3860, %v3972
        %3974 = vmatmul.f32.gmra.mxu0 %v2226
        %v3975 = vpop.f32.mrf.mxu0
        %v3976 = vadd.f32 %v3863, %v3975
        %3977 = vmatmul.f32.gmra.mxu0 %v2253
        %v3978 = vpop.f32.mrf.mxu0
        %v3979 = vadd.f32 %v3866, %v3978
        %3980 = vmatmul.f32.gmra.mxu0 %v2280
        %v3981 = vpop.f32.mrf.mxu0
        %v3982 = vadd.f32 %v3869, %v3981
        %3983 = vmatmul.f32.gmra.mxu0 %v2307
        %v3984 = vpop.f32.mrf.mxu0
        %v3985 = vadd.f32 %v3872, %v3984
        %3986 = vmatmul.f32.gmra.mxu0 %v2334
        %v3987 = vpop.f32.mrf.mxu0
        %v3988 = vadd.f32 %v3875, %v3987
        %3989 = vmatmul.f32.gmra.mxu0 %v2361
        %v3990 = vpop.f32.mrf.mxu0
        %v3991 = vadd.f32 %v3878, %v3990
        %3992 = vmatmul.f32.gmra.mxu0 %v2388
        %v3993 = vpop.f32.mrf.mxu0
        %v3994 = vadd.f32 %v3881, %v3993
        %3995 = vmatmul.f32.gmra.mxu0 %v2415
        %v3996 = vpop.f32.mrf.mxu0
        %v3997 = vadd.f32 %v3884, %v3996
        %3998 = vmatmul.f32.gmra.mxu0 %v2442
        %v3999 = vpop.f32.mrf.mxu0
        %v4000 = vadd.f32 %v3887, %v3999
        %4001 = vmatmul.f32.gmra.mxu0 %v2469
        %v4002 = vpop.f32.mrf.mxu0
        %v4003 = vadd.f32 %v3890, %v4002
        %4004 = vmatmul.f32.gmra.mxu0 %v2496
        %v4005 = vpop.f32.mrf.mxu0
        %v4006 = vadd.f32 %v3893, %v4005
        %4007 = vmatmul.f32.gmra.mxu0 %v2523
        %v4008 = vpop.f32.mrf.mxu0
        %v4009 = vadd.f32 %v3896, %v4008
        %4010 = vmatmul.f32.gmra.mxu0 %v2550
        %v4011 = vpop.f32.mrf.mxu0
        %v4012 = vadd.f32 %v3899, %v4011
        %4013 = vmatmul.f32.gmra.mxu0 %v2577
        %v4014 = vpop.f32.mrf.mxu0
        %v4015 = vadd.f32 %v3902, %v4014
        %4016 = vmatmul.f32.gmra.mxu0 %v2604
        %v4017 = vpop.f32.mrf.mxu0
        %v4018 = vadd.f32 %v3905, %v4017
        %4019 = vmatmul.f32.gmra.mxu0 %v2631
        %v4020 = vpop.f32.mrf.mxu0
        %v4021 = vadd.f32 %v3908, %v4020
        %4022 = vmatmul.f32.gmra.mxu0 %v2658
        %v4023 = vpop.f32.mrf.mxu0
        %v4024 = vadd.f32 %v3911, %v4023
        %4025 = vmatmul.f32.gmra.mxu0 %v2685
        %v4026 = vpop.f32.mrf.mxu0
        %v4027 = vadd.f32 %v3914, %v4026
        %4028 = vmatmul.f32.gmra.mxu0 %v2712
        %v4029 = vpop.f32.mrf.mxu0
        %v4030 = vadd.f32 %v3917, %v4029
        %4031 = vmatmul.f32.gmra.mxu0 %v2739
        %v4032 = vpop.f32.mrf.mxu0
        %v4033 = vadd.f32 %v3920, %v4032
        %4034 = vmatmul.f32.gmra.mxu0 %v2766
        %v4035 = vpop.f32.mrf.mxu0
        %v4036 = vadd.f32 %v3923, %v4035
        %4037 = vmatmul.f32.gmra.mxu0 %v2793
        %v4038 = vpop.f32.mrf.mxu0
        %v4039 = vadd.f32 %v3926, %v4038
        %4040 = vdwg.mxu0
        %4041 = vmatpush.msra.mxu0 %v2941
        %4042 = vmatpush.msra.mxu0 %v2940
        %4043 = vmatpush.msra.mxu0 %v2939
        %4044 = vmatpush.msra.mxu0 %v2938
        %4045 = vmatpush.msra.mxu0 %v2937
        %4046 = vmatpush.msra.mxu0 %v2936
        %4047 = vmatpush.msra.mxu0 %v2935
        %4048 = vmatpush.msra.mxu0 %v2934
        %4049 = vmatpush.msra.mxu0 %v2933
        %4050 = vmatpush.msra.mxu0 %v2932
        %4051 = vmatpush.msra.mxu0 %v2931
        %4052 = vmatpush.msra.mxu0 %v2930
        %4053 = vmatpush.msra.mxu0 %v2929
        %4054 = vmatpush.msra.mxu0 %v2928
        %4055 = vmatpush.msra.mxu0 %v2927
        %4056 = vmatpush.msra.mxu0 %v2926
        %4057 = vmatmul.f32.gmra.mxu0 %v1957
        %v4058 = vpop.f32.mrf.mxu0
        %v4059 = vadd.f32 %v3946, %v4058
        %4060 = vmatmul.f32.gmra.mxu0 %v1984
        %v4061 = vpop.f32.mrf.mxu0
        %v4062 = vadd.f32 %v3949, %v4061
        %4063 = vmatmul.f32.gmra.mxu0 %v2011
        %v4064 = vpop.f32.mrf.mxu0
        %v4065 = vadd.f32 %v3952, %v4064
        %4066 = vmatmul.f32.gmra.mxu0 %v2038
        %v4067 = vpop.f32.mrf.mxu0
        %v4068 = vadd.f32 %v3955, %v4067
        %4069 = vmatmul.f32.gmra.mxu0 %v2065
        %v4070 = vpop.f32.mrf.mxu0
        %v4071 = vadd.f32 %v3958, %v4070
        %4072 = vmatmul.f32.gmra.mxu0 %v2092
        %v4073 = vpop.f32.mrf.mxu0
        %v4074 = vadd.f32 %v3961, %v4073
        %4075 = vmatmul.f32.gmra.mxu0 %v2119
        %v4076 = vpop.f32.mrf.mxu0
        %v4077 = vadd.f32 %v3964, %v4076
        %4078 = vmatmul.f32.gmra.mxu0 %v2146
        %v4079 = vpop.f32.mrf.mxu0
        %v4080 = vadd.f32 %v3967, %v4079
        %4081 = vmatmul.f32.gmra.mxu0 %v2173
        %v4082 = vpop.f32.mrf.mxu0
        %v4083 = vadd.f32 %v3970, %v4082
        %4084 = vmatmul.f32.gmra.mxu0 %v2200
        %v4085 = vpop.f32.mrf.mxu0
        %v4086 = vadd.f32 %v3973, %v4085
        %4087 = vmatmul.f32.gmra.mxu0 %v2227
        %v4088 = vpop.f32.mrf.mxu0
        %v4089 = vadd.f32 %v3976, %v4088
        %4090 = vmatmul.f32.gmra.mxu0 %v2254
        %v4091 = vpop.f32.mrf.mxu0
        %v4092 = vadd.f32 %v3979, %v4091
        %4093 = vmatmul.f32.gmra.mxu0 %v2281
        %v4094 = vpop.f32.mrf.mxu0
        %v4095 = vadd.f32 %v3982, %v4094
        %4096 = vmatmul.f32.gmra.mxu0 %v2308
        %v4097 = vpop.f32.mrf.mxu0
        %v4098 = vadd.f32 %v3985, %v4097
        %4099 = vmatmul.f32.gmra.mxu0 %v2335
        %v4100 = vpop.f32.mrf.mxu0
        %v4101 = vadd.f32 %v3988, %v4100
        %4102 = vmatmul.f32.gmra.mxu0 %v2362
        %v4103 = vpop.f32.mrf.mxu0
        %v4104 = vadd.f32 %v3991, %v4103
        %4105 = vmatmul.f32.gmra.mxu0 %v2389
        %v4106 = vpop.f32.mrf.mxu0
        %v4107 = vadd.f32 %v3994, %v4106
        %4108 = vmatmul.f32.gmra.mxu0 %v2416
        %v4109 = vpop.f32.mrf.mxu0
        %v4110 = vadd.f32 %v3997, %v4109
        %4111 = vmatmul.f32.gmra.mxu0 %v2443
        %v4112 = vpop.f32.mrf.mxu0
        %v4113 = vadd.f32 %v4000, %v4112
        %4114 = vmatmul.f32.gmra.mxu0 %v2470
        %v4115 = vpop.f32.mrf.mxu0
        %v4116 = vadd.f32 %v4003, %v4115
        %4117 = vmatmul.f32.gmra.mxu0 %v2497
        %v4118 = vpop.f32.mrf.mxu0
        %v4119 = vadd.f32 %v4006, %v4118
        %4120 = vmatmul.f32.gmra.mxu0 %v2524
        %v4121 = vpop.f32.mrf.mxu0
        %v4122 = vadd.f32 %v4009, %v4121
        %4123 = vmatmul.f32.gmra.mxu0 %v2551
        %v4124 = vpop.f32.mrf.mxu0
        %v4125 = vadd.f32 %v4012, %v4124
        %4126 = vmatmul.f32.gmra.mxu0 %v2578
        %v4127 = vpop.f32.mrf.mxu0
        %v4128 = vadd.f32 %v4015, %v4127
        %4129 = vmatmul.f32.gmra.mxu0 %v2605
        %v4130 = vpop.f32.mrf.mxu0
        %v4131 = vadd.f32 %v4018, %v4130
        %4132 = vmatmul.f32.gmra.mxu0 %v2632
        %v4133 = vpop.f32.mrf.mxu0
        %v4134 = vadd.f32 %v4021, %v4133
        %4135 = vmatmul.f32.gmra.mxu0 %v2659
        %v4136 = vpop.f32.mrf.mxu0
        %v4137 = vadd.f32 %v4024, %v4136
        %4138 = vmatmul.f32.gmra.mxu0 %v2686
        %v4139 = vpop.f32.mrf.mxu0
        %v4140 = vadd.f32 %v4027, %v4139
        %4141 = vmatmul.f32.gmra.mxu0 %v2713
        %v4142 = vpop.f32.mrf.mxu0
        %v4143 = vadd.f32 %v4030, %v4142
        %4144 = vmatmul.f32.gmra.mxu0 %v2740
        %v4145 = vpop.f32.mrf.mxu0
        %v4146 = vadd.f32 %v4033, %v4145
        %4147 = vmatmul.f32.gmra.mxu0 %v2767
        %v4148 = vpop.f32.mrf.mxu0
        %v4149 = vadd.f32 %v4036, %v4148
        %4150 = vmatmul.f32.gmra.mxu0 %v2794
        %v4151 = vpop.f32.mrf.mxu0
        %v4152 = vadd.f32 %v4039, %v4151
        %4153 = vdwg.mxu0
        %4154 = vmatpush.msra.mxu0 %v2957
        %4155 = vmatpush.msra.mxu0 %v2956
        %4156 = vmatpush.msra.mxu0 %v2955
        %4157 = vmatpush.msra.mxu0 %v2954
        %4158 = vmatpush.msra.mxu0 %v2953
        %4159 = vmatpush.msra.mxu0 %v2952
        %4160 = vmatpush.msra.mxu0 %v2951
        %4161 = vmatpush.msra.mxu0 %v2950
        %4162 = vmatpush.msra.mxu0 %v2949
        %4163 = vmatpush.msra.mxu0 %v2948
        %4164 = vmatpush.msra.mxu0 %v2947
        %4165 = vmatpush.msra.mxu0 %v2946
        %4166 = vmatpush.msra.mxu0 %v2945
        %4167 = vmatpush.msra.mxu0 %v2944
        %4168 = vmatpush.msra.mxu0 %v2943
        %4169 = vmatpush.msra.mxu0 %v2942
        %4170 = vmatmul.f32.gmra.mxu0 %v1958
        %v4171 = vpop.f32.mrf.mxu0
        %v4172 = vadd.f32 %v4059, %v4171
        %4173 = vmatmul.f32.gmra.mxu0 %v1985
        %v4174 = vpop.f32.mrf.mxu0
        %v4175 = vadd.f32 %v4062, %v4174
        %4176 = vmatmul.f32.gmra.mxu0 %v2012
        %v4177 = vpop.f32.mrf.mxu0
        %v4178 = vadd.f32 %v4065, %v4177
        %4179 = vmatmul.f32.gmra.mxu0 %v2039
        %v4180 = vpop.f32.mrf.mxu0
        %v4181 = vadd.f32 %v4068, %v4180
        %4182 = vmatmul.f32.gmra.mxu0 %v2066
        %v4183 = vpop.f32.mrf.mxu0
        %v4184 = vadd.f32 %v4071, %v4183
        %4185 = vmatmul.f32.gmra.mxu0 %v2093
        %v4186 = vpop.f32.mrf.mxu0
        %v4187 = vadd.f32 %v4074, %v4186
        %4188 = vmatmul.f32.gmra.mxu0 %v2120
        %v4189 = vpop.f32.mrf.mxu0
        %v4190 = vadd.f32 %v4077, %v4189
        %4191 = vmatmul.f32.gmra.mxu0 %v2147
        %v4192 = vpop.f32.mrf.mxu0
        %v4193 = vadd.f32 %v4080, %v4192
        %4194 = vmatmul.f32.gmra.mxu0 %v2174
        %v4195 = vpop.f32.mrf.mxu0
        %v4196 = vadd.f32 %v4083, %v4195
        %4197 = vmatmul.f32.gmra.mxu0 %v2201
        %v4198 = vpop.f32.mrf.mxu0
        %v4199 = vadd.f32 %v4086, %v4198
        %4200 = vmatmul.f32.gmra.mxu0 %v2228
        %v4201 = vpop.f32.mrf.mxu0
        %v4202 = vadd.f32 %v4089, %v4201
        %4203 = vmatmul.f32.gmra.mxu0 %v2255
        %v4204 = vpop.f32.mrf.mxu0
        %v4205 = vadd.f32 %v4092, %v4204
        %4206 = vmatmul.f32.gmra.mxu0 %v2282
        %v4207 = vpop.f32.mrf.mxu0
        %v4208 = vadd.f32 %v4095, %v4207
        %4209 = vmatmul.f32.gmra.mxu0 %v2309
        %v4210 = vpop.f32.mrf.mxu0
        %v4211 = vadd.f32 %v4098, %v4210
        %4212 = vmatmul.f32.gmra.mxu0 %v2336
        %v4213 = vpop.f32.mrf.mxu0
        %v4214 = vadd.f32 %v4101, %v4213
        %4215 = vmatmul.f32.gmra.mxu0 %v2363
        %v4216 = vpop.f32.mrf.mxu0
        %v4217 = vadd.f32 %v4104, %v4216
        %4218 = vmatmul.f32.gmra.mxu0 %v2390
        %v4219 = vpop.f32.mrf.mxu0
        %v4220 = vadd.f32 %v4107, %v4219
        %4221 = vmatmul.f32.gmra.mxu0 %v2417
        %v4222 = vpop.f32.mrf.mxu0
        %v4223 = vadd.f32 %v4110, %v4222
        %4224 = vmatmul.f32.gmra.mxu0 %v2444
        %v4225 = vpop.f32.mrf.mxu0
        %v4226 = vadd.f32 %v4113, %v4225
        %4227 = vmatmul.f32.gmra.mxu0 %v2471
        %v4228 = vpop.f32.mrf.mxu0
        %v4229 = vadd.f32 %v4116, %v4228
        %4230 = vmatmul.f32.gmra.mxu0 %v2498
        %v4231 = vpop.f32.mrf.mxu0
        %v4232 = vadd.f32 %v4119, %v4231
        %4233 = vmatmul.f32.gmra.mxu0 %v2525
        %v4234 = vpop.f32.mrf.mxu0
        %v4235 = vadd.f32 %v4122, %v4234
        %4236 = vmatmul.f32.gmra.mxu0 %v2552
        %v4237 = vpop.f32.mrf.mxu0
        %v4238 = vadd.f32 %v4125, %v4237
        %4239 = vmatmul.f32.gmra.mxu0 %v2579
        %v4240 = vpop.f32.mrf.mxu0
        %v4241 = vadd.f32 %v4128, %v4240
        %4242 = vmatmul.f32.gmra.mxu0 %v2606
        %v4243 = vpop.f32.mrf.mxu0
        %v4244 = vadd.f32 %v4131, %v4243
        %4245 = vmatmul.f32.gmra.mxu0 %v2633
        %v4246 = vpop.f32.mrf.mxu0
        %v4247 = vadd.f32 %v4134, %v4246
        %4248 = vmatmul.f32.gmra.mxu0 %v2660
        %v4249 = vpop.f32.mrf.mxu0
        %v4250 = vadd.f32 %v4137, %v4249
        %4251 = vmatmul.f32.gmra.mxu0 %v2687
        %v4252 = vpop.f32.mrf.mxu0
        %v4253 = vadd.f32 %v4140, %v4252
        %4254 = vmatmul.f32.gmra.mxu0 %v2714
        %v4255 = vpop.f32.mrf.mxu0
        %v4256 = vadd.f32 %v4143, %v4255
        %4257 = vmatmul.f32.gmra.mxu0 %v2741
        %v4258 = vpop.f32.mrf.mxu0
        %v4259 = vadd.f32 %v4146, %v4258
        %4260 = vmatmul.f32.gmra.mxu0 %v2768
        %v4261 = vpop.f32.mrf.mxu0
        %v4262 = vadd.f32 %v4149, %v4261
        %4263 = vmatmul.f32.gmra.mxu0 %v2795
        %v4264 = vpop.f32.mrf.mxu0
        %v4265 = vadd.f32 %v4152, %v4264
        %4266 = vdwg.mxu0
        %4267 = vmatpush.msra.mxu0 %v2973
        %4268 = vmatpush.msra.mxu0 %v2972
        %4269 = vmatpush.msra.mxu0 %v2971
        %4270 = vmatpush.msra.mxu0 %v2970
        %4271 = vmatpush.msra.mxu0 %v2969
        %4272 = vmatpush.msra.mxu0 %v2968
        %4273 = vmatpush.msra.mxu0 %v2967
        %4274 = vmatpush.msra.mxu0 %v2966
        %4275 = vmatpush.msra.mxu0 %v2965
        %4276 = vmatpush.msra.mxu0 %v2964
        %4277 = vmatpush.msra.mxu0 %v2963
        %4278 = vmatpush.msra.mxu0 %v2962
        %4279 = vmatpush.msra.mxu0 %v2961
        %4280 = vmatpush.msra.mxu0 %v2960
        %4281 = vmatpush.msra.mxu0 %v2959
        %4282 = vmatpush.msra.mxu0 %v2958
        %4283 = vmatmul.f32.gmra.mxu0 %v1959
        %v4284 = vpop.f32.mrf.mxu0
        %v4285 = vadd.f32 %v4172, %v4284
        %4286 = vmatmul.f32.gmra.mxu0 %v1986
        %v4287 = vpop.f32.mrf.mxu0
        %v4288 = vadd.f32 %v4175, %v4287
        %4289 = vmatmul.f32.gmra.mxu0 %v2013
        %v4290 = vpop.f32.mrf.mxu0
        %v4291 = vadd.f32 %v4178, %v4290
        %4292 = vmatmul.f32.gmra.mxu0 %v2040
        %v4293 = vpop.f32.mrf.mxu0
        %v4294 = vadd.f32 %v4181, %v4293
        %4295 = vmatmul.f32.gmra.mxu0 %v2067
        %v4296 = vpop.f32.mrf.mxu0
        %v4297 = vadd.f32 %v4184, %v4296
        %4298 = vmatmul.f32.gmra.mxu0 %v2094
        %v4299 = vpop.f32.mrf.mxu0
        %v4300 = vadd.f32 %v4187, %v4299
        %4301 = vmatmul.f32.gmra.mxu0 %v2121
        %v4302 = vpop.f32.mrf.mxu0
        %v4303 = vadd.f32 %v4190, %v4302
        %4304 = vmatmul.f32.gmra.mxu0 %v2148
        %v4305 = vpop.f32.mrf.mxu0
        %v4306 = vadd.f32 %v4193, %v4305
        %4307 = vmatmul.f32.gmra.mxu0 %v2175
        %v4308 = vpop.f32.mrf.mxu0
        %v4309 = vadd.f32 %v4196, %v4308
        %4310 = vmatmul.f32.gmra.mxu0 %v2202
        %v4311 = vpop.f32.mrf.mxu0
        %v4312 = vadd.f32 %v4199, %v4311
        %4313 = vmatmul.f32.gmra.mxu0 %v2229
        %v4314 = vpop.f32.mrf.mxu0
        %v4315 = vadd.f32 %v4202, %v4314
        %4316 = vmatmul.f32.gmra.mxu0 %v2256
        %v4317 = vpop.f32.mrf.mxu0
        %v4318 = vadd.f32 %v4205, %v4317
        %4319 = vmatmul.f32.gmra.mxu0 %v2283
        %v4320 = vpop.f32.mrf.mxu0
        %v4321 = vadd.f32 %v4208, %v4320
        %4322 = vmatmul.f32.gmra.mxu0 %v2310
        %v4323 = vpop.f32.mrf.mxu0
        %v4324 = vadd.f32 %v4211, %v4323
        %4325 = vmatmul.f32.gmra.mxu0 %v2337
        %v4326 = vpop.f32.mrf.mxu0
        %v4327 = vadd.f32 %v4214, %v4326
        %4328 = vmatmul.f32.gmra.mxu0 %v2364
        %v4329 = vpop.f32.mrf.mxu0
        %v4330 = vadd.f32 %v4217, %v4329
        %4331 = vmatmul.f32.gmra.mxu0 %v2391
        %v4332 = vpop.f32.mrf.mxu0
        %v4333 = vadd.f32 %v4220, %v4332
        %4334 = vmatmul.f32.gmra.mxu0 %v2418
        %v4335 = vpop.f32.mrf.mxu0
        %v4336 = vadd.f32 %v4223, %v4335
        %4337 = vmatmul.f32.gmra.mxu0 %v2445
        %v4338 = vpop.f32.mrf.mxu0
        %v4339 = vadd.f32 %v4226, %v4338
        %4340 = vmatmul.f32.gmra.mxu0 %v2472
        %v4341 = vpop.f32.mrf.mxu0
        %v4342 = vadd.f32 %v4229, %v4341
        %4343 = vmatmul.f32.gmra.mxu0 %v2499
        %v4344 = vpop.f32.mrf.mxu0
        %v4345 = vadd.f32 %v4232, %v4344
        %4346 = vmatmul.f32.gmra.mxu0 %v2526
        %v4347 = vpop.f32.mrf.mxu0
        %v4348 = vadd.f32 %v4235, %v4347
        %4349 = vmatmul.f32.gmra.mxu0 %v2553
        %v4350 = vpop.f32.mrf.mxu0
        %v4351 = vadd.f32 %v4238, %v4350
        %4352 = vmatmul.f32.gmra.mxu0 %v2580
        %v4353 = vpop.f32.mrf.mxu0
        %v4354 = vadd.f32 %v4241, %v4353
        %4355 = vmatmul.f32.gmra.mxu0 %v2607
        %v4356 = vpop.f32.mrf.mxu0
        %v4357 = vadd.f32 %v4244, %v4356
        %4358 = vmatmul.f32.gmra.mxu0 %v2634
        %v4359 = vpop.f32.mrf.mxu0
        %v4360 = vadd.f32 %v4247, %v4359
        %4361 = vmatmul.f32.gmra.mxu0 %v2661
        %v4362 = vpop.f32.mrf.mxu0
        %v4363 = vadd.f32 %v4250, %v4362
        %4364 = vmatmul.f32.gmra.mxu0 %v2688
        %v4365 = vpop.f32.mrf.mxu0
        %v4366 = vadd.f32 %v4253, %v4365
        %4367 = vmatmul.f32.gmra.mxu0 %v2715
        %v4368 = vpop.f32.mrf.mxu0
        %v4369 = vadd.f32 %v4256, %v4368
        %4370 = vmatmul.f32.gmra.mxu0 %v2742
        %v4371 = vpop.f32.mrf.mxu0
        %v4372 = vadd.f32 %v4259, %v4371
        %4373 = vmatmul.f32.gmra.mxu0 %v2769
        %v4374 = vpop.f32.mrf.mxu0
        %v4375 = vadd.f32 %v4262, %v4374
        %4376 = vmatmul.f32.gmra.mxu0 %v2796
        %v4377 = vpop.f32.mrf.mxu0
        %v4378 = vadd.f32 %v4265, %v4377
        %4379 = vdwg.mxu0
        %4380 = vmatpush.msra.mxu0 %v2989
        %4381 = vmatpush.msra.mxu0 %v2988
        %4382 = vmatpush.msra.mxu0 %v2987
        %4383 = vmatpush.msra.mxu0 %v2986
        %4384 = vmatpush.msra.mxu0 %v2985
        %4385 = vmatpush.msra.mxu0 %v2984
        %4386 = vmatpush.msra.mxu0 %v2983
        %4387 = vmatpush.msra.mxu0 %v2982
        %4388 = vmatpush.msra.mxu0 %v2981
        %4389 = vmatpush.msra.mxu0 %v2980
        %4390 = vmatpush.msra.mxu0 %v2979
        %4391 = vmatpush.msra.mxu0 %v2978
        %4392 = vmatpush.msra.mxu0 %v2977
        %4393 = vmatpush.msra.mxu0 %v2976
        %4394 = vmatpush.msra.mxu0 %v2975
        %4395 = vmatpush.msra.mxu0 %v2974
        %4396 = vmatmul.f32.gmra.mxu0 %v1960
        %v4397 = vpop.f32.mrf.mxu0
        %v4398 = vadd.f32 %v4285, %v4397
        %4399 = vmatmul.f32.gmra.mxu0 %v1987
        %v4400 = vpop.f32.mrf.mxu0
        %v4401 = vadd.f32 %v4288, %v4400
        %4402 = vmatmul.f32.gmra.mxu0 %v2014
        %v4403 = vpop.f32.mrf.mxu0
        %v4404 = vadd.f32 %v4291, %v4403
        %4405 = vmatmul.f32.gmra.mxu0 %v2041
        %v4406 = vpop.f32.mrf.mxu0
        %v4407 = vadd.f32 %v4294, %v4406
        %4408 = vmatmul.f32.gmra.mxu0 %v2068
        %v4409 = vpop.f32.mrf.mxu0
        %v4410 = vadd.f32 %v4297, %v4409
        %4411 = vmatmul.f32.gmra.mxu0 %v2095
        %v4412 = vpop.f32.mrf.mxu0
        %v4413 = vadd.f32 %v4300, %v4412
        %4414 = vmatmul.f32.gmra.mxu0 %v2122
        %v4415 = vpop.f32.mrf.mxu0
        %v4416 = vadd.f32 %v4303, %v4415
        %4417 = vmatmul.f32.gmra.mxu0 %v2149
        %v4418 = vpop.f32.mrf.mxu0
        %v4419 = vadd.f32 %v4306, %v4418
        %4420 = vmatmul.f32.gmra.mxu0 %v2176
        %v4421 = vpop.f32.mrf.mxu0
        %v4422 = vadd.f32 %v4309, %v4421
        %4423 = vmatmul.f32.gmra.mxu0 %v2203
        %v4424 = vpop.f32.mrf.mxu0
        %v4425 = vadd.f32 %v4312, %v4424
        %4426 = vmatmul.f32.gmra.mxu0 %v2230
        %v4427 = vpop.f32.mrf.mxu0
        %v4428 = vadd.f32 %v4315, %v4427
        %4429 = vmatmul.f32.gmra.mxu0 %v2257
        %v4430 = vpop.f32.mrf.mxu0
        %v4431 = vadd.f32 %v4318, %v4430
        %4432 = vmatmul.f32.gmra.mxu0 %v2284
        %v4433 = vpop.f32.mrf.mxu0
        %v4434 = vadd.f32 %v4321, %v4433
        %4435 = vmatmul.f32.gmra.mxu0 %v2311
        %v4436 = vpop.f32.mrf.mxu0
        %v4437 = vadd.f32 %v4324, %v4436
        %4438 = vmatmul.f32.gmra.mxu0 %v2338
        %v4439 = vpop.f32.mrf.mxu0
        %v4440 = vadd.f32 %v4327, %v4439
        %4441 = vmatmul.f32.gmra.mxu0 %v2365
        %v4442 = vpop.f32.mrf.mxu0
        %v4443 = vadd.f32 %v4330, %v4442
        %4444 = vmatmul.f32.gmra.mxu0 %v2392
        %v4445 = vpop.f32.mrf.mxu0
        %v4446 = vadd.f32 %v4333, %v4445
        %4447 = vmatmul.f32.gmra.mxu0 %v2419
        %v4448 = vpop.f32.mrf.mxu0
        %v4449 = vadd.f32 %v4336, %v4448
        %4450 = vmatmul.f32.gmra.mxu0 %v2446
        %v4451 = vpop.f32.mrf.mxu0
        %v4452 = vadd.f32 %v4339, %v4451
        %4453 = vmatmul.f32.gmra.mxu0 %v2473
        %v4454 = vpop.f32.mrf.mxu0
        %v4455 = vadd.f32 %v4342, %v4454
        %4456 = vmatmul.f32.gmra.mxu0 %v2500
        %v4457 = vpop.f32.mrf.mxu0
        %v4458 = vadd.f32 %v4345, %v4457
        %4459 = vmatmul.f32.gmra.mxu0 %v2527
        %v4460 = vpop.f32.mrf.mxu0
        %v4461 = vadd.f32 %v4348, %v4460
        %4462 = vmatmul.f32.gmra.mxu0 %v2554
        %v4463 = vpop.f32.mrf.mxu0
        %v4464 = vadd.f32 %v4351, %v4463
        %4465 = vmatmul.f32.gmra.mxu0 %v2581
        %v4466 = vpop.f32.mrf.mxu0
        %v4467 = vadd.f32 %v4354, %v4466
        %4468 = vmatmul.f32.gmra.mxu0 %v2608
        %v4469 = vpop.f32.mrf.mxu0
        %v4470 = vadd.f32 %v4357, %v4469
        %4471 = vmatmul.f32.gmra.mxu0 %v2635
        %v4472 = vpop.f32.mrf.mxu0
        %v4473 = vadd.f32 %v4360, %v4472
        %4474 = vmatmul.f32.gmra.mxu0 %v2662
        %v4475 = vpop.f32.mrf.mxu0
        %v4476 = vadd.f32 %v4363, %v4475
        %4477 = vmatmul.f32.gmra.mxu0 %v2689
        %v4478 = vpop.f32.mrf.mxu0
        %v4479 = vadd.f32 %v4366, %v4478
        %4480 = vmatmul.f32.gmra.mxu0 %v2716
        %v4481 = vpop.f32.mrf.mxu0
        %v4482 = vadd.f32 %v4369, %v4481
        %4483 = vmatmul.f32.gmra.mxu0 %v2743
        %v4484 = vpop.f32.mrf.mxu0
        %v4485 = vadd.f32 %v4372, %v4484
        %4486 = vmatmul.f32.gmra.mxu0 %v2770
        %v4487 = vpop.f32.mrf.mxu0
        %v4488 = vadd.f32 %v4375, %v4487
        %4489 = vmatmul.f32.gmra.mxu0 %v2797
        %v4490 = vpop.f32.mrf.mxu0
        %v4491 = vadd.f32 %v4378, %v4490
        %4492 = vdwg.mxu0
        %4493 = vmatpush.msra.mxu0 %v3005
        %4494 = vmatpush.msra.mxu0 %v3004
        %4495 = vmatpush.msra.mxu0 %v3003
        %4496 = vmatpush.msra.mxu0 %v3002
        %4497 = vmatpush.msra.mxu0 %v3001
        %4498 = vmatpush.msra.mxu0 %v3000
        %4499 = vmatpush.msra.mxu0 %v2999
        %4500 = vmatpush.msra.mxu0 %v2998
        %4501 = vmatpush.msra.mxu0 %v2997
        %4502 = vmatpush.msra.mxu0 %v2996
        %4503 = vmatpush.msra.mxu0 %v2995
        %4504 = vmatpush.msra.mxu0 %v2994
        %4505 = vmatpush.msra.mxu0 %v2993
        %4506 = vmatpush.msra.mxu0 %v2992
        %4507 = vmatpush.msra.mxu0 %v2991
        %4508 = vmatpush.msra.mxu0 %v2990
        %4509 = vmatmul.f32.gmra.mxu0 %v1961
        %v4510 = vpop.f32.mrf.mxu0
        %v4511 = vadd.f32 %v4398, %v4510
        %4512 = vmatmul.f32.gmra.mxu0 %v1988
        %v4513 = vpop.f32.mrf.mxu0
        %v4514 = vadd.f32 %v4401, %v4513
        %4515 = vmatmul.f32.gmra.mxu0 %v2015
        %v4516 = vpop.f32.mrf.mxu0
        %v4517 = vadd.f32 %v4404, %v4516
        %4518 = vmatmul.f32.gmra.mxu0 %v2042
        %v4519 = vpop.f32.mrf.mxu0
        %v4520 = vadd.f32 %v4407, %v4519
        %4521 = vmatmul.f32.gmra.mxu0 %v2069
        %v4522 = vpop.f32.mrf.mxu0
        %v4523 = vadd.f32 %v4410, %v4522
        %4524 = vmatmul.f32.gmra.mxu0 %v2096
        %v4525 = vpop.f32.mrf.mxu0
        %v4526 = vadd.f32 %v4413, %v4525
        %4527 = vmatmul.f32.gmra.mxu0 %v2123
        %v4528 = vpop.f32.mrf.mxu0
        %v4529 = vadd.f32 %v4416, %v4528
        %4530 = vmatmul.f32.gmra.mxu0 %v2150
        %v4531 = vpop.f32.mrf.mxu0
        %v4532 = vadd.f32 %v4419, %v4531
        %4533 = vmatmul.f32.gmra.mxu0 %v2177
        %v4534 = vpop.f32.mrf.mxu0
        %v4535 = vadd.f32 %v4422, %v4534
        %4536 = vmatmul.f32.gmra.mxu0 %v2204
        %v4537 = vpop.f32.mrf.mxu0
        %v4538 = vadd.f32 %v4425, %v4537
        %4539 = vmatmul.f32.gmra.mxu0 %v2231
        %v4540 = vpop.f32.mrf.mxu0
        %v4541 = vadd.f32 %v4428, %v4540
        %4542 = vmatmul.f32.gmra.mxu0 %v2258
        %v4543 = vpop.f32.mrf.mxu0
        %v4544 = vadd.f32 %v4431, %v4543
        %4545 = vmatmul.f32.gmra.mxu0 %v2285
        %v4546 = vpop.f32.mrf.mxu0
        %v4547 = vadd.f32 %v4434, %v4546
        %4548 = vmatmul.f32.gmra.mxu0 %v2312
        %v4549 = vpop.f32.mrf.mxu0
        %v4550 = vadd.f32 %v4437, %v4549
        %4551 = vmatmul.f32.gmra.mxu0 %v2339
        %v4552 = vpop.f32.mrf.mxu0
        %v4553 = vadd.f32 %v4440, %v4552
        %4554 = vmatmul.f32.gmra.mxu0 %v2366
        %v4555 = vpop.f32.mrf.mxu0
        %v4556 = vadd.f32 %v4443, %v4555
        %4557 = vmatmul.f32.gmra.mxu0 %v2393
        %v4558 = vpop.f32.mrf.mxu0
        %v4559 = vadd.f32 %v4446, %v4558
        %4560 = vmatmul.f32.gmra.mxu0 %v2420
        %v4561 = vpop.f32.mrf.mxu0
        %v4562 = vadd.f32 %v4449, %v4561
        %4563 = vmatmul.f32.gmra.mxu0 %v2447
        %v4564 = vpop.f32.mrf.mxu0
        %v4565 = vadd.f32 %v4452, %v4564
        %4566 = vmatmul.f32.gmra.mxu0 %v2474
        %v4567 = vpop.f32.mrf.mxu0
        %v4568 = vadd.f32 %v4455, %v4567
        %4569 = vmatmul.f32.gmra.mxu0 %v2501
        %v4570 = vpop.f32.mrf.mxu0
        %v4571 = vadd.f32 %v4458, %v4570
        %4572 = vmatmul.f32.gmra.mxu0 %v2528
        %v4573 = vpop.f32.mrf.mxu0
        %v4574 = vadd.f32 %v4461, %v4573
        %4575 = vmatmul.f32.gmra.mxu0 %v2555
        %v4576 = vpop.f32.mrf.mxu0
        %v4577 = vadd.f32 %v4464, %v4576
        %4578 = vmatmul.f32.gmra.mxu0 %v2582
        %v4579 = vpop.f32.mrf.mxu0
        %v4580 = vadd.f32 %v4467, %v4579
        %4581 = vmatmul.f32.gmra.mxu0 %v2609
        %v4582 = vpop.f32.mrf.mxu0
        %v4583 = vadd.f32 %v4470, %v4582
        %4584 = vmatmul.f32.gmra.mxu0 %v2636
        %v4585 = vpop.f32.mrf.mxu0
        %v4586 = vadd.f32 %v4473, %v4585
        %4587 = vmatmul.f32.gmra.mxu0 %v2663
        %v4588 = vpop.f32.mrf.mxu0
        %v4589 = vadd.f32 %v4476, %v4588
        %4590 = vmatmul.f32.gmra.mxu0 %v2690
        %v4591 = vpop.f32.mrf.mxu0
        %v4592 = vadd.f32 %v4479, %v4591
        %4593 = vmatmul.f32.gmra.mxu0 %v2717
        %v4594 = vpop.f32.mrf.mxu0
        %v4595 = vadd.f32 %v4482, %v4594
        %4596 = vmatmul.f32.gmra.mxu0 %v2744
        %v4597 = vpop.f32.mrf.mxu0
        %v4598 = vadd.f32 %v4485, %v4597
        %4599 = vmatmul.f32.gmra.mxu0 %v2771
        %v4600 = vpop.f32.mrf.mxu0
        %v4601 = vadd.f32 %v4488, %v4600
        %4602 = vmatmul.f32.gmra.mxu0 %v2798
        %v4603 = vpop.f32.mrf.mxu0
        %v4604 = vadd.f32 %v4491, %v4603
        %4605 = vdwg.mxu0
        %4606 = vmatpush.msra.mxu0 %v3021
        %4607 = vmatpush.msra.mxu0 %v3020
        %4608 = vmatpush.msra.mxu0 %v3019
        %4609 = vmatpush.msra.mxu0 %v3018
        %4610 = vmatpush.msra.mxu0 %v3017
        %4611 = vmatpush.msra.mxu0 %v3016
        %4612 = vmatpush.msra.mxu0 %v3015
        %4613 = vmatpush.msra.mxu0 %v3014
        %4614 = vmatpush.msra.mxu0 %v3013
        %4615 = vmatpush.msra.mxu0 %v3012
        %4616 = vmatpush.msra.mxu0 %v3011
        %4617 = vmatpush.msra.mxu0 %v3010
        %4618 = vmatpush.msra.mxu0 %v3009
        %4619 = vmatpush.msra.mxu0 %v3008
        %4620 = vmatpush.msra.mxu0 %v3007
        %4621 = vmatpush.msra.mxu0 %v3006
        %4622 = vmatmul.f32.gmra.mxu0 %v1962
        %v4623 = vpop.f32.mrf.mxu0
        %v4624 = vadd.f32 %v4511, %v4623
        %4625 = vmatmul.f32.gmra.mxu0 %v1989
        %v4626 = vpop.f32.mrf.mxu0
        %v4627 = vadd.f32 %v4514, %v4626
        %4628 = vmatmul.f32.gmra.mxu0 %v2016
        %v4629 = vpop.f32.mrf.mxu0
        %v4630 = vadd.f32 %v4517, %v4629
        %4631 = vmatmul.f32.gmra.mxu0 %v2043
        %v4632 = vpop.f32.mrf.mxu0
        %v4633 = vadd.f32 %v4520, %v4632
        %4634 = vmatmul.f32.gmra.mxu0 %v2070
        %v4635 = vpop.f32.mrf.mxu0
        %v4636 = vadd.f32 %v4523, %v4635
        %4637 = vmatmul.f32.gmra.mxu0 %v2097
        %v4638 = vpop.f32.mrf.mxu0
        %v4639 = vadd.f32 %v4526, %v4638
        %4640 = vmatmul.f32.gmra.mxu0 %v2124
        %v4641 = vpop.f32.mrf.mxu0
        %v4642 = vadd.f32 %v4529, %v4641
        %4643 = vmatmul.f32.gmra.mxu0 %v2151
        %v4644 = vpop.f32.mrf.mxu0
        %v4645 = vadd.f32 %v4532, %v4644
        %4646 = vmatmul.f32.gmra.mxu0 %v2178
        %v4647 = vpop.f32.mrf.mxu0
        %v4648 = vadd.f32 %v4535, %v4647
        %4649 = vmatmul.f32.gmra.mxu0 %v2205
        %v4650 = vpop.f32.mrf.mxu0
        %v4651 = vadd.f32 %v4538, %v4650
        %4652 = vmatmul.f32.gmra.mxu0 %v2232
        %v4653 = vpop.f32.mrf.mxu0
        %v4654 = vadd.f32 %v4541, %v4653
        %4655 = vmatmul.f32.gmra.mxu0 %v2259
        %v4656 = vpop.f32.mrf.mxu0
        %v4657 = vadd.f32 %v4544, %v4656
        %4658 = vmatmul.f32.gmra.mxu0 %v2286
        %v4659 = vpop.f32.mrf.mxu0
        %v4660 = vadd.f32 %v4547, %v4659
        %4661 = vmatmul.f32.gmra.mxu0 %v2313
        %v4662 = vpop.f32.mrf.mxu0
        %v4663 = vadd.f32 %v4550, %v4662
        %4664 = vmatmul.f32.gmra.mxu0 %v2340
        %v4665 = vpop.f32.mrf.mxu0
        %v4666 = vadd.f32 %v4553, %v4665
        %4667 = vmatmul.f32.gmra.mxu0 %v2367
        %v4668 = vpop.f32.mrf.mxu0
        %v4669 = vadd.f32 %v4556, %v4668
        %4670 = vmatmul.f32.gmra.mxu0 %v2394
        %v4671 = vpop.f32.mrf.mxu0
        %v4672 = vadd.f32 %v4559, %v4671
        %4673 = vmatmul.f32.gmra.mxu0 %v2421
        %v4674 = vpop.f32.mrf.mxu0
        %v4675 = vadd.f32 %v4562, %v4674
        %4676 = vmatmul.f32.gmra.mxu0 %v2448
        %v4677 = vpop.f32.mrf.mxu0
        %v4678 = vadd.f32 %v4565, %v4677
        %4679 = vmatmul.f32.gmra.mxu0 %v2475
        %v4680 = vpop.f32.mrf.mxu0
        %v4681 = vadd.f32 %v4568, %v4680
        %4682 = vmatmul.f32.gmra.mxu0 %v2502
        %v4683 = vpop.f32.mrf.mxu0
        %v4684 = vadd.f32 %v4571, %v4683
        %4685 = vmatmul.f32.gmra.mxu0 %v2529
        %v4686 = vpop.f32.mrf.mxu0
        %v4687 = vadd.f32 %v4574, %v4686
        %4688 = vmatmul.f32.gmra.mxu0 %v2556
        %v4689 = vpop.f32.mrf.mxu0
        %v4690 = vadd.f32 %v4577, %v4689
        %4691 = vmatmul.f32.gmra.mxu0 %v2583
        %v4692 = vpop.f32.mrf.mxu0
        %v4693 = vadd.f32 %v4580, %v4692
        %4694 = vmatmul.f32.gmra.mxu0 %v2610
        %v4695 = vpop.f32.mrf.mxu0
        %v4696 = vadd.f32 %v4583, %v4695
        %4697 = vmatmul.f32.gmra.mxu0 %v2637
        %v4698 = vpop.f32.mrf.mxu0
        %v4699 = vadd.f32 %v4586, %v4698
        %4700 = vmatmul.f32.gmra.mxu0 %v2664
        %v4701 = vpop.f32.mrf.mxu0
        %v4702 = vadd.f32 %v4589, %v4701
        %4703 = vmatmul.f32.gmra.mxu0 %v2691
        %v4704 = vpop.f32.mrf.mxu0
        %v4705 = vadd.f32 %v4592, %v4704
        %4706 = vmatmul.f32.gmra.mxu0 %v2718
        %v4707 = vpop.f32.mrf.mxu0
        %v4708 = vadd.f32 %v4595, %v4707
        %4709 = vmatmul.f32.gmra.mxu0 %v2745
        %v4710 = vpop.f32.mrf.mxu0
        %v4711 = vadd.f32 %v4598, %v4710
        %4712 = vmatmul.f32.gmra.mxu0 %v2772
        %v4713 = vpop.f32.mrf.mxu0
        %v4714 = vadd.f32 %v4601, %v4713
        %4715 = vmatmul.f32.gmra.mxu0 %v2799
        %v4716 = vpop.f32.mrf.mxu0
        %v4717 = vadd.f32 %v4604, %v4716
        %4718 = vdwg.mxu0
        %4719 = vmatpush.msra.mxu0 %v3037
        %4720 = vmatpush.msra.mxu0 %v3036
        %4721 = vmatpush.msra.mxu0 %v3035
        %4722 = vmatpush.msra.mxu0 %v3034
        %4723 = vmatpush.msra.mxu0 %v3033
        %4724 = vmatpush.msra.mxu0 %v3032
        %4725 = vmatpush.msra.mxu0 %v3031
        %4726 = vmatpush.msra.mxu0 %v3030
        %4727 = vmatpush.msra.mxu0 %v3029
        %4728 = vmatpush.msra.mxu0 %v3028
        %4729 = vmatpush.msra.mxu0 %v3027
        %4730 = vmatpush.msra.mxu0 %v3026
        %4731 = vmatpush.msra.mxu0 %v3025
        %4732 = vmatpush.msra.mxu0 %v3024
        %4733 = vmatpush.msra.mxu0 %v3023
        %4734 = vmatpush.msra.mxu0 %v3022
        %4735 = vmatmul.f32.gmra.mxu0 %v1963
        %v4736 = vpop.f32.mrf.mxu0
        %v4737 = vadd.f32 %v4624, %v4736
        %4738 = vmatmul.f32.gmra.mxu0 %v1990
        %v4739 = vpop.f32.mrf.mxu0
        %v4740 = vadd.f32 %v4627, %v4739
        %4741 = vmatmul.f32.gmra.mxu0 %v2017
        %v4742 = vpop.f32.mrf.mxu0
        %v4743 = vadd.f32 %v4630, %v4742
        %4744 = vmatmul.f32.gmra.mxu0 %v2044
        %v4745 = vpop.f32.mrf.mxu0
        %v4746 = vadd.f32 %v4633, %v4745
        %4747 = vmatmul.f32.gmra.mxu0 %v2071
        %v4748 = vpop.f32.mrf.mxu0
        %v4749 = vadd.f32 %v4636, %v4748
        %4750 = vmatmul.f32.gmra.mxu0 %v2098
        %v4751 = vpop.f32.mrf.mxu0
        %v4752 = vadd.f32 %v4639, %v4751
        %4753 = vmatmul.f32.gmra.mxu0 %v2125
        %v4754 = vpop.f32.mrf.mxu0
        %v4755 = vadd.f32 %v4642, %v4754
        %4756 = vmatmul.f32.gmra.mxu0 %v2152
        %v4757 = vpop.f32.mrf.mxu0
        %v4758 = vadd.f32 %v4645, %v4757
        %4759 = vmatmul.f32.gmra.mxu0 %v2179
        %v4760 = vpop.f32.mrf.mxu0
        %v4761 = vadd.f32 %v4648, %v4760
        %4762 = vmatmul.f32.gmra.mxu0 %v2206
        %v4763 = vpop.f32.mrf.mxu0
        %v4764 = vadd.f32 %v4651, %v4763
        %4765 = vmatmul.f32.gmra.mxu0 %v2233
        %v4766 = vpop.f32.mrf.mxu0
        %v4767 = vadd.f32 %v4654, %v4766
        %4768 = vmatmul.f32.gmra.mxu0 %v2260
        %v4769 = vpop.f32.mrf.mxu0
        %v4770 = vadd.f32 %v4657, %v4769
        %4771 = vmatmul.f32.gmra.mxu0 %v2287
        %v4772 = vpop.f32.mrf.mxu0
        %v4773 = vadd.f32 %v4660, %v4772
        %4774 = vmatmul.f32.gmra.mxu0 %v2314
        %v4775 = vpop.f32.mrf.mxu0
        %v4776 = vadd.f32 %v4663, %v4775
        %4777 = vmatmul.f32.gmra.mxu0 %v2341
        %v4778 = vpop.f32.mrf.mxu0
        %v4779 = vadd.f32 %v4666, %v4778
        %4780 = vmatmul.f32.gmra.mxu0 %v2368
        %v4781 = vpop.f32.mrf.mxu0
        %v4782 = vadd.f32 %v4669, %v4781
        %4783 = vmatmul.f32.gmra.mxu0 %v2395
        %v4784 = vpop.f32.mrf.mxu0
        %v4785 = vadd.f32 %v4672, %v4784
        %4786 = vmatmul.f32.gmra.mxu0 %v2422
        %v4787 = vpop.f32.mrf.mxu0
        %v4788 = vadd.f32 %v4675, %v4787
        %4789 = vmatmul.f32.gmra.mxu0 %v2449
        %v4790 = vpop.f32.mrf.mxu0
        %v4791 = vadd.f32 %v4678, %v4790
        %4792 = vmatmul.f32.gmra.mxu0 %v2476
        %v4793 = vpop.f32.mrf.mxu0
        %v4794 = vadd.f32 %v4681, %v4793
        %4795 = vmatmul.f32.gmra.mxu0 %v2503
        %v4796 = vpop.f32.mrf.mxu0
        %v4797 = vadd.f32 %v4684, %v4796
        %4798 = vmatmul.f32.gmra.mxu0 %v2530
        %v4799 = vpop.f32.mrf.mxu0
        %v4800 = vadd.f32 %v4687, %v4799
        %4801 = vmatmul.f32.gmra.mxu0 %v2557
        %v4802 = vpop.f32.mrf.mxu0
        %v4803 = vadd.f32 %v4690, %v4802
        %4804 = vmatmul.f32.gmra.mxu0 %v2584
        %v4805 = vpop.f32.mrf.mxu0
        %v4806 = vadd.f32 %v4693, %v4805
        %4807 = vmatmul.f32.gmra.mxu0 %v2611
        %v4808 = vpop.f32.mrf.mxu0
        %v4809 = vadd.f32 %v4696, %v4808
        %4810 = vmatmul.f32.gmra.mxu0 %v2638
        %v4811 = vpop.f32.mrf.mxu0
        %v4812 = vadd.f32 %v4699, %v4811
        %4813 = vmatmul.f32.gmra.mxu0 %v2665
        %v4814 = vpop.f32.mrf.mxu0
        %v4815 = vadd.f32 %v4702, %v4814
        %4816 = vmatmul.f32.gmra.mxu0 %v2692
        %v4817 = vpop.f32.mrf.mxu0
        %v4818 = vadd.f32 %v4705, %v4817
        %4819 = vmatmul.f32.gmra.mxu0 %v2719
        %v4820 = vpop.f32.mrf.mxu0
        %v4821 = vadd.f32 %v4708, %v4820
        %4822 = vmatmul.f32.gmra.mxu0 %v2746
        %v4823 = vpop.f32.mrf.mxu0
        %v4824 = vadd.f32 %v4711, %v4823
        %4825 = vmatmul.f32.gmra.mxu0 %v2773
        %v4826 = vpop.f32.mrf.mxu0
        %v4827 = vadd.f32 %v4714, %v4826
        %4828 = vmatmul.f32.gmra.mxu0 %v2800
        %v4829 = vpop.f32.mrf.mxu0
        %v4830 = vadd.f32 %v4717, %v4829
        %4831 = vdwg.mxu0
        %4832 = vmatpush.msra.mxu0 %v3053
        %4833 = vmatpush.msra.mxu0 %v3052
        %4834 = vmatpush.msra.mxu0 %v3051
        %4835 = vmatpush.msra.mxu0 %v3050
        %4836 = vmatpush.msra.mxu0 %v3049
        %4837 = vmatpush.msra.mxu0 %v3048
        %4838 = vmatpush.msra.mxu0 %v3047
        %4839 = vmatpush.msra.mxu0 %v3046
        %4840 = vmatpush.msra.mxu0 %v3045
        %4841 = vmatpush.msra.mxu0 %v3044
        %4842 = vmatpush.msra.mxu0 %v3043
        %4843 = vmatpush.msra.mxu0 %v3042
        %4844 = vmatpush.msra.mxu0 %v3041
        %4845 = vmatpush.msra.mxu0 %v3040
        %4846 = vmatpush.msra.mxu0 %v3039
        %4847 = vmatpush.msra.mxu0 %v3038
        %4848 = vmatmul.f32.gmra.mxu0 %v1964
        %v4849 = vpop.f32.mrf.mxu0
        %v4850 = vadd.f32 %v4737, %v4849
        %4851 = vmatmul.f32.gmra.mxu0 %v1991
        %v4852 = vpop.f32.mrf.mxu0
        %v4853 = vadd.f32 %v4740, %v4852
        %4854 = vmatmul.f32.gmra.mxu0 %v2018
        %v4855 = vpop.f32.mrf.mxu0
        %v4856 = vadd.f32 %v4743, %v4855
        %4857 = vmatmul.f32.gmra.mxu0 %v2045
        %v4858 = vpop.f32.mrf.mxu0
        %v4859 = vadd.f32 %v4746, %v4858
        %4860 = vmatmul.f32.gmra.mxu0 %v2072
        %v4861 = vpop.f32.mrf.mxu0
        %v4862 = vadd.f32 %v4749, %v4861
        %4863 = vmatmul.f32.gmra.mxu0 %v2099
        %v4864 = vpop.f32.mrf.mxu0
        %v4865 = vadd.f32 %v4752, %v4864
        %4866 = vmatmul.f32.gmra.mxu0 %v2126
        %v4867 = vpop.f32.mrf.mxu0
        %v4868 = vadd.f32 %v4755, %v4867
        %4869 = vmatmul.f32.gmra.mxu0 %v2153
        %v4870 = vpop.f32.mrf.mxu0
        %v4871 = vadd.f32 %v4758, %v4870
        %4872 = vmatmul.f32.gmra.mxu0 %v2180
        %v4873 = vpop.f32.mrf.mxu0
        %v4874 = vadd.f32 %v4761, %v4873
        %4875 = vmatmul.f32.gmra.mxu0 %v2207
        %v4876 = vpop.f32.mrf.mxu0
        %v4877 = vadd.f32 %v4764, %v4876
        %4878 = vmatmul.f32.gmra.mxu0 %v2234
        %v4879 = vpop.f32.mrf.mxu0
        %v4880 = vadd.f32 %v4767, %v4879
        %4881 = vmatmul.f32.gmra.mxu0 %v2261
        %v4882 = vpop.f32.mrf.mxu0
        %v4883 = vadd.f32 %v4770, %v4882
        %4884 = vmatmul.f32.gmra.mxu0 %v2288
        %v4885 = vpop.f32.mrf.mxu0
        %v4886 = vadd.f32 %v4773, %v4885
        %4887 = vmatmul.f32.gmra.mxu0 %v2315
        %v4888 = vpop.f32.mrf.mxu0
        %v4889 = vadd.f32 %v4776, %v4888
        %4890 = vmatmul.f32.gmra.mxu0 %v2342
        %v4891 = vpop.f32.mrf.mxu0
        %v4892 = vadd.f32 %v4779, %v4891
        %4893 = vmatmul.f32.gmra.mxu0 %v2369
        %v4894 = vpop.f32.mrf.mxu0
        %v4895 = vadd.f32 %v4782, %v4894
        %4896 = vmatmul.f32.gmra.mxu0 %v2396
        %v4897 = vpop.f32.mrf.mxu0
        %v4898 = vadd.f32 %v4785, %v4897
        %4899 = vmatmul.f32.gmra.mxu0 %v2423
        %v4900 = vpop.f32.mrf.mxu0
        %v4901 = vadd.f32 %v4788, %v4900
        %4902 = vmatmul.f32.gmra.mxu0 %v2450
        %v4903 = vpop.f32.mrf.mxu0
        %v4904 = vadd.f32 %v4791, %v4903
        %4905 = vmatmul.f32.gmra.mxu0 %v2477
        %v4906 = vpop.f32.mrf.mxu0
        %v4907 = vadd.f32 %v4794, %v4906
        %4908 = vmatmul.f32.gmra.mxu0 %v2504
        %v4909 = vpop.f32.mrf.mxu0
        %v4910 = vadd.f32 %v4797, %v4909
        %4911 = vmatmul.f32.gmra.mxu0 %v2531
        %v4912 = vpop.f32.mrf.mxu0
        %v4913 = vadd.f32 %v4800, %v4912
        %4914 = vmatmul.f32.gmra.mxu0 %v2558
        %v4915 = vpop.f32.mrf.mxu0
        %v4916 = vadd.f32 %v4803, %v4915
        %4917 = vmatmul.f32.gmra.mxu0 %v2585
        %v4918 = vpop.f32.mrf.mxu0
        %v4919 = vadd.f32 %v4806, %v4918
        %4920 = vmatmul.f32.gmra.mxu0 %v2612
        %v4921 = vpop.f32.mrf.mxu0
        %v4922 = vadd.f32 %v4809, %v4921
        %4923 = vmatmul.f32.gmra.mxu0 %v2639
        %v4924 = vpop.f32.mrf.mxu0
        %v4925 = vadd.f32 %v4812, %v4924
        %4926 = vmatmul.f32.gmra.mxu0 %v2666
        %v4927 = vpop.f32.mrf.mxu0
        %v4928 = vadd.f32 %v4815, %v4927
        %4929 = vmatmul.f32.gmra.mxu0 %v2693
        %v4930 = vpop.f32.mrf.mxu0
        %v4931 = vadd.f32 %v4818, %v4930
        %4932 = vmatmul.f32.gmra.mxu0 %v2720
        %v4933 = vpop.f32.mrf.mxu0
        %v4934 = vadd.f32 %v4821, %v4933
        %4935 = vmatmul.f32.gmra.mxu0 %v2747
        %v4936 = vpop.f32.mrf.mxu0
        %v4937 = vadd.f32 %v4824, %v4936
        %4938 = vmatmul.f32.gmra.mxu0 %v2774
        %v4939 = vpop.f32.mrf.mxu0
        %v4940 = vadd.f32 %v4827, %v4939
        %4941 = vmatmul.f32.gmra.mxu0 %v2801
        %v4942 = vpop.f32.mrf.mxu0
        %v4943 = vadd.f32 %v4830, %v4942
        %4944 = vdwg.mxu0
        %4945 = vmatpush.msra.mxu0 %v3069
        %4946 = vmatpush.msra.mxu0 %v3068
        %4947 = vmatpush.msra.mxu0 %v3067
        %4948 = vmatpush.msra.mxu0 %v3066
        %4949 = vmatpush.msra.mxu0 %v3065
        %4950 = vmatpush.msra.mxu0 %v3064
        %4951 = vmatpush.msra.mxu0 %v3063
        %4952 = vmatpush.msra.mxu0 %v3062
        %4953 = vmatpush.msra.mxu0 %v3061
        %4954 = vmatpush.msra.mxu0 %v3060
        %4955 = vmatpush.msra.mxu0 %v3059
        %4956 = vmatpush.msra.mxu0 %v3058
        %4957 = vmatpush.msra.mxu0 %v3057
        %4958 = vmatpush.msra.mxu0 %v3056
        %4959 = vmatpush.msra.mxu0 %v3055
        %4960 = vmatpush.msra.mxu0 %v3054
        %4961 = vmatmul.f32.gmra.mxu0 %v1965
        %v4962 = vpop.f32.mrf.mxu0
        %v4963 = vadd.f32 %v4850, %v4962
        %4964 = vmatmul.f32.gmra.mxu0 %v1992
        %v4965 = vpop.f32.mrf.mxu0
        %v4966 = vadd.f32 %v4853, %v4965
        %4967 = vmatmul.f32.gmra.mxu0 %v2019
        %v4968 = vpop.f32.mrf.mxu0
        %v4969 = vadd.f32 %v4856, %v4968
        %4970 = vmatmul.f32.gmra.mxu0 %v2046
        %v4971 = vpop.f32.mrf.mxu0
        %v4972 = vadd.f32 %v4859, %v4971
        %4973 = vmatmul.f32.gmra.mxu0 %v2073
        %v4974 = vpop.f32.mrf.mxu0
        %v4975 = vadd.f32 %v4862, %v4974
        %4976 = vmatmul.f32.gmra.mxu0 %v2100
        %v4977 = vpop.f32.mrf.mxu0
        %v4978 = vadd.f32 %v4865, %v4977
        %4979 = vmatmul.f32.gmra.mxu0 %v2127
        %v4980 = vpop.f32.mrf.mxu0
        %v4981 = vadd.f32 %v4868, %v4980
        %4982 = vmatmul.f32.gmra.mxu0 %v2154
        %v4983 = vpop.f32.mrf.mxu0
        %v4984 = vadd.f32 %v4871, %v4983
        %4985 = vmatmul.f32.gmra.mxu0 %v2181
        %v4986 = vpop.f32.mrf.mxu0
        %v4987 = vadd.f32 %v4874, %v4986
        %4988 = vmatmul.f32.gmra.mxu0 %v2208
        %v4989 = vpop.f32.mrf.mxu0
        %v4990 = vadd.f32 %v4877, %v4989
        %4991 = vmatmul.f32.gmra.mxu0 %v2235
        %v4992 = vpop.f32.mrf.mxu0
        %v4993 = vadd.f32 %v4880, %v4992
        %4994 = vmatmul.f32.gmra.mxu0 %v2262
        %v4995 = vpop.f32.mrf.mxu0
        %v4996 = vadd.f32 %v4883, %v4995
        %4997 = vmatmul.f32.gmra.mxu0 %v2289
        %v4998 = vpop.f32.mrf.mxu0
        %v4999 = vadd.f32 %v4886, %v4998
        %5000 = vmatmul.f32.gmra.mxu0 %v2316
        %v5001 = vpop.f32.mrf.mxu0
        %v5002 = vadd.f32 %v4889, %v5001
        %5003 = vmatmul.f32.gmra.mxu0 %v2343
        %v5004 = vpop.f32.mrf.mxu0
        %v5005 = vadd.f32 %v4892, %v5004
        %5006 = vmatmul.f32.gmra.mxu0 %v2370
        %v5007 = vpop.f32.mrf.mxu0
        %v5008 = vadd.f32 %v4895, %v5007
        %5009 = vmatmul.f32.gmra.mxu0 %v2397
        %v5010 = vpop.f32.mrf.mxu0
        %v5011 = vadd.f32 %v4898, %v5010
        %5012 = vmatmul.f32.gmra.mxu0 %v2424
        %v5013 = vpop.f32.mrf.mxu0
        %v5014 = vadd.f32 %v4901, %v5013
        %5015 = vmatmul.f32.gmra.mxu0 %v2451
        %v5016 = vpop.f32.mrf.mxu0
        %v5017 = vadd.f32 %v4904, %v5016
        %5018 = vmatmul.f32.gmra.mxu0 %v2478
        %v5019 = vpop.f32.mrf.mxu0
        %v5020 = vadd.f32 %v4907, %v5019
        %5021 = vmatmul.f32.gmra.mxu0 %v2505
        %v5022 = vpop.f32.mrf.mxu0
        %v5023 = vadd.f32 %v4910, %v5022
        %5024 = vmatmul.f32.gmra.mxu0 %v2532
        %v5025 = vpop.f32.mrf.mxu0
        %v5026 = vadd.f32 %v4913, %v5025
        %5027 = vmatmul.f32.gmra.mxu0 %v2559
        %v5028 = vpop.f32.mrf.mxu0
        %v5029 = vadd.f32 %v4916, %v5028
        %5030 = vmatmul.f32.gmra.mxu0 %v2586
        %v5031 = vpop.f32.mrf.mxu0
        %v5032 = vadd.f32 %v4919, %v5031
        %5033 = vmatmul.f32.gmra.mxu0 %v2613
        %v5034 = vpop.f32.mrf.mxu0
        %v5035 = vadd.f32 %v4922, %v5034
        %5036 = vmatmul.f32.gmra.mxu0 %v2640
        %v5037 = vpop.f32.mrf.mxu0
        %v5038 = vadd.f32 %v4925, %v5037
        %5039 = vmatmul.f32.gmra.mxu0 %v2667
        %v5040 = vpop.f32.mrf.mxu0
        %v5041 = vadd.f32 %v4928, %v5040
        %5042 = vmatmul.f32.gmra.mxu0 %v2694
        %v5043 = vpop.f32.mrf.mxu0
        %v5044 = vadd.f32 %v4931, %v5043
        %5045 = vmatmul.f32.gmra.mxu0 %v2721
        %v5046 = vpop.f32.mrf.mxu0
        %v5047 = vadd.f32 %v4934, %v5046
        %5048 = vmatmul.f32.gmra.mxu0 %v2748
        %v5049 = vpop.f32.mrf.mxu0
        %v5050 = vadd.f32 %v4937, %v5049
        %5051 = vmatmul.f32.gmra.mxu0 %v2775
        %v5052 = vpop.f32.mrf.mxu0
        %v5053 = vadd.f32 %v4940, %v5052
        %5054 = vmatmul.f32.gmra.mxu0 %v2802
        %v5055 = vpop.f32.mrf.mxu0
        %v5056 = vadd.f32 %v4943, %v5055
        %5057 = vdwg.mxu0
        %5058 = vmatpush.msra.mxu0 %v3085
        %5059 = vmatpush.msra.mxu0 %v3084
        %5060 = vmatpush.msra.mxu0 %v3083
        %5061 = vmatpush.msra.mxu0 %v3082
        %5062 = vmatpush.msra.mxu0 %v3081
        %5063 = vmatpush.msra.mxu0 %v3080
        %5064 = vmatpush.msra.mxu0 %v3079
        %5065 = vmatpush.msra.mxu0 %v3078
        %5066 = vmatpush.msra.mxu0 %v3077
        %5067 = vmatpush.msra.mxu0 %v3076
        %5068 = vmatpush.msra.mxu0 %v3075
        %5069 = vmatpush.msra.mxu0 %v3074
        %5070 = vmatpush.msra.mxu0 %v3073
        %5071 = vmatpush.msra.mxu0 %v3072
        %5072 = vmatpush.msra.mxu0 %v3071
        %5073 = vmatpush.msra.mxu0 %v3070
        %5074 = vmatmul.f32.gmra.mxu0 %v1966
        %v5075 = vpop.f32.mrf.mxu0
        %v5076 = vadd.f32 %v4963, %v5075
        %5077 = vmatmul.f32.gmra.mxu0 %v1993
        %v5078 = vpop.f32.mrf.mxu0
        %v5079 = vadd.f32 %v4966, %v5078
        %5080 = vmatmul.f32.gmra.mxu0 %v2020
        %v5081 = vpop.f32.mrf.mxu0
        %v5082 = vadd.f32 %v4969, %v5081
        %5083 = vmatmul.f32.gmra.mxu0 %v2047
        %v5084 = vpop.f32.mrf.mxu0
        %v5085 = vadd.f32 %v4972, %v5084
        %5086 = vmatmul.f32.gmra.mxu0 %v2074
        %v5087 = vpop.f32.mrf.mxu0
        %v5088 = vadd.f32 %v4975, %v5087
        %5089 = vmatmul.f32.gmra.mxu0 %v2101
        %v5090 = vpop.f32.mrf.mxu0
        %v5091 = vadd.f32 %v4978, %v5090
        %5092 = vmatmul.f32.gmra.mxu0 %v2128
        %v5093 = vpop.f32.mrf.mxu0
        %v5094 = vadd.f32 %v4981, %v5093
        %5095 = vmatmul.f32.gmra.mxu0 %v2155
        %v5096 = vpop.f32.mrf.mxu0
        %v5097 = vadd.f32 %v4984, %v5096
        %5098 = vmatmul.f32.gmra.mxu0 %v2182
        %v5099 = vpop.f32.mrf.mxu0
        %v5100 = vadd.f32 %v4987, %v5099
        %5101 = vmatmul.f32.gmra.mxu0 %v2209
        %v5102 = vpop.f32.mrf.mxu0
        %v5103 = vadd.f32 %v4990, %v5102
        %5104 = vmatmul.f32.gmra.mxu0 %v2236
        %v5105 = vpop.f32.mrf.mxu0
        %v5106 = vadd.f32 %v4993, %v5105
        %5107 = vmatmul.f32.gmra.mxu0 %v2263
        %v5108 = vpop.f32.mrf.mxu0
        %v5109 = vadd.f32 %v4996, %v5108
        %5110 = vmatmul.f32.gmra.mxu0 %v2290
        %v5111 = vpop.f32.mrf.mxu0
        %v5112 = vadd.f32 %v4999, %v5111
        %5113 = vmatmul.f32.gmra.mxu0 %v2317
        %v5114 = vpop.f32.mrf.mxu0
        %v5115 = vadd.f32 %v5002, %v5114
        %5116 = vmatmul.f32.gmra.mxu0 %v2344
        %v5117 = vpop.f32.mrf.mxu0
        %v5118 = vadd.f32 %v5005, %v5117
        %5119 = vmatmul.f32.gmra.mxu0 %v2371
        %v5120 = vpop.f32.mrf.mxu0
        %v5121 = vadd.f32 %v5008, %v5120
        %5122 = vmatmul.f32.gmra.mxu0 %v2398
        %v5123 = vpop.f32.mrf.mxu0
        %v5124 = vadd.f32 %v5011, %v5123
        %5125 = vmatmul.f32.gmra.mxu0 %v2425
        %v5126 = vpop.f32.mrf.mxu0
        %v5127 = vadd.f32 %v5014, %v5126
        %5128 = vmatmul.f32.gmra.mxu0 %v2452
        %v5129 = vpop.f32.mrf.mxu0
        %v5130 = vadd.f32 %v5017, %v5129
        %5131 = vmatmul.f32.gmra.mxu0 %v2479
        %v5132 = vpop.f32.mrf.mxu0
        %v5133 = vadd.f32 %v5020, %v5132
        %5134 = vmatmul.f32.gmra.mxu0 %v2506
        %v5135 = vpop.f32.mrf.mxu0
        %v5136 = vadd.f32 %v5023, %v5135
        %5137 = vmatmul.f32.gmra.mxu0 %v2533
        %v5138 = vpop.f32.mrf.mxu0
        %v5139 = vadd.f32 %v5026, %v5138
        %5140 = vmatmul.f32.gmra.mxu0 %v2560
        %v5141 = vpop.f32.mrf.mxu0
        %v5142 = vadd.f32 %v5029, %v5141
        %5143 = vmatmul.f32.gmra.mxu0 %v2587
        %v5144 = vpop.f32.mrf.mxu0
        %v5145 = vadd.f32 %v5032, %v5144
        %5146 = vmatmul.f32.gmra.mxu0 %v2614
        %v5147 = vpop.f32.mrf.mxu0
        %v5148 = vadd.f32 %v5035, %v5147
        %5149 = vmatmul.f32.gmra.mxu0 %v2641
        %v5150 = vpop.f32.mrf.mxu0
        %v5151 = vadd.f32 %v5038, %v5150
        %5152 = vmatmul.f32.gmra.mxu0 %v2668
        %v5153 = vpop.f32.mrf.mxu0
        %v5154 = vadd.f32 %v5041, %v5153
        %5155 = vmatmul.f32.gmra.mxu0 %v2695
        %v5156 = vpop.f32.mrf.mxu0
        %v5157 = vadd.f32 %v5044, %v5156
        %5158 = vmatmul.f32.gmra.mxu0 %v2722
        %v5159 = vpop.f32.mrf.mxu0
        %v5160 = vadd.f32 %v5047, %v5159
        %5161 = vmatmul.f32.gmra.mxu0 %v2749
        %v5162 = vpop.f32.mrf.mxu0
        %v5163 = vadd.f32 %v5050, %v5162
        %5164 = vmatmul.f32.gmra.mxu0 %v2776
        %v5165 = vpop.f32.mrf.mxu0
        %v5166 = vadd.f32 %v5053, %v5165
        %5167 = vmatmul.f32.gmra.mxu0 %v2803
        %v5168 = vpop.f32.mrf.mxu0
        %v5169 = vadd.f32 %v5056, %v5168
        %5170 = vdwg.mxu0
        %5171 = vmatpush.msra.mxu0 %v3101
        %5172 = vmatpush.msra.mxu0 %v3100
        %5173 = vmatpush.msra.mxu0 %v3099
        %5174 = vmatpush.msra.mxu0 %v3098
        %5175 = vmatpush.msra.mxu0 %v3097
        %5176 = vmatpush.msra.mxu0 %v3096
        %5177 = vmatpush.msra.mxu0 %v3095
        %5178 = vmatpush.msra.mxu0 %v3094
        %5179 = vmatpush.msra.mxu0 %v3093
        %5180 = vmatpush.msra.mxu0 %v3092
        %5181 = vmatpush.msra.mxu0 %v3091
        %5182 = vmatpush.msra.mxu0 %v3090
        %5183 = vmatpush.msra.mxu0 %v3089
        %5184 = vmatpush.msra.mxu0 %v3088
        %5185 = vmatpush.msra.mxu0 %v3087
        %5186 = vmatpush.msra.mxu0 %v3086
        %5187 = vmatmul.f32.gmra.mxu0 %v1967
        %v5188 = vpop.f32.mrf.mxu0
        %v5189 = vadd.f32 %v5076, %v5188
        %5190 = vmatmul.f32.gmra.mxu0 %v1994
        %v5191 = vpop.f32.mrf.mxu0
        %v5192 = vadd.f32 %v5079, %v5191
        %5193 = vmatmul.f32.gmra.mxu0 %v2021
        %v5194 = vpop.f32.mrf.mxu0
        %v5195 = vadd.f32 %v5082, %v5194
        %5196 = vmatmul.f32.gmra.mxu0 %v2048
        %v5197 = vpop.f32.mrf.mxu0
        %v5198 = vadd.f32 %v5085, %v5197
        %5199 = vmatmul.f32.gmra.mxu0 %v2075
        %v5200 = vpop.f32.mrf.mxu0
        %v5201 = vadd.f32 %v5088, %v5200
        %5202 = vmatmul.f32.gmra.mxu0 %v2102
        %v5203 = vpop.f32.mrf.mxu0
        %v5204 = vadd.f32 %v5091, %v5203
        %5205 = vmatmul.f32.gmra.mxu0 %v2129
        %v5206 = vpop.f32.mrf.mxu0
        %v5207 = vadd.f32 %v5094, %v5206
        %5208 = vmatmul.f32.gmra.mxu0 %v2156
        %v5209 = vpop.f32.mrf.mxu0
        %v5210 = vadd.f32 %v5097, %v5209
        %5211 = vmatmul.f32.gmra.mxu0 %v2183
        %v5212 = vpop.f32.mrf.mxu0
        %v5213 = vadd.f32 %v5100, %v5212
        %5214 = vmatmul.f32.gmra.mxu0 %v2210
        %v5215 = vpop.f32.mrf.mxu0
        %v5216 = vadd.f32 %v5103, %v5215
        %5217 = vmatmul.f32.gmra.mxu0 %v2237
        %v5218 = vpop.f32.mrf.mxu0
        %v5219 = vadd.f32 %v5106, %v5218
        %5220 = vmatmul.f32.gmra.mxu0 %v2264
        %v5221 = vpop.f32.mrf.mxu0
        %v5222 = vadd.f32 %v5109, %v5221
        %5223 = vmatmul.f32.gmra.mxu0 %v2291
        %v5224 = vpop.f32.mrf.mxu0
        %v5225 = vadd.f32 %v5112, %v5224
        %5226 = vmatmul.f32.gmra.mxu0 %v2318
        %v5227 = vpop.f32.mrf.mxu0
        %v5228 = vadd.f32 %v5115, %v5227
        %5229 = vmatmul.f32.gmra.mxu0 %v2345
        %v5230 = vpop.f32.mrf.mxu0
        %v5231 = vadd.f32 %v5118, %v5230
        %5232 = vmatmul.f32.gmra.mxu0 %v2372
        %v5233 = vpop.f32.mrf.mxu0
        %v5234 = vadd.f32 %v5121, %v5233
        %5235 = vmatmul.f32.gmra.mxu0 %v2399
        %v5236 = vpop.f32.mrf.mxu0
        %v5237 = vadd.f32 %v5124, %v5236
        %5238 = vmatmul.f32.gmra.mxu0 %v2426
        %v5239 = vpop.f32.mrf.mxu0
        %v5240 = vadd.f32 %v5127, %v5239
        %5241 = vmatmul.f32.gmra.mxu0 %v2453
        %v5242 = vpop.f32.mrf.mxu0
        %v5243 = vadd.f32 %v5130, %v5242
        %5244 = vmatmul.f32.gmra.mxu0 %v2480
        %v5245 = vpop.f32.mrf.mxu0
        %v5246 = vadd.f32 %v5133, %v5245
        %5247 = vmatmul.f32.gmra.mxu0 %v2507
        %v5248 = vpop.f32.mrf.mxu0
        %v5249 = vadd.f32 %v5136, %v5248
        %5250 = vmatmul.f32.gmra.mxu0 %v2534
        %v5251 = vpop.f32.mrf.mxu0
        %v5252 = vadd.f32 %v5139, %v5251
        %5253 = vmatmul.f32.gmra.mxu0 %v2561
        %v5254 = vpop.f32.mrf.mxu0
        %v5255 = vadd.f32 %v5142, %v5254
        %5256 = vmatmul.f32.gmra.mxu0 %v2588
        %v5257 = vpop.f32.mrf.mxu0
        %v5258 = vadd.f32 %v5145, %v5257
        %5259 = vmatmul.f32.gmra.mxu0 %v2615
        %v5260 = vpop.f32.mrf.mxu0
        %v5261 = vadd.f32 %v5148, %v5260
        %5262 = vmatmul.f32.gmra.mxu0 %v2642
        %v5263 = vpop.f32.mrf.mxu0
        %v5264 = vadd.f32 %v5151, %v5263
        %5265 = vmatmul.f32.gmra.mxu0 %v2669
        %v5266 = vpop.f32.mrf.mxu0
        %v5267 = vadd.f32 %v5154, %v5266
        %5268 = vmatmul.f32.gmra.mxu0 %v2696
        %v5269 = vpop.f32.mrf.mxu0
        %v5270 = vadd.f32 %v5157, %v5269
        %5271 = vmatmul.f32.gmra.mxu0 %v2723
        %v5272 = vpop.f32.mrf.mxu0
        %v5273 = vadd.f32 %v5160, %v5272
        %5274 = vmatmul.f32.gmra.mxu0 %v2750
        %v5275 = vpop.f32.mrf.mxu0
        %v5276 = vadd.f32 %v5163, %v5275
        %5277 = vmatmul.f32.gmra.mxu0 %v2777
        %v5278 = vpop.f32.mrf.mxu0
        %v5279 = vadd.f32 %v5166, %v5278
        %5280 = vmatmul.f32.gmra.mxu0 %v2804
        %v5281 = vpop.f32.mrf.mxu0
        %v5282 = vadd.f32 %v5169, %v5281
        %5283 = vdwg.mxu0
        %5284 = vmatpush.msra.mxu0 %v3117
        %5285 = vmatpush.msra.mxu0 %v3116
        %5286 = vmatpush.msra.mxu0 %v3115
        %5287 = vmatpush.msra.mxu0 %v3114
        %5288 = vmatpush.msra.mxu0 %v3113
        %5289 = vmatpush.msra.mxu0 %v3112
        %5290 = vmatpush.msra.mxu0 %v3111
        %5291 = vmatpush.msra.mxu0 %v3110
        %5292 = vmatpush.msra.mxu0 %v3109
        %5293 = vmatpush.msra.mxu0 %v3108
        %5294 = vmatpush.msra.mxu0 %v3107
        %5295 = vmatpush.msra.mxu0 %v3106
        %5296 = vmatpush.msra.mxu0 %v3105
        %5297 = vmatpush.msra.mxu0 %v3104
        %5298 = vmatpush.msra.mxu0 %v3103
        %5299 = vmatpush.msra.mxu0 %v3102
        %5300 = vmatmul.f32.gmra.mxu0 %v1968
        %v5301 = vpop.f32.mrf.mxu0
        %v5302 = vadd.f32 %v5189, %v5301
        %5303 = vmatmul.f32.gmra.mxu0 %v1995
        %v5304 = vpop.f32.mrf.mxu0
        %v5305 = vadd.f32 %v5192, %v5304
        %5306 = vmatmul.f32.gmra.mxu0 %v2022
        %v5307 = vpop.f32.mrf.mxu0
        %v5308 = vadd.f32 %v5195, %v5307
        %5309 = vmatmul.f32.gmra.mxu0 %v2049
        %v5310 = vpop.f32.mrf.mxu0
        %v5311 = vadd.f32 %v5198, %v5310
        %5312 = vmatmul.f32.gmra.mxu0 %v2076
        %v5313 = vpop.f32.mrf.mxu0
        %v5314 = vadd.f32 %v5201, %v5313
        %5315 = vmatmul.f32.gmra.mxu0 %v2103
        %v5316 = vpop.f32.mrf.mxu0
        %v5317 = vadd.f32 %v5204, %v5316
        %5318 = vmatmul.f32.gmra.mxu0 %v2130
        %v5319 = vpop.f32.mrf.mxu0
        %v5320 = vadd.f32 %v5207, %v5319
        %5321 = vmatmul.f32.gmra.mxu0 %v2157
        %v5322 = vpop.f32.mrf.mxu0
        %v5323 = vadd.f32 %v5210, %v5322
        %5324 = vmatmul.f32.gmra.mxu0 %v2184
        %v5325 = vpop.f32.mrf.mxu0
        %v5326 = vadd.f32 %v5213, %v5325
        %5327 = vmatmul.f32.gmra.mxu0 %v2211
        %v5328 = vpop.f32.mrf.mxu0
        %v5329 = vadd.f32 %v5216, %v5328
        %5330 = vmatmul.f32.gmra.mxu0 %v2238
        %v5331 = vpop.f32.mrf.mxu0
        %v5332 = vadd.f32 %v5219, %v5331
        %5333 = vmatmul.f32.gmra.mxu0 %v2265
        %v5334 = vpop.f32.mrf.mxu0
        %v5335 = vadd.f32 %v5222, %v5334
        %5336 = vmatmul.f32.gmra.mxu0 %v2292
        %v5337 = vpop.f32.mrf.mxu0
        %v5338 = vadd.f32 %v5225, %v5337
        %5339 = vmatmul.f32.gmra.mxu0 %v2319
        %v5340 = vpop.f32.mrf.mxu0
        %v5341 = vadd.f32 %v5228, %v5340
        %5342 = vmatmul.f32.gmra.mxu0 %v2346
        %v5343 = vpop.f32.mrf.mxu0
        %v5344 = vadd.f32 %v5231, %v5343
        %5345 = vmatmul.f32.gmra.mxu0 %v2373
        %v5346 = vpop.f32.mrf.mxu0
        %v5347 = vadd.f32 %v5234, %v5346
        %5348 = vmatmul.f32.gmra.mxu0 %v2400
        %v5349 = vpop.f32.mrf.mxu0
        %v5350 = vadd.f32 %v5237, %v5349
        %5351 = vmatmul.f32.gmra.mxu0 %v2427
        %v5352 = vpop.f32.mrf.mxu0
        %v5353 = vadd.f32 %v5240, %v5352
        %5354 = vmatmul.f32.gmra.mxu0 %v2454
        %v5355 = vpop.f32.mrf.mxu0
        %v5356 = vadd.f32 %v5243, %v5355
        %5357 = vmatmul.f32.gmra.mxu0 %v2481
        %v5358 = vpop.f32.mrf.mxu0
        %v5359 = vadd.f32 %v5246, %v5358
        %5360 = vmatmul.f32.gmra.mxu0 %v2508
        %v5361 = vpop.f32.mrf.mxu0
        %v5362 = vadd.f32 %v5249, %v5361
        %5363 = vmatmul.f32.gmra.mxu0 %v2535
        %v5364 = vpop.f32.mrf.mxu0
        %v5365 = vadd.f32 %v5252, %v5364
        %5366 = vmatmul.f32.gmra.mxu0 %v2562
        %v5367 = vpop.f32.mrf.mxu0
        %v5368 = vadd.f32 %v5255, %v5367
        %5369 = vmatmul.f32.gmra.mxu0 %v2589
        %v5370 = vpop.f32.mrf.mxu0
        %v5371 = vadd.f32 %v5258, %v5370
        %5372 = vmatmul.f32.gmra.mxu0 %v2616
        %v5373 = vpop.f32.mrf.mxu0
        %v5374 = vadd.f32 %v5261, %v5373
        %5375 = vmatmul.f32.gmra.mxu0 %v2643
        %v5376 = vpop.f32.mrf.mxu0
        %v5377 = vadd.f32 %v5264, %v5376
        %5378 = vmatmul.f32.gmra.mxu0 %v2670
        %v5379 = vpop.f32.mrf.mxu0
        %v5380 = vadd.f32 %v5267, %v5379
        %5381 = vmatmul.f32.gmra.mxu0 %v2697
        %v5382 = vpop.f32.mrf.mxu0
        %v5383 = vadd.f32 %v5270, %v5382
        %5384 = vmatmul.f32.gmra.mxu0 %v2724
        %v5385 = vpop.f32.mrf.mxu0
        %v5386 = vadd.f32 %v5273, %v5385
        %5387 = vmatmul.f32.gmra.mxu0 %v2751
        %v5388 = vpop.f32.mrf.mxu0
        %v5389 = vadd.f32 %v5276, %v5388
        %5390 = vmatmul.f32.gmra.mxu0 %v2778
        %v5391 = vpop.f32.mrf.mxu0
        %v5392 = vadd.f32 %v5279, %v5391
        %5393 = vmatmul.f32.gmra.mxu0 %v2805
        %v5394 = vpop.f32.mrf.mxu0
        %v5395 = vadd.f32 %v5282, %v5394
        %5396 = vdwg.mxu0
        %5397 = vmatpush.msra.mxu0 %v3133
        %5398 = vmatpush.msra.mxu0 %v3132
        %5399 = vmatpush.msra.mxu0 %v3131
        %5400 = vmatpush.msra.mxu0 %v3130
        %5401 = vmatpush.msra.mxu0 %v3129
        %5402 = vmatpush.msra.mxu0 %v3128
        %5403 = vmatpush.msra.mxu0 %v3127
        %5404 = vmatpush.msra.mxu0 %v3126
        %5405 = vmatpush.msra.mxu0 %v3125
        %5406 = vmatpush.msra.mxu0 %v3124
        %5407 = vmatpush.msra.mxu0 %v3123
        %5408 = vmatpush.msra.mxu0 %v3122
        %5409 = vmatpush.msra.mxu0 %v3121
        %5410 = vmatpush.msra.mxu0 %v3120
        %5411 = vmatpush.msra.mxu0 %v3119
        %5412 = vmatpush.msra.mxu0 %v3118
        %5413 = vmatmul.f32.gmra.mxu0 %v1969
        %v5414 = vpop.f32.mrf.mxu0
        %v5415 = vadd.f32 %v5302, %v5414
        %5416 = vmatmul.f32.gmra.mxu0 %v1996
        %v5417 = vpop.f32.mrf.mxu0
        %v5418 = vadd.f32 %v5305, %v5417
        %5419 = vmatmul.f32.gmra.mxu0 %v2023
        %v5420 = vpop.f32.mrf.mxu0
        %v5421 = vadd.f32 %v5308, %v5420
        %5422 = vmatmul.f32.gmra.mxu0 %v2050
        %v5423 = vpop.f32.mrf.mxu0
        %v5424 = vadd.f32 %v5311, %v5423
        %5425 = vmatmul.f32.gmra.mxu0 %v2077
        %v5426 = vpop.f32.mrf.mxu0
        %v5427 = vadd.f32 %v5314, %v5426
        %5428 = vmatmul.f32.gmra.mxu0 %v2104
        %v5429 = vpop.f32.mrf.mxu0
        %v5430 = vadd.f32 %v5317, %v5429
        %5431 = vmatmul.f32.gmra.mxu0 %v2131
        %v5432 = vpop.f32.mrf.mxu0
        %v5433 = vadd.f32 %v5320, %v5432
        %5434 = vmatmul.f32.gmra.mxu0 %v2158
        %v5435 = vpop.f32.mrf.mxu0
        %v5436 = vadd.f32 %v5323, %v5435
        %5437 = vmatmul.f32.gmra.mxu0 %v2185
        %v5438 = vpop.f32.mrf.mxu0
        %v5439 = vadd.f32 %v5326, %v5438
        %5440 = vmatmul.f32.gmra.mxu0 %v2212
        %v5441 = vpop.f32.mrf.mxu0
        %v5442 = vadd.f32 %v5329, %v5441
        %5443 = vmatmul.f32.gmra.mxu0 %v2239
        %v5444 = vpop.f32.mrf.mxu0
        %v5445 = vadd.f32 %v5332, %v5444
        %5446 = vmatmul.f32.gmra.mxu0 %v2266
        %v5447 = vpop.f32.mrf.mxu0
        %v5448 = vadd.f32 %v5335, %v5447
        %5449 = vmatmul.f32.gmra.mxu0 %v2293
        %v5450 = vpop.f32.mrf.mxu0
        %v5451 = vadd.f32 %v5338, %v5450
        %5452 = vmatmul.f32.gmra.mxu0 %v2320
        %v5453 = vpop.f32.mrf.mxu0
        %v5454 = vadd.f32 %v5341, %v5453
        %5455 = vmatmul.f32.gmra.mxu0 %v2347
        %v5456 = vpop.f32.mrf.mxu0
        %v5457 = vadd.f32 %v5344, %v5456
        %5458 = vmatmul.f32.gmra.mxu0 %v2374
        %v5459 = vpop.f32.mrf.mxu0
        %v5460 = vadd.f32 %v5347, %v5459
        %5461 = vmatmul.f32.gmra.mxu0 %v2401
        %v5462 = vpop.f32.mrf.mxu0
        %v5463 = vadd.f32 %v5350, %v5462
        %5464 = vmatmul.f32.gmra.mxu0 %v2428
        %v5465 = vpop.f32.mrf.mxu0
        %v5466 = vadd.f32 %v5353, %v5465
        %5467 = vmatmul.f32.gmra.mxu0 %v2455
        %v5468 = vpop.f32.mrf.mxu0
        %v5469 = vadd.f32 %v5356, %v5468
        %5470 = vmatmul.f32.gmra.mxu0 %v2482
        %v5471 = vpop.f32.mrf.mxu0
        %v5472 = vadd.f32 %v5359, %v5471
        %5473 = vmatmul.f32.gmra.mxu0 %v2509
        %v5474 = vpop.f32.mrf.mxu0
        %v5475 = vadd.f32 %v5362, %v5474
        %5476 = vmatmul.f32.gmra.mxu0 %v2536
        %v5477 = vpop.f32.mrf.mxu0
        %v5478 = vadd.f32 %v5365, %v5477
        %5479 = vmatmul.f32.gmra.mxu0 %v2563
        %v5480 = vpop.f32.mrf.mxu0
        %v5481 = vadd.f32 %v5368, %v5480
        %5482 = vmatmul.f32.gmra.mxu0 %v2590
        %v5483 = vpop.f32.mrf.mxu0
        %v5484 = vadd.f32 %v5371, %v5483
        %5485 = vmatmul.f32.gmra.mxu0 %v2617
        %v5486 = vpop.f32.mrf.mxu0
        %v5487 = vadd.f32 %v5374, %v5486
        %5488 = vmatmul.f32.gmra.mxu0 %v2644
        %v5489 = vpop.f32.mrf.mxu0
        %v5490 = vadd.f32 %v5377, %v5489
        %5491 = vmatmul.f32.gmra.mxu0 %v2671
        %v5492 = vpop.f32.mrf.mxu0
        %v5493 = vadd.f32 %v5380, %v5492
        %5494 = vmatmul.f32.gmra.mxu0 %v2698
        %v5495 = vpop.f32.mrf.mxu0
        %v5496 = vadd.f32 %v5383, %v5495
        %5497 = vmatmul.f32.gmra.mxu0 %v2725
        %v5498 = vpop.f32.mrf.mxu0
        %v5499 = vadd.f32 %v5386, %v5498
        %5500 = vmatmul.f32.gmra.mxu0 %v2752
        %v5501 = vpop.f32.mrf.mxu0
        %v5502 = vadd.f32 %v5389, %v5501
        %5503 = vmatmul.f32.gmra.mxu0 %v2779
        %v5504 = vpop.f32.mrf.mxu0
        %v5505 = vadd.f32 %v5392, %v5504
        %5506 = vmatmul.f32.gmra.mxu0 %v2806
        %v5507 = vpop.f32.mrf.mxu0
        %v5508 = vadd.f32 %v5395, %v5507
        %5509 = vdwg.mxu0
        %5510 = vmatpush.msra.mxu0 %v3149
        %5511 = vmatpush.msra.mxu0 %v3148
        %5512 = vmatpush.msra.mxu0 %v3147
        %5513 = vmatpush.msra.mxu0 %v3146
        %5514 = vmatpush.msra.mxu0 %v3145
        %5515 = vmatpush.msra.mxu0 %v3144
        %5516 = vmatpush.msra.mxu0 %v3143
        %5517 = vmatpush.msra.mxu0 %v3142
        %5518 = vmatpush.msra.mxu0 %v3141
        %5519 = vmatpush.msra.mxu0 %v3140
        %5520 = vmatpush.msra.mxu0 %v3139
        %5521 = vmatpush.msra.mxu0 %v3138
        %5522 = vmatpush.msra.mxu0 %v3137
        %5523 = vmatpush.msra.mxu0 %v3136
        %5524 = vmatpush.msra.mxu0 %v3135
        %5525 = vmatpush.msra.mxu0 %v3134
        %5526 = vmatmul.f32.gmra.mxu0 %v1970
        %v5527 = vpop.f32.mrf.mxu0
        %v5528 = vadd.f32 %v5415, %v5527
        %5529 = vmatmul.f32.gmra.mxu0 %v1997
        %v5530 = vpop.f32.mrf.mxu0
        %v5531 = vadd.f32 %v5418, %v5530
        %5532 = vmatmul.f32.gmra.mxu0 %v2024
        %v5533 = vpop.f32.mrf.mxu0
        %v5534 = vadd.f32 %v5421, %v5533
        %5535 = vmatmul.f32.gmra.mxu0 %v2051
        %v5536 = vpop.f32.mrf.mxu0
        %v5537 = vadd.f32 %v5424, %v5536
        %5538 = vmatmul.f32.gmra.mxu0 %v2078
        %v5539 = vpop.f32.mrf.mxu0
        %v5540 = vadd.f32 %v5427, %v5539
        %5541 = vmatmul.f32.gmra.mxu0 %v2105
        %v5542 = vpop.f32.mrf.mxu0
        %v5543 = vadd.f32 %v5430, %v5542
        %5544 = vmatmul.f32.gmra.mxu0 %v2132
        %v5545 = vpop.f32.mrf.mxu0
        %v5546 = vadd.f32 %v5433, %v5545
        %5547 = vmatmul.f32.gmra.mxu0 %v2159
        %v5548 = vpop.f32.mrf.mxu0
        %v5549 = vadd.f32 %v5436, %v5548
        %5550 = vmatmul.f32.gmra.mxu0 %v2186
        %v5551 = vpop.f32.mrf.mxu0
        %v5552 = vadd.f32 %v5439, %v5551
        %5553 = vmatmul.f32.gmra.mxu0 %v2213
        %v5554 = vpop.f32.mrf.mxu0
        %v5555 = vadd.f32 %v5442, %v5554
        %5556 = vmatmul.f32.gmra.mxu0 %v2240
        %v5557 = vpop.f32.mrf.mxu0
        %v5558 = vadd.f32 %v5445, %v5557
        %5559 = vmatmul.f32.gmra.mxu0 %v2267
        %v5560 = vpop.f32.mrf.mxu0
        %v5561 = vadd.f32 %v5448, %v5560
        %5562 = vmatmul.f32.gmra.mxu0 %v2294
        %v5563 = vpop.f32.mrf.mxu0
        %v5564 = vadd.f32 %v5451, %v5563
        %5565 = vmatmul.f32.gmra.mxu0 %v2321
        %v5566 = vpop.f32.mrf.mxu0
        %v5567 = vadd.f32 %v5454, %v5566
        %5568 = vmatmul.f32.gmra.mxu0 %v2348
        %v5569 = vpop.f32.mrf.mxu0
        %v5570 = vadd.f32 %v5457, %v5569
        %5571 = vmatmul.f32.gmra.mxu0 %v2375
        %v5572 = vpop.f32.mrf.mxu0
        %v5573 = vadd.f32 %v5460, %v5572
        %5574 = vmatmul.f32.gmra.mxu0 %v2402
        %v5575 = vpop.f32.mrf.mxu0
        %v5576 = vadd.f32 %v5463, %v5575
        %5577 = vmatmul.f32.gmra.mxu0 %v2429
        %v5578 = vpop.f32.mrf.mxu0
        %v5579 = vadd.f32 %v5466, %v5578
        %5580 = vmatmul.f32.gmra.mxu0 %v2456
        %v5581 = vpop.f32.mrf.mxu0
        %v5582 = vadd.f32 %v5469, %v5581
        %5583 = vmatmul.f32.gmra.mxu0 %v2483
        %v5584 = vpop.f32.mrf.mxu0
        %v5585 = vadd.f32 %v5472, %v5584
        %5586 = vmatmul.f32.gmra.mxu0 %v2510
        %v5587 = vpop.f32.mrf.mxu0
        %v5588 = vadd.f32 %v5475, %v5587
        %5589 = vmatmul.f32.gmra.mxu0 %v2537
        %v5590 = vpop.f32.mrf.mxu0
        %v5591 = vadd.f32 %v5478, %v5590
        %5592 = vmatmul.f32.gmra.mxu0 %v2564
        %v5593 = vpop.f32.mrf.mxu0
        %v5594 = vadd.f32 %v5481, %v5593
        %5595 = vmatmul.f32.gmra.mxu0 %v2591
        %v5596 = vpop.f32.mrf.mxu0
        %v5597 = vadd.f32 %v5484, %v5596
        %5598 = vmatmul.f32.gmra.mxu0 %v2618
        %v5599 = vpop.f32.mrf.mxu0
        %v5600 = vadd.f32 %v5487, %v5599
        %5601 = vmatmul.f32.gmra.mxu0 %v2645
        %v5602 = vpop.f32.mrf.mxu0
        %v5603 = vadd.f32 %v5490, %v5602
        %5604 = vmatmul.f32.gmra.mxu0 %v2672
        %v5605 = vpop.f32.mrf.mxu0
        %v5606 = vadd.f32 %v5493, %v5605
        %5607 = vmatmul.f32.gmra.mxu0 %v2699
        %v5608 = vpop.f32.mrf.mxu0
        %v5609 = vadd.f32 %v5496, %v5608
        %5610 = vmatmul.f32.gmra.mxu0 %v2726
        %v5611 = vpop.f32.mrf.mxu0
        %v5612 = vadd.f32 %v5499, %v5611
        %5613 = vmatmul.f32.gmra.mxu0 %v2753
        %v5614 = vpop.f32.mrf.mxu0
        %v5615 = vadd.f32 %v5502, %v5614
        %5616 = vmatmul.f32.gmra.mxu0 %v2780
        %v5617 = vpop.f32.mrf.mxu0
        %v5618 = vadd.f32 %v5505, %v5617
        %5619 = vmatmul.f32.gmra.mxu0 %v2807
        %v5620 = vpop.f32.mrf.mxu0
        %v5621 = vadd.f32 %v5508, %v5620
        %5622 = vdwg.mxu0
        %5623 = vmatpush.msra.mxu0 %v3165
        %5624 = vmatpush.msra.mxu0 %v3164
        %5625 = vmatpush.msra.mxu0 %v3163
        %5626 = vmatpush.msra.mxu0 %v3162
        %5627 = vmatpush.msra.mxu0 %v3161
        %5628 = vmatpush.msra.mxu0 %v3160
        %5629 = vmatpush.msra.mxu0 %v3159
        %5630 = vmatpush.msra.mxu0 %v3158
        %5631 = vmatpush.msra.mxu0 %v3157
        %5632 = vmatpush.msra.mxu0 %v3156
        %5633 = vmatpush.msra.mxu0 %v3155
        %5634 = vmatpush.msra.mxu0 %v3154
        %5635 = vmatpush.msra.mxu0 %v3153
        %5636 = vmatpush.msra.mxu0 %v3152
        %5637 = vmatpush.msra.mxu0 %v3151
        %5638 = vmatpush.msra.mxu0 %v3150
        %5639 = vmatmul.f32.gmra.mxu0 %v1971
        %v5640 = vpop.f32.mrf.mxu0
        %v5641 = vadd.f32 %v5528, %v5640
        %5642 = vmatmul.f32.gmra.mxu0 %v1998
        %v5643 = vpop.f32.mrf.mxu0
        %v5644 = vadd.f32 %v5531, %v5643
        %5645 = vmatmul.f32.gmra.mxu0 %v2025
        %v5646 = vpop.f32.mrf.mxu0
        %v5647 = vadd.f32 %v5534, %v5646
        %5648 = vmatmul.f32.gmra.mxu0 %v2052
        %v5649 = vpop.f32.mrf.mxu0
        %v5650 = vadd.f32 %v5537, %v5649
        %5651 = vmatmul.f32.gmra.mxu0 %v2079
        %v5652 = vpop.f32.mrf.mxu0
        %v5653 = vadd.f32 %v5540, %v5652
        %5654 = vmatmul.f32.gmra.mxu0 %v2106
        %v5655 = vpop.f32.mrf.mxu0
        %v5656 = vadd.f32 %v5543, %v5655
        %5657 = vmatmul.f32.gmra.mxu0 %v2133
        %v5658 = vpop.f32.mrf.mxu0
        %v5659 = vadd.f32 %v5546, %v5658
        %5660 = vmatmul.f32.gmra.mxu0 %v2160
        %v5661 = vpop.f32.mrf.mxu0
        %v5662 = vadd.f32 %v5549, %v5661
        %5663 = vmatmul.f32.gmra.mxu0 %v2187
        %v5664 = vpop.f32.mrf.mxu0
        %v5665 = vadd.f32 %v5552, %v5664
        %5666 = vmatmul.f32.gmra.mxu0 %v2214
        %v5667 = vpop.f32.mrf.mxu0
        %v5668 = vadd.f32 %v5555, %v5667
        %5669 = vmatmul.f32.gmra.mxu0 %v2241
        %v5670 = vpop.f32.mrf.mxu0
        %v5671 = vadd.f32 %v5558, %v5670
        %5672 = vmatmul.f32.gmra.mxu0 %v2268
        %v5673 = vpop.f32.mrf.mxu0
        %v5674 = vadd.f32 %v5561, %v5673
        %5675 = vmatmul.f32.gmra.mxu0 %v2295
        %v5676 = vpop.f32.mrf.mxu0
        %v5677 = vadd.f32 %v5564, %v5676
        %5678 = vmatmul.f32.gmra.mxu0 %v2322
        %v5679 = vpop.f32.mrf.mxu0
        %v5680 = vadd.f32 %v5567, %v5679
        %5681 = vmatmul.f32.gmra.mxu0 %v2349
        %v5682 = vpop.f32.mrf.mxu0
        %v5683 = vadd.f32 %v5570, %v5682
        %5684 = vmatmul.f32.gmra.mxu0 %v2376
        %v5685 = vpop.f32.mrf.mxu0
        %v5686 = vadd.f32 %v5573, %v5685
        %5687 = vmatmul.f32.gmra.mxu0 %v2403
        %v5688 = vpop.f32.mrf.mxu0
        %v5689 = vadd.f32 %v5576, %v5688
        %5690 = vmatmul.f32.gmra.mxu0 %v2430
        %v5691 = vpop.f32.mrf.mxu0
        %v5692 = vadd.f32 %v5579, %v5691
        %5693 = vmatmul.f32.gmra.mxu0 %v2457
        %v5694 = vpop.f32.mrf.mxu0
        %v5695 = vadd.f32 %v5582, %v5694
        %5696 = vmatmul.f32.gmra.mxu0 %v2484
        %v5697 = vpop.f32.mrf.mxu0
        %v5698 = vadd.f32 %v5585, %v5697
        %5699 = vmatmul.f32.gmra.mxu0 %v2511
        %v5700 = vpop.f32.mrf.mxu0
        %v5701 = vadd.f32 %v5588, %v5700
        %5702 = vmatmul.f32.gmra.mxu0 %v2538
        %v5703 = vpop.f32.mrf.mxu0
        %v5704 = vadd.f32 %v5591, %v5703
        %5705 = vmatmul.f32.gmra.mxu0 %v2565
        %v5706 = vpop.f32.mrf.mxu0
        %v5707 = vadd.f32 %v5594, %v5706
        %5708 = vmatmul.f32.gmra.mxu0 %v2592
        %v5709 = vpop.f32.mrf.mxu0
        %v5710 = vadd.f32 %v5597, %v5709
        %5711 = vmatmul.f32.gmra.mxu0 %v2619
        %v5712 = vpop.f32.mrf.mxu0
        %v5713 = vadd.f32 %v5600, %v5712
        %5714 = vmatmul.f32.gmra.mxu0 %v2646
        %v5715 = vpop.f32.mrf.mxu0
        %v5716 = vadd.f32 %v5603, %v5715
        %5717 = vmatmul.f32.gmra.mxu0 %v2673
        %v5718 = vpop.f32.mrf.mxu0
        %v5719 = vadd.f32 %v5606, %v5718
        %5720 = vmatmul.f32.gmra.mxu0 %v2700
        %v5721 = vpop.f32.mrf.mxu0
        %v5722 = vadd.f32 %v5609, %v5721
        %5723 = vmatmul.f32.gmra.mxu0 %v2727
        %v5724 = vpop.f32.mrf.mxu0
        %v5725 = vadd.f32 %v5612, %v5724
        %5726 = vmatmul.f32.gmra.mxu0 %v2754
        %v5727 = vpop.f32.mrf.mxu0
        %v5728 = vadd.f32 %v5615, %v5727
        %5729 = vmatmul.f32.gmra.mxu0 %v2781
        %v5730 = vpop.f32.mrf.mxu0
        %v5731 = vadd.f32 %v5618, %v5730
        %5732 = vmatmul.f32.gmra.mxu0 %v2808
        %v5733 = vpop.f32.mrf.mxu0
        %v5734 = vadd.f32 %v5621, %v5733
        %5735 = vdwg.mxu0
        %5736 = vmatpush.msra.mxu0 %v3181
        %5737 = vmatpush.msra.mxu0 %v3180
        %5738 = vmatpush.msra.mxu0 %v3179
        %5739 = vmatpush.msra.mxu0 %v3178
        %5740 = vmatpush.msra.mxu0 %v3177
        %5741 = vmatpush.msra.mxu0 %v3176
        %5742 = vmatpush.msra.mxu0 %v3175
        %5743 = vmatpush.msra.mxu0 %v3174
        %5744 = vmatpush.msra.mxu0 %v3173
        %5745 = vmatpush.msra.mxu0 %v3172
        %5746 = vmatpush.msra.mxu0 %v3171
        %5747 = vmatpush.msra.mxu0 %v3170
        %5748 = vmatpush.msra.mxu0 %v3169
        %5749 = vmatpush.msra.mxu0 %v3168
        %5750 = vmatpush.msra.mxu0 %v3167
        %5751 = vmatpush.msra.mxu0 %v3166
        %5752 = vmatmul.f32.gmra.mxu0 %v1972
        %v5753 = vpop.f32.mrf.mxu0
        %v5754 = vadd.f32 %v5641, %v5753
        %5755 = vmatmul.f32.gmra.mxu0 %v1999
        %v5756 = vpop.f32.mrf.mxu0
        %v5757 = vadd.f32 %v5644, %v5756
        %5758 = vmatmul.f32.gmra.mxu0 %v2026
        %v5759 = vpop.f32.mrf.mxu0
        %v5760 = vadd.f32 %v5647, %v5759
        %5761 = vmatmul.f32.gmra.mxu0 %v2053
        %v5762 = vpop.f32.mrf.mxu0
        %v5763 = vadd.f32 %v5650, %v5762
        %5764 = vmatmul.f32.gmra.mxu0 %v2080
        %v5765 = vpop.f32.mrf.mxu0
        %v5766 = vadd.f32 %v5653, %v5765
        %5767 = vmatmul.f32.gmra.mxu0 %v2107
        %v5768 = vpop.f32.mrf.mxu0
        %v5769 = vadd.f32 %v5656, %v5768
        %5770 = vmatmul.f32.gmra.mxu0 %v2134
        %v5771 = vpop.f32.mrf.mxu0
        %v5772 = vadd.f32 %v5659, %v5771
        %5773 = vmatmul.f32.gmra.mxu0 %v2161
        %v5774 = vpop.f32.mrf.mxu0
        %v5775 = vadd.f32 %v5662, %v5774
        %5776 = vmatmul.f32.gmra.mxu0 %v2188
        %v5777 = vpop.f32.mrf.mxu0
        %v5778 = vadd.f32 %v5665, %v5777
        %5779 = vmatmul.f32.gmra.mxu0 %v2215
        %v5780 = vpop.f32.mrf.mxu0
        %v5781 = vadd.f32 %v5668, %v5780
        %5782 = vmatmul.f32.gmra.mxu0 %v2242
        %v5783 = vpop.f32.mrf.mxu0
        %v5784 = vadd.f32 %v5671, %v5783
        %5785 = vmatmul.f32.gmra.mxu0 %v2269
        %v5786 = vpop.f32.mrf.mxu0
        %v5787 = vadd.f32 %v5674, %v5786
        %5788 = vmatmul.f32.gmra.mxu0 %v2296
        %v5789 = vpop.f32.mrf.mxu0
        %v5790 = vadd.f32 %v5677, %v5789
        %5791 = vmatmul.f32.gmra.mxu0 %v2323
        %v5792 = vpop.f32.mrf.mxu0
        %v5793 = vadd.f32 %v5680, %v5792
        %5794 = vmatmul.f32.gmra.mxu0 %v2350
        %v5795 = vpop.f32.mrf.mxu0
        %v5796 = vadd.f32 %v5683, %v5795
        %5797 = vmatmul.f32.gmra.mxu0 %v2377
        %v5798 = vpop.f32.mrf.mxu0
        %v5799 = vadd.f32 %v5686, %v5798
        %5800 = vmatmul.f32.gmra.mxu0 %v2404
        %v5801 = vpop.f32.mrf.mxu0
        %v5802 = vadd.f32 %v5689, %v5801
        %5803 = vmatmul.f32.gmra.mxu0 %v2431
        %v5804 = vpop.f32.mrf.mxu0
        %v5805 = vadd.f32 %v5692, %v5804
        %5806 = vmatmul.f32.gmra.mxu0 %v2458
        %v5807 = vpop.f32.mrf.mxu0
        %v5808 = vadd.f32 %v5695, %v5807
        %5809 = vmatmul.f32.gmra.mxu0 %v2485
        %v5810 = vpop.f32.mrf.mxu0
        %v5811 = vadd.f32 %v5698, %v5810
        %5812 = vmatmul.f32.gmra.mxu0 %v2512
        %v5813 = vpop.f32.mrf.mxu0
        %v5814 = vadd.f32 %v5701, %v5813
        %5815 = vmatmul.f32.gmra.mxu0 %v2539
        %v5816 = vpop.f32.mrf.mxu0
        %v5817 = vadd.f32 %v5704, %v5816
        %5818 = vmatmul.f32.gmra.mxu0 %v2566
        %v5819 = vpop.f32.mrf.mxu0
        %v5820 = vadd.f32 %v5707, %v5819
        %5821 = vmatmul.f32.gmra.mxu0 %v2593
        %v5822 = vpop.f32.mrf.mxu0
        %v5823 = vadd.f32 %v5710, %v5822
        %5824 = vmatmul.f32.gmra.mxu0 %v2620
        %v5825 = vpop.f32.mrf.mxu0
        %v5826 = vadd.f32 %v5713, %v5825
        %5827 = vmatmul.f32.gmra.mxu0 %v2647
        %v5828 = vpop.f32.mrf.mxu0
        %v5829 = vadd.f32 %v5716, %v5828
        %5830 = vmatmul.f32.gmra.mxu0 %v2674
        %v5831 = vpop.f32.mrf.mxu0
        %v5832 = vadd.f32 %v5719, %v5831
        %5833 = vmatmul.f32.gmra.mxu0 %v2701
        %v5834 = vpop.f32.mrf.mxu0
        %v5835 = vadd.f32 %v5722, %v5834
        %5836 = vmatmul.f32.gmra.mxu0 %v2728
        %v5837 = vpop.f32.mrf.mxu0
        %v5838 = vadd.f32 %v5725, %v5837
        %5839 = vmatmul.f32.gmra.mxu0 %v2755
        %v5840 = vpop.f32.mrf.mxu0
        %v5841 = vadd.f32 %v5728, %v5840
        %5842 = vmatmul.f32.gmra.mxu0 %v2782
        %v5843 = vpop.f32.mrf.mxu0
        %v5844 = vadd.f32 %v5731, %v5843
        %5845 = vmatmul.f32.gmra.mxu0 %v2809
        %v5846 = vpop.f32.mrf.mxu0
        %v5847 = vadd.f32 %v5734, %v5846
        %5848 = vdwg.mxu0
        %5849 = vmatpush.msra.mxu0 %v3197
        %5850 = vmatpush.msra.mxu0 %v3196
        %5851 = vmatpush.msra.mxu0 %v3195
        %5852 = vmatpush.msra.mxu0 %v3194
        %5853 = vmatpush.msra.mxu0 %v3193
        %5854 = vmatpush.msra.mxu0 %v3192
        %5855 = vmatpush.msra.mxu0 %v3191
        %5856 = vmatpush.msra.mxu0 %v3190
        %5857 = vmatpush.msra.mxu0 %v3189
        %5858 = vmatpush.msra.mxu0 %v3188
        %5859 = vmatpush.msra.mxu0 %v3187
        %5860 = vmatpush.msra.mxu0 %v3186
        %5861 = vmatpush.msra.mxu0 %v3185
        %5862 = vmatpush.msra.mxu0 %v3184
        %5863 = vmatpush.msra.mxu0 %v3183
        %5864 = vmatpush.msra.mxu0 %v3182
        %5865 = vmatmul.f32.gmra.mxu0 %v1973
        %v5866 = vpop.f32.mrf.mxu0
        %v5867 = vadd.f32 %v5754, %v5866
        %5868 = vmatmul.f32.gmra.mxu0 %v2000
        %v5869 = vpop.f32.mrf.mxu0
        %v5870 = vadd.f32 %v5757, %v5869
        %5871 = vmatmul.f32.gmra.mxu0 %v2027
        %v5872 = vpop.f32.mrf.mxu0
        %v5873 = vadd.f32 %v5760, %v5872
        %5874 = vmatmul.f32.gmra.mxu0 %v2054
        %v5875 = vpop.f32.mrf.mxu0
        %v5876 = vadd.f32 %v5763, %v5875
        %5877 = vmatmul.f32.gmra.mxu0 %v2081
        %v5878 = vpop.f32.mrf.mxu0
        %v5879 = vadd.f32 %v5766, %v5878
        %5880 = vmatmul.f32.gmra.mxu0 %v2108
        %v5881 = vpop.f32.mrf.mxu0
        %v5882 = vadd.f32 %v5769, %v5881
        %5883 = vmatmul.f32.gmra.mxu0 %v2135
        %v5884 = vpop.f32.mrf.mxu0
        %v5885 = vadd.f32 %v5772, %v5884
        %5886 = vmatmul.f32.gmra.mxu0 %v2162
        %v5887 = vpop.f32.mrf.mxu0
        %v5888 = vadd.f32 %v5775, %v5887
        %5889 = vmatmul.f32.gmra.mxu0 %v2189
        %v5890 = vpop.f32.mrf.mxu0
        %v5891 = vadd.f32 %v5778, %v5890
        %5892 = vmatmul.f32.gmra.mxu0 %v2216
        %v5893 = vpop.f32.mrf.mxu0
        %v5894 = vadd.f32 %v5781, %v5893
        %5895 = vmatmul.f32.gmra.mxu0 %v2243
        %v5896 = vpop.f32.mrf.mxu0
        %v5897 = vadd.f32 %v5784, %v5896
        %5898 = vmatmul.f32.gmra.mxu0 %v2270
        %v5899 = vpop.f32.mrf.mxu0
        %v5900 = vadd.f32 %v5787, %v5899
        %5901 = vmatmul.f32.gmra.mxu0 %v2297
        %v5902 = vpop.f32.mrf.mxu0
        %v5903 = vadd.f32 %v5790, %v5902
        %5904 = vmatmul.f32.gmra.mxu0 %v2324
        %v5905 = vpop.f32.mrf.mxu0
        %v5906 = vadd.f32 %v5793, %v5905
        %5907 = vmatmul.f32.gmra.mxu0 %v2351
        %v5908 = vpop.f32.mrf.mxu0
        %v5909 = vadd.f32 %v5796, %v5908
        %5910 = vmatmul.f32.gmra.mxu0 %v2378
        %v5911 = vpop.f32.mrf.mxu0
        %v5912 = vadd.f32 %v5799, %v5911
        %5913 = vmatmul.f32.gmra.mxu0 %v2405
        %v5914 = vpop.f32.mrf.mxu0
        %v5915 = vadd.f32 %v5802, %v5914
        %5916 = vmatmul.f32.gmra.mxu0 %v2432
        %v5917 = vpop.f32.mrf.mxu0
        %v5918 = vadd.f32 %v5805, %v5917
        %5919 = vmatmul.f32.gmra.mxu0 %v2459
        %v5920 = vpop.f32.mrf.mxu0
        %v5921 = vadd.f32 %v5808, %v5920
        %5922 = vmatmul.f32.gmra.mxu0 %v2486
        %v5923 = vpop.f32.mrf.mxu0
        %v5924 = vadd.f32 %v5811, %v5923
        %5925 = vmatmul.f32.gmra.mxu0 %v2513
        %v5926 = vpop.f32.mrf.mxu0
        %v5927 = vadd.f32 %v5814, %v5926
        %5928 = vmatmul.f32.gmra.mxu0 %v2540
        %v5929 = vpop.f32.mrf.mxu0
        %v5930 = vadd.f32 %v5817, %v5929
        %5931 = vmatmul.f32.gmra.mxu0 %v2567
        %v5932 = vpop.f32.mrf.mxu0
        %v5933 = vadd.f32 %v5820, %v5932
        %5934 = vmatmul.f32.gmra.mxu0 %v2594
        %v5935 = vpop.f32.mrf.mxu0
        %v5936 = vadd.f32 %v5823, %v5935
        %5937 = vmatmul.f32.gmra.mxu0 %v2621
        %v5938 = vpop.f32.mrf.mxu0
        %v5939 = vadd.f32 %v5826, %v5938
        %5940 = vmatmul.f32.gmra.mxu0 %v2648
        %v5941 = vpop.f32.mrf.mxu0
        %v5942 = vadd.f32 %v5829, %v5941
        %5943 = vmatmul.f32.gmra.mxu0 %v2675
        %v5944 = vpop.f32.mrf.mxu0
        %v5945 = vadd.f32 %v5832, %v5944
        %5946 = vmatmul.f32.gmra.mxu0 %v2702
        %v5947 = vpop.f32.mrf.mxu0
        %v5948 = vadd.f32 %v5835, %v5947
        %5949 = vmatmul.f32.gmra.mxu0 %v2729
        %v5950 = vpop.f32.mrf.mxu0
        %v5951 = vadd.f32 %v5838, %v5950
        %5952 = vmatmul.f32.gmra.mxu0 %v2756
        %v5953 = vpop.f32.mrf.mxu0
        %v5954 = vadd.f32 %v5841, %v5953
        %5955 = vmatmul.f32.gmra.mxu0 %v2783
        %v5956 = vpop.f32.mrf.mxu0
        %v5957 = vadd.f32 %v5844, %v5956
        %5958 = vmatmul.f32.gmra.mxu0 %v2810
        %v5959 = vpop.f32.mrf.mxu0
        %v5960 = vadd.f32 %v5847, %v5959
        %5961 = vdwg.mxu0
        %5962 = vmatpush.msra.mxu0 %v3213
        %5963 = vmatpush.msra.mxu0 %v3212
        %5964 = vmatpush.msra.mxu0 %v3211
        %5965 = vmatpush.msra.mxu0 %v3210
        %5966 = vmatpush.msra.mxu0 %v3209
        %5967 = vmatpush.msra.mxu0 %v3208
        %5968 = vmatpush.msra.mxu0 %v3207
        %5969 = vmatpush.msra.mxu0 %v3206
        %5970 = vmatpush.msra.mxu0 %v3205
        %5971 = vmatpush.msra.mxu0 %v3204
        %5972 = vmatpush.msra.mxu0 %v3203
        %5973 = vmatpush.msra.mxu0 %v3202
        %5974 = vmatpush.msra.mxu0 %v3201
        %5975 = vmatpush.msra.mxu0 %v3200
        %5976 = vmatpush.msra.mxu0 %v3199
        %5977 = vmatpush.msra.mxu0 %v3198
        %5978 = vmatmul.f32.gmra.mxu0 %v1974
        %v5979 = vpop.f32.mrf.mxu0
        %v5980 = vadd.f32 %v5867, %v5979
        %5981 = vmatmul.f32.gmra.mxu0 %v2001
        %v5982 = vpop.f32.mrf.mxu0
        %v5983 = vadd.f32 %v5870, %v5982
        %5984 = vmatmul.f32.gmra.mxu0 %v2028
        %v5985 = vpop.f32.mrf.mxu0
        %v5986 = vadd.f32 %v5873, %v5985
        %5987 = vmatmul.f32.gmra.mxu0 %v2055
        %v5988 = vpop.f32.mrf.mxu0
        %v5989 = vadd.f32 %v5876, %v5988
        %5990 = vmatmul.f32.gmra.mxu0 %v2082
        %v5991 = vpop.f32.mrf.mxu0
        %v5992 = vadd.f32 %v5879, %v5991
        %5993 = vmatmul.f32.gmra.mxu0 %v2109
        %v5994 = vpop.f32.mrf.mxu0
        %v5995 = vadd.f32 %v5882, %v5994
        %5996 = vmatmul.f32.gmra.mxu0 %v2136
        %v5997 = vpop.f32.mrf.mxu0
        %v5998 = vadd.f32 %v5885, %v5997
        %5999 = vmatmul.f32.gmra.mxu0 %v2163
        %v6000 = vpop.f32.mrf.mxu0
        %v6001 = vadd.f32 %v5888, %v6000
        %6002 = vmatmul.f32.gmra.mxu0 %v2190
        %v6003 = vpop.f32.mrf.mxu0
        %v6004 = vadd.f32 %v5891, %v6003
        %6005 = vmatmul.f32.gmra.mxu0 %v2217
        %v6006 = vpop.f32.mrf.mxu0
        %v6007 = vadd.f32 %v5894, %v6006
        %6008 = vmatmul.f32.gmra.mxu0 %v2244
        %v6009 = vpop.f32.mrf.mxu0
        %v6010 = vadd.f32 %v5897, %v6009
        %6011 = vmatmul.f32.gmra.mxu0 %v2271
        %v6012 = vpop.f32.mrf.mxu0
        %v6013 = vadd.f32 %v5900, %v6012
        %6014 = vmatmul.f32.gmra.mxu0 %v2298
        %v6015 = vpop.f32.mrf.mxu0
        %v6016 = vadd.f32 %v5903, %v6015
        %6017 = vmatmul.f32.gmra.mxu0 %v2325
        %v6018 = vpop.f32.mrf.mxu0
        %v6019 = vadd.f32 %v5906, %v6018
        %6020 = vmatmul.f32.gmra.mxu0 %v2352
        %v6021 = vpop.f32.mrf.mxu0
        %v6022 = vadd.f32 %v5909, %v6021
        %6023 = vmatmul.f32.gmra.mxu0 %v2379
        %v6024 = vpop.f32.mrf.mxu0
        %v6025 = vadd.f32 %v5912, %v6024
        %6026 = vmatmul.f32.gmra.mxu0 %v2406
        %v6027 = vpop.f32.mrf.mxu0
        %v6028 = vadd.f32 %v5915, %v6027
        %6029 = vmatmul.f32.gmra.mxu0 %v2433
        %v6030 = vpop.f32.mrf.mxu0
        %v6031 = vadd.f32 %v5918, %v6030
        %6032 = vmatmul.f32.gmra.mxu0 %v2460
        %v6033 = vpop.f32.mrf.mxu0
        %v6034 = vadd.f32 %v5921, %v6033
        %6035 = vmatmul.f32.gmra.mxu0 %v2487
        %v6036 = vpop.f32.mrf.mxu0
        %v6037 = vadd.f32 %v5924, %v6036
        %6038 = vmatmul.f32.gmra.mxu0 %v2514
        %v6039 = vpop.f32.mrf.mxu0
        %v6040 = vadd.f32 %v5927, %v6039
        %6041 = vmatmul.f32.gmra.mxu0 %v2541
        %v6042 = vpop.f32.mrf.mxu0
        %v6043 = vadd.f32 %v5930, %v6042
        %6044 = vmatmul.f32.gmra.mxu0 %v2568
        %v6045 = vpop.f32.mrf.mxu0
        %v6046 = vadd.f32 %v5933, %v6045
        %6047 = vmatmul.f32.gmra.mxu0 %v2595
        %v6048 = vpop.f32.mrf.mxu0
        %v6049 = vadd.f32 %v5936, %v6048
        %6050 = vmatmul.f32.gmra.mxu0 %v2622
        %v6051 = vpop.f32.mrf.mxu0
        %v6052 = vadd.f32 %v5939, %v6051
        %6053 = vmatmul.f32.gmra.mxu0 %v2649
        %v6054 = vpop.f32.mrf.mxu0
        %v6055 = vadd.f32 %v5942, %v6054
        %6056 = vmatmul.f32.gmra.mxu0 %v2676
        %v6057 = vpop.f32.mrf.mxu0
        %v6058 = vadd.f32 %v5945, %v6057
        %6059 = vmatmul.f32.gmra.mxu0 %v2703
        %v6060 = vpop.f32.mrf.mxu0
        %v6061 = vadd.f32 %v5948, %v6060
        %6062 = vmatmul.f32.gmra.mxu0 %v2730
        %v6063 = vpop.f32.mrf.mxu0
        %v6064 = vadd.f32 %v5951, %v6063
        %6065 = vmatmul.f32.gmra.mxu0 %v2757
        %v6066 = vpop.f32.mrf.mxu0
        %v6067 = vadd.f32 %v5954, %v6066
        %6068 = vmatmul.f32.gmra.mxu0 %v2784
        %v6069 = vpop.f32.mrf.mxu0
        %v6070 = vadd.f32 %v5957, %v6069
        %6071 = vmatmul.f32.gmra.mxu0 %v2811
        %v6072 = vpop.f32.mrf.mxu0
        %v6073 = vadd.f32 %v5960, %v6072
        %6074 = vdwg.mxu0
        %6075 = vmatpush.msra.mxu0 %v3229
        %6076 = vmatpush.msra.mxu0 %v3228
        %6077 = vmatpush.msra.mxu0 %v3227
        %6078 = vmatpush.msra.mxu0 %v3226
        %6079 = vmatpush.msra.mxu0 %v3225
        %6080 = vmatpush.msra.mxu0 %v3224
        %6081 = vmatpush.msra.mxu0 %v3223
        %6082 = vmatpush.msra.mxu0 %v3222
        %6083 = vmatpush.msra.mxu0 %v3221
        %6084 = vmatpush.msra.mxu0 %v3220
        %6085 = vmatpush.msra.mxu0 %v3219
        %6086 = vmatpush.msra.mxu0 %v3218
        %6087 = vmatpush.msra.mxu0 %v3217
        %6088 = vmatpush.msra.mxu0 %v3216
        %6089 = vmatpush.msra.mxu0 %v3215
        %6090 = vmatpush.msra.mxu0 %v3214
        %6091 = vmatmul.f32.gmra.mxu0 %v1975
        %v6092 = vpop.f32.mrf.mxu0
        %v6093 = vadd.f32 %v5980, %v6092
        %6094 = vmatmul.f32.gmra.mxu0 %v2002
        %v6095 = vpop.f32.mrf.mxu0
        %v6096 = vadd.f32 %v5983, %v6095
        %6097 = vmatmul.f32.gmra.mxu0 %v2029
        %v6098 = vpop.f32.mrf.mxu0
        %v6099 = vadd.f32 %v5986, %v6098
        %6100 = vmatmul.f32.gmra.mxu0 %v2056
        %v6101 = vpop.f32.mrf.mxu0
        %v6102 = vadd.f32 %v5989, %v6101
        %6103 = vmatmul.f32.gmra.mxu0 %v2083
        %v6104 = vpop.f32.mrf.mxu0
        %v6105 = vadd.f32 %v5992, %v6104
        %6106 = vmatmul.f32.gmra.mxu0 %v2110
        %v6107 = vpop.f32.mrf.mxu0
        %v6108 = vadd.f32 %v5995, %v6107
        %6109 = vmatmul.f32.gmra.mxu0 %v2137
        %v6110 = vpop.f32.mrf.mxu0
        %v6111 = vadd.f32 %v5998, %v6110
        %6112 = vmatmul.f32.gmra.mxu0 %v2164
        %v6113 = vpop.f32.mrf.mxu0
        %v6114 = vadd.f32 %v6001, %v6113
        %6115 = vmatmul.f32.gmra.mxu0 %v2191
        %v6116 = vpop.f32.mrf.mxu0
        %v6117 = vadd.f32 %v6004, %v6116
        %6118 = vmatmul.f32.gmra.mxu0 %v2218
        %v6119 = vpop.f32.mrf.mxu0
        %v6120 = vadd.f32 %v6007, %v6119
        %6121 = vmatmul.f32.gmra.mxu0 %v2245
        %v6122 = vpop.f32.mrf.mxu0
        %v6123 = vadd.f32 %v6010, %v6122
        %6124 = vmatmul.f32.gmra.mxu0 %v2272
        %v6125 = vpop.f32.mrf.mxu0
        %v6126 = vadd.f32 %v6013, %v6125
        %6127 = vmatmul.f32.gmra.mxu0 %v2299
        %v6128 = vpop.f32.mrf.mxu0
        %v6129 = vadd.f32 %v6016, %v6128
        %6130 = vmatmul.f32.gmra.mxu0 %v2326
        %v6131 = vpop.f32.mrf.mxu0
        %v6132 = vadd.f32 %v6019, %v6131
        %6133 = vmatmul.f32.gmra.mxu0 %v2353
        %v6134 = vpop.f32.mrf.mxu0
        %v6135 = vadd.f32 %v6022, %v6134
        %6136 = vmatmul.f32.gmra.mxu0 %v2380
        %v6137 = vpop.f32.mrf.mxu0
        %v6138 = vadd.f32 %v6025, %v6137
        %6139 = vmatmul.f32.gmra.mxu0 %v2407
        %v6140 = vpop.f32.mrf.mxu0
        %v6141 = vadd.f32 %v6028, %v6140
        %6142 = vmatmul.f32.gmra.mxu0 %v2434
        %v6143 = vpop.f32.mrf.mxu0
        %v6144 = vadd.f32 %v6031, %v6143
        %6145 = vmatmul.f32.gmra.mxu0 %v2461
        %v6146 = vpop.f32.mrf.mxu0
        %v6147 = vadd.f32 %v6034, %v6146
        %6148 = vmatmul.f32.gmra.mxu0 %v2488
        %v6149 = vpop.f32.mrf.mxu0
        %v6150 = vadd.f32 %v6037, %v6149
        %6151 = vmatmul.f32.gmra.mxu0 %v2515
        %v6152 = vpop.f32.mrf.mxu0
        %v6153 = vadd.f32 %v6040, %v6152
        %6154 = vmatmul.f32.gmra.mxu0 %v2542
        %v6155 = vpop.f32.mrf.mxu0
        %v6156 = vadd.f32 %v6043, %v6155
        %6157 = vmatmul.f32.gmra.mxu0 %v2569
        %v6158 = vpop.f32.mrf.mxu0
        %v6159 = vadd.f32 %v6046, %v6158
        %6160 = vmatmul.f32.gmra.mxu0 %v2596
        %v6161 = vpop.f32.mrf.mxu0
        %v6162 = vadd.f32 %v6049, %v6161
        %6163 = vmatmul.f32.gmra.mxu0 %v2623
        %v6164 = vpop.f32.mrf.mxu0
        %v6165 = vadd.f32 %v6052, %v6164
        %6166 = vmatmul.f32.gmra.mxu0 %v2650
        %v6167 = vpop.f32.mrf.mxu0
        %v6168 = vadd.f32 %v6055, %v6167
        %6169 = vmatmul.f32.gmra.mxu0 %v2677
        %v6170 = vpop.f32.mrf.mxu0
        %v6171 = vadd.f32 %v6058, %v6170
        %6172 = vmatmul.f32.gmra.mxu0 %v2704
        %v6173 = vpop.f32.mrf.mxu0
        %v6174 = vadd.f32 %v6061, %v6173
        %6175 = vmatmul.f32.gmra.mxu0 %v2731
        %v6176 = vpop.f32.mrf.mxu0
        %v6177 = vadd.f32 %v6064, %v6176
        %6178 = vmatmul.f32.gmra.mxu0 %v2758
        %v6179 = vpop.f32.mrf.mxu0
        %v6180 = vadd.f32 %v6067, %v6179
        %6181 = vmatmul.f32.gmra.mxu0 %v2785
        %v6182 = vpop.f32.mrf.mxu0
        %v6183 = vadd.f32 %v6070, %v6182
        %6184 = vmatmul.f32.gmra.mxu0 %v2812
        %v6185 = vpop.f32.mrf.mxu0
        %v6186 = vadd.f32 %v6073, %v6185
        %6187 = vdwg.mxu0
        %6188 = vmatpush.msra.mxu0 %v3245
        %6189 = vmatpush.msra.mxu0 %v3244
        %6190 = vmatpush.msra.mxu0 %v3243
        %6191 = vmatpush.msra.mxu0 %v3242
        %6192 = vmatpush.msra.mxu0 %v3241
        %6193 = vmatpush.msra.mxu0 %v3240
        %6194 = vmatpush.msra.mxu0 %v3239
        %6195 = vmatpush.msra.mxu0 %v3238
        %6196 = vmatpush.msra.mxu0 %v3237
        %6197 = vmatpush.msra.mxu0 %v3236
        %6198 = vmatpush.msra.mxu0 %v3235
        %6199 = vmatpush.msra.mxu0 %v3234
        %6200 = vmatpush.msra.mxu0 %v3233
        %6201 = vmatpush.msra.mxu0 %v3232
        %6202 = vmatpush.msra.mxu0 %v3231
        %6203 = vmatpush.msra.mxu0 %v3230
        %6204 = vmatmul.f32.gmra.mxu0 %v1976
        %v6205 = vpop.f32.mrf.mxu0
        %v6206 = vadd.f32 %v6093, %v6205
        %6207 = vmatmul.f32.gmra.mxu0 %v2003
        %v6208 = vpop.f32.mrf.mxu0
        %v6209 = vadd.f32 %v6096, %v6208
        %6210 = vmatmul.f32.gmra.mxu0 %v2030
        %v6211 = vpop.f32.mrf.mxu0
        %v6212 = vadd.f32 %v6099, %v6211
        %6213 = vmatmul.f32.gmra.mxu0 %v2057
        %v6214 = vpop.f32.mrf.mxu0
        %v6215 = vadd.f32 %v6102, %v6214
        %6216 = vmatmul.f32.gmra.mxu0 %v2084
        %v6217 = vpop.f32.mrf.mxu0
        %v6218 = vadd.f32 %v6105, %v6217
        %6219 = vmatmul.f32.gmra.mxu0 %v2111
        %v6220 = vpop.f32.mrf.mxu0
        %v6221 = vadd.f32 %v6108, %v6220
        %6222 = vmatmul.f32.gmra.mxu0 %v2138
        %v6223 = vpop.f32.mrf.mxu0
        %v6224 = vadd.f32 %v6111, %v6223
        %6225 = vmatmul.f32.gmra.mxu0 %v2165
        %v6226 = vpop.f32.mrf.mxu0
        %v6227 = vadd.f32 %v6114, %v6226
        %6228 = vmatmul.f32.gmra.mxu0 %v2192
        %v6229 = vpop.f32.mrf.mxu0
        %v6230 = vadd.f32 %v6117, %v6229
        %6231 = vmatmul.f32.gmra.mxu0 %v2219
        %v6232 = vpop.f32.mrf.mxu0
        %v6233 = vadd.f32 %v6120, %v6232
        %6234 = vmatmul.f32.gmra.mxu0 %v2246
        %v6235 = vpop.f32.mrf.mxu0
        %v6236 = vadd.f32 %v6123, %v6235
        %6237 = vmatmul.f32.gmra.mxu0 %v2273
        %v6238 = vpop.f32.mrf.mxu0
        %v6239 = vadd.f32 %v6126, %v6238
        %6240 = vmatmul.f32.gmra.mxu0 %v2300
        %v6241 = vpop.f32.mrf.mxu0
        %v6242 = vadd.f32 %v6129, %v6241
        %6243 = vmatmul.f32.gmra.mxu0 %v2327
        %v6244 = vpop.f32.mrf.mxu0
        %v6245 = vadd.f32 %v6132, %v6244
        %6246 = vmatmul.f32.gmra.mxu0 %v2354
        %v6247 = vpop.f32.mrf.mxu0
        %v6248 = vadd.f32 %v6135, %v6247
        %6249 = vmatmul.f32.gmra.mxu0 %v2381
        %v6250 = vpop.f32.mrf.mxu0
        %v6251 = vadd.f32 %v6138, %v6250
        %6252 = vmatmul.f32.gmra.mxu0 %v2408
        %v6253 = vpop.f32.mrf.mxu0
        %v6254 = vadd.f32 %v6141, %v6253
        %6255 = vmatmul.f32.gmra.mxu0 %v2435
        %v6256 = vpop.f32.mrf.mxu0
        %v6257 = vadd.f32 %v6144, %v6256
        %6258 = vmatmul.f32.gmra.mxu0 %v2462
        %v6259 = vpop.f32.mrf.mxu0
        %v6260 = vadd.f32 %v6147, %v6259
        %6261 = vmatmul.f32.gmra.mxu0 %v2489
        %v6262 = vpop.f32.mrf.mxu0
        %v6263 = vadd.f32 %v6150, %v6262
        %6264 = vmatmul.f32.gmra.mxu0 %v2516
        %v6265 = vpop.f32.mrf.mxu0
        %v6266 = vadd.f32 %v6153, %v6265
        %6267 = vmatmul.f32.gmra.mxu0 %v2543
        %v6268 = vpop.f32.mrf.mxu0
        %v6269 = vadd.f32 %v6156, %v6268
        %6270 = vmatmul.f32.gmra.mxu0 %v2570
        %v6271 = vpop.f32.mrf.mxu0
        %v6272 = vadd.f32 %v6159, %v6271
        %6273 = vmatmul.f32.gmra.mxu0 %v2597
        %v6274 = vpop.f32.mrf.mxu0
        %v6275 = vadd.f32 %v6162, %v6274
        %6276 = vmatmul.f32.gmra.mxu0 %v2624
        %v6277 = vpop.f32.mrf.mxu0
        %v6278 = vadd.f32 %v6165, %v6277
        %6279 = vmatmul.f32.gmra.mxu0 %v2651
        %v6280 = vpop.f32.mrf.mxu0
        %v6281 = vadd.f32 %v6168, %v6280
        %6282 = vmatmul.f32.gmra.mxu0 %v2678
        %v6283 = vpop.f32.mrf.mxu0
        %v6284 = vadd.f32 %v6171, %v6283
        %6285 = vmatmul.f32.gmra.mxu0 %v2705
        %v6286 = vpop.f32.mrf.mxu0
        %v6287 = vadd.f32 %v6174, %v6286
        %6288 = vmatmul.f32.gmra.mxu0 %v2732
        %v6289 = vpop.f32.mrf.mxu0
        %v6290 = vadd.f32 %v6177, %v6289
        %6291 = vmatmul.f32.gmra.mxu0 %v2759
        %v6292 = vpop.f32.mrf.mxu0
        %v6293 = vadd.f32 %v6180, %v6292
        %6294 = vmatmul.f32.gmra.mxu0 %v2786
        %v6295 = vpop.f32.mrf.mxu0
        %v6296 = vadd.f32 %v6183, %v6295
        %6297 = vmatmul.f32.gmra.mxu0 %v2813
        %v6298 = vpop.f32.mrf.mxu0
        %v6299 = vadd.f32 %v6186, %v6298
        %6300 = vdwg.mxu0
        %6301 = vst [vmem:[%s186] sm:$0xff] %v6206
        %6302 = vst [vmem:[%s186 + $0x8] sm:$0xff] %v6209
        %6303 = vst [vmem:[%s186 + $0x10] sm:$0xff] %v6212
        %6304 = vst [vmem:[%s186 + $0x18] sm:$0xff] %v6215
        %6305 = vst [vmem:[%s186 + $0x20] sm:$0xff] %v6218
        %6306 = vst [vmem:[%s186 + $0x28] sm:$0xff] %v6221
        %6307 = vst [vmem:[%s186 + $0x30] sm:$0xff] %v6224
        %6308 = vst [vmem:[%s186 + $0x38] sm:$0xff] %v6227
        %6309 = vst [vmem:[%s186 + $0x40] sm:$0xff] %v6230
        %6310 = vst [vmem:[%s186 + $0x48] sm:$0xff] %v6233
        %6311 = vst [vmem:[%s186 + $0x50] sm:$0xff] %v6236
        %6312 = vst [vmem:[%s186 + $0x58] sm:$0xff] %v6239
        %6313 = vst [vmem:[%s186 + $0x60] sm:$0xff] %v6242
        %6314 = vst [vmem:[%s186 + $0x68] sm:$0xff] %v6245
        %6315 = vst [vmem:[%s186 + $0x70] sm:$0xff] %v6248
        %6316 = vst [vmem:[%s186 + $0x78] sm:$0xff] %v6251
        %6317 = vst [vmem:[%s186 + $0x80] sm:$0xff] %v6254
        %6318 = vst [vmem:[%s186 + $0x88] sm:$0xff] %v6257
        %6319 = vst [vmem:[%s186 + $0x90] sm:$0xff] %v6260
        %6320 = vst [vmem:[%s186 + $0x98] sm:$0xff] %v6263
        %6321 = vst [vmem:[%s186 + $0xa0] sm:$0xff] %v6266
        %6322 = vst [vmem:[%s186 + $0xa8] sm:$0xff] %v6269
        %6323 = vst [vmem:[%s186 + $0xb0] sm:$0xff] %v6272
        %6324 = vst [vmem:[%s186 + $0xb8] sm:$0xff] %v6275
        %6325 = vst [vmem:[%s186 + $0xc0] sm:$0xff] %v6278
        %6326 = vst [vmem:[%s186 + $0xc8] sm:$0xff] %v6281
        %6327 = vst [vmem:[%s186 + $0xd0] sm:$0xff] %v6284
        %6328 = vst [vmem:[%s186 + $0xd8] sm:$0xff] %v6287
        %6329 = vst [vmem:[%s186 + $0xe0] sm:$0xff] %v6290
        %6330 = vst [vmem:[%s186 + $0xe8] sm:$0xff] %v6293
        %6331 = vst [vmem:[%s186 + $0xf0] sm:$0xff] %v6296
        %6332 = vst [vmem:[%s186 + $0xf8] sm:$0xff] %v6299
        %s6333 = sand.u32 %s116, 1
        %s6334 = scalar_lea.sflag [#allocation4], %s6333
        %s6335 = sand.u32 %s116, 1
        %s6336 = smul.addr %s6335, 256
        %s6337 = scalar_lea.vmem [#allocation3], %s6336
        // Predicated region
        $region33: #{tpu_custom_call.1} parent=31 // pred_check
          %p6338 = pneg %p126
        $region34: #{tpu_custom_call.1} parent=31 // pred_check_branch
          %6340 = sbr.rel (%p6338) target = $region36
        $region35: #{tpu_custom_call.1} parent=31 // pred_region
          %s6341 = smul.u32 32, %s24
          %6343 = vsyncadd %s6334, 0
          %s6344 = smul.addr %s23, 32
          %s6345 = sadd.s32 %s6341, %s6344
          %s6346 = smul.addr %s22, 256
          %s6347 = sadd.s32 %s6345, %s6346
          %s6348 = smul.addr %s6347, 8
          %s6349 = scalar_lea.hbm %s3, %s6348
          %s6350 = sshll.u32 %s6337, 4
          %s6351 = int_to_ptr.vmem [resolvable:$true] %s6350
          %s6352 = sshll.u32 %s6349, 4
          %s6353 = int_to_ptr.hbm [resolvable:$true] %s6352
          %6358 = dma.vmem_to_hbm [thread:$0]  %s6351, 4096, %s6353, %s6334, 128, 128, 8
        $region36: #{tpu_custom_call.1} parent=31 // pred_fallthru
          _
      $region32: #{tpu_custom_call.1} parent=5 // pred_fallthru
        _
      %p6359 = scmp.le.s32.totalorder 2, %s12
      // Predicated region
      $region37: #{tpu_custom_call.1} parent=5 // pred_check
        %p6360 = pneg %p6359
      $region38: #{tpu_custom_call.1} parent=5 // pred_check_branch
        %6362 = sbr.rel (%p6360) target = $region40
      $region39: #{tpu_custom_call.1} parent=5 // pred_region
        %s6363 = ssub.s32 %s12, 2
        // Predicated region
        $region41: #{tpu_custom_call.1} parent=39 // pred_check
          %p6364 = pneg %p132
        $region42: #{tpu_custom_call.1} parent=39 // pred_check_branch
          %6366 = sbr.rel (%p6364) target = $region44
        $region43: #{tpu_custom_call.1} parent=39 // pred_region
          %s6367 = sand.u32 %s117, 1
          %s6368 = scalar_lea.sflag [#allocation4], %s6367
          %s6369 = sand.u32 %s117, 1
          %s6370 = smul.addr %s6369, 256
          %s6371 = scalar_lea.vmem [#allocation3], %s6370
          %6373 = dma.done %s6368, 4096
        $region44: #{tpu_custom_call.1} parent=39 // pred_fallthru
          _
      $region40: #{tpu_custom_call.1} parent=5 // pred_fallthru
        _
    $region6: #{tpu_custom_call.1} parent=1 // loop_footer
      %s16 = sadd.s32 1, %s12
    $region7: #{tpu_custom_call.1} parent=1 // loop_footer_branch
      %11 = sbr.rel target = $region3
    $region8: #{tpu_custom_call.1} parent=1 // loop_exit
      _
    %6374 = vsyncpa [#allocation4], 1
    %s6375 = scalar_lea.sflag [#allocation4], 1
    %6376 = vsyncpa %s6375, 1

</llo_original>
